<compile_context>
chip_gen: v5e
topology: v5e:2x2
jax: 0.10.0
libtpu: 0.0.40
codegen_flags: <defaults>
</compile_context>

<pallas_src>
import functools

import jax
import jax.numpy as jnp
from jax.experimental import pallas as pl
from jax.experimental.pallas import tpu as pltpu


# ----------------------------------------------------------------------------
# Fused ResBlock kernel (channels on sublanes, spatial on lanes)
# ----------------------------------------------------------------------------
def _im2col_3x3(xp, H, W):
    """xp: (C, H+2, W+2) zero-padded tile -> (9*C, H*W) patch matrix.

    Row order is (kh, kw, c), matching w_hwio.reshape(9*C, Cout).T columns."""
    C = xp.shape[0]
    taps = []
    for kh in range(3):
        for kw in range(3):
            taps.append(xp[:, kh:kh + H, kw:kw + W].reshape(C, H * W))
    return jnp.concatenate(taps, axis=0)


def _resblock_body(x_ref, w1_ref, b1_ref, w2_ref, b2_ref, wd_ref, bd_ref,
                   o_ref, xp_ref, rp_ref, compute_dtype):
    nb, cin = x_ref.shape[0], x_ref.shape[1]
    cout = o_ref.shape[1]
    H = xp_ref.shape[1] - 2
    W = xp_ref.shape[2] - 2
    has_ds = wd_ref is not None
    f32 = jnp.float32

    def mm(w_ref2, a):
        w = w_ref2[...]                       # already compute_dtype (wrapper cast)
        if compute_dtype != jnp.float32:
            a = a.astype(compute_dtype)
        return jnp.dot(w, a, preferred_element_type=jnp.float32)

    # Zero only the top/bottom halo rows, once per grid step.  The left/right
    # pad columns are written together with the interior below, and the
    # interior is fully rewritten every image, so no whole-scratch zero fill
    # and no reliance on scratch contents from other grid steps / cores.
    zrow_x = jnp.zeros((cin, 1, W + 2), f32)
    xp_ref[:, 0:1, :] = zrow_x
    xp_ref[:, H + 1:H + 2, :] = zrow_x
    zrow_r = jnp.zeros((cout, 1, W + 2), f32)
    rp_ref[:, 0:1, :] = zrow_r
    rp_ref[:, H + 1:H + 2, :] = zrow_r

    zlr_x = jnp.zeros((cin, H, 1), f32)       # hoisted (no broadcast CSE in loops)
    zlr_r = jnp.zeros((cout, H, 1), f32)

    for b in range(nb):                       # static in-kernel batch fold
        x = x_ref[b].astype(f32)              # (Cin, H*W), lane-dense load

        # relu(pad0(x)) == pad0(relu(x)): without a downsample branch store
        # relu(x) directly and skip the relu on the 9x larger col matrix.
        xi = x if has_ds else jnp.maximum(x, 0.0)
        xp_ref[:, 1:H + 1, :] = jnp.concatenate(
            [zlr_x, xi.reshape(cin, H, W), zlr_x], axis=2)
        col_x = _im2col_3x3(xp_ref[...], H, W)            # (9*Cin, H*W)

        # r = conv1(relu(x)) -- one im2col matmul, N = H*W lanes
        a1 = jnp.maximum(col_x, 0.0) if has_ds else col_x
        r = mm(w1_ref, a1) + b1_ref[...]                  # (Cout, H*W) f32

        # residual branch (reuses col_x when a downsample conv exists)
        if has_ds:
            res = mm(wd_ref, col_x) + bd_ref[...]         # downsample(x), no relu
        else:
            res = x                                       # identity (Cin==Cout)

        # padded relu(r) tile for conv2 (r never leaves VMEM)
        rp_ref[:, 1:H + 1, :] = jnp.concatenate(
            [zlr_r, jnp.maximum(r, 0.0).reshape(cout, H, W), zlr_r], axis=2)
        col_r = _im2col_3x3(rp_ref[...], H, W)            # (9*Cout, H*W)

        # out = conv2(relu(r)) + residual (fused); lane-dense (Cout, H*W) store
        out = mm(w2_ref, col_r) + b2_ref[...] + res
        o_ref[b] = out.astype(o_ref.dtype)


def _resblock_kernel(x_ref, w1_ref, b1_ref, w2_ref, b2_ref,
                     o_ref, xp_ref, rp_ref, *, compute_dtype):
    _resblock_body(x_ref, w1_ref, b1_ref, w2_ref, b2_ref, None, None,
                   o_ref, xp_ref, rp_ref, compute_dtype)


def _resblock_kernel_ds(x_ref, w1_ref, b1_ref, w2_ref, b2_ref, wd_ref, bd_ref,
                        o_ref, xp_ref, rp_ref, *, compute_dtype):
    _resblock_body(x_ref, w1_ref, b1_ref, w2_ref, b2_ref, wd_ref, bd_ref,
                   o_ref, xp_ref, rp_ref, compute_dtype)


# ----------------------------------------------------------------------------
# ResBlock forward (single fused pallas_call)
# ----------------------------------------------------------------------------
def resblock_forward(x_nchw, params, *, compute_dtype=jnp.float32,
                     batch_block=None):
    """ResBlock forward; x_nchw: (N, Cin, H, W) -> (N, Cout, H, W)."""
    N, Cin, H, W = x_nchw.shape
    Cout = params["b1"].shape[0]
    HW = H * W

    if batch_block is None:
        # Fold small batches into one grid step (amortize ~0.35us/step and
        # enlarge block DMAs); cap per-block input around 1 MiB.
        per_img = Cin * HW * x_nchw.dtype.itemsize
        batch_block = max(1, min(N, (1 << 20) // max(per_img, 1)))
    while N % batch_block:
        batch_block -= 1

    # NCHW is already channels-first: (N, Cin, H*W) is a free reshape and puts
    # the spatial dim on lanes (lane-dense loads/stores, no boundary transposes).
    x = x_nchw.reshape(N, Cin, HW)

    # im2col weight layout: (Cout, 9*Cin) with columns ordered (kh, kw, cin).
    w1 = params["w1"].reshape(9 * Cin, Cout).T.astype(compute_dtype)
    w2 = params["w2"].reshape(9 * Cout, Cout).T.astype(compute_dtype)
    b1 = params["b1"].reshape(Cout, 1).astype(jnp.float32)
    b2 = params["b2"].reshape(Cout, 1).astype(jnp.float32)

    args = [x, w1, b1, w2, b2]
    in_specs = [
        pl.BlockSpec((batch_block, Cin, HW), lambda n: (n, 0, 0)),
        # Constant index_map: weights/biases DMA'd once, resident across grid.
        # TODO(synk): single-buffer these (pipeline_mode=pl.Buffered(1)) once
        # channel counts are large enough for the duplicate buffer to matter.
        pl.BlockSpec((Cout, 9 * Cin), lambda n: (0, 0)),
        pl.BlockSpec((Cout, 1), lambda n: (0, 0)),
        pl.BlockSpec((Cout, 9 * Cout), lambda n: (0, 0)),
        pl.BlockSpec((Cout, 1), lambda n: (0, 0)),
    ]
    if params["wd"] is not None:
        wd = params["wd"].reshape(9 * Cin, Cout).T.astype(compute_dtype)
        bd = params["bd"].reshape(Cout, 1).astype(jnp.float32)
        args += [wd, bd]
        in_specs += [pl.BlockSpec((Cout, 9 * Cin), lambda n: (0, 0)),
                     pl.BlockSpec((Cout, 1), lambda n: (0, 0))]
        kernel = functools.partial(_resblock_kernel_ds,
                                   compute_dtype=compute_dtype)
    else:
        kernel = functools.partial(_resblock_kernel,
                                   compute_dtype=compute_dtype)

    out = pl.pallas_call(
        kernel,
        out_shape=jax.ShapeDtypeStruct((N, Cout, HW), x_nchw.dtype),
        grid=(N // batch_block,),
        in_specs=in_specs,
        out_specs=pl.BlockSpec((batch_block, Cout, HW), lambda n: (n, 0, 0)),
        scratch_shapes=[
            pltpu.VMEM((Cin, H + 2, W + 2), jnp.float32),   # padded x tile
            pltpu.VMEM((Cout, H + 2, W + 2), jnp.float32),  # padded relu(r) tile
        ],
        compiler_params=pltpu.CompilerParams(
            dimension_semantics=("parallel",),
            vmem_limit_bytes=32 * 1024 * 1024,
        ),
    )(*args)
    # TODO(synk): for large H/W or C >= 128, add a row-block grid axis with a
    # 2-row halo and replace the materialized (9*C, H*W) col matrices with a
    # 9-tap accumulating matmul so peak VMEM fits v7x's 64 MiB budget; also
    # carry activation scratches in bf16 on v6e/v7x to halve DMA/VMEM traffic.
    return out.reshape(N, Cout, H, W)


# ----------------------------------------------------------------------------
# Deterministic parameter init (PyTorch-like uniform(-1/sqrt(fan_in), ...))
# ----------------------------------------------------------------------------
def init_resblock_params(key, indim, outdim):
    def conv_init(k, cin, cout):
        kw_, kb_ = jax.random.split(k)
        bound = 1.0 / jnp.sqrt(cin * 3.0 * 3.0)
        w = jax.random.uniform(kw_, (3, 3, cin, cout), jnp.float32,
                               -bound, bound)   # HWIO
        b = jax.random.uniform(kb_, (cout,), jnp.float32, -bound, bound)
        return w, b

    k1, k2, kd = jax.random.split(key, 3)
    w1, b1 = conv_init(k1, indim, outdim)
    w2, b2 = conv_init(k2, outdim, outdim)
    if indim == outdim:
        wd, bd = None, None
    else:
        wd, bd = conv_init(kd, indim, outdim)
    return {"w1": w1, "b1": b1, "w2": w2, "b2": b2, "wd": wd, "bd": bd}


# ----------------------------------------------------------------------------
# Pure-JAX reference (for correctness check)
# ----------------------------------------------------------------------------
def _conv_ref(x_nhwc, w_hwio, bias):
    y = jax.lax.conv_general_dilated(
        x_nhwc, w_hwio, window_strides=(1, 1), padding="SAME",
        dimension_numbers=("NHWC", "HWIO", "NHWC"))
    return y + bias[None, None, None, :]


def resblock_ref(x_nchw, params):
    x = jnp.transpose(x_nchw, (0, 2, 3, 1))
    r = _conv_ref(jnp.maximum(x, 0.0), params["w1"], params["b1"])
    r = _conv_ref(jnp.maximum(r, 0.0), params["w2"], params["b2"])
    if params["wd"] is not None:
        x = _conv_ref(x, params["wd"], params["bd"])
    return jnp.transpose(x + r, (0, 3, 1, 2))


if __name__ == "__main__":
    key = jax.random.PRNGKey(0)
    kx, kp, kx2, kp2 = jax.random.split(key, 4)

    # downsample path (indim != outdim); batch folded into a single grid step
    N, indim, outdim, H, W = 2, 4, 8, 16, 16
    x = jax.random.normal(kx, (N, indim, H, W), jnp.float32)
    params = init_resblock_params(kp, indim, outdim)

    out = jax.block_until_ready(resblock_forward(x, params))
    ref = resblock_ref(x, params)
    assert out.shape == (N, outdim, H, W)
    assert jnp.allclose(out, ref, rtol=1e-4, atol=1e-4), (
        float(jnp.max(jnp.abs(out - ref))))

    # identity-residual path (indim == outdim), one image per grid step
    x2 = jax.random.normal(kx2, (N, outdim, H, W), jnp.float32)
    params2 = init_resblock_params(kp2, outdim, outdim)
    out2 = jax.block_until_ready(resblock_forward(x2, params2, batch_block=1))
    ref2 = resblock_ref(x2, params2)
    assert jnp.allclose(out2, ref2, rtol=1e-4, atol=1e-4), (
        float(jnp.max(jnp.abs(out2 - ref2))))

    # bf16-operand / f32-accumulate MXU path (v6e/v7x)
    out_bf16 = jax.block_until_ready(
        resblock_forward(x, params, compute_dtype=jnp.bfloat16))
    assert jnp.allclose(out_bf16, ref, rtol=2e-2, atol=2e-2), (
        float(jnp.max(jnp.abs(out_bf16 - ref))))

    print("KERNEL_OK")
</pallas_src>

<mosaic_0001>
module attributes {stable_mosaic.version = 11 : i64} {
  func.func @_resblock_kernel_ds(%arg0: i32, %arg1: memref<2x4x256xf32, #tpu.memory_space<vmem>>, %arg2: memref<8x36xf32, #tpu.memory_space<vmem>>, %arg3: memref<8x1xf32, #tpu.memory_space<vmem>>, %arg4: memref<8x72xf32, #tpu.memory_space<vmem>>, %arg5: memref<8x1xf32, #tpu.memory_space<vmem>>, %arg6: memref<8x36xf32, #tpu.memory_space<vmem>>, %arg7: memref<8x1xf32, #tpu.memory_space<vmem>>, %arg8: memref<2x8x256xf32, #tpu.memory_space<vmem>>, %arg9: memref<4x18x18xf32, #tpu.memory_space<vmem>>, %arg10: memref<8x18x18xf32, #tpu.memory_space<vmem>>) attributes {dimension_semantics = [#tpu.dimension_semantics<parallel>], iteration_bounds = array<i64: 1>, scalar_prefetch = 0 : i64, scratch_operands = 2 : i64, tpu.core_type = #tpu.core_type<tc>, window_params = [{transform_indices = @transform_0, window_bounds = array<i64: 2, 4, 256>}, {pipeline_mode = #tpu.pipeline_mode<synchronous>, transform_indices = @transform_1, window_bounds = array<i64: 8, 36>}, {pipeline_mode = #tpu.pipeline_mode<synchronous>, transform_indices = @transform_2, window_bounds = array<i64: 8, 1>}, {pipeline_mode = #tpu.pipeline_mode<synchronous>, transform_indices = @transform_3, window_bounds = array<i64: 8, 72>}, {pipeline_mode = #tpu.pipeline_mode<synchronous>, transform_indices = @transform_4, window_bounds = array<i64: 8, 1>}, {pipeline_mode = #tpu.pipeline_mode<synchronous>, transform_indices = @transform_5, window_bounds = array<i64: 8, 36>}, {pipeline_mode = #tpu.pipeline_mode<synchronous>, transform_indices = @transform_6, window_bounds = array<i64: 8, 1>}, {transform_indices = @transform_7, window_bounds = array<i64: 2, 8, 256>}]} {
    %cst = arith.constant 0.000000e+00 : f32
    %0 = vector.broadcast %cst : f32 to vector<4x1x18xf32>
    %c0 = arith.constant 0 : index
    %c0_0 = arith.constant 0 : index
    %c0_1 = arith.constant 0 : index
    %1 = vector.load %arg9[%c0, %c0_0, %c0_1] : memref<4x18x18xf32, #tpu.memory_space<vmem>>, vector<4x1x18xf32>
    tpu.vector_store %arg9[%c0, %c0_0, %c0_1], %0 {strides = array<i32>} : memref<4x18x18xf32, #tpu.memory_space<vmem>>, vector<4x1x18xf32>,
    %c0_2 = arith.constant 0 : index
    %c17 = arith.constant 17 : index
    %c0_3 = arith.constant 0 : index
    %2 = vector.load %arg9[%c0_2, %c17, %c0_3] : memref<4x18x18xf32, #tpu.memory_space<vmem>>, vector<4x1x18xf32>
    tpu.vector_store %arg9[%c0_2, %c17, %c0_3], %0 {strides = array<i32>} : memref<4x18x18xf32, #tpu.memory_space<vmem>>, vector<4x1x18xf32>,
    %cst_4 = arith.constant 0.000000e+00 : f32
    %3 = vector.broadcast %cst_4 : f32 to vector<8x1x18xf32>
    %c0_5 = arith.constant 0 : index
    %c0_6 = arith.constant 0 : index
    %c0_7 = arith.constant 0 : index
    %4 = vector.load %arg10[%c0_5, %c0_6, %c0_7] : memref<8x18x18xf32, #tpu.memory_space<vmem>>, vector<8x1x18xf32>
    tpu.vector_store %arg10[%c0_5, %c0_6, %c0_7], %3 {strides = array<i32>} : memref<8x18x18xf32, #tpu.memory_space<vmem>>, vector<8x1x18xf32>,
    %c0_8 = arith.constant 0 : index
    %c17_9 = arith.constant 17 : index
    %c0_10 = arith.constant 0 : index
    %5 = vector.load %arg10[%c0_8, %c17_9, %c0_10] : memref<8x18x18xf32, #tpu.memory_space<vmem>>, vector<8x1x18xf32>
    tpu.vector_store %arg10[%c0_8, %c17_9, %c0_10], %3 {strides = array<i32>} : memref<8x18x18xf32, #tpu.memory_space<vmem>>, vector<8x1x18xf32>,
    %cst_11 = arith.constant 0.000000e+00 : f32
    %6 = vector.broadcast %cst_11 : f32 to vector<4x16x1xf32>
    %cst_12 = arith.constant 0.000000e+00 : f32
    %7 = vector.broadcast %cst_12 : f32 to vector<8x16x1xf32>
    %c0_13 = arith.constant 0 : index
    %c0_14 = arith.constant 0 : index
    %c0_15 = arith.constant 0 : index
    %8 = vector.load %arg1[%c0_13, %c0_14, %c0_15] : memref<2x4x256xf32, #tpu.memory_space<vmem>>, vector<1x4x256xf32>
    %9 = vector.shape_cast %8 : vector<1x4x256xf32> to vector<4x256xf32>
    %10 = vector.shape_cast %9 : vector<4x256xf32> to vector<4x16x16xf32>
    %11 = tpu.concatenate %6, %10, %6 in 2 : vector<4x16x1xf32>, vector<4x16x16xf32>, vector<4x16x1xf32> -> vector<4x16x18xf32>
    %c0_16 = arith.constant 0 : index
    %c1 = arith.constant 1 : index
    %c0_17 = arith.constant 0 : index
    %12 = vector.load %arg9[%c0_16, %c1, %c0_17] : memref<4x18x18xf32, #tpu.memory_space<vmem>>, vector<4x16x18xf32>
    tpu.vector_store %arg9[%c0_16, %c1, %c0_17], %11 {strides = array<i32>} : memref<4x18x18xf32, #tpu.memory_space<vmem>>, vector<4x16x18xf32>,
    %c0_18 = arith.constant 0 : index
    %c0_19 = arith.constant 0 : index
    %c0_20 = arith.constant 0 : index
    %13 = vector.load %arg9[%c0_18, %c0_19, %c0_20] : memref<4x18x18xf32, #tpu.memory_space<vmem>>, vector<4x18x18xf32>
    %14 = vector.extract_strided_slice %13 {offsets = [0, 0, 0], sizes = [4, 16, 16], strides = [1, 1, 1]} : vector<4x18x18xf32> to vector<4x16x16xf32>
    %15 = vector.shape_cast %14 : vector<4x16x16xf32> to vector<4x256xf32>
    %16 = vector.extract_strided_slice %13 {offsets = [0, 0, 1], sizes = [4, 16, 16], strides = [1, 1, 1]} : vector<4x18x18xf32> to vector<4x16x16xf32>
    %17 = vector.shape_cast %16 : vector<4x16x16xf32> to vector<4x256xf32>
    %18 = vector.extract_strided_slice %13 {offsets = [0, 0, 2], sizes = [4, 16, 16], strides = [1, 1, 1]} : vector<4x18x18xf32> to vector<4x16x16xf32>
    %19 = vector.shape_cast %18 : vector<4x16x16xf32> to vector<4x256xf32>
    %20 = vector.extract_strided_slice %13 {offsets = [0, 1, 0], sizes = [4, 16, 16], strides = [1, 1, 1]} : vector<4x18x18xf32> to vector<4x16x16xf32>
    %21 = vector.shape_cast %20 : vector<4x16x16xf32> to vector<4x256xf32>
    %22 = vector.extract_strided_slice %13 {offsets = [0, 1, 1], sizes = [4, 16, 16], strides = [1, 1, 1]} : vector<4x18x18xf32> to vector<4x16x16xf32>
    %23 = vector.shape_cast %22 : vector<4x16x16xf32> to vector<4x256xf32>
    %24 = vector.extract_strided_slice %13 {offsets = [0, 1, 2], sizes = [4, 16, 16], strides = [1, 1, 1]} : vector<4x18x18xf32> to vector<4x16x16xf32>
    %25 = vector.shape_cast %24 : vector<4x16x16xf32> to vector<4x256xf32>
    %26 = vector.extract_strided_slice %13 {offsets = [0, 2, 0], sizes = [4, 16, 16], strides = [1, 1, 1]} : vector<4x18x18xf32> to vector<4x16x16xf32>
    %27 = vector.shape_cast %26 : vector<4x16x16xf32> to vector<4x256xf32>
    %28 = vector.extract_strided_slice %13 {offsets = [0, 2, 1], sizes = [4, 16, 16], strides = [1, 1, 1]} : vector<4x18x18xf32> to vector<4x16x16xf32>
    %29 = vector.shape_cast %28 : vector<4x16x16xf32> to vector<4x256xf32>
    %30 = vector.extract_strided_slice %13 {offsets = [0, 2, 2], sizes = [4, 16, 16], strides = [1, 1, 1]} : vector<4x18x18xf32> to vector<4x16x16xf32>
    %31 = vector.shape_cast %30 : vector<4x16x16xf32> to vector<4x256xf32>
    %32 = tpu.concatenate %15, %17, %19, %21, %23, %25, %27, %29, %31 in 0 : vector<4x256xf32>, vector<4x256xf32>, vector<4x256xf32>, vector<4x256xf32>, vector<4x256xf32>, vector<4x256xf32>, vector<4x256xf32>, vector<4x256xf32>, vector<4x256xf32> -> vector<36x256xf32>
    %cst_21 = arith.constant 0.000000e+00 : f32
    %33 = vector.broadcast %cst_21 : f32 to vector<36x256xf32>
    %34 = arith.maximumf %32, %33 : vector<36x256xf32>
    %c0_22 = arith.constant 0 : index
    %c0_23 = arith.constant 0 : index
    %35 = vector.load %arg2[%c0_22, %c0_23] : memref<8x36xf32, #tpu.memory_space<vmem>>, vector<8x36xf32>
    %cst_24 = arith.constant dense<0.000000e+00> : vector<8x256xf32>
    %36 = tpu.matmul %35, %34, %cst_24 {dimension_numbers = #tpu.dot_dimension_numbers<[1], [0], [0], [1], [0, 0, 1, 1], [], []>} : vector<8x36xf32>, vector<36x256xf32>, vector<8x256xf32> -> vector<8x256xf32>
    %c0_25 = arith.constant 0 : index
    %c0_26 = arith.constant 0 : index
    %37 = vector.load %arg3[%c0_25, %c0_26] : memref<8x1xf32, #tpu.memory_space<vmem>>, vector<8x1xf32>
    %38 = vector.broadcast %37 : vector<8x1xf32> to vector<8x256xf32>
    %39 = arith.addf %36, %38 : vector<8x256xf32>
    %c0_27 = arith.constant 0 : index
    %c0_28 = arith.constant 0 : index
    %40 = vector.load %arg6[%c0_27, %c0_28] : memref<8x36xf32, #tpu.memory_space<vmem>>, vector<8x36xf32>
    %cst_29 = arith.constant dense<0.000000e+00> : vector<8x256xf32>
    %41 = tpu.matmul %40, %32, %cst_29 {dimension_numbers = #tpu.dot_dimension_numbers<[1], [0], [0], [1], [0, 0, 1, 1], [], []>} : vector<8x36xf32>, vector<36x256xf32>, vector<8x256xf32> -> vector<8x256xf32>
    %c0_30 = arith.constant 0 : index
    %c0_31 = arith.constant 0 : index
    %42 = vector.load %arg7[%c0_30, %c0_31] : memref<8x1xf32, #tpu.memory_space<vmem>>, vector<8x1xf32>
    %43 = vector.broadcast %42 : vector<8x1xf32> to vector<8x256xf32>
    %44 = arith.addf %41, %43 : vector<8x256xf32>
    %cst_32 = arith.constant 0.000000e+00 : f32
    %45 = vector.broadcast %cst_32 : f32 to vector<8x256xf32>
    %46 = arith.maximumf %39, %45 : vector<8x256xf32>
    %47 = vector.shape_cast %46 : vector<8x256xf32> to vector<8x16x16xf32>
    %48 = tpu.concatenate %7, %47, %7 in 2 : vector<8x16x1xf32>, vector<8x16x16xf32>, vector<8x16x1xf32> -> vector<8x16x18xf32>
    %c0_33 = arith.constant 0 : index
    %c1_34 = arith.constant 1 : index
    %c0_35 = arith.constant 0 : index
    %49 = vector.load %arg10[%c0_33, %c1_34, %c0_35] : memref<8x18x18xf32, #tpu.memory_space<vmem>>, vector<8x16x18xf32>
    tpu.vector_store %arg10[%c0_33, %c1_34, %c0_35], %48 {strides = array<i32>} : memref<8x18x18xf32, #tpu.memory_space<vmem>>, vector<8x16x18xf32>,
    %c0_36 = arith.constant 0 : index
    %c0_37 = arith.constant 0 : index
    %c0_38 = arith.constant 0 : index
    %50 = vector.load %arg10[%c0_36, %c0_37, %c0_38] : memref<8x18x18xf32, #tpu.memory_space<vmem>>, vector<8x18x18xf32>
    %51 = vector.extract_strided_slice %50 {offsets = [0, 0, 0], sizes = [8, 16, 16], strides = [1, 1, 1]} : vector<8x18x18xf32> to vector<8x16x16xf32>
    %52 = vector.shape_cast %51 : vector<8x16x16xf32> to vector<8x256xf32>
    %53 = vector.extract_strided_slice %50 {offsets = [0, 0, 1], sizes = [8, 16, 16], strides = [1, 1, 1]} : vector<8x18x18xf32> to vector<8x16x16xf32>
    %54 = vector.shape_cast %53 : vector<8x16x16xf32> to vector<8x256xf32>
    %55 = vector.extract_strided_slice %50 {offsets = [0, 0, 2], sizes = [8, 16, 16], strides = [1, 1, 1]} : vector<8x18x18xf32> to vector<8x16x16xf32>
    %56 = vector.shape_cast %55 : vector<8x16x16xf32> to vector<8x256xf32>
    %57 = vector.extract_strided_slice %50 {offsets = [0, 1, 0], sizes = [8, 16, 16], strides = [1, 1, 1]} : vector<8x18x18xf32> to vector<8x16x16xf32>
    %58 = vector.shape_cast %57 : vector<8x16x16xf32> to vector<8x256xf32>
    %59 = vector.extract_strided_slice %50 {offsets = [0, 1, 1], sizes = [8, 16, 16], strides = [1, 1, 1]} : vector<8x18x18xf32> to vector<8x16x16xf32>
    %60 = vector.shape_cast %59 : vector<8x16x16xf32> to vector<8x256xf32>
    %61 = vector.extract_strided_slice %50 {offsets = [0, 1, 2], sizes = [8, 16, 16], strides = [1, 1, 1]} : vector<8x18x18xf32> to vector<8x16x16xf32>
    %62 = vector.shape_cast %61 : vector<8x16x16xf32> to vector<8x256xf32>
    %63 = vector.extract_strided_slice %50 {offsets = [0, 2, 0], sizes = [8, 16, 16], strides = [1, 1, 1]} : vector<8x18x18xf32> to vector<8x16x16xf32>
    %64 = vector.shape_cast %63 : vector<8x16x16xf32> to vector<8x256xf32>
    %65 = vector.extract_strided_slice %50 {offsets = [0, 2, 1], sizes = [8, 16, 16], strides = [1, 1, 1]} : vector<8x18x18xf32> to vector<8x16x16xf32>
    %66 = vector.shape_cast %65 : vector<8x16x16xf32> to vector<8x256xf32>
    %67 = vector.extract_strided_slice %50 {offsets = [0, 2, 2], sizes = [8, 16, 16], strides = [1, 1, 1]} : vector<8x18x18xf32> to vector<8x16x16xf32>
    %68 = vector.shape_cast %67 : vector<8x16x16xf32> to vector<8x256xf32>
    %69 = tpu.concatenate %52, %54, %56, %58, %60, %62, %64, %66, %68 in 0 : vector<8x256xf32>, vector<8x256xf32>, vector<8x256xf32>, vector<8x256xf32>, vector<8x256xf32>, vector<8x256xf32>, vector<8x256xf32>, vector<8x256xf32>, vector<8x256xf32> -> vector<72x256xf32>
    %c0_39 = arith.constant 0 : index
    %c0_40 = arith.constant 0 : index
    %70 = vector.load %arg4[%c0_39, %c0_40] : memref<8x72xf32, #tpu.memory_space<vmem>>, vector<8x72xf32>
    %cst_41 = arith.constant dense<0.000000e+00> : vector<8x256xf32>
    %71 = tpu.matmul %70, %69, %cst_41 {dimension_numbers = #tpu.dot_dimension_numbers<[1], [0], [0], [1], [0, 0, 1, 1], [], []>} : vector<8x72xf32>, vector<72x256xf32>, vector<8x256xf32> -> vector<8x256xf32>
    %c0_42 = arith.constant 0 : index
    %c0_43 = arith.constant 0 : index
    %72 = vector.load %arg5[%c0_42, %c0_43] : memref<8x1xf32, #tpu.memory_space<vmem>>, vector<8x1xf32>
    %73 = vector.broadcast %72 : vector<8x1xf32> to vector<8x256xf32>
    %74 = arith.addf %71, %73 : vector<8x256xf32>
    %75 = arith.addf %74, %44 : vector<8x256xf32>
    %c0_44 = arith.constant 0 : index
    %c0_45 = arith.constant 0 : index
    %c0_46 = arith.constant 0 : index
    %76 = vector.load %arg8[%c0_44, %c0_45, %c0_46] : memref<2x8x256xf32, #tpu.memory_space<vmem>>, vector<1x8x256xf32>
    %77 = vector.shape_cast %76 : vector<1x8x256xf32> to vector<8x256xf32>
    %78 = vector.shape_cast %75 : vector<8x256xf32> to vector<1x8x256xf32>
    tpu.vector_store %arg8[%c0_44, %c0_45, %c0_46], %78 {strides = array<i32>} : memref<2x8x256xf32, #tpu.memory_space<vmem>>, vector<1x8x256xf32>,
    %c1_47 = arith.constant 1 : index
    %c0_48 = arith.constant 0 : index
    %c0_49 = arith.constant 0 : index
    %79 = vector.load %arg1[%c1_47, %c0_48, %c0_49] : memref<2x4x256xf32, #tpu.memory_space<vmem>>, vector<1x4x256xf32>
    %80 = vector.shape_cast %79 : vector<1x4x256xf32> to vector<4x256xf32>
    %81 = vector.shape_cast %80 : vector<4x256xf32> to vector<4x16x16xf32>
    %82 = tpu.concatenate %6, %81, %6 in 2 : vector<4x16x1xf32>, vector<4x16x16xf32>, vector<4x16x1xf32> -> vector<4x16x18xf32>
    %c0_50 = arith.constant 0 : index
    %c1_51 = arith.constant 1 : index
    %c0_52 = arith.constant 0 : index
    %83 = vector.load %arg9[%c0_50, %c1_51, %c0_52] : memref<4x18x18xf32, #tpu.memory_space<vmem>>, vector<4x16x18xf32>
    tpu.vector_store %arg9[%c0_50, %c1_51, %c0_52], %82 {strides = array<i32>} : memref<4x18x18xf32, #tpu.memory_space<vmem>>, vector<4x16x18xf32>,
    %c0_53 = arith.constant 0 : index
    %c0_54 = arith.constant 0 : index
    %c0_55 = arith.constant 0 : index
    %84 = vector.load %arg9[%c0_53, %c0_54, %c0_55] : memref<4x18x18xf32, #tpu.memory_space<vmem>>, vector<4x18x18xf32>
    %85 = vector.extract_strided_slice %84 {offsets = [0, 0, 0], sizes = [4, 16, 16], strides = [1, 1, 1]} : vector<4x18x18xf32> to vector<4x16x16xf32>
    %86 = vector.shape_cast %85 : vector<4x16x16xf32> to vector<4x256xf32>
    %87 = vector.extract_strided_slice %84 {offsets = [0, 0, 1], sizes = [4, 16, 16], strides = [1, 1, 1]} : vector<4x18x18xf32> to vector<4x16x16xf32>
    %88 = vector.shape_cast %87 : vector<4x16x16xf32> to vector<4x256xf32>
    %89 = vector.extract_strided_slice %84 {offsets = [0, 0, 2], sizes = [4, 16, 16], strides = [1, 1, 1]} : vector<4x18x18xf32> to vector<4x16x16xf32>
    %90 = vector.shape_cast %89 : vector<4x16x16xf32> to vector<4x256xf32>
    %91 = vector.extract_strided_slice %84 {offsets = [0, 1, 0], sizes = [4, 16, 16], strides = [1, 1, 1]} : vector<4x18x18xf32> to vector<4x16x16xf32>
    %92 = vector.shape_cast %91 : vector<4x16x16xf32> to vector<4x256xf32>
    %93 = vector.extract_strided_slice %84 {offsets = [0, 1, 1], sizes = [4, 16, 16], strides = [1, 1, 1]} : vector<4x18x18xf32> to vector<4x16x16xf32>
    %94 = vector.shape_cast %93 : vector<4x16x16xf32> to vector<4x256xf32>
    %95 = vector.extract_strided_slice %84 {offsets = [0, 1, 2], sizes = [4, 16, 16], strides = [1, 1, 1]} : vector<4x18x18xf32> to vector<4x16x16xf32>
    %96 = vector.shape_cast %95 : vector<4x16x16xf32> to vector<4x256xf32>
    %97 = vector.extract_strided_slice %84 {offsets = [0, 2, 0], sizes = [4, 16, 16], strides = [1, 1, 1]} : vector<4x18x18xf32> to vector<4x16x16xf32>
    %98 = vector.shape_cast %97 : vector<4x16x16xf32> to vector<4x256xf32>
    %99 = vector.extract_strided_slice %84 {offsets = [0, 2, 1], sizes = [4, 16, 16], strides = [1, 1, 1]} : vector<4x18x18xf32> to vector<4x16x16xf32>
    %100 = vector.shape_cast %99 : vector<4x16x16xf32> to vector<4x256xf32>
    %101 = vector.extract_strided_slice %84 {offsets = [0, 2, 2], sizes = [4, 16, 16], strides = [1, 1, 1]} : vector<4x18x18xf32> to vector<4x16x16xf32>
    %102 = vector.shape_cast %101 : vector<4x16x16xf32> to vector<4x256xf32>
    %103 = tpu.concatenate %86, %88, %90, %92, %94, %96, %98, %100, %102 in 0 : vector<4x256xf32>, vector<4x256xf32>, vector<4x256xf32>, vector<4x256xf32>, vector<4x256xf32>, vector<4x256xf32>, vector<4x256xf32>, vector<4x256xf32>, vector<4x256xf32> -> vector<36x256xf32>
    %cst_56 = arith.constant 0.000000e+00 : f32
    %104 = vector.broadcast %cst_56 : f32 to vector<36x256xf32>
    %105 = arith.maximumf %103, %104 : vector<36x256xf32>
    %c0_57 = arith.constant 0 : index
    %c0_58 = arith.constant 0 : index
    %106 = vector.load %arg2[%c0_57, %c0_58] : memref<8x36xf32, #tpu.memory_space<vmem>>, vector<8x36xf32>
    %cst_59 = arith.constant dense<0.000000e+00> : vector<8x256xf32>
    %107 = tpu.matmul %106, %105, %cst_59 {dimension_numbers = #tpu.dot_dimension_numbers<[1], [0], [0], [1], [0, 0, 1, 1], [], []>} : vector<8x36xf32>, vector<36x256xf32>, vector<8x256xf32> -> vector<8x256xf32>
    %c0_60 = arith.constant 0 : index
    %c0_61 = arith.constant 0 : index
    %108 = vector.load %arg3[%c0_60, %c0_61] : memref<8x1xf32, #tpu.memory_space<vmem>>, vector<8x1xf32>
    %109 = vector.broadcast %108 : vector<8x1xf32> to vector<8x256xf32>
    %110 = arith.addf %107, %109 : vector<8x256xf32>
    %c0_62 = arith.constant 0 : index
    %c0_63 = arith.constant 0 : index
    %111 = vector.load %arg6[%c0_62, %c0_63] : memref<8x36xf32, #tpu.memory_space<vmem>>, vector<8x36xf32>
    %cst_64 = arith.constant dense<0.000000e+00> : vector<8x256xf32>
    %112 = tpu.matmul %111, %103, %cst_64 {dimension_numbers = #tpu.dot_dimension_numbers<[1], [0], [0], [1], [0, 0, 1, 1], [], []>} : vector<8x36xf32>, vector<36x256xf32>, vector<8x256xf32> -> vector<8x256xf32>
    %c0_65 = arith.constant 0 : index
    %c0_66 = arith.constant 0 : index
    %113 = vector.load %arg7[%c0_65, %c0_66] : memref<8x1xf32, #tpu.memory_space<vmem>>, vector<8x1xf32>
    %114 = vector.broadcast %113 : vector<8x1xf32> to vector<8x256xf32>
    %115 = arith.addf %112, %114 : vector<8x256xf32>
    %cst_67 = arith.constant 0.000000e+00 : f32
    %116 = vector.broadcast %cst_67 : f32 to vector<8x256xf32>
    %117 = arith.maximumf %110, %116 : vector<8x256xf32>
    %118 = vector.shape_cast %117 : vector<8x256xf32> to vector<8x16x16xf32>
    %119 = tpu.concatenate %7, %118, %7 in 2 : vector<8x16x1xf32>, vector<8x16x16xf32>, vector<8x16x1xf32> -> vector<8x16x18xf32>
    %c0_68 = arith.constant 0 : index
    %c1_69 = arith.constant 1 : index
    %c0_70 = arith.constant 0 : index
    %120 = vector.load %arg10[%c0_68, %c1_69, %c0_70] : memref<8x18x18xf32, #tpu.memory_space<vmem>>, vector<8x16x18xf32>
    tpu.vector_store %arg10[%c0_68, %c1_69, %c0_70], %119 {strides = array<i32>} : memref<8x18x18xf32, #tpu.memory_space<vmem>>, vector<8x16x18xf32>,
    %c0_71 = arith.constant 0 : index
    %c0_72 = arith.constant 0 : index
    %c0_73 = arith.constant 0 : index
    %121 = vector.load %arg10[%c0_71, %c0_72, %c0_73] : memref<8x18x18xf32, #tpu.memory_space<vmem>>, vector<8x18x18xf32>
    %122 = vector.extract_strided_slice %121 {offsets = [0, 0, 0], sizes = [8, 16, 16], strides = [1, 1, 1]} : vector<8x18x18xf32> to vector<8x16x16xf32>
    %123 = vector.shape_cast %122 : vector<8x16x16xf32> to vector<8x256xf32>
    %124 = vector.extract_strided_slice %121 {offsets = [0, 0, 1], sizes = [8, 16, 16], strides = [1, 1, 1]} : vector<8x18x18xf32> to vector<8x16x16xf32>
    %125 = vector.shape_cast %124 : vector<8x16x16xf32> to vector<8x256xf32>
    %126 = vector.extract_strided_slice %121 {offsets = [0, 0, 2], sizes = [8, 16, 16], strides = [1, 1, 1]} : vector<8x18x18xf32> to vector<8x16x16xf32>
    %127 = vector.shape_cast %126 : vector<8x16x16xf32> to vector<8x256xf32>
    %128 = vector.extract_strided_slice %121 {offsets = [0, 1, 0], sizes = [8, 16, 16], strides = [1, 1, 1]} : vector<8x18x18xf32> to vector<8x16x16xf32>
    %129 = vector.shape_cast %128 : vector<8x16x16xf32> to vector<8x256xf32>
    %130 = vector.extract_strided_slice %121 {offsets = [0, 1, 1], sizes = [8, 16, 16], strides = [1, 1, 1]} : vector<8x18x18xf32> to vector<8x16x16xf32>
    %131 = vector.shape_cast %130 : vector<8x16x16xf32> to vector<8x256xf32>
    %132 = vector.extract_strided_slice %121 {offsets = [0, 1, 2], sizes = [8, 16, 16], strides = [1, 1, 1]} : vector<8x18x18xf32> to vector<8x16x16xf32>
    %133 = vector.shape_cast %132 : vector<8x16x16xf32> to vector<8x256xf32>
    %134 = vector.extract_strided_slice %121 {offsets = [0, 2, 0], sizes = [8, 16, 16], strides = [1, 1, 1]} : vector<8x18x18xf32> to vector<8x16x16xf32>
    %135 = vector.shape_cast %134 : vector<8x16x16xf32> to vector<8x256xf32>
    %136 = vector.extract_strided_slice %121 {offsets = [0, 2, 1], sizes = [8, 16, 16], strides = [1, 1, 1]} : vector<8x18x18xf32> to vector<8x16x16xf32>
    %137 = vector.shape_cast %136 : vector<8x16x16xf32> to vector<8x256xf32>
    %138 = vector.extract_strided_slice %121 {offsets = [0, 2, 2], sizes = [8, 16, 16], strides = [1, 1, 1]} : vector<8x18x18xf32> to vector<8x16x16xf32>
    %139 = vector.shape_cast %138 : vector<8x16x16xf32> to vector<8x256xf32>
    %140 = tpu.concatenate %123, %125, %127, %129, %131, %133, %135, %137, %139 in 0 : vector<8x256xf32>, vector<8x256xf32>, vector<8x256xf32>, vector<8x256xf32>, vector<8x256xf32>, vector<8x256xf32>, vector<8x256xf32>, vector<8x256xf32>, vector<8x256xf32> -> vector<72x256xf32>
    %c0_74 = arith.constant 0 : index
    %c0_75 = arith.constant 0 : index
    %141 = vector.load %arg4[%c0_74, %c0_75] : memref<8x72xf32, #tpu.memory_space<vmem>>, vector<8x72xf32>
    %cst_76 = arith.constant dense<0.000000e+00> : vector<8x256xf32>
    %142 = tpu.matmul %141, %140, %cst_76 {dimension_numbers = #tpu.dot_dimension_numbers<[1], [0], [0], [1], [0, 0, 1, 1], [], []>} : vector<8x72xf32>, vector<72x256xf32>, vector<8x256xf32> -> vector<8x256xf32>
    %c0_77 = arith.constant 0 : index
    %c0_78 = arith.constant 0 : index
    %143 = vector.load %arg5[%c0_77, %c0_78] : memref<8x1xf32, #tpu.memory_space<vmem>>, vector<8x1xf32>
    %144 = vector.broadcast %143 : vector<8x1xf32> to vector<8x256xf32>
    %145 = arith.addf %142, %144 : vector<8x256xf32>
    %146 = arith.addf %145, %115 : vector<8x256xf32>
    %c1_79 = arith.constant 1 : index
    %c0_80 = arith.constant 0 : index
    %c0_81 = arith.constant 0 : index
    %147 = vector.load %arg8[%c1_79, %c0_80, %c0_81] : memref<2x8x256xf32, #tpu.memory_space<vmem>>, vector<1x8x256xf32>
    %148 = vector.shape_cast %147 : vector<1x8x256xf32> to vector<8x256xf32>
    %149 = vector.shape_cast %146 : vector<8x256xf32> to vector<1x8x256xf32>
    tpu.vector_store %arg8[%c1_79, %c0_80, %c0_81], %149 {strides = array<i32>} : memref<2x8x256xf32, #tpu.memory_space<vmem>>, vector<1x8x256xf32>,
    return
  }
  func.func @transform_0(%arg0: i32) -> (i32, i32, i32) {
    %c0_i32 = arith.constant 0 : i32
    %c0_i32_0 = arith.constant 0 : i32
    %c0_i32_1 = arith.constant 0 : i32
    return %arg0, %c0_i32, %c0_i32_0 : i32, i32, i32
  }
  func.func @transform_1(%arg0: i32) -> (i32, i32) {
    %c0_i32 = arith.constant 0 : i32
    %c0_i32_0 = arith.constant 0 : i32
    %c0_i32_1 = arith.constant 0 : i32
    return %c0_i32, %c0_i32_0 : i32, i32
  }
  func.func @transform_2(%arg0: i32) -> (i32, i32) {
    %c0_i32 = arith.constant 0 : i32
    %c0_i32_0 = arith.constant 0 : i32
    %c0_i32_1 = arith.constant 0 : i32
    return %c0_i32, %c0_i32_0 : i32, i32
  }
  func.func @transform_3(%arg0: i32) -> (i32, i32) {
    %c0_i32 = arith.constant 0 : i32
    %c0_i32_0 = arith.constant 0 : i32
    %c0_i32_1 = arith.constant 0 : i32
    return %c0_i32, %c0_i32_0 : i32, i32
  }
  func.func @transform_4(%arg0: i32) -> (i32, i32) {
    %c0_i32 = arith.constant 0 : i32
    %c0_i32_0 = arith.constant 0 : i32
    %c0_i32_1 = arith.constant 0 : i32
    return %c0_i32, %c0_i32_0 : i32, i32
  }
  func.func @transform_5(%arg0: i32) -> (i32, i32) {
    %c0_i32 = arith.constant 0 : i32
    %c0_i32_0 = arith.constant 0 : i32
    %c0_i32_1 = arith.constant 0 : i32
    return %c0_i32, %c0_i32_0 : i32, i32
  }
  func.func @transform_6(%arg0: i32) -> (i32, i32) {
    %c0_i32 = arith.constant 0 : i32
    %c0_i32_0 = arith.constant 0 : i32
    %c0_i32_1 = arith.constant 0 : i32
    return %c0_i32, %c0_i32_0 : i32, i32
  }
  func.func @transform_7(%arg0: i32) -> (i32, i32, i32) {
    %c0_i32 = arith.constant 0 : i32
    %c0_i32_0 = arith.constant 0 : i32
    %c0_i32_1 = arith.constant 0 : i32
    return %arg0, %c0_i32, %c0_i32_0 : i32, i32, i32
  }
}

</mosaic_0001>

<llo_original>
// kernel: tpu_custom_call.1
$region0: #{tpu_custom_call.1}
  #allocation0 [shape = 'u32[]', space=smem, size = 0x4, offset = 0x4, fixed_abs, tag = 'smem constant byte address 0x4 - core index']
  #allocation1 [shape = 'u32[72,128]{1,0:T(1,128)}', space=vmem, size = 0x9000, scoped, tag = 'internal scratch']
  #allocation2 [shape = 'f32[4,18,18]{2,1,0:T(8,128)}', space=vmem, size = 0xc000, scoped, tag = 'scratch operand']
  #allocation3 [shape = 'f32[8,18,18]{2,1,0:T(8,128)}', space=vmem, size = 0x18000, scoped, tag = 'scratch operand']
  %s0 = inlined_call_operand.vmem [shape: f32[2,4,256], index: 0, kind: input, shape index: {}]
  %s1 = inlined_call_operand.vmem [shape: f32[8,36], index: 1, kind: input, shape index: {}]
  %s2 = inlined_call_operand.vmem [shape: f32[8,1], index: 2, kind: input, shape index: {}]
  %s3 = inlined_call_operand.hbm [shape: f32[8,72], index: 3, kind: input, shape index: {}]
  %s4 = inlined_call_operand.vmem [shape: f32[8,1], index: 4, kind: input, shape index: {}]
  %s5 = inlined_call_operand.hbm [shape: f32[8,36], index: 5, kind: input, shape index: {}]
  %s6 = inlined_call_operand.vmem [shape: f32[8,1], index: 6, kind: input, shape index: {}]
  %s7 = inlined_call_operand.hbm [shape: f32[2,8,256], index: 7, kind: output, shape index: {}]
  %s8 = sld [smem:[#allocation0]]
  $region46: #{tpu_custom_call.1} parent=0
    _
  %s10 = ssub.s32 1, %s8
  %s11 = scalar_select 0, %s10, %s8
  $region1: #{tpu_custom_call.1} parent=0
    #allocation4 [shape = 'u8[4096]{0}', space=vmem, size = 0x1000, scoped, tag = 'input window, operand 3, single buffered']
    #allocation5 [shape = 's32[1]{0}', space=sflag, size = 0x4, scoped, tag = 'scoped memory for tpu_custom_call.1']
    #allocation6 [shape = 's32[1]{0}', space=sflag, size = 0x4, scoped, tag = 'scoped memory for tpu_custom_call.1']
    #allocation7 [shape = 'u8[4096]{0}', space=vmem, size = 0x1000, scoped, tag = 'input window, operand 5, single buffered']
    #allocation8 [shape = 's32[1]{0}', space=sflag, size = 0x4, scoped, tag = 'scoped memory for tpu_custom_call.1']
    #allocation9 [shape = 'u8[16384]{0}', space=vmem, size = 0x4000, scoped, tag = 'output window, operand 0, single buffered']
    %12 = vsyncpa [#allocation5], 0
    %13 = vsyncpa [#allocation8], 0
    %14 = vsyncpa [#allocation6], 0
    // Predicated region
    $region2: #{tpu_custom_call.1} parent=1 // pred_check
      _
    $region3: #{tpu_custom_call.1} parent=1 // pred_check_branch
      %16 = sbr.rel (0) target = $region5
    $region4: #{tpu_custom_call.1} parent=1 // pred_region
      _
    $region5: #{tpu_custom_call.1} parent=1 // pred_fallthru
      _
    // Predicated region
    $region6: #{tpu_custom_call.1} parent=1 // pred_check
      _
    $region7: #{tpu_custom_call.1} parent=1 // pred_check_branch
      %18 = sbr.rel (0) target = $region9
    $region8: #{tpu_custom_call.1} parent=1 // pred_region
      _
    $region9: #{tpu_custom_call.1} parent=1 // pred_fallthru
      _
    // Predicated region
    $region10: #{tpu_custom_call.1} parent=1 // pred_check
      _
    $region11: #{tpu_custom_call.1} parent=1 // pred_check_branch
      %20 = sbr.rel (0) target = $region13
    $region12: #{tpu_custom_call.1} parent=1 // pred_region
      _
    $region13: #{tpu_custom_call.1} parent=1 // pred_fallthru
      _
    // Predicated region
    $region14: #{tpu_custom_call.1} parent=1 // pred_check
      _
    $region15: #{tpu_custom_call.1} parent=1 // pred_check_branch
      %22 = sbr.rel (0) target = $region17
    $region16: #{tpu_custom_call.1} parent=1 // pred_region
      %24 = vsyncadd [#allocation5], 0
      %s26 = sshll.u32 %s3, 4
      %s27 = int_to_ptr.hbm [resolvable:$true] %s26
      %s28 = sshll.u32 [#allocation4], 4
      %s29 = int_to_ptr.vmem [resolvable:$true] %s28
      %31 = dma.hbm_to_vmem [thread:$0]  %s27, 128, %s29, [#allocation5]
    $region17: #{tpu_custom_call.1} parent=1 // pred_fallthru
      _
    // Predicated region
    $region18: #{tpu_custom_call.1} parent=1 // pred_check
      _
    $region19: #{tpu_custom_call.1} parent=1 // pred_check_branch
      %33 = sbr.rel (0) target = $region21
    $region20: #{tpu_custom_call.1} parent=1 // pred_region
      _
    $region21: #{tpu_custom_call.1} parent=1 // pred_fallthru
      _
    // Predicated region
    $region22: #{tpu_custom_call.1} parent=1 // pred_check
      _
    $region23: #{tpu_custom_call.1} parent=1 // pred_check_branch
      %35 = sbr.rel (0) target = $region25
    $region24: #{tpu_custom_call.1} parent=1 // pred_region
      %37 = vsyncadd [#allocation8], 0
      %s39 = sshll.u32 %s5, 4
      %s40 = int_to_ptr.hbm [resolvable:$true] %s39
      %s41 = sshll.u32 [#allocation7], 4
      %s42 = int_to_ptr.vmem [resolvable:$true] %s41
      %44 = dma.hbm_to_vmem [thread:$0]  %s40, 128, %s42, [#allocation8]
    $region25: #{tpu_custom_call.1} parent=1 // pred_fallthru
      _
    // Predicated region
    $region26: #{tpu_custom_call.1} parent=1 // pred_check
      _
    $region27: #{tpu_custom_call.1} parent=1 // pred_check_branch
      %46 = sbr.rel (0) target = $region29
    $region28: #{tpu_custom_call.1} parent=1 // pred_region
      _
    $region29: #{tpu_custom_call.1} parent=1 // pred_fallthru
      _
    // Predicated region
    $region30: #{tpu_custom_call.1} parent=1 // pred_check
      _
    $region31: #{tpu_custom_call.1} parent=1 // pred_check_branch
      %48 = sbr.rel (0) target = $region33
    $region32: #{tpu_custom_call.1} parent=1 // pred_region
      %50 = dma.done [#allocation5], 128
    $region33: #{tpu_custom_call.1} parent=1 // pred_fallthru
      _
    // Predicated region
    $region34: #{tpu_custom_call.1} parent=1 // pred_check
      _
    $region35: #{tpu_custom_call.1} parent=1 // pred_check_branch
      %52 = sbr.rel (0) target = $region37
    $region36: #{tpu_custom_call.1} parent=1 // pred_region
      %54 = dma.done [#allocation8], 128
    $region37: #{tpu_custom_call.1} parent=1 // pred_fallthru
      _
    %vm55 = vcmask 139264
    %56 = vst.msk [vmem:[#allocation2] sm:$0x1] %vm55, 0.0
    %57 = vst.msk [vmem:[#allocation2 + $0x18] sm:$0x1] %vm55, 0.0
    %58 = vst.msk [vmem:[#allocation2 + $0x30] sm:$0x1] %vm55, 0.0
    %59 = vst.msk [vmem:[#allocation2 + $0x48] sm:$0x1] %vm55, 0.0
    %60 = vst.msk [vmem:[#allocation2 + $0x11] sm:$0x1] %vm55, 0.0
    %61 = vst.msk [vmem:[#allocation2 + $0x29] sm:$0x1] %vm55, 0.0
    %62 = vst.msk [vmem:[#allocation2 + $0x41] sm:$0x1] %vm55, 0.0
    %63 = vst.msk [vmem:[#allocation2 + $0x59] sm:$0x1] %vm55, 0.0
    %64 = vst.msk [vmem:[#allocation3] sm:$0x1] %vm55, 0.0
    %65 = vst.msk [vmem:[#allocation3 + $0x18] sm:$0x1] %vm55, 0.0
    %66 = vst.msk [vmem:[#allocation3 + $0x30] sm:$0x1] %vm55, 0.0
    %67 = vst.msk [vmem:[#allocation3 + $0x48] sm:$0x1] %vm55, 0.0
    %68 = vst.msk [vmem:[#allocation3 + $0x60] sm:$0x1] %vm55, 0.0
    %69 = vst.msk [vmem:[#allocation3 + $0x78] sm:$0x1] %vm55, 0.0
    %70 = vst.msk [vmem:[#allocation3 + $0x90] sm:$0x1] %vm55, 0.0
    %71 = vst.msk [vmem:[#allocation3 + $0xa8] sm:$0x1] %vm55, 0.0
    %72 = vst.msk [vmem:[#allocation3 + $0x11] sm:$0x1] %vm55, 0.0
    %73 = vst.msk [vmem:[#allocation3 + $0x29] sm:$0x1] %vm55, 0.0
    %74 = vst.msk [vmem:[#allocation3 + $0x41] sm:$0x1] %vm55, 0.0
    %75 = vst.msk [vmem:[#allocation3 + $0x59] sm:$0x1] %vm55, 0.0
    %76 = vst.msk [vmem:[#allocation3 + $0x71] sm:$0x1] %vm55, 0.0
    %77 = vst.msk [vmem:[#allocation3 + $0x89] sm:$0x1] %vm55, 0.0
    %78 = vst.msk [vmem:[#allocation3 + $0xa1] sm:$0x1] %vm55, 0.0
    %79 = vst.msk [vmem:[#allocation3 + $0xb9] sm:$0x1] %vm55, 0.0
    %v80 = vld [vmem:[%s0] sm:$0xff]
    %v82 = vrot.slane %v80, 4
    %84 = vrot.lane.b32.xlu0 %v80, 112
    %v85 = vpop.permute.xlu0 %84
    %v86 = vrot.slane %v85, 4
    %88 = vrot.lane.b32.xlu0 %v80, 96
    %v89 = vpop.permute.xlu0 %88
    %v90 = vrot.slane %v89, 4
    %92 = vrot.lane.b32.xlu0 %v80, 80
    %v93 = vpop.permute.xlu0 %92
    %v94 = vrot.slane %v93, 4
    %96 = vrot.lane.b32.xlu0 %v80, 64
    %v97 = vpop.permute.xlu0 %96
    %v98 = vrot.slane %v97, 4
    %100 = vrot.lane.b32.xlu0 %v80, 48
    %v101 = vpop.permute.xlu0 %100
    %v102 = vrot.slane %v101, 4
    %104 = vrot.lane.b32.xlu0 %v80, 32
    %v105 = vpop.permute.xlu0 %104
    %v106 = vrot.slane %v105, 4
    %108 = vrot.lane.b32.xlu0 %v80, 16
    %v109 = vpop.permute.xlu0 %108
    %v110 = vrot.slane %v109, 4
    %v119 = vrot.slane %v89, 4
    %vm120 = vcmask 1047556
    %v121 = vsel %vm120, %v119, %v80
    %v123 = vunpack.c.l.s4 1983009808
    %v124 = vunpack.c.0.s8 %v123
    %v125 = vperm.slane %v121, %v124
    %v126 = vrot.slane %v93, 4
    %v127 = vsel %vm120, %v126, %v85
    %v129 = vunpack.c.l.s4 1983009808
    %v130 = vunpack.c.0.s8 %v129
    %v131 = vperm.slane %v127, %v130
    %v132 = vrot.slane %v131, 4
    %v133 = vsel %vm120, %v132, %v125
    %v134 = vrot.slane %v125, 4
    %v135 = vsel %vm120, %v131, %v134
    %v137 = vunpack.c.l.s4 1934713408
    %v138 = vunpack.c.0.s8 %v137
    %v139 = vperm.slane %v133, %v138
    %v141 = vunpack.c.l.s4 1934713408
    %v142 = vunpack.c.0.s8 %v141
    %v143 = vperm.slane %v135, %v142
    %v144 = vrot.slane %v139, 4
    %v145 = vsel %vm120, 0.0, %v144
    %v146 = vrot.slane %v143, 4
    %v147 = vsel %vm120, 0.0, %v146
    %v148 = vrot.slane %v105, 4
    %v149 = vsel %vm120, %v148, %v97
    %v151 = vunpack.c.l.s4 1983009808
    %v152 = vunpack.c.0.s8 %v151
    %v153 = vperm.slane %v149, %v152
    %v154 = vrot.slane %v109, 4
    %v155 = vsel %vm120, %v154, %v101
    %v157 = vunpack.c.l.s4 1983009808
    %v158 = vunpack.c.0.s8 %v157
    %v159 = vperm.slane %v155, %v158
    %v160 = vrot.slane %v159, 4
    %v161 = vsel %vm120, %v160, %v153
    %v162 = vrot.slane %v153, 4
    %v163 = vsel %vm120, %v159, %v162
    %v165 = vunpack.c.l.s4 1934713408
    %v166 = vunpack.c.0.s8 %v165
    %v167 = vperm.slane %v161, %v166
    %v169 = vunpack.c.l.s4 1934713408
    %v170 = vunpack.c.0.s8 %v169
    %v171 = vperm.slane %v163, %v170
    %v172 = vrot.slane %v167, 4
    %v173 = vsel %vm120, 0.0, %v172
    %v174 = vrot.slane %v171, 4
    %v175 = vsel %vm120, 0.0, %v174
    %v176 = vrot.slane %v90, 4
    %v177 = vsel %vm120, %v176, %v82
    %v179 = vunpack.c.l.s4 1983009808
    %v180 = vunpack.c.0.s8 %v179
    %v181 = vperm.slane %v177, %v180
    %v182 = vrot.slane %v94, 4
    %v183 = vsel %vm120, %v182, %v86
    %v185 = vunpack.c.l.s4 1983009808
    %v186 = vunpack.c.0.s8 %v185
    %v187 = vperm.slane %v183, %v186
    %v188 = vrot.slane %v187, 4
    %v189 = vsel %vm120, %v188, %v181
    %v190 = vrot.slane %v181, 4
    %v191 = vsel %vm120, %v187, %v190
    %v193 = vunpack.c.l.s4 1934713408
    %v194 = vunpack.c.0.s8 %v193
    %v195 = vperm.slane %v189, %v194
    %v197 = vunpack.c.l.s4 1934713408
    %v198 = vunpack.c.0.s8 %v197
    %v199 = vperm.slane %v191, %v198
    %v200 = vrot.slane %v195, 4
    %v201 = vsel %vm120, 0.0, %v200
    %v202 = vrot.slane %v199, 4
    %v203 = vsel %vm120, 0.0, %v202
    %v204 = vrot.slane %v106, 4
    %v205 = vsel %vm120, %v204, %v98
    %v207 = vunpack.c.l.s4 1983009808
    %v208 = vunpack.c.0.s8 %v207
    %v209 = vperm.slane %v205, %v208
    %v210 = vrot.slane %v110, 4
    %v211 = vsel %vm120, %v210, %v102
    %v213 = vunpack.c.l.s4 1983009808
    %v214 = vunpack.c.0.s8 %v213
    %v215 = vperm.slane %v211, %v214
    %v216 = vrot.slane %v215, 4
    %v217 = vsel %vm120, %v216, %v209
    %v218 = vrot.slane %v209, 4
    %v219 = vsel %vm120, %v215, %v218
    %v221 = vunpack.c.l.s4 1934713408
    %v222 = vunpack.c.0.s8 %v221
    %v223 = vperm.slane %v217, %v222
    %v225 = vunpack.c.l.s4 1934713408
    %v226 = vunpack.c.0.s8 %v225
    %v227 = vperm.slane %v219, %v226
    %v228 = vrot.slane %v223, 4
    %v229 = vsel %vm120, 0.0, %v228
    %v230 = vrot.slane %v227, 4
    %v231 = vsel %vm120, 0.0, %v230
    %248 = vst [vmem:[#allocation1] ss:$2 sm:$0xff] %v139
    %s249 = scalar_lea.vmem [#allocation1], 1
    %250 = vst [vmem:[%s249] ss:$2 sm:$0xff] %v167
    %s251 = scalar_lea.vmem [#allocation1], 16
    %252 = vst [vmem:[%s251] ss:$2 sm:$0xff] %v195
    %s253 = scalar_lea.vmem [#allocation1], 17
    %254 = vst [vmem:[%s253] ss:$2 sm:$0xff] %v223
    %v255 = vld.sshfl [vmem:[#allocation1] sm:$0xff pattern:$0x75316420]
    %v256 = vld.sshfl [vmem:[#allocation1 + $0x10] sm:$0xff pattern:$0x75316420]
    %s257 = scalar_lea.vmem [#allocation1], 32
    %258 = vst [vmem:[%s257] ss:$2 sm:$0xff] %v145
    %s259 = scalar_lea.vmem [#allocation1], 33
    %260 = vst [vmem:[%s259] ss:$2 sm:$0xff] %v173
    %s261 = scalar_lea.vmem [#allocation1], 48
    %262 = vst [vmem:[%s261] ss:$2 sm:$0xff] %v201
    %s263 = scalar_lea.vmem [#allocation1], 49
    %264 = vst [vmem:[%s263] ss:$2 sm:$0xff] %v229
    %v265 = vld.sshfl [vmem:[#allocation1 + $0x20] sm:$0xff pattern:$0x75316420]
    %v266 = vld.sshfl [vmem:[#allocation1 + $0x30] sm:$0xff pattern:$0x75316420]
    %267 = vst [vmem:[#allocation1] ss:$2 sm:$0xff] %v143
    %268 = vst [vmem:[%s249] ss:$2 sm:$0xff] %v171
    %269 = vst [vmem:[%s251] ss:$2 sm:$0xff] %v199
    %270 = vst [vmem:[%s253] ss:$2 sm:$0xff] %v227
    %v271 = vld.sshfl [vmem:[#allocation1] sm:$0xff pattern:$0x75316420]
    %v272 = vld.sshfl [vmem:[#allocation1 + $0x10] sm:$0xff pattern:$0x75316420]
    %273 = vst [vmem:[%s257] ss:$2 sm:$0xff] %v147
    %274 = vst [vmem:[%s259] ss:$2 sm:$0xff] %v175
    %275 = vst [vmem:[%s261] ss:$2 sm:$0xff] %v203
    %276 = vst [vmem:[%s263] ss:$2 sm:$0xff] %v231
    %v277 = vld.sshfl [vmem:[#allocation1 + $0x20] sm:$0xff pattern:$0x75316420]
    %v278 = vld.sshfl [vmem:[#allocation1 + $0x30] sm:$0xff pattern:$0x75316420]
    %279 = vrot.lane.b32.xlu0 %v255, 1
    %v280 = vpop.permute.xlu0 %279
    %281 = vrot.lane.b32.xlu0 %v256, 1
    %v282 = vpop.permute.xlu0 %281
    %283 = vrot.lane.b32.xlu0 %v265, 1
    %v284 = vpop.permute.xlu0 %283
    %285 = vrot.lane.b32.xlu0 %v266, 1
    %v286 = vpop.permute.xlu0 %285
    %287 = vrot.lane.b32.xlu0 %v271, 1
    %v288 = vpop.permute.xlu0 %287
    %289 = vrot.lane.b32.xlu0 %v272, 1
    %v290 = vpop.permute.xlu0 %289
    %291 = vrot.lane.b32.xlu0 %v277, 1
    %v292 = vpop.permute.xlu0 %291
    %293 = vrot.lane.b32.xlu0 %v278, 1
    %v294 = vpop.permute.xlu0 %293
    %vm303 = vcmask 7168
    %v304 = vsel %vm303, 0.0, %v280
    %v305 = vsel %vm303, 0.0, %v282
    %v306 = vsel %vm303, 0.0, %v284
    %v307 = vsel %vm303, 0.0, %v286
    %v308 = vsel %vm303, 0.0, %v288
    %v309 = vsel %vm303, 0.0, %v290
    %v310 = vsel %vm303, 0.0, %v292
    %v311 = vsel %vm303, 0.0, %v294
    %vm312 = vcmask 138240
    %v313 = vsel %vm312, %v304, 0.0
    %v314 = vsel %vm312, %v305, 0.0
    %v315 = vsel %vm312, %v306, 0.0
    %v316 = vsel %vm312, %v307, 0.0
    %v317 = vsel %vm312, %v308, 0.0
    %v318 = vsel %vm312, %v309, 0.0
    %v319 = vsel %vm312, %v310, 0.0
    %v320 = vsel %vm312, %v311, 0.0
    %vm321 = vcmask 146432
    %322 = vst.msk [vmem:[#allocation2 + $0x1] sm:$0xff] %vm321, %v313
    %323 = vst.msk [vmem:[#allocation2 + $0x9] sm:$0xff] %vm321, %v314
    %324 = vst.msk [vmem:[#allocation2 + $0x19] sm:$0xff] %vm321, %v315
    %325 = vst.msk [vmem:[#allocation2 + $0x21] sm:$0xff] %vm321, %v316
    %326 = vst.msk [vmem:[#allocation2 + $0x31] sm:$0xff] %vm321, %v317
    %327 = vst.msk [vmem:[#allocation2 + $0x39] sm:$0xff] %vm321, %v318
    %328 = vst.msk [vmem:[#allocation2 + $0x49] sm:$0xff] %vm321, %v319
    %329 = vst.msk [vmem:[#allocation2 + $0x51] sm:$0xff] %vm321, %v320
    %v330 = vld [vmem:[#allocation2] sm:$0xff]
    %v331 = vld [vmem:[#allocation2 + $0x8] sm:$0xff]
    %v332 = vld [vmem:[#allocation2 + $0x10] sm:$0x3]
    %v333 = vld [vmem:[#allocation2 + $0x18] sm:$0xff]
    %v334 = vld [vmem:[#allocation2 + $0x20] sm:$0xff]
    %v335 = vld [vmem:[#allocation2 + $0x28] sm:$0x3]
    %v336 = vld [vmem:[#allocation2 + $0x30] sm:$0xff]
    %v337 = vld [vmem:[#allocation2 + $0x38] sm:$0xff]
    %v338 = vld [vmem:[#allocation2 + $0x40] sm:$0x3]
    %v339 = vld [vmem:[#allocation2 + $0x48] sm:$0xff]
    %v340 = vld [vmem:[#allocation2 + $0x50] sm:$0xff]
    %v341 = vld [vmem:[#allocation2 + $0x58] sm:$0x3]
    %v342 = vrot.slane %v336, 4
    %v343 = vsel %vm120, %v342, %v330
    %v344 = vrot.slane %v330, 4
    %v345 = vsel %vm120, %v336, %v344
    %v347 = vunpack.c.l.s4 1983009808
    %v348 = vunpack.c.0.s8 %v347
    %v349 = vperm.slane %v343, %v348
    %v351 = vunpack.c.l.s4 1983009808
    %v352 = vunpack.c.0.s8 %v351
    %v353 = vperm.slane %v345, %v352
    %v354 = vrot.slane %v339, 4
    %v355 = vsel %vm120, %v354, %v333
    %v356 = vrot.slane %v333, 4
    %v357 = vsel %vm120, %v339, %v356
    %v359 = vunpack.c.l.s4 1983009808
    %v360 = vunpack.c.0.s8 %v359
    %v361 = vperm.slane %v355, %v360
    %v363 = vunpack.c.l.s4 1983009808
    %v364 = vunpack.c.0.s8 %v363
    %v365 = vperm.slane %v357, %v364
    %v366 = vrot.slane %v361, 4
    %v367 = vsel %vm120, %v366, %v349
    %v368 = vrot.slane %v349, 4
    %v369 = vsel %vm120, %v361, %v368
    %v371 = vunpack.c.l.s4 1934713408
    %v372 = vunpack.c.0.s8 %v371
    %v373 = vperm.slane %v367, %v372
    %v375 = vunpack.c.l.s4 1934713408
    %v376 = vunpack.c.0.s8 %v375
    %v377 = vperm.slane %v369, %v376
    %v378 = vrot.slane %v365, 4
    %v379 = vsel %vm120, %v378, %v353
    %v380 = vrot.slane %v353, 4
    %v381 = vsel %vm120, %v365, %v380
    %v383 = vunpack.c.l.s4 1934713408
    %v384 = vunpack.c.0.s8 %v383
    %v385 = vperm.slane %v379, %v384
    %v387 = vunpack.c.l.s4 1934713408
    %v388 = vunpack.c.0.s8 %v387
    %v389 = vperm.slane %v381, %v388
    %v390 = vrot.slane %v373, 4
    %v391 = vsel %vm120, 0.0, %v390
    %v392 = vrot.slane %v377, 4
    %v393 = vsel %vm120, 0.0, %v392
    %v394 = vrot.slane %v385, 4
    %v395 = vsel %vm120, 0.0, %v394
    %v396 = vrot.slane %v389, 4
    %v397 = vsel %vm120, 0.0, %v396
    %v398 = vrot.slane %v337, 4
    %v399 = vsel %vm120, %v398, %v331
    %v400 = vrot.slane %v331, 4
    %v401 = vsel %vm120, %v337, %v400
    %v403 = vunpack.c.l.s4 1983009808
    %v404 = vunpack.c.0.s8 %v403
    %v405 = vperm.slane %v399, %v404
    %v407 = vunpack.c.l.s4 1983009808
    %v408 = vunpack.c.0.s8 %v407
    %v409 = vperm.slane %v401, %v408
    %v410 = vrot.slane %v340, 4
    %v411 = vsel %vm120, %v410, %v334
    %v412 = vrot.slane %v334, 4
    %v413 = vsel %vm120, %v340, %v412
    %v415 = vunpack.c.l.s4 1983009808
    %v416 = vunpack.c.0.s8 %v415
    %v417 = vperm.slane %v411, %v416
    %v419 = vunpack.c.l.s4 1983009808
    %v420 = vunpack.c.0.s8 %v419
    %v421 = vperm.slane %v413, %v420
    %v422 = vrot.slane %v417, 4
    %v423 = vsel %vm120, %v422, %v405
    %v424 = vrot.slane %v405, 4
    %v425 = vsel %vm120, %v417, %v424
    %v427 = vunpack.c.l.s4 1934713408
    %v428 = vunpack.c.0.s8 %v427
    %v429 = vperm.slane %v423, %v428
    %v431 = vunpack.c.l.s4 1934713408
    %v432 = vunpack.c.0.s8 %v431
    %v433 = vperm.slane %v425, %v432
    %v434 = vrot.slane %v421, 4
    %v435 = vsel %vm120, %v434, %v409
    %v436 = vrot.slane %v409, 4
    %v437 = vsel %vm120, %v421, %v436
    %v439 = vunpack.c.l.s4 1934713408
    %v440 = vunpack.c.0.s8 %v439
    %v441 = vperm.slane %v435, %v440
    %v443 = vunpack.c.l.s4 1934713408
    %v444 = vunpack.c.0.s8 %v443
    %v445 = vperm.slane %v437, %v444
    %v446 = vrot.slane %v429, 4
    %v447 = vsel %vm120, 0.0, %v446
    %v448 = vrot.slane %v433, 4
    %v449 = vsel %vm120, 0.0, %v448
    %v450 = vrot.slane %v441, 4
    %v451 = vsel %vm120, 0.0, %v450
    %v452 = vrot.slane %v445, 4
    %v453 = vsel %vm120, 0.0, %v452
    %455 = vrot.lane.b32.xlu0 %v391, 16
    %v456 = vpop.permute.xlu0 %455
    %459 = vrot.lane.b32.xlu0 %v377, 32
    %v460 = vpop.permute.xlu0 %459
    %463 = vrot.lane.b32.xlu0 %v393, 48
    %v464 = vpop.permute.xlu0 %463
    %467 = vrot.lane.b32.xlu0 %v385, 64
    %v468 = vpop.permute.xlu0 %467
    %471 = vrot.lane.b32.xlu0 %v395, 80
    %v472 = vpop.permute.xlu0 %471
    %475 = vrot.lane.b32.xlu0 %v389, 96
    %v476 = vpop.permute.xlu0 %475
    %479 = vrot.lane.b32.xlu0 %v397, 112
    %v480 = vpop.permute.xlu0 %479
    %483 = vrot.lane.b32.xlu0 %v447, 16
    %v484 = vpop.permute.xlu0 %483
    %487 = vrot.lane.b32.xlu0 %v433, 32
    %v488 = vpop.permute.xlu0 %487
    %491 = vrot.lane.b32.xlu0 %v449, 48
    %v492 = vpop.permute.xlu0 %491
    %495 = vrot.lane.b32.xlu0 %v441, 64
    %v496 = vpop.permute.xlu0 %495
    %499 = vrot.lane.b32.xlu0 %v451, 80
    %v500 = vpop.permute.xlu0 %499
    %503 = vrot.lane.b32.xlu0 %v445, 96
    %v504 = vpop.permute.xlu0 %503
    %507 = vrot.lane.b32.xlu0 %v453, 112
    %v508 = vpop.permute.xlu0 %507
    %vm510 = vcmask 130048
    %v511 = vsel %vm510, %v373, %v456
    %vm512 = vcmask 261120
    %v513 = vsel %vm512, %v511, %v460
    %vm514 = vcmask 392192
    %v515 = vsel %vm514, %v513, %v464
    %vm516 = vcmask 523264
    %v517 = vsel %vm516, %v515, %v468
    %vm518 = vcmask 654336
    %v519 = vsel %vm518, %v517, %v472
    %vm520 = vcmask 785408
    %v521 = vsel %vm520, %v519, %v476
    %vm522 = vcmask 916480
    %v523 = vsel %vm522, %v521, %v480
    %v524 = vsel %vm510, %v429, %v484
    %v525 = vsel %vm512, %v524, %v488
    %v526 = vsel %vm514, %v525, %v492
    %v527 = vsel %vm516, %v526, %v496
    %v528 = vsel %vm518, %v527, %v500
    %v529 = vsel %vm520, %v528, %v504
    %v530 = vsel %vm522, %v529, %v508
    %539 = vrot.lane.b32.xlu0 %v330, 127
    %v540 = vpop.permute.xlu0 %539
    %541 = vrot.lane.b32.xlu0 %v331, 127
    %v542 = vpop.permute.xlu0 %541
    %543 = vrot.lane.b32.xlu0 %v333, 127
    %v544 = vpop.permute.xlu0 %543
    %545 = vrot.lane.b32.xlu0 %v334, 127
    %v546 = vpop.permute.xlu0 %545
    %547 = vrot.lane.b32.xlu0 %v336, 127
    %v548 = vpop.permute.xlu0 %547
    %549 = vrot.lane.b32.xlu0 %v337, 127
    %v550 = vpop.permute.xlu0 %549
    %551 = vrot.lane.b32.xlu0 %v339, 127
    %v552 = vpop.permute.xlu0 %551
    %553 = vrot.lane.b32.xlu0 %v340, 127
    %v554 = vpop.permute.xlu0 %553
    %v563 = vrot.slane %v548, 4
    %v564 = vsel %vm120, %v563, %v540
    %v565 = vrot.slane %v540, 4
    %v566 = vsel %vm120, %v548, %v565
    %v568 = vunpack.c.l.s4 1983009808
    %v569 = vunpack.c.0.s8 %v568
    %v570 = vperm.slane %v564, %v569
    %v572 = vunpack.c.l.s4 1983009808
    %v573 = vunpack.c.0.s8 %v572
    %v574 = vperm.slane %v566, %v573
    %v575 = vrot.slane %v552, 4
    %v576 = vsel %vm120, %v575, %v544
    %v577 = vrot.slane %v544, 4
    %v578 = vsel %vm120, %v552, %v577
    %v580 = vunpack.c.l.s4 1983009808
    %v581 = vunpack.c.0.s8 %v580
    %v582 = vperm.slane %v576, %v581
    %v584 = vunpack.c.l.s4 1983009808
    %v585 = vunpack.c.0.s8 %v584
    %v586 = vperm.slane %v578, %v585
    %v587 = vrot.slane %v582, 4
    %v588 = vsel %vm120, %v587, %v570
    %v589 = vrot.slane %v570, 4
    %v590 = vsel %vm120, %v582, %v589
    %v592 = vunpack.c.l.s4 1934713408
    %v593 = vunpack.c.0.s8 %v592
    %v594 = vperm.slane %v588, %v593
    %v596 = vunpack.c.l.s4 1934713408
    %v597 = vunpack.c.0.s8 %v596
    %v598 = vperm.slane %v590, %v597
    %v599 = vrot.slane %v586, 4
    %v600 = vsel %vm120, %v599, %v574
    %v601 = vrot.slane %v574, 4
    %v602 = vsel %vm120, %v586, %v601
    %v604 = vunpack.c.l.s4 1934713408
    %v605 = vunpack.c.0.s8 %v604
    %v606 = vperm.slane %v600, %v605
    %v608 = vunpack.c.l.s4 1934713408
    %v609 = vunpack.c.0.s8 %v608
    %v610 = vperm.slane %v602, %v609
    %v611 = vrot.slane %v594, 4
    %v612 = vsel %vm120, 0.0, %v611
    %v613 = vrot.slane %v598, 4
    %v614 = vsel %vm120, 0.0, %v613
    %v615 = vrot.slane %v606, 4
    %v616 = vsel %vm120, 0.0, %v615
    %v617 = vrot.slane %v610, 4
    %v618 = vsel %vm120, 0.0, %v617
    %v619 = vrot.slane %v550, 4
    %v620 = vsel %vm120, %v619, %v542
    %v621 = vrot.slane %v542, 4
    %v622 = vsel %vm120, %v550, %v621
    %v624 = vunpack.c.l.s4 1983009808
    %v625 = vunpack.c.0.s8 %v624
    %v626 = vperm.slane %v620, %v625
    %v628 = vunpack.c.l.s4 1983009808
    %v629 = vunpack.c.0.s8 %v628
    %v630 = vperm.slane %v622, %v629
    %v631 = vrot.slane %v554, 4
    %v632 = vsel %vm120, %v631, %v546
    %v633 = vrot.slane %v546, 4
    %v634 = vsel %vm120, %v554, %v633
    %v636 = vunpack.c.l.s4 1983009808
    %v637 = vunpack.c.0.s8 %v636
    %v638 = vperm.slane %v632, %v637
    %v640 = vunpack.c.l.s4 1983009808
    %v641 = vunpack.c.0.s8 %v640
    %v642 = vperm.slane %v634, %v641
    %v643 = vrot.slane %v638, 4
    %v644 = vsel %vm120, %v643, %v626
    %v645 = vrot.slane %v626, 4
    %v646 = vsel %vm120, %v638, %v645
    %v648 = vunpack.c.l.s4 1934713408
    %v649 = vunpack.c.0.s8 %v648
    %v650 = vperm.slane %v644, %v649
    %v652 = vunpack.c.l.s4 1934713408
    %v653 = vunpack.c.0.s8 %v652
    %v654 = vperm.slane %v646, %v653
    %v655 = vrot.slane %v642, 4
    %v656 = vsel %vm120, %v655, %v630
    %v657 = vrot.slane %v630, 4
    %v658 = vsel %vm120, %v642, %v657
    %v660 = vunpack.c.l.s4 1934713408
    %v661 = vunpack.c.0.s8 %v660
    %v662 = vperm.slane %v656, %v661
    %v664 = vunpack.c.l.s4 1934713408
    %v665 = vunpack.c.0.s8 %v664
    %v666 = vperm.slane %v658, %v665
    %v667 = vrot.slane %v650, 4
    %v668 = vsel %vm120, 0.0, %v667
    %v669 = vrot.slane %v654, 4
    %v670 = vsel %vm120, 0.0, %v669
    %v671 = vrot.slane %v662, 4
    %v672 = vsel %vm120, 0.0, %v671
    %v673 = vrot.slane %v666, 4
    %v674 = vsel %vm120, 0.0, %v673
    %676 = vrot.lane.b32.xlu0 %v612, 16
    %v677 = vpop.permute.xlu0 %676
    %680 = vrot.lane.b32.xlu0 %v598, 32
    %v681 = vpop.permute.xlu0 %680
    %684 = vrot.lane.b32.xlu0 %v614, 48
    %v685 = vpop.permute.xlu0 %684
    %688 = vrot.lane.b32.xlu0 %v606, 64
    %v689 = vpop.permute.xlu0 %688
    %692 = vrot.lane.b32.xlu0 %v616, 80
    %v693 = vpop.permute.xlu0 %692
    %696 = vrot.lane.b32.xlu0 %v610, 96
    %v697 = vpop.permute.xlu0 %696
    %700 = vrot.lane.b32.xlu0 %v618, 112
    %v701 = vpop.permute.xlu0 %700
    %704 = vrot.lane.b32.xlu0 %v668, 16
    %v705 = vpop.permute.xlu0 %704
    %708 = vrot.lane.b32.xlu0 %v654, 32
    %v709 = vpop.permute.xlu0 %708
    %712 = vrot.lane.b32.xlu0 %v670, 48
    %v713 = vpop.permute.xlu0 %712
    %716 = vrot.lane.b32.xlu0 %v662, 64
    %v717 = vpop.permute.xlu0 %716
    %720 = vrot.lane.b32.xlu0 %v672, 80
    %v721 = vpop.permute.xlu0 %720
    %724 = vrot.lane.b32.xlu0 %v666, 96
    %v725 = vpop.permute.xlu0 %724
    %728 = vrot.lane.b32.xlu0 %v674, 112
    %v729 = vpop.permute.xlu0 %728
    %v731 = vsel %vm510, %v594, %v677
    %v732 = vsel %vm512, %v731, %v681
    %v733 = vsel %vm514, %v732, %v685
    %v734 = vsel %vm516, %v733, %v689
    %v735 = vsel %vm518, %v734, %v693
    %v736 = vsel %vm520, %v735, %v697
    %v737 = vsel %vm522, %v736, %v701
    %v738 = vsel %vm510, %v650, %v705
    %v739 = vsel %vm512, %v738, %v709
    %v740 = vsel %vm514, %v739, %v713
    %v741 = vsel %vm516, %v740, %v717
    %v742 = vsel %vm518, %v741, %v721
    %v743 = vsel %vm520, %v742, %v725
    %v744 = vsel %vm522, %v743, %v729
    %745 = vrot.lane.b32.xlu0 %v330, 126
    %v746 = vpop.permute.xlu0 %745
    %747 = vrot.lane.b32.xlu0 %v331, 126
    %v748 = vpop.permute.xlu0 %747
    %749 = vrot.lane.b32.xlu0 %v333, 126
    %v750 = vpop.permute.xlu0 %749
    %751 = vrot.lane.b32.xlu0 %v334, 126
    %v752 = vpop.permute.xlu0 %751
    %753 = vrot.lane.b32.xlu0 %v336, 126
    %v754 = vpop.permute.xlu0 %753
    %755 = vrot.lane.b32.xlu0 %v337, 126
    %v756 = vpop.permute.xlu0 %755
    %757 = vrot.lane.b32.xlu0 %v339, 126
    %v758 = vpop.permute.xlu0 %757
    %759 = vrot.lane.b32.xlu0 %v340, 126
    %v760 = vpop.permute.xlu0 %759
    %v769 = vrot.slane %v754, 4
    %v770 = vsel %vm120, %v769, %v746
    %v771 = vrot.slane %v746, 4
    %v772 = vsel %vm120, %v754, %v771
    %v774 = vunpack.c.l.s4 1983009808
    %v775 = vunpack.c.0.s8 %v774
    %v776 = vperm.slane %v770, %v775
    %v778 = vunpack.c.l.s4 1983009808
    %v779 = vunpack.c.0.s8 %v778
    %v780 = vperm.slane %v772, %v779
    %v781 = vrot.slane %v758, 4
    %v782 = vsel %vm120, %v781, %v750
    %v783 = vrot.slane %v750, 4
    %v784 = vsel %vm120, %v758, %v783
    %v786 = vunpack.c.l.s4 1983009808
    %v787 = vunpack.c.0.s8 %v786
    %v788 = vperm.slane %v782, %v787
    %v790 = vunpack.c.l.s4 1983009808
    %v791 = vunpack.c.0.s8 %v790
    %v792 = vperm.slane %v784, %v791
    %v793 = vrot.slane %v788, 4
    %v794 = vsel %vm120, %v793, %v776
    %v795 = vrot.slane %v776, 4
    %v796 = vsel %vm120, %v788, %v795
    %v798 = vunpack.c.l.s4 1934713408
    %v799 = vunpack.c.0.s8 %v798
    %v800 = vperm.slane %v794, %v799
    %v802 = vunpack.c.l.s4 1934713408
    %v803 = vunpack.c.0.s8 %v802
    %v804 = vperm.slane %v796, %v803
    %v805 = vrot.slane %v792, 4
    %v806 = vsel %vm120, %v805, %v780
    %v807 = vrot.slane %v780, 4
    %v808 = vsel %vm120, %v792, %v807
    %v810 = vunpack.c.l.s4 1934713408
    %v811 = vunpack.c.0.s8 %v810
    %v812 = vperm.slane %v806, %v811
    %v814 = vunpack.c.l.s4 1934713408
    %v815 = vunpack.c.0.s8 %v814
    %v816 = vperm.slane %v808, %v815
    %v817 = vrot.slane %v800, 4
    %v818 = vsel %vm120, 0.0, %v817
    %v819 = vrot.slane %v804, 4
    %v820 = vsel %vm120, 0.0, %v819
    %v821 = vrot.slane %v812, 4
    %v822 = vsel %vm120, 0.0, %v821
    %v823 = vrot.slane %v816, 4
    %v824 = vsel %vm120, 0.0, %v823
    %v825 = vrot.slane %v756, 4
    %v826 = vsel %vm120, %v825, %v748
    %v827 = vrot.slane %v748, 4
    %v828 = vsel %vm120, %v756, %v827
    %v830 = vunpack.c.l.s4 1983009808
    %v831 = vunpack.c.0.s8 %v830
    %v832 = vperm.slane %v826, %v831
    %v834 = vunpack.c.l.s4 1983009808
    %v835 = vunpack.c.0.s8 %v834
    %v836 = vperm.slane %v828, %v835
    %v837 = vrot.slane %v760, 4
    %v838 = vsel %vm120, %v837, %v752
    %v839 = vrot.slane %v752, 4
    %v840 = vsel %vm120, %v760, %v839
    %v842 = vunpack.c.l.s4 1983009808
    %v843 = vunpack.c.0.s8 %v842
    %v844 = vperm.slane %v838, %v843
    %v846 = vunpack.c.l.s4 1983009808
    %v847 = vunpack.c.0.s8 %v846
    %v848 = vperm.slane %v840, %v847
    %v849 = vrot.slane %v844, 4
    %v850 = vsel %vm120, %v849, %v832
    %v851 = vrot.slane %v832, 4
    %v852 = vsel %vm120, %v844, %v851
    %v854 = vunpack.c.l.s4 1934713408
    %v855 = vunpack.c.0.s8 %v854
    %v856 = vperm.slane %v850, %v855
    %v858 = vunpack.c.l.s4 1934713408
    %v859 = vunpack.c.0.s8 %v858
    %v860 = vperm.slane %v852, %v859
    %v861 = vrot.slane %v848, 4
    %v862 = vsel %vm120, %v861, %v836
    %v863 = vrot.slane %v836, 4
    %v864 = vsel %vm120, %v848, %v863
    %v866 = vunpack.c.l.s4 1934713408
    %v867 = vunpack.c.0.s8 %v866
    %v868 = vperm.slane %v862, %v867
    %v870 = vunpack.c.l.s4 1934713408
    %v871 = vunpack.c.0.s8 %v870
    %v872 = vperm.slane %v864, %v871
    %v873 = vrot.slane %v856, 4
    %v874 = vsel %vm120, 0.0, %v873
    %v875 = vrot.slane %v860, 4
    %v876 = vsel %vm120, 0.0, %v875
    %v877 = vrot.slane %v868, 4
    %v878 = vsel %vm120, 0.0, %v877
    %v879 = vrot.slane %v872, 4
    %v880 = vsel %vm120, 0.0, %v879
    %882 = vrot.lane.b32.xlu0 %v818, 16
    %v883 = vpop.permute.xlu0 %882
    %886 = vrot.lane.b32.xlu0 %v804, 32
    %v887 = vpop.permute.xlu0 %886
    %890 = vrot.lane.b32.xlu0 %v820, 48
    %v891 = vpop.permute.xlu0 %890
    %894 = vrot.lane.b32.xlu0 %v812, 64
    %v895 = vpop.permute.xlu0 %894
    %898 = vrot.lane.b32.xlu0 %v822, 80
    %v899 = vpop.permute.xlu0 %898
    %902 = vrot.lane.b32.xlu0 %v816, 96
    %v903 = vpop.permute.xlu0 %902
    %906 = vrot.lane.b32.xlu0 %v824, 112
    %v907 = vpop.permute.xlu0 %906
    %910 = vrot.lane.b32.xlu0 %v874, 16
    %v911 = vpop.permute.xlu0 %910
    %914 = vrot.lane.b32.xlu0 %v860, 32
    %v915 = vpop.permute.xlu0 %914
    %918 = vrot.lane.b32.xlu0 %v876, 48
    %v919 = vpop.permute.xlu0 %918
    %922 = vrot.lane.b32.xlu0 %v868, 64
    %v923 = vpop.permute.xlu0 %922
    %926 = vrot.lane.b32.xlu0 %v878, 80
    %v927 = vpop.permute.xlu0 %926
    %930 = vrot.lane.b32.xlu0 %v872, 96
    %v931 = vpop.permute.xlu0 %930
    %934 = vrot.lane.b32.xlu0 %v880, 112
    %v935 = vpop.permute.xlu0 %934
    %v937 = vsel %vm510, %v800, %v883
    %v938 = vsel %vm512, %v937, %v887
    %v939 = vsel %vm514, %v938, %v891
    %v940 = vsel %vm516, %v939, %v895
    %v941 = vsel %vm518, %v940, %v899
    %v942 = vsel %vm520, %v941, %v903
    %v943 = vsel %vm522, %v942, %v907
    %v944 = vsel %vm510, %v856, %v911
    %v945 = vsel %vm512, %v944, %v915
    %v946 = vsel %vm514, %v945, %v919
    %v947 = vsel %vm516, %v946, %v923
    %v948 = vsel %vm518, %v947, %v927
    %v949 = vsel %vm520, %v948, %v931
    %v950 = vsel %vm522, %v949, %v935
    %vm955 = vcmask 1046528
    %v956 = vrot.slane %v330, 1
    %v957 = vrot.slane %v331, 1
    %v958 = vsel %vm955, %v956, %v957
    %v959 = vrot.slane %v332, 1
    %v960 = vsel %vm955, %v957, %v959
    %v961 = vrot.slane %v333, 1
    %v962 = vrot.slane %v334, 1
    %v963 = vsel %vm955, %v961, %v962
    %v964 = vrot.slane %v335, 1
    %v965 = vsel %vm955, %v962, %v964
    %v966 = vrot.slane %v336, 1
    %v967 = vrot.slane %v337, 1
    %v968 = vsel %vm955, %v966, %v967
    %v969 = vrot.slane %v338, 1
    %v970 = vsel %vm955, %v967, %v969
    %v971 = vrot.slane %v339, 1
    %v972 = vrot.slane %v340, 1
    %v973 = vsel %vm955, %v971, %v972
    %v974 = vrot.slane %v341, 1
    %v975 = vsel %vm955, %v972, %v974
    %v984 = vrot.slane %v968, 4
    %v985 = vsel %vm120, %v984, %v958
    %v986 = vrot.slane %v958, 4
    %v987 = vsel %vm120, %v968, %v986
    %v989 = vunpack.c.l.s4 1983009808
    %v990 = vunpack.c.0.s8 %v989
    %v991 = vperm.slane %v985, %v990
    %v993 = vunpack.c.l.s4 1983009808
    %v994 = vunpack.c.0.s8 %v993
    %v995 = vperm.slane %v987, %v994
    %v996 = vrot.slane %v973, 4
    %v997 = vsel %vm120, %v996, %v963
    %v998 = vrot.slane %v963, 4
    %v999 = vsel %vm120, %v973, %v998
    %v1001 = vunpack.c.l.s4 1983009808
    %v1002 = vunpack.c.0.s8 %v1001
    %v1003 = vperm.slane %v997, %v1002
    %v1005 = vunpack.c.l.s4 1983009808
    %v1006 = vunpack.c.0.s8 %v1005
    %v1007 = vperm.slane %v999, %v1006
    %v1008 = vrot.slane %v1003, 4
    %v1009 = vsel %vm120, %v1008, %v991
    %v1010 = vrot.slane %v991, 4
    %v1011 = vsel %vm120, %v1003, %v1010
    %v1013 = vunpack.c.l.s4 1934713408
    %v1014 = vunpack.c.0.s8 %v1013
    %v1015 = vperm.slane %v1009, %v1014
    %v1017 = vunpack.c.l.s4 1934713408
    %v1018 = vunpack.c.0.s8 %v1017
    %v1019 = vperm.slane %v1011, %v1018
    %v1020 = vrot.slane %v1007, 4
    %v1021 = vsel %vm120, %v1020, %v995
    %v1022 = vrot.slane %v995, 4
    %v1023 = vsel %vm120, %v1007, %v1022
    %v1025 = vunpack.c.l.s4 1934713408
    %v1026 = vunpack.c.0.s8 %v1025
    %v1027 = vperm.slane %v1021, %v1026
    %v1029 = vunpack.c.l.s4 1934713408
    %v1030 = vunpack.c.0.s8 %v1029
    %v1031 = vperm.slane %v1023, %v1030
    %v1032 = vrot.slane %v1015, 4
    %v1033 = vsel %vm120, 0.0, %v1032
    %v1034 = vrot.slane %v1019, 4
    %v1035 = vsel %vm120, 0.0, %v1034
    %v1036 = vrot.slane %v1027, 4
    %v1037 = vsel %vm120, 0.0, %v1036
    %v1038 = vrot.slane %v1031, 4
    %v1039 = vsel %vm120, 0.0, %v1038
    %v1040 = vrot.slane %v970, 4
    %v1041 = vsel %vm120, %v1040, %v960
    %v1042 = vrot.slane %v960, 4
    %v1043 = vsel %vm120, %v970, %v1042
    %v1045 = vunpack.c.l.s4 1983009808
    %v1046 = vunpack.c.0.s8 %v1045
    %v1047 = vperm.slane %v1041, %v1046
    %v1049 = vunpack.c.l.s4 1983009808
    %v1050 = vunpack.c.0.s8 %v1049
    %v1051 = vperm.slane %v1043, %v1050
    %v1052 = vrot.slane %v975, 4
    %v1053 = vsel %vm120, %v1052, %v965
    %v1054 = vrot.slane %v965, 4
    %v1055 = vsel %vm120, %v975, %v1054
    %v1057 = vunpack.c.l.s4 1983009808
    %v1058 = vunpack.c.0.s8 %v1057
    %v1059 = vperm.slane %v1053, %v1058
    %v1061 = vunpack.c.l.s4 1983009808
    %v1062 = vunpack.c.0.s8 %v1061
    %v1063 = vperm.slane %v1055, %v1062
    %v1064 = vrot.slane %v1059, 4
    %v1065 = vsel %vm120, %v1064, %v1047
    %v1066 = vrot.slane %v1047, 4
    %v1067 = vsel %vm120, %v1059, %v1066
    %v1069 = vunpack.c.l.s4 1934713408
    %v1070 = vunpack.c.0.s8 %v1069
    %v1071 = vperm.slane %v1065, %v1070
    %v1073 = vunpack.c.l.s4 1934713408
    %v1074 = vunpack.c.0.s8 %v1073
    %v1075 = vperm.slane %v1067, %v1074
    %v1076 = vrot.slane %v1063, 4
    %v1077 = vsel %vm120, %v1076, %v1051
    %v1078 = vrot.slane %v1051, 4
    %v1079 = vsel %vm120, %v1063, %v1078
    %v1081 = vunpack.c.l.s4 1934713408
    %v1082 = vunpack.c.0.s8 %v1081
    %v1083 = vperm.slane %v1077, %v1082
    %v1085 = vunpack.c.l.s4 1934713408
    %v1086 = vunpack.c.0.s8 %v1085
    %v1087 = vperm.slane %v1079, %v1086
    %v1088 = vrot.slane %v1071, 4
    %v1089 = vsel %vm120, 0.0, %v1088
    %v1090 = vrot.slane %v1075, 4
    %v1091 = vsel %vm120, 0.0, %v1090
    %v1092 = vrot.slane %v1083, 4
    %v1093 = vsel %vm120, 0.0, %v1092
    %v1094 = vrot.slane %v1087, 4
    %v1095 = vsel %vm120, 0.0, %v1094
    %1097 = vrot.lane.b32.xlu0 %v1033, 16
    %v1098 = vpop.permute.xlu0 %1097
    %1101 = vrot.lane.b32.xlu0 %v1019, 32
    %v1102 = vpop.permute.xlu0 %1101
    %1105 = vrot.lane.b32.xlu0 %v1035, 48
    %v1106 = vpop.permute.xlu0 %1105
    %1109 = vrot.lane.b32.xlu0 %v1027, 64
    %v1110 = vpop.permute.xlu0 %1109
    %1113 = vrot.lane.b32.xlu0 %v1037, 80
    %v1114 = vpop.permute.xlu0 %1113
    %1117 = vrot.lane.b32.xlu0 %v1031, 96
    %v1118 = vpop.permute.xlu0 %1117
    %1121 = vrot.lane.b32.xlu0 %v1039, 112
    %v1122 = vpop.permute.xlu0 %1121
    %1125 = vrot.lane.b32.xlu0 %v1089, 16
    %v1126 = vpop.permute.xlu0 %1125
    %1129 = vrot.lane.b32.xlu0 %v1075, 32
    %v1130 = vpop.permute.xlu0 %1129
    %1133 = vrot.lane.b32.xlu0 %v1091, 48
    %v1134 = vpop.permute.xlu0 %1133
    %1137 = vrot.lane.b32.xlu0 %v1083, 64
    %v1138 = vpop.permute.xlu0 %1137
    %1141 = vrot.lane.b32.xlu0 %v1093, 80
    %v1142 = vpop.permute.xlu0 %1141
    %1145 = vrot.lane.b32.xlu0 %v1087, 96
    %v1146 = vpop.permute.xlu0 %1145
    %1149 = vrot.lane.b32.xlu0 %v1095, 112
    %v1150 = vpop.permute.xlu0 %1149
    %v1152 = vsel %vm510, %v1015, %v1098
    %v1153 = vsel %vm512, %v1152, %v1102
    %v1154 = vsel %vm514, %v1153, %v1106
    %v1155 = vsel %vm516, %v1154, %v1110
    %v1156 = vsel %vm518, %v1155, %v1114
    %v1157 = vsel %vm520, %v1156, %v1118
    %v1158 = vsel %vm522, %v1157, %v1122
    %v1159 = vsel %vm510, %v1071, %v1126
    %v1160 = vsel %vm512, %v1159, %v1130
    %v1161 = vsel %vm514, %v1160, %v1134
    %v1162 = vsel %vm516, %v1161, %v1138
    %v1163 = vsel %vm518, %v1162, %v1142
    %v1164 = vsel %vm520, %v1163, %v1146
    %v1165 = vsel %vm522, %v1164, %v1150
    %1166 = vrot.lane.b32.xlu0 %v958, 127
    %v1167 = vpop.permute.xlu0 %1166
    %1168 = vrot.lane.b32.xlu0 %v960, 127
    %v1169 = vpop.permute.xlu0 %1168
    %1170 = vrot.lane.b32.xlu0 %v963, 127
    %v1171 = vpop.permute.xlu0 %1170
    %1172 = vrot.lane.b32.xlu0 %v965, 127
    %v1173 = vpop.permute.xlu0 %1172
    %1174 = vrot.lane.b32.xlu0 %v968, 127
    %v1175 = vpop.permute.xlu0 %1174
    %1176 = vrot.lane.b32.xlu0 %v970, 127
    %v1177 = vpop.permute.xlu0 %1176
    %1178 = vrot.lane.b32.xlu0 %v973, 127
    %v1179 = vpop.permute.xlu0 %1178
    %1180 = vrot.lane.b32.xlu0 %v975, 127
    %v1181 = vpop.permute.xlu0 %1180
    %v1190 = vrot.slane %v1175, 4
    %v1191 = vsel %vm120, %v1190, %v1167
    %v1192 = vrot.slane %v1167, 4
    %v1193 = vsel %vm120, %v1175, %v1192
    %v1195 = vunpack.c.l.s4 1983009808
    %v1196 = vunpack.c.0.s8 %v1195
    %v1197 = vperm.slane %v1191, %v1196
    %v1199 = vunpack.c.l.s4 1983009808
    %v1200 = vunpack.c.0.s8 %v1199
    %v1201 = vperm.slane %v1193, %v1200
    %v1202 = vrot.slane %v1179, 4
    %v1203 = vsel %vm120, %v1202, %v1171
    %v1204 = vrot.slane %v1171, 4
    %v1205 = vsel %vm120, %v1179, %v1204
    %v1207 = vunpack.c.l.s4 1983009808
    %v1208 = vunpack.c.0.s8 %v1207
    %v1209 = vperm.slane %v1203, %v1208
    %v1211 = vunpack.c.l.s4 1983009808
    %v1212 = vunpack.c.0.s8 %v1211
    %v1213 = vperm.slane %v1205, %v1212
    %v1214 = vrot.slane %v1209, 4
    %v1215 = vsel %vm120, %v1214, %v1197
    %v1216 = vrot.slane %v1197, 4
    %v1217 = vsel %vm120, %v1209, %v1216
    %v1219 = vunpack.c.l.s4 1934713408
    %v1220 = vunpack.c.0.s8 %v1219
    %v1221 = vperm.slane %v1215, %v1220
    %v1223 = vunpack.c.l.s4 1934713408
    %v1224 = vunpack.c.0.s8 %v1223
    %v1225 = vperm.slane %v1217, %v1224
    %v1226 = vrot.slane %v1213, 4
    %v1227 = vsel %vm120, %v1226, %v1201
    %v1228 = vrot.slane %v1201, 4
    %v1229 = vsel %vm120, %v1213, %v1228
    %v1231 = vunpack.c.l.s4 1934713408
    %v1232 = vunpack.c.0.s8 %v1231
    %v1233 = vperm.slane %v1227, %v1232
    %v1235 = vunpack.c.l.s4 1934713408
    %v1236 = vunpack.c.0.s8 %v1235
    %v1237 = vperm.slane %v1229, %v1236
    %v1238 = vrot.slane %v1221, 4
    %v1239 = vsel %vm120, 0.0, %v1238
    %v1240 = vrot.slane %v1225, 4
    %v1241 = vsel %vm120, 0.0, %v1240
    %v1242 = vrot.slane %v1233, 4
    %v1243 = vsel %vm120, 0.0, %v1242
    %v1244 = vrot.slane %v1237, 4
    %v1245 = vsel %vm120, 0.0, %v1244
    %v1246 = vrot.slane %v1177, 4
    %v1247 = vsel %vm120, %v1246, %v1169
    %v1248 = vrot.slane %v1169, 4
    %v1249 = vsel %vm120, %v1177, %v1248
    %v1251 = vunpack.c.l.s4 1983009808
    %v1252 = vunpack.c.0.s8 %v1251
    %v1253 = vperm.slane %v1247, %v1252
    %v1255 = vunpack.c.l.s4 1983009808
    %v1256 = vunpack.c.0.s8 %v1255
    %v1257 = vperm.slane %v1249, %v1256
    %v1258 = vrot.slane %v1181, 4
    %v1259 = vsel %vm120, %v1258, %v1173
    %v1260 = vrot.slane %v1173, 4
    %v1261 = vsel %vm120, %v1181, %v1260
    %v1263 = vunpack.c.l.s4 1983009808
    %v1264 = vunpack.c.0.s8 %v1263
    %v1265 = vperm.slane %v1259, %v1264
    %v1267 = vunpack.c.l.s4 1983009808
    %v1268 = vunpack.c.0.s8 %v1267
    %v1269 = vperm.slane %v1261, %v1268
    %v1270 = vrot.slane %v1265, 4
    %v1271 = vsel %vm120, %v1270, %v1253
    %v1272 = vrot.slane %v1253, 4
    %v1273 = vsel %vm120, %v1265, %v1272
    %v1275 = vunpack.c.l.s4 1934713408
    %v1276 = vunpack.c.0.s8 %v1275
    %v1277 = vperm.slane %v1271, %v1276
    %v1279 = vunpack.c.l.s4 1934713408
    %v1280 = vunpack.c.0.s8 %v1279
    %v1281 = vperm.slane %v1273, %v1280
    %v1282 = vrot.slane %v1269, 4
    %v1283 = vsel %vm120, %v1282, %v1257
    %v1284 = vrot.slane %v1257, 4
    %v1285 = vsel %vm120, %v1269, %v1284
    %v1287 = vunpack.c.l.s4 1934713408
    %v1288 = vunpack.c.0.s8 %v1287
    %v1289 = vperm.slane %v1283, %v1288
    %v1291 = vunpack.c.l.s4 1934713408
    %v1292 = vunpack.c.0.s8 %v1291
    %v1293 = vperm.slane %v1285, %v1292
    %v1294 = vrot.slane %v1277, 4
    %v1295 = vsel %vm120, 0.0, %v1294
    %v1296 = vrot.slane %v1281, 4
    %v1297 = vsel %vm120, 0.0, %v1296
    %v1298 = vrot.slane %v1289, 4
    %v1299 = vsel %vm120, 0.0, %v1298
    %v1300 = vrot.slane %v1293, 4
    %v1301 = vsel %vm120, 0.0, %v1300
    %1303 = vrot.lane.b32.xlu0 %v1239, 16
    %v1304 = vpop.permute.xlu0 %1303
    %1307 = vrot.lane.b32.xlu0 %v1225, 32
    %v1308 = vpop.permute.xlu0 %1307
    %1311 = vrot.lane.b32.xlu0 %v1241, 48
    %v1312 = vpop.permute.xlu0 %1311
    %1315 = vrot.lane.b32.xlu0 %v1233, 64
    %v1316 = vpop.permute.xlu0 %1315
    %1319 = vrot.lane.b32.xlu0 %v1243, 80
    %v1320 = vpop.permute.xlu0 %1319
    %1323 = vrot.lane.b32.xlu0 %v1237, 96
    %v1324 = vpop.permute.xlu0 %1323
    %1327 = vrot.lane.b32.xlu0 %v1245, 112
    %v1328 = vpop.permute.xlu0 %1327
    %1331 = vrot.lane.b32.xlu0 %v1295, 16
    %v1332 = vpop.permute.xlu0 %1331
    %1335 = vrot.lane.b32.xlu0 %v1281, 32
    %v1336 = vpop.permute.xlu0 %1335
    %1339 = vrot.lane.b32.xlu0 %v1297, 48
    %v1340 = vpop.permute.xlu0 %1339
    %1343 = vrot.lane.b32.xlu0 %v1289, 64
    %v1344 = vpop.permute.xlu0 %1343
    %1347 = vrot.lane.b32.xlu0 %v1299, 80
    %v1348 = vpop.permute.xlu0 %1347
    %1351 = vrot.lane.b32.xlu0 %v1293, 96
    %v1352 = vpop.permute.xlu0 %1351
    %1355 = vrot.lane.b32.xlu0 %v1301, 112
    %v1356 = vpop.permute.xlu0 %1355
    %v1358 = vsel %vm510, %v1221, %v1304
    %v1359 = vsel %vm512, %v1358, %v1308
    %v1360 = vsel %vm514, %v1359, %v1312
    %v1361 = vsel %vm516, %v1360, %v1316
    %v1362 = vsel %vm518, %v1361, %v1320
    %v1363 = vsel %vm520, %v1362, %v1324
    %v1364 = vsel %vm522, %v1363, %v1328
    %v1365 = vsel %vm510, %v1277, %v1332
    %v1366 = vsel %vm512, %v1365, %v1336
    %v1367 = vsel %vm514, %v1366, %v1340
    %v1368 = vsel %vm516, %v1367, %v1344
    %v1369 = vsel %vm518, %v1368, %v1348
    %v1370 = vsel %vm520, %v1369, %v1352
    %v1371 = vsel %vm522, %v1370, %v1356
    %1372 = vrot.lane.b32.xlu0 %v958, 126
    %v1373 = vpop.permute.xlu0 %1372
    %1374 = vrot.lane.b32.xlu0 %v960, 126
    %v1375 = vpop.permute.xlu0 %1374
    %1376 = vrot.lane.b32.xlu0 %v963, 126
    %v1377 = vpop.permute.xlu0 %1376
    %1378 = vrot.lane.b32.xlu0 %v965, 126
    %v1379 = vpop.permute.xlu0 %1378
    %1380 = vrot.lane.b32.xlu0 %v968, 126
    %v1381 = vpop.permute.xlu0 %1380
    %1382 = vrot.lane.b32.xlu0 %v970, 126
    %v1383 = vpop.permute.xlu0 %1382
    %1384 = vrot.lane.b32.xlu0 %v973, 126
    %v1385 = vpop.permute.xlu0 %1384
    %1386 = vrot.lane.b32.xlu0 %v975, 126
    %v1387 = vpop.permute.xlu0 %1386
    %v1396 = vrot.slane %v1381, 4
    %v1397 = vsel %vm120, %v1396, %v1373
    %v1398 = vrot.slane %v1373, 4
    %v1399 = vsel %vm120, %v1381, %v1398
    %v1401 = vunpack.c.l.s4 1983009808
    %v1402 = vunpack.c.0.s8 %v1401
    %v1403 = vperm.slane %v1397, %v1402
    %v1405 = vunpack.c.l.s4 1983009808
    %v1406 = vunpack.c.0.s8 %v1405
    %v1407 = vperm.slane %v1399, %v1406
    %v1408 = vrot.slane %v1385, 4
    %v1409 = vsel %vm120, %v1408, %v1377
    %v1410 = vrot.slane %v1377, 4
    %v1411 = vsel %vm120, %v1385, %v1410
    %v1413 = vunpack.c.l.s4 1983009808
    %v1414 = vunpack.c.0.s8 %v1413
    %v1415 = vperm.slane %v1409, %v1414
    %v1417 = vunpack.c.l.s4 1983009808
    %v1418 = vunpack.c.0.s8 %v1417
    %v1419 = vperm.slane %v1411, %v1418
    %v1420 = vrot.slane %v1415, 4
    %v1421 = vsel %vm120, %v1420, %v1403
    %v1422 = vrot.slane %v1403, 4
    %v1423 = vsel %vm120, %v1415, %v1422
    %v1425 = vunpack.c.l.s4 1934713408
    %v1426 = vunpack.c.0.s8 %v1425
    %v1427 = vperm.slane %v1421, %v1426
    %v1429 = vunpack.c.l.s4 1934713408
    %v1430 = vunpack.c.0.s8 %v1429
    %v1431 = vperm.slane %v1423, %v1430
    %v1432 = vrot.slane %v1419, 4
    %v1433 = vsel %vm120, %v1432, %v1407
    %v1434 = vrot.slane %v1407, 4
    %v1435 = vsel %vm120, %v1419, %v1434
    %v1437 = vunpack.c.l.s4 1934713408
    %v1438 = vunpack.c.0.s8 %v1437
    %v1439 = vperm.slane %v1433, %v1438
    %v1441 = vunpack.c.l.s4 1934713408
    %v1442 = vunpack.c.0.s8 %v1441
    %v1443 = vperm.slane %v1435, %v1442
    %v1444 = vrot.slane %v1427, 4
    %v1445 = vsel %vm120, 0.0, %v1444
    %v1446 = vrot.slane %v1431, 4
    %v1447 = vsel %vm120, 0.0, %v1446
    %v1448 = vrot.slane %v1439, 4
    %v1449 = vsel %vm120, 0.0, %v1448
    %v1450 = vrot.slane %v1443, 4
    %v1451 = vsel %vm120, 0.0, %v1450
    %v1452 = vrot.slane %v1383, 4
    %v1453 = vsel %vm120, %v1452, %v1375
    %v1454 = vrot.slane %v1375, 4
    %v1455 = vsel %vm120, %v1383, %v1454
    %v1457 = vunpack.c.l.s4 1983009808
    %v1458 = vunpack.c.0.s8 %v1457
    %v1459 = vperm.slane %v1453, %v1458
    %v1461 = vunpack.c.l.s4 1983009808
    %v1462 = vunpack.c.0.s8 %v1461
    %v1463 = vperm.slane %v1455, %v1462
    %v1464 = vrot.slane %v1387, 4
    %v1465 = vsel %vm120, %v1464, %v1379
    %v1466 = vrot.slane %v1379, 4
    %v1467 = vsel %vm120, %v1387, %v1466
    %v1469 = vunpack.c.l.s4 1983009808
    %v1470 = vunpack.c.0.s8 %v1469
    %v1471 = vperm.slane %v1465, %v1470
    %v1473 = vunpack.c.l.s4 1983009808
    %v1474 = vunpack.c.0.s8 %v1473
    %v1475 = vperm.slane %v1467, %v1474
    %v1476 = vrot.slane %v1471, 4
    %v1477 = vsel %vm120, %v1476, %v1459
    %v1478 = vrot.slane %v1459, 4
    %v1479 = vsel %vm120, %v1471, %v1478
    %v1481 = vunpack.c.l.s4 1934713408
    %v1482 = vunpack.c.0.s8 %v1481
    %v1483 = vperm.slane %v1477, %v1482
    %v1485 = vunpack.c.l.s4 1934713408
    %v1486 = vunpack.c.0.s8 %v1485
    %v1487 = vperm.slane %v1479, %v1486
    %v1488 = vrot.slane %v1475, 4
    %v1489 = vsel %vm120, %v1488, %v1463
    %v1490 = vrot.slane %v1463, 4
    %v1491 = vsel %vm120, %v1475, %v1490
    %v1493 = vunpack.c.l.s4 1934713408
    %v1494 = vunpack.c.0.s8 %v1493
    %v1495 = vperm.slane %v1489, %v1494
    %v1497 = vunpack.c.l.s4 1934713408
    %v1498 = vunpack.c.0.s8 %v1497
    %v1499 = vperm.slane %v1491, %v1498
    %v1500 = vrot.slane %v1483, 4
    %v1501 = vsel %vm120, 0.0, %v1500
    %v1502 = vrot.slane %v1487, 4
    %v1503 = vsel %vm120, 0.0, %v1502
    %v1504 = vrot.slane %v1495, 4
    %v1505 = vsel %vm120, 0.0, %v1504
    %v1506 = vrot.slane %v1499, 4
    %v1507 = vsel %vm120, 0.0, %v1506
    %1509 = vrot.lane.b32.xlu0 %v1445, 16
    %v1510 = vpop.permute.xlu0 %1509
    %1513 = vrot.lane.b32.xlu0 %v1431, 32
    %v1514 = vpop.permute.xlu0 %1513
    %1517 = vrot.lane.b32.xlu0 %v1447, 48
    %v1518 = vpop.permute.xlu0 %1517
    %1521 = vrot.lane.b32.xlu0 %v1439, 64
    %v1522 = vpop.permute.xlu0 %1521
    %1525 = vrot.lane.b32.xlu0 %v1449, 80
    %v1526 = vpop.permute.xlu0 %1525
    %1529 = vrot.lane.b32.xlu0 %v1443, 96
    %v1530 = vpop.permute.xlu0 %1529
    %1533 = vrot.lane.b32.xlu0 %v1451, 112
    %v1534 = vpop.permute.xlu0 %1533
    %1537 = vrot.lane.b32.xlu0 %v1501, 16
    %v1538 = vpop.permute.xlu0 %1537
    %1541 = vrot.lane.b32.xlu0 %v1487, 32
    %v1542 = vpop.permute.xlu0 %1541
    %1545 = vrot.lane.b32.xlu0 %v1503, 48
    %v1546 = vpop.permute.xlu0 %1545
    %1549 = vrot.lane.b32.xlu0 %v1495, 64
    %v1550 = vpop.permute.xlu0 %1549
    %1553 = vrot.lane.b32.xlu0 %v1505, 80
    %v1554 = vpop.permute.xlu0 %1553
    %1557 = vrot.lane.b32.xlu0 %v1499, 96
    %v1558 = vpop.permute.xlu0 %1557
    %1561 = vrot.lane.b32.xlu0 %v1507, 112
    %v1562 = vpop.permute.xlu0 %1561
    %v1564 = vsel %vm510, %v1427, %v1510
    %v1565 = vsel %vm512, %v1564, %v1514
    %v1566 = vsel %vm514, %v1565, %v1518
    %v1567 = vsel %vm516, %v1566, %v1522
    %v1568 = vsel %vm518, %v1567, %v1526
    %v1569 = vsel %vm520, %v1568, %v1530
    %v1570 = vsel %vm522, %v1569, %v1534
    %v1571 = vsel %vm510, %v1483, %v1538
    %v1572 = vsel %vm512, %v1571, %v1542
    %v1573 = vsel %vm514, %v1572, %v1546
    %v1574 = vsel %vm516, %v1573, %v1550
    %v1575 = vsel %vm518, %v1574, %v1554
    %v1576 = vsel %vm520, %v1575, %v1558
    %v1577 = vsel %vm522, %v1576, %v1562
    %vm1578 = vcmask 1045504
    %v1579 = vrot.slane %v330, 2
    %v1580 = vrot.slane %v331, 2
    %v1581 = vsel %vm1578, %v1579, %v1580
    %v1582 = vrot.slane %v332, 2
    %v1583 = vsel %vm1578, %v1580, %v1582
    %v1584 = vrot.slane %v333, 2
    %v1585 = vrot.slane %v334, 2
    %v1586 = vsel %vm1578, %v1584, %v1585
    %v1587 = vrot.slane %v335, 2
    %v1588 = vsel %vm1578, %v1585, %v1587
    %v1589 = vrot.slane %v336, 2
    %v1590 = vrot.slane %v337, 2
    %v1591 = vsel %vm1578, %v1589, %v1590
    %v1592 = vrot.slane %v338, 2
    %v1593 = vsel %vm1578, %v1590, %v1592
    %v1594 = vrot.slane %v339, 2
    %v1595 = vrot.slane %v340, 2
    %v1596 = vsel %vm1578, %v1594, %v1595
    %v1597 = vrot.slane %v341, 2
    %v1598 = vsel %vm1578, %v1595, %v1597
    %v1607 = vrot.slane %v1591, 4
    %v1608 = vsel %vm120, %v1607, %v1581
    %v1609 = vrot.slane %v1581, 4
    %v1610 = vsel %vm120, %v1591, %v1609
    %v1612 = vunpack.c.l.s4 1983009808
    %v1613 = vunpack.c.0.s8 %v1612
    %v1614 = vperm.slane %v1608, %v1613
    %v1616 = vunpack.c.l.s4 1983009808
    %v1617 = vunpack.c.0.s8 %v1616
    %v1618 = vperm.slane %v1610, %v1617
    %v1619 = vrot.slane %v1596, 4
    %v1620 = vsel %vm120, %v1619, %v1586
    %v1621 = vrot.slane %v1586, 4
    %v1622 = vsel %vm120, %v1596, %v1621
    %v1624 = vunpack.c.l.s4 1983009808
    %v1625 = vunpack.c.0.s8 %v1624
    %v1626 = vperm.slane %v1620, %v1625
    %v1628 = vunpack.c.l.s4 1983009808
    %v1629 = vunpack.c.0.s8 %v1628
    %v1630 = vperm.slane %v1622, %v1629
    %v1631 = vrot.slane %v1626, 4
    %v1632 = vsel %vm120, %v1631, %v1614
    %v1633 = vrot.slane %v1614, 4
    %v1634 = vsel %vm120, %v1626, %v1633
    %v1636 = vunpack.c.l.s4 1934713408
    %v1637 = vunpack.c.0.s8 %v1636
    %v1638 = vperm.slane %v1632, %v1637
    %v1640 = vunpack.c.l.s4 1934713408
    %v1641 = vunpack.c.0.s8 %v1640
    %v1642 = vperm.slane %v1634, %v1641
    %v1643 = vrot.slane %v1630, 4
    %v1644 = vsel %vm120, %v1643, %v1618
    %v1645 = vrot.slane %v1618, 4
    %v1646 = vsel %vm120, %v1630, %v1645
    %v1648 = vunpack.c.l.s4 1934713408
    %v1649 = vunpack.c.0.s8 %v1648
    %v1650 = vperm.slane %v1644, %v1649
    %v1652 = vunpack.c.l.s4 1934713408
    %v1653 = vunpack.c.0.s8 %v1652
    %v1654 = vperm.slane %v1646, %v1653
    %v1655 = vrot.slane %v1638, 4
    %v1656 = vsel %vm120, 0.0, %v1655
    %v1657 = vrot.slane %v1642, 4
    %v1658 = vsel %vm120, 0.0, %v1657
    %v1659 = vrot.slane %v1650, 4
    %v1660 = vsel %vm120, 0.0, %v1659
    %v1661 = vrot.slane %v1654, 4
    %v1662 = vsel %vm120, 0.0, %v1661
    %v1663 = vrot.slane %v1593, 4
    %v1664 = vsel %vm120, %v1663, %v1583
    %v1665 = vrot.slane %v1583, 4
    %v1666 = vsel %vm120, %v1593, %v1665
    %v1668 = vunpack.c.l.s4 1983009808
    %v1669 = vunpack.c.0.s8 %v1668
    %v1670 = vperm.slane %v1664, %v1669
    %v1672 = vunpack.c.l.s4 1983009808
    %v1673 = vunpack.c.0.s8 %v1672
    %v1674 = vperm.slane %v1666, %v1673
    %v1675 = vrot.slane %v1598, 4
    %v1676 = vsel %vm120, %v1675, %v1588
    %v1677 = vrot.slane %v1588, 4
    %v1678 = vsel %vm120, %v1598, %v1677
    %v1680 = vunpack.c.l.s4 1983009808
    %v1681 = vunpack.c.0.s8 %v1680
    %v1682 = vperm.slane %v1676, %v1681
    %v1684 = vunpack.c.l.s4 1983009808
    %v1685 = vunpack.c.0.s8 %v1684
    %v1686 = vperm.slane %v1678, %v1685
    %v1687 = vrot.slane %v1682, 4
    %v1688 = vsel %vm120, %v1687, %v1670
    %v1689 = vrot.slane %v1670, 4
    %v1690 = vsel %vm120, %v1682, %v1689
    %v1692 = vunpack.c.l.s4 1934713408
    %v1693 = vunpack.c.0.s8 %v1692
    %v1694 = vperm.slane %v1688, %v1693
    %v1696 = vunpack.c.l.s4 1934713408
    %v1697 = vunpack.c.0.s8 %v1696
    %v1698 = vperm.slane %v1690, %v1697
    %v1699 = vrot.slane %v1686, 4
    %v1700 = vsel %vm120, %v1699, %v1674
    %v1701 = vrot.slane %v1674, 4
    %v1702 = vsel %vm120, %v1686, %v1701
    %v1704 = vunpack.c.l.s4 1934713408
    %v1705 = vunpack.c.0.s8 %v1704
    %v1706 = vperm.slane %v1700, %v1705
    %v1708 = vunpack.c.l.s4 1934713408
    %v1709 = vunpack.c.0.s8 %v1708
    %v1710 = vperm.slane %v1702, %v1709
    %v1711 = vrot.slane %v1694, 4
    %v1712 = vsel %vm120, 0.0, %v1711
    %v1713 = vrot.slane %v1698, 4
    %v1714 = vsel %vm120, 0.0, %v1713
    %v1715 = vrot.slane %v1706, 4
    %v1716 = vsel %vm120, 0.0, %v1715
    %v1717 = vrot.slane %v1710, 4
    %v1718 = vsel %vm120, 0.0, %v1717
    %1720 = vrot.lane.b32.xlu0 %v1656, 16
    %v1721 = vpop.permute.xlu0 %1720
    %1724 = vrot.lane.b32.xlu0 %v1642, 32
    %v1725 = vpop.permute.xlu0 %1724
    %1728 = vrot.lane.b32.xlu0 %v1658, 48
    %v1729 = vpop.permute.xlu0 %1728
    %1732 = vrot.lane.b32.xlu0 %v1650, 64
    %v1733 = vpop.permute.xlu0 %1732
    %1736 = vrot.lane.b32.xlu0 %v1660, 80
    %v1737 = vpop.permute.xlu0 %1736
    %1740 = vrot.lane.b32.xlu0 %v1654, 96
    %v1741 = vpop.permute.xlu0 %1740
    %1744 = vrot.lane.b32.xlu0 %v1662, 112
    %v1745 = vpop.permute.xlu0 %1744
    %1748 = vrot.lane.b32.xlu0 %v1712, 16
    %v1749 = vpop.permute.xlu0 %1748
    %1752 = vrot.lane.b32.xlu0 %v1698, 32
    %v1753 = vpop.permute.xlu0 %1752
    %1756 = vrot.lane.b32.xlu0 %v1714, 48
    %v1757 = vpop.permute.xlu0 %1756
    %1760 = vrot.lane.b32.xlu0 %v1706, 64
    %v1761 = vpop.permute.xlu0 %1760
    %1764 = vrot.lane.b32.xlu0 %v1716, 80
    %v1765 = vpop.permute.xlu0 %1764
    %1768 = vrot.lane.b32.xlu0 %v1710, 96
    %v1769 = vpop.permute.xlu0 %1768
    %1772 = vrot.lane.b32.xlu0 %v1718, 112
    %v1773 = vpop.permute.xlu0 %1772
    %v1775 = vsel %vm510, %v1638, %v1721
    %v1776 = vsel %vm512, %v1775, %v1725
    %v1777 = vsel %vm514, %v1776, %v1729
    %v1778 = vsel %vm516, %v1777, %v1733
    %v1779 = vsel %vm518, %v1778, %v1737
    %v1780 = vsel %vm520, %v1779, %v1741
    %v1781 = vsel %vm522, %v1780, %v1745
    %v1782 = vsel %vm510, %v1694, %v1749
    %v1783 = vsel %vm512, %v1782, %v1753
    %v1784 = vsel %vm514, %v1783, %v1757
    %v1785 = vsel %vm516, %v1784, %v1761
    %v1786 = vsel %vm518, %v1785, %v1765
    %v1787 = vsel %vm520, %v1786, %v1769
    %v1788 = vsel %vm522, %v1787, %v1773
    %1789 = vrot.lane.b32.xlu0 %v1581, 127
    %v1790 = vpop.permute.xlu0 %1789
    %1791 = vrot.lane.b32.xlu0 %v1583, 127
    %v1792 = vpop.permute.xlu0 %1791
    %1793 = vrot.lane.b32.xlu0 %v1586, 127
    %v1794 = vpop.permute.xlu0 %1793
    %1795 = vrot.lane.b32.xlu0 %v1588, 127
    %v1796 = vpop.permute.xlu0 %1795
    %1797 = vrot.lane.b32.xlu0 %v1591, 127
    %v1798 = vpop.permute.xlu0 %1797
    %1799 = vrot.lane.b32.xlu0 %v1593, 127
    %v1800 = vpop.permute.xlu0 %1799
    %1801 = vrot.lane.b32.xlu0 %v1596, 127
    %v1802 = vpop.permute.xlu0 %1801
    %1803 = vrot.lane.b32.xlu0 %v1598, 127
    %v1804 = vpop.permute.xlu0 %1803
    %v1813 = vrot.slane %v1798, 4
    %v1814 = vsel %vm120, %v1813, %v1790
    %v1815 = vrot.slane %v1790, 4
    %v1816 = vsel %vm120, %v1798, %v1815
    %v1818 = vunpack.c.l.s4 1983009808
    %v1819 = vunpack.c.0.s8 %v1818
    %v1820 = vperm.slane %v1814, %v1819
    %v1822 = vunpack.c.l.s4 1983009808
    %v1823 = vunpack.c.0.s8 %v1822
    %v1824 = vperm.slane %v1816, %v1823
    %v1825 = vrot.slane %v1802, 4
    %v1826 = vsel %vm120, %v1825, %v1794
    %v1827 = vrot.slane %v1794, 4
    %v1828 = vsel %vm120, %v1802, %v1827
    %v1830 = vunpack.c.l.s4 1983009808
    %v1831 = vunpack.c.0.s8 %v1830
    %v1832 = vperm.slane %v1826, %v1831
    %v1834 = vunpack.c.l.s4 1983009808
    %v1835 = vunpack.c.0.s8 %v1834
    %v1836 = vperm.slane %v1828, %v1835
    %v1837 = vrot.slane %v1832, 4
    %v1838 = vsel %vm120, %v1837, %v1820
    %v1839 = vrot.slane %v1820, 4
    %v1840 = vsel %vm120, %v1832, %v1839
    %v1842 = vunpack.c.l.s4 1934713408
    %v1843 = vunpack.c.0.s8 %v1842
    %v1844 = vperm.slane %v1838, %v1843
    %v1846 = vunpack.c.l.s4 1934713408
    %v1847 = vunpack.c.0.s8 %v1846
    %v1848 = vperm.slane %v1840, %v1847
    %v1849 = vrot.slane %v1836, 4
    %v1850 = vsel %vm120, %v1849, %v1824
    %v1851 = vrot.slane %v1824, 4
    %v1852 = vsel %vm120, %v1836, %v1851
    %v1854 = vunpack.c.l.s4 1934713408
    %v1855 = vunpack.c.0.s8 %v1854
    %v1856 = vperm.slane %v1850, %v1855
    %v1858 = vunpack.c.l.s4 1934713408
    %v1859 = vunpack.c.0.s8 %v1858
    %v1860 = vperm.slane %v1852, %v1859
    %v1861 = vrot.slane %v1844, 4
    %v1862 = vsel %vm120, 0.0, %v1861
    %v1863 = vrot.slane %v1848, 4
    %v1864 = vsel %vm120, 0.0, %v1863
    %v1865 = vrot.slane %v1856, 4
    %v1866 = vsel %vm120, 0.0, %v1865
    %v1867 = vrot.slane %v1860, 4
    %v1868 = vsel %vm120, 0.0, %v1867
    %v1869 = vrot.slane %v1800, 4
    %v1870 = vsel %vm120, %v1869, %v1792
    %v1871 = vrot.slane %v1792, 4
    %v1872 = vsel %vm120, %v1800, %v1871
    %v1874 = vunpack.c.l.s4 1983009808
    %v1875 = vunpack.c.0.s8 %v1874
    %v1876 = vperm.slane %v1870, %v1875
    %v1878 = vunpack.c.l.s4 1983009808
    %v1879 = vunpack.c.0.s8 %v1878
    %v1880 = vperm.slane %v1872, %v1879
    %v1881 = vrot.slane %v1804, 4
    %v1882 = vsel %vm120, %v1881, %v1796
    %v1883 = vrot.slane %v1796, 4
    %v1884 = vsel %vm120, %v1804, %v1883
    %v1886 = vunpack.c.l.s4 1983009808
    %v1887 = vunpack.c.0.s8 %v1886
    %v1888 = vperm.slane %v1882, %v1887
    %v1890 = vunpack.c.l.s4 1983009808
    %v1891 = vunpack.c.0.s8 %v1890
    %v1892 = vperm.slane %v1884, %v1891
    %v1893 = vrot.slane %v1888, 4
    %v1894 = vsel %vm120, %v1893, %v1876
    %v1895 = vrot.slane %v1876, 4
    %v1896 = vsel %vm120, %v1888, %v1895
    %v1898 = vunpack.c.l.s4 1934713408
    %v1899 = vunpack.c.0.s8 %v1898
    %v1900 = vperm.slane %v1894, %v1899
    %v1902 = vunpack.c.l.s4 1934713408
    %v1903 = vunpack.c.0.s8 %v1902
    %v1904 = vperm.slane %v1896, %v1903
    %v1905 = vrot.slane %v1892, 4
    %v1906 = vsel %vm120, %v1905, %v1880
    %v1907 = vrot.slane %v1880, 4
    %v1908 = vsel %vm120, %v1892, %v1907
    %v1910 = vunpack.c.l.s4 1934713408
    %v1911 = vunpack.c.0.s8 %v1910
    %v1912 = vperm.slane %v1906, %v1911
    %v1914 = vunpack.c.l.s4 1934713408
    %v1915 = vunpack.c.0.s8 %v1914
    %v1916 = vperm.slane %v1908, %v1915
    %v1917 = vrot.slane %v1900, 4
    %v1918 = vsel %vm120, 0.0, %v1917
    %v1919 = vrot.slane %v1904, 4
    %v1920 = vsel %vm120, 0.0, %v1919
    %v1921 = vrot.slane %v1912, 4
    %v1922 = vsel %vm120, 0.0, %v1921
    %v1923 = vrot.slane %v1916, 4
    %v1924 = vsel %vm120, 0.0, %v1923
    %1926 = vrot.lane.b32.xlu0 %v1862, 16
    %v1927 = vpop.permute.xlu0 %1926
    %1930 = vrot.lane.b32.xlu0 %v1848, 32
    %v1931 = vpop.permute.xlu0 %1930
    %1934 = vrot.lane.b32.xlu0 %v1864, 48
    %v1935 = vpop.permute.xlu0 %1934
    %1938 = vrot.lane.b32.xlu0 %v1856, 64
    %v1939 = vpop.permute.xlu0 %1938
    %1942 = vrot.lane.b32.xlu0 %v1866, 80
    %v1943 = vpop.permute.xlu0 %1942
    %1946 = vrot.lane.b32.xlu0 %v1860, 96
    %v1947 = vpop.permute.xlu0 %1946
    %1950 = vrot.lane.b32.xlu0 %v1868, 112
    %v1951 = vpop.permute.xlu0 %1950
    %1954 = vrot.lane.b32.xlu0 %v1918, 16
    %v1955 = vpop.permute.xlu0 %1954
    %1958 = vrot.lane.b32.xlu0 %v1904, 32
    %v1959 = vpop.permute.xlu0 %1958
    %1962 = vrot.lane.b32.xlu0 %v1920, 48
    %v1963 = vpop.permute.xlu0 %1962
    %1966 = vrot.lane.b32.xlu0 %v1912, 64
    %v1967 = vpop.permute.xlu0 %1966
    %1970 = vrot.lane.b32.xlu0 %v1922, 80
    %v1971 = vpop.permute.xlu0 %1970
    %1974 = vrot.lane.b32.xlu0 %v1916, 96
    %v1975 = vpop.permute.xlu0 %1974
    %1978 = vrot.lane.b32.xlu0 %v1924, 112
    %v1979 = vpop.permute.xlu0 %1978
    %v1981 = vsel %vm510, %v1844, %v1927
    %v1982 = vsel %vm512, %v1981, %v1931
    %v1983 = vsel %vm514, %v1982, %v1935
    %v1984 = vsel %vm516, %v1983, %v1939
    %v1985 = vsel %vm518, %v1984, %v1943
    %v1986 = vsel %vm520, %v1985, %v1947
    %v1987 = vsel %vm522, %v1986, %v1951
    %v1988 = vsel %vm510, %v1900, %v1955
    %v1989 = vsel %vm512, %v1988, %v1959
    %v1990 = vsel %vm514, %v1989, %v1963
    %v1991 = vsel %vm516, %v1990, %v1967
    %v1992 = vsel %vm518, %v1991, %v1971
    %v1993 = vsel %vm520, %v1992, %v1975
    %v1994 = vsel %vm522, %v1993, %v1979
    %1995 = vrot.lane.b32.xlu0 %v1581, 126
    %v1996 = vpop.permute.xlu0 %1995
    %1997 = vrot.lane.b32.xlu0 %v1583, 126
    %v1998 = vpop.permute.xlu0 %1997
    %1999 = vrot.lane.b32.xlu0 %v1586, 126
    %v2000 = vpop.permute.xlu0 %1999
    %2001 = vrot.lane.b32.xlu0 %v1588, 126
    %v2002 = vpop.permute.xlu0 %2001
    %2003 = vrot.lane.b32.xlu0 %v1591, 126
    %v2004 = vpop.permute.xlu0 %2003
    %2005 = vrot.lane.b32.xlu0 %v1593, 126
    %v2006 = vpop.permute.xlu0 %2005
    %2007 = vrot.lane.b32.xlu0 %v1596, 126
    %v2008 = vpop.permute.xlu0 %2007
    %2009 = vrot.lane.b32.xlu0 %v1598, 126
    %v2010 = vpop.permute.xlu0 %2009
    %v2019 = vrot.slane %v2004, 4
    %v2020 = vsel %vm120, %v2019, %v1996
    %v2021 = vrot.slane %v1996, 4
    %v2022 = vsel %vm120, %v2004, %v2021
    %v2024 = vunpack.c.l.s4 1983009808
    %v2025 = vunpack.c.0.s8 %v2024
    %v2026 = vperm.slane %v2020, %v2025
    %v2028 = vunpack.c.l.s4 1983009808
    %v2029 = vunpack.c.0.s8 %v2028
    %v2030 = vperm.slane %v2022, %v2029
    %v2031 = vrot.slane %v2008, 4
    %v2032 = vsel %vm120, %v2031, %v2000
    %v2033 = vrot.slane %v2000, 4
    %v2034 = vsel %vm120, %v2008, %v2033
    %v2036 = vunpack.c.l.s4 1983009808
    %v2037 = vunpack.c.0.s8 %v2036
    %v2038 = vperm.slane %v2032, %v2037
    %v2040 = vunpack.c.l.s4 1983009808
    %v2041 = vunpack.c.0.s8 %v2040
    %v2042 = vperm.slane %v2034, %v2041
    %v2043 = vrot.slane %v2038, 4
    %v2044 = vsel %vm120, %v2043, %v2026
    %v2045 = vrot.slane %v2026, 4
    %v2046 = vsel %vm120, %v2038, %v2045
    %v2048 = vunpack.c.l.s4 1934713408
    %v2049 = vunpack.c.0.s8 %v2048
    %v2050 = vperm.slane %v2044, %v2049
    %v2052 = vunpack.c.l.s4 1934713408
    %v2053 = vunpack.c.0.s8 %v2052
    %v2054 = vperm.slane %v2046, %v2053
    %v2055 = vrot.slane %v2042, 4
    %v2056 = vsel %vm120, %v2055, %v2030
    %v2057 = vrot.slane %v2030, 4
    %v2058 = vsel %vm120, %v2042, %v2057
    %v2060 = vunpack.c.l.s4 1934713408
    %v2061 = vunpack.c.0.s8 %v2060
    %v2062 = vperm.slane %v2056, %v2061
    %v2064 = vunpack.c.l.s4 1934713408
    %v2065 = vunpack.c.0.s8 %v2064
    %v2066 = vperm.slane %v2058, %v2065
    %v2067 = vrot.slane %v2050, 4
    %v2068 = vsel %vm120, 0.0, %v2067
    %v2069 = vrot.slane %v2054, 4
    %v2070 = vsel %vm120, 0.0, %v2069
    %v2071 = vrot.slane %v2062, 4
    %v2072 = vsel %vm120, 0.0, %v2071
    %v2073 = vrot.slane %v2066, 4
    %v2074 = vsel %vm120, 0.0, %v2073
    %v2075 = vrot.slane %v2006, 4
    %v2076 = vsel %vm120, %v2075, %v1998
    %v2077 = vrot.slane %v1998, 4
    %v2078 = vsel %vm120, %v2006, %v2077
    %v2080 = vunpack.c.l.s4 1983009808
    %v2081 = vunpack.c.0.s8 %v2080
    %v2082 = vperm.slane %v2076, %v2081
    %v2084 = vunpack.c.l.s4 1983009808
    %v2085 = vunpack.c.0.s8 %v2084
    %v2086 = vperm.slane %v2078, %v2085
    %v2087 = vrot.slane %v2010, 4
    %v2088 = vsel %vm120, %v2087, %v2002
    %v2089 = vrot.slane %v2002, 4
    %v2090 = vsel %vm120, %v2010, %v2089
    %v2092 = vunpack.c.l.s4 1983009808
    %v2093 = vunpack.c.0.s8 %v2092
    %v2094 = vperm.slane %v2088, %v2093
    %v2096 = vunpack.c.l.s4 1983009808
    %v2097 = vunpack.c.0.s8 %v2096
    %v2098 = vperm.slane %v2090, %v2097
    %v2099 = vrot.slane %v2094, 4
    %v2100 = vsel %vm120, %v2099, %v2082
    %v2101 = vrot.slane %v2082, 4
    %v2102 = vsel %vm120, %v2094, %v2101
    %v2104 = vunpack.c.l.s4 1934713408
    %v2105 = vunpack.c.0.s8 %v2104
    %v2106 = vperm.slane %v2100, %v2105
    %v2108 = vunpack.c.l.s4 1934713408
    %v2109 = vunpack.c.0.s8 %v2108
    %v2110 = vperm.slane %v2102, %v2109
    %v2111 = vrot.slane %v2098, 4
    %v2112 = vsel %vm120, %v2111, %v2086
    %v2113 = vrot.slane %v2086, 4
    %v2114 = vsel %vm120, %v2098, %v2113
    %v2116 = vunpack.c.l.s4 1934713408
    %v2117 = vunpack.c.0.s8 %v2116
    %v2118 = vperm.slane %v2112, %v2117
    %v2120 = vunpack.c.l.s4 1934713408
    %v2121 = vunpack.c.0.s8 %v2120
    %v2122 = vperm.slane %v2114, %v2121
    %v2123 = vrot.slane %v2106, 4
    %v2124 = vsel %vm120, 0.0, %v2123
    %v2125 = vrot.slane %v2110, 4
    %v2126 = vsel %vm120, 0.0, %v2125
    %v2127 = vrot.slane %v2118, 4
    %v2128 = vsel %vm120, 0.0, %v2127
    %v2129 = vrot.slane %v2122, 4
    %v2130 = vsel %vm120, 0.0, %v2129
    %2132 = vrot.lane.b32.xlu0 %v2068, 16
    %v2133 = vpop.permute.xlu0 %2132
    %2136 = vrot.lane.b32.xlu0 %v2054, 32
    %v2137 = vpop.permute.xlu0 %2136
    %2140 = vrot.lane.b32.xlu0 %v2070, 48
    %v2141 = vpop.permute.xlu0 %2140
    %2144 = vrot.lane.b32.xlu0 %v2062, 64
    %v2145 = vpop.permute.xlu0 %2144
    %2148 = vrot.lane.b32.xlu0 %v2072, 80
    %v2149 = vpop.permute.xlu0 %2148
    %2152 = vrot.lane.b32.xlu0 %v2066, 96
    %v2153 = vpop.permute.xlu0 %2152
    %2156 = vrot.lane.b32.xlu0 %v2074, 112
    %v2157 = vpop.permute.xlu0 %2156
    %2160 = vrot.lane.b32.xlu0 %v2124, 16
    %v2161 = vpop.permute.xlu0 %2160
    %2164 = vrot.lane.b32.xlu0 %v2110, 32
    %v2165 = vpop.permute.xlu0 %2164
    %2168 = vrot.lane.b32.xlu0 %v2126, 48
    %v2169 = vpop.permute.xlu0 %2168
    %2172 = vrot.lane.b32.xlu0 %v2118, 64
    %v2173 = vpop.permute.xlu0 %2172
    %2176 = vrot.lane.b32.xlu0 %v2128, 80
    %v2177 = vpop.permute.xlu0 %2176
    %2180 = vrot.lane.b32.xlu0 %v2122, 96
    %v2181 = vpop.permute.xlu0 %2180
    %2184 = vrot.lane.b32.xlu0 %v2130, 112
    %v2185 = vpop.permute.xlu0 %2184
    %v2187 = vsel %vm510, %v2050, %v2133
    %v2188 = vsel %vm512, %v2187, %v2137
    %v2189 = vsel %vm514, %v2188, %v2141
    %v2190 = vsel %vm516, %v2189, %v2145
    %v2191 = vsel %vm518, %v2190, %v2149
    %v2192 = vsel %vm520, %v2191, %v2153
    %v2193 = vsel %vm522, %v2192, %v2157
    %v2194 = vsel %vm510, %v2106, %v2161
    %v2195 = vsel %vm512, %v2194, %v2165
    %v2196 = vsel %vm514, %v2195, %v2169
    %v2197 = vsel %vm516, %v2196, %v2173
    %v2198 = vsel %vm518, %v2197, %v2177
    %v2199 = vsel %vm520, %v2198, %v2181
    %v2200 = vsel %vm522, %v2199, %v2185
    %v2203 = vrot.slane %v737, 4
    %v2204 = vrot.slane %v744, 4
    %v2209 = vrot.slane %v1158, 4
    %v2210 = vrot.slane %v1165, 4
    %v2215 = vrot.slane %v1570, 4
    %v2216 = vrot.slane %v1577, 4
    %v2221 = vrot.slane %v1987, 4
    %v2222 = vrot.slane %v1994, 4
    %vm2225 = vcmask 1043456
    %v2226 = vsel %vm2225, %v523, %v2203
    %v2227 = vsel %vm2225, %v530, %v2204
    %v2228 = vsel %vm2225, %v943, %v2209
    %v2229 = vsel %vm2225, %v950, %v2210
    %v2230 = vsel %vm2225, %v1364, %v2215
    %v2231 = vsel %vm2225, %v1371, %v2216
    %v2232 = vsel %vm2225, %v1781, %v2221
    %v2233 = vsel %vm2225, %v1788, %v2222
    %v2234 = vmax.f32 %v2226, 0.0
    %v2235 = vmax.f32 %v2227, 0.0
    %v2236 = vmax.f32 %v2228, 0.0
    %v2237 = vmax.f32 %v2229, 0.0
    %v2238 = vmax.f32 %v2230, 0.0
    %v2239 = vmax.f32 %v2231, 0.0
    %v2240 = vmax.f32 %v2232, 0.0
    %v2241 = vmax.f32 %v2233, 0.0
    %v2242 = vmax.f32 %v2193, 0.0
    %v2243 = vmax.f32 %v2200, 0.0
    %v2244 = vld [vmem:[%s1] sm:$0xff]
    %v2245 = vld [vmem:[%s2] sm:$0xff]
    %2247 = vset.pattern.permute.xlu0 0
    %2248 = vperm.xlu0 %2247, %v2245
    %v2249 = vpop.permute.xlu0 %2248
    %vm2251 = vcmask 293888
    %v2253 = vsel %vm2251, %v2244, 0
    %v2256 = vsel %vm2225, %v2242, 0
    %v2259 = vsel %vm2225, %v2243, 0
    %2261 = vmatpush.msra.mxu0 0.0
    %2262 = vmatpush.msra.mxu0 0.0
    %2263 = vmatpush.msra.mxu0 0.0
    %2264 = vmatpush.msra.mxu0 0.0
    %2265 = vmatpush.msra.mxu0 0.0
    %2266 = vmatpush.msra.mxu0 0.0
    %2267 = vmatpush.msra.mxu0 0.0
    %2268 = vmatpush.msra.mxu0 0.0
    %2269 = vmatpush.msra.mxu0 0.0
    %2270 = vmatpush.msra.mxu0 0.0
    %2271 = vmatpush.msra.mxu0 0.0
    %2272 = vmatpush.msra.mxu0 %v2256
    %2273 = vmatpush.msra.mxu0 %v2240
    %2274 = vmatpush.msra.mxu0 %v2238
    %2275 = vmatpush.msra.mxu0 %v2236
    %2276 = vmatpush.msra.mxu0 %v2234
    %2277 = vmatmul.f32.gmra.mxu0 %v2253
    %v2278 = vpop.f32.mrf.mxu0
    %v2279 = vadd.f32 %v2249, %v2278
    %2280 = vdwg.mxu0
    %2281 = vmatpush.msra.mxu0 0.0
    %2282 = vmatpush.msra.mxu0 0.0
    %2283 = vmatpush.msra.mxu0 0.0
    %2284 = vmatpush.msra.mxu0 0.0
    %2285 = vmatpush.msra.mxu0 0.0
    %2286 = vmatpush.msra.mxu0 0.0
    %2287 = vmatpush.msra.mxu0 0.0
    %2288 = vmatpush.msra.mxu0 0.0
    %2289 = vmatpush.msra.mxu0 0.0
    %2290 = vmatpush.msra.mxu0 0.0
    %2291 = vmatpush.msra.mxu0 0.0
    %2292 = vmatpush.msra.mxu0 %v2259
    %2293 = vmatpush.msra.mxu0 %v2241
    %2294 = vmatpush.msra.mxu0 %v2239
    %2295 = vmatpush.msra.mxu0 %v2237
    %2296 = vmatpush.msra.mxu0 %v2235
    %2297 = vmatmul.f32.gmra.mxu0 %v2253
    %v2298 = vpop.f32.mrf.mxu0
    %v2299 = vadd.f32 %v2249, %v2298
    %2300 = vdwg.mxu0
    %v2301 = vld [vmem:[#allocation7] sm:$0xff]
    %v2302 = vld [vmem:[%s6] sm:$0xff]
    %2304 = vset.pattern.permute.xlu0 0
    %2305 = vperm.xlu0 %2304, %v2302
    %v2306 = vpop.permute.xlu0 %2305
    %v2309 = vsel %vm2251, %v2301, 0
    %v2312 = vsel %vm2225, %v2193, 0
    %v2315 = vsel %vm2225, %v2200, 0
    %2317 = vmatpush.msra.mxu0 0.0
    %2318 = vmatpush.msra.mxu0 0.0
    %2319 = vmatpush.msra.mxu0 0.0
    %2320 = vmatpush.msra.mxu0 0.0
    %2321 = vmatpush.msra.mxu0 0.0
    %2322 = vmatpush.msra.mxu0 0.0
    %2323 = vmatpush.msra.mxu0 0.0
    %2324 = vmatpush.msra.mxu0 0.0
    %2325 = vmatpush.msra.mxu0 0.0
    %2326 = vmatpush.msra.mxu0 0.0
    %2327 = vmatpush.msra.mxu0 0.0
    %2328 = vmatpush.msra.mxu0 %v2312
    %2329 = vmatpush.msra.mxu0 %v2232
    %2330 = vmatpush.msra.mxu0 %v2230
    %2331 = vmatpush.msra.mxu0 %v2228
    %2332 = vmatpush.msra.mxu0 %v2226
    %2333 = vmatmul.f32.gmra.mxu0 %v2309
    %v2334 = vpop.f32.mrf.mxu0
    %v2335 = vadd.f32 %v2306, %v2334
    %2336 = vdwg.mxu0
    %2337 = vmatpush.msra.mxu0 0.0
    %2338 = vmatpush.msra.mxu0 0.0
    %2339 = vmatpush.msra.mxu0 0.0
    %2340 = vmatpush.msra.mxu0 0.0
    %2341 = vmatpush.msra.mxu0 0.0
    %2342 = vmatpush.msra.mxu0 0.0
    %2343 = vmatpush.msra.mxu0 0.0
    %2344 = vmatpush.msra.mxu0 0.0
    %2345 = vmatpush.msra.mxu0 0.0
    %2346 = vmatpush.msra.mxu0 0.0
    %2347 = vmatpush.msra.mxu0 0.0
    %2348 = vmatpush.msra.mxu0 %v2315
    %2349 = vmatpush.msra.mxu0 %v2233
    %2350 = vmatpush.msra.mxu0 %v2231
    %2351 = vmatpush.msra.mxu0 %v2229
    %2352 = vmatpush.msra.mxu0 %v2227
    %2353 = vmatmul.f32.gmra.mxu0 %v2309
    %v2354 = vpop.f32.mrf.mxu0
    %v2355 = vadd.f32 %v2306, %v2354
    %2356 = vdwg.mxu0
    %v2357 = vmax.f32 %v2279, 0.0
    %v2358 = vmax.f32 %v2299, 0.0
    %2360 = vrot.lane.b32.xlu0 %v2357, 112
    %v2361 = vpop.permute.xlu0 %2360
    %2363 = vrot.lane.b32.xlu0 %v2357, 96
    %v2364 = vpop.permute.xlu0 %2363
    %2366 = vrot.lane.b32.xlu0 %v2357, 80
    %v2367 = vpop.permute.xlu0 %2366
    %2369 = vrot.lane.b32.xlu0 %v2357, 64
    %v2370 = vpop.permute.xlu0 %2369
    %2372 = vrot.lane.b32.xlu0 %v2357, 48
    %v2373 = vpop.permute.xlu0 %2372
    %2375 = vrot.lane.b32.xlu0 %v2357, 32
    %v2376 = vpop.permute.xlu0 %2375
    %2378 = vrot.lane.b32.xlu0 %v2357, 16
    %v2379 = vpop.permute.xlu0 %2378
    %2382 = vrot.lane.b32.xlu0 %v2358, 112
    %v2383 = vpop.permute.xlu0 %2382
    %2385 = vrot.lane.b32.xlu0 %v2358, 96
    %v2386 = vpop.permute.xlu0 %2385
    %2388 = vrot.lane.b32.xlu0 %v2358, 80
    %v2389 = vpop.permute.xlu0 %2388
    %2391 = vrot.lane.b32.xlu0 %v2358, 64
    %v2392 = vpop.permute.xlu0 %2391
    %2394 = vrot.lane.b32.xlu0 %v2358, 48
    %v2395 = vpop.permute.xlu0 %2394
    %2397 = vrot.lane.b32.xlu0 %v2358, 32
    %v2398 = vpop.permute.xlu0 %2397
    %2400 = vrot.lane.b32.xlu0 %v2358, 16
    %v2401 = vpop.permute.xlu0 %2400
    %v2403 = vrot.slane %v2364, 4
    %v2404 = vsel %vm120, %v2403, %v2357
    %v2405 = vrot.slane %v2357, 4
    %v2406 = vsel %vm120, %v2364, %v2405
    %v2408 = vunpack.c.l.s4 1983009808
    %v2409 = vunpack.c.0.s8 %v2408
    %v2410 = vperm.slane %v2404, %v2409
    %v2412 = vunpack.c.l.s4 1983009808
    %v2413 = vunpack.c.0.s8 %v2412
    %v2414 = vperm.slane %v2406, %v2413
    %v2415 = vrot.slane %v2367, 4
    %v2416 = vsel %vm120, %v2415, %v2361
    %v2417 = vrot.slane %v2361, 4
    %v2418 = vsel %vm120, %v2367, %v2417
    %v2420 = vunpack.c.l.s4 1983009808
    %v2421 = vunpack.c.0.s8 %v2420
    %v2422 = vperm.slane %v2416, %v2421
    %v2424 = vunpack.c.l.s4 1983009808
    %v2425 = vunpack.c.0.s8 %v2424
    %v2426 = vperm.slane %v2418, %v2425
    %v2427 = vrot.slane %v2376, 4
    %v2428 = vsel %vm120, %v2427, %v2370
    %v2429 = vrot.slane %v2370, 4
    %v2430 = vsel %vm120, %v2376, %v2429
    %v2432 = vunpack.c.l.s4 1983009808
    %v2433 = vunpack.c.0.s8 %v2432
    %v2434 = vperm.slane %v2428, %v2433
    %v2436 = vunpack.c.l.s4 1983009808
    %v2437 = vunpack.c.0.s8 %v2436
    %v2438 = vperm.slane %v2430, %v2437
    %v2439 = vrot.slane %v2379, 4
    %v2440 = vsel %vm120, %v2439, %v2373
    %v2441 = vrot.slane %v2373, 4
    %v2442 = vsel %vm120, %v2379, %v2441
    %v2444 = vunpack.c.l.s4 1983009808
    %v2445 = vunpack.c.0.s8 %v2444
    %v2446 = vperm.slane %v2440, %v2445
    %v2448 = vunpack.c.l.s4 1983009808
    %v2449 = vunpack.c.0.s8 %v2448
    %v2450 = vperm.slane %v2442, %v2449
    %v2451 = vrot.slane %v2422, 4
    %v2452 = vsel %vm120, %v2451, %v2410
    %v2453 = vrot.slane %v2410, 4
    %v2454 = vsel %vm120, %v2422, %v2453
    %v2456 = vunpack.c.l.s4 1934713408
    %v2457 = vunpack.c.0.s8 %v2456
    %v2458 = vperm.slane %v2452, %v2457
    %v2460 = vunpack.c.l.s4 1934713408
    %v2461 = vunpack.c.0.s8 %v2460
    %v2462 = vperm.slane %v2454, %v2461
    %v2463 = vrot.slane %v2426, 4
    %v2464 = vsel %vm120, %v2463, %v2414
    %v2465 = vrot.slane %v2414, 4
    %v2466 = vsel %vm120, %v2426, %v2465
    %v2468 = vunpack.c.l.s4 1934713408
    %v2469 = vunpack.c.0.s8 %v2468
    %v2470 = vperm.slane %v2464, %v2469
    %v2472 = vunpack.c.l.s4 1934713408
    %v2473 = vunpack.c.0.s8 %v2472
    %v2474 = vperm.slane %v2466, %v2473
    %v2475 = vrot.slane %v2446, 4
    %v2476 = vsel %vm120, %v2475, %v2434
    %v2477 = vrot.slane %v2434, 4
    %v2478 = vsel %vm120, %v2446, %v2477
    %v2480 = vunpack.c.l.s4 1934713408
    %v2481 = vunpack.c.0.s8 %v2480
    %v2482 = vperm.slane %v2476, %v2481
    %v2484 = vunpack.c.l.s4 1934713408
    %v2485 = vunpack.c.0.s8 %v2484
    %v2486 = vperm.slane %v2478, %v2485
    %v2487 = vrot.slane %v2450, 4
    %v2488 = vsel %vm120, %v2487, %v2438
    %v2489 = vrot.slane %v2438, 4
    %v2490 = vsel %vm120, %v2450, %v2489
    %v2492 = vunpack.c.l.s4 1934713408
    %v2493 = vunpack.c.0.s8 %v2492
    %v2494 = vperm.slane %v2488, %v2493
    %v2496 = vunpack.c.l.s4 1934713408
    %v2497 = vunpack.c.0.s8 %v2496
    %v2498 = vperm.slane %v2490, %v2497
    %v2499 = vrot.slane %v2482, 4
    %v2500 = vsel %vm120, %v2499, %v2458
    %v2501 = vrot.slane %v2458, 4
    %v2502 = vsel %vm120, %v2482, %v2501
    %v2503 = vrot.slane %v2486, 4
    %v2504 = vsel %vm120, %v2503, %v2462
    %v2505 = vrot.slane %v2462, 4
    %v2506 = vsel %vm120, %v2486, %v2505
    %v2507 = vrot.slane %v2494, 4
    %v2508 = vsel %vm120, %v2507, %v2470
    %v2509 = vrot.slane %v2470, 4
    %v2510 = vsel %vm120, %v2494, %v2509
    %v2511 = vrot.slane %v2498, 4
    %v2512 = vsel %vm120, %v2511, %v2474
    %v2513 = vrot.slane %v2474, 4
    %v2514 = vsel %vm120, %v2498, %v2513
    %v2515 = vrot.slane %v2386, 4
    %v2516 = vsel %vm120, %v2515, %v2358
    %v2517 = vrot.slane %v2358, 4
    %v2518 = vsel %vm120, %v2386, %v2517
    %v2520 = vunpack.c.l.s4 1983009808
    %v2521 = vunpack.c.0.s8 %v2520
    %v2522 = vperm.slane %v2516, %v2521
    %v2524 = vunpack.c.l.s4 1983009808
    %v2525 = vunpack.c.0.s8 %v2524
    %v2526 = vperm.slane %v2518, %v2525
    %v2527 = vrot.slane %v2389, 4
    %v2528 = vsel %vm120, %v2527, %v2383
    %v2529 = vrot.slane %v2383, 4
    %v2530 = vsel %vm120, %v2389, %v2529
    %v2532 = vunpack.c.l.s4 1983009808
    %v2533 = vunpack.c.0.s8 %v2532
    %v2534 = vperm.slane %v2528, %v2533
    %v2536 = vunpack.c.l.s4 1983009808
    %v2537 = vunpack.c.0.s8 %v2536
    %v2538 = vperm.slane %v2530, %v2537
    %v2539 = vrot.slane %v2398, 4
    %v2540 = vsel %vm120, %v2539, %v2392
    %v2541 = vrot.slane %v2392, 4
    %v2542 = vsel %vm120, %v2398, %v2541
    %v2544 = vunpack.c.l.s4 1983009808
    %v2545 = vunpack.c.0.s8 %v2544
    %v2546 = vperm.slane %v2540, %v2545
    %v2548 = vunpack.c.l.s4 1983009808
    %v2549 = vunpack.c.0.s8 %v2548
    %v2550 = vperm.slane %v2542, %v2549
    %v2551 = vrot.slane %v2401, 4
    %v2552 = vsel %vm120, %v2551, %v2395
    %v2553 = vrot.slane %v2395, 4
    %v2554 = vsel %vm120, %v2401, %v2553
    %v2556 = vunpack.c.l.s4 1983009808
    %v2557 = vunpack.c.0.s8 %v2556
    %v2558 = vperm.slane %v2552, %v2557
    %v2560 = vunpack.c.l.s4 1983009808
    %v2561 = vunpack.c.0.s8 %v2560
    %v2562 = vperm.slane %v2554, %v2561
    %v2563 = vrot.slane %v2534, 4
    %v2564 = vsel %vm120, %v2563, %v2522
    %v2565 = vrot.slane %v2522, 4
    %v2566 = vsel %vm120, %v2534, %v2565
    %v2568 = vunpack.c.l.s4 1934713408
    %v2569 = vunpack.c.0.s8 %v2568
    %v2570 = vperm.slane %v2564, %v2569
    %v2572 = vunpack.c.l.s4 1934713408
    %v2573 = vunpack.c.0.s8 %v2572
    %v2574 = vperm.slane %v2566, %v2573
    %v2575 = vrot.slane %v2538, 4
    %v2576 = vsel %vm120, %v2575, %v2526
    %v2577 = vrot.slane %v2526, 4
    %v2578 = vsel %vm120, %v2538, %v2577
    %v2580 = vunpack.c.l.s4 1934713408
    %v2581 = vunpack.c.0.s8 %v2580
    %v2582 = vperm.slane %v2576, %v2581
    %v2584 = vunpack.c.l.s4 1934713408
    %v2585 = vunpack.c.0.s8 %v2584
    %v2586 = vperm.slane %v2578, %v2585
    %v2587 = vrot.slane %v2558, 4
    %v2588 = vsel %vm120, %v2587, %v2546
    %v2589 = vrot.slane %v2546, 4
    %v2590 = vsel %vm120, %v2558, %v2589
    %v2592 = vunpack.c.l.s4 1934713408
    %v2593 = vunpack.c.0.s8 %v2592
    %v2594 = vperm.slane %v2588, %v2593
    %v2596 = vunpack.c.l.s4 1934713408
    %v2597 = vunpack.c.0.s8 %v2596
    %v2598 = vperm.slane %v2590, %v2597
    %v2599 = vrot.slane %v2562, 4
    %v2600 = vsel %vm120, %v2599, %v2550
    %v2601 = vrot.slane %v2550, 4
    %v2602 = vsel %vm120, %v2562, %v2601
    %v2604 = vunpack.c.l.s4 1934713408
    %v2605 = vunpack.c.0.s8 %v2604
    %v2606 = vperm.slane %v2600, %v2605
    %v2608 = vunpack.c.l.s4 1934713408
    %v2609 = vunpack.c.0.s8 %v2608
    %v2610 = vperm.slane %v2602, %v2609
    %v2611 = vrot.slane %v2594, 4
    %v2612 = vsel %vm120, %v2611, %v2570
    %v2613 = vrot.slane %v2570, 4
    %v2614 = vsel %vm120, %v2594, %v2613
    %v2615 = vrot.slane %v2598, 4
    %v2616 = vsel %vm120, %v2615, %v2574
    %v2617 = vrot.slane %v2574, 4
    %v2618 = vsel %vm120, %v2598, %v2617
    %v2619 = vrot.slane %v2606, 4
    %v2620 = vsel %vm120, %v2619, %v2582
    %v2621 = vrot.slane %v2582, 4
    %v2622 = vsel %vm120, %v2606, %v2621
    %v2623 = vrot.slane %v2610, 4
    %v2624 = vsel %vm120, %v2623, %v2586
    %v2625 = vrot.slane %v2586, 4
    %v2626 = vsel %vm120, %v2610, %v2625
    %2643 = vrot.lane.b32.xlu0 %v2500, 1
    %v2644 = vpop.permute.xlu0 %2643
    %2645 = vrot.lane.b32.xlu0 %v2612, 1
    %v2646 = vpop.permute.xlu0 %2645
    %2647 = vrot.lane.b32.xlu0 %v2502, 1
    %v2648 = vpop.permute.xlu0 %2647
    %2649 = vrot.lane.b32.xlu0 %v2614, 1
    %v2650 = vpop.permute.xlu0 %2649
    %2651 = vrot.lane.b32.xlu0 %v2504, 1
    %v2652 = vpop.permute.xlu0 %2651
    %2653 = vrot.lane.b32.xlu0 %v2616, 1
    %v2654 = vpop.permute.xlu0 %2653
    %2655 = vrot.lane.b32.xlu0 %v2506, 1
    %v2656 = vpop.permute.xlu0 %2655
    %2657 = vrot.lane.b32.xlu0 %v2618, 1
    %v2658 = vpop.permute.xlu0 %2657
    %2659 = vrot.lane.b32.xlu0 %v2508, 1
    %v2660 = vpop.permute.xlu0 %2659
    %2661 = vrot.lane.b32.xlu0 %v2620, 1
    %v2662 = vpop.permute.xlu0 %2661
    %2663 = vrot.lane.b32.xlu0 %v2510, 1
    %v2664 = vpop.permute.xlu0 %2663
    %2665 = vrot.lane.b32.xlu0 %v2622, 1
    %v2666 = vpop.permute.xlu0 %2665
    %2667 = vrot.lane.b32.xlu0 %v2512, 1
    %v2668 = vpop.permute.xlu0 %2667
    %2669 = vrot.lane.b32.xlu0 %v2624, 1
    %v2670 = vpop.permute.xlu0 %2669
    %2671 = vrot.lane.b32.xlu0 %v2514, 1
    %v2672 = vpop.permute.xlu0 %2671
    %2673 = vrot.lane.b32.xlu0 %v2626, 1
    %v2674 = vpop.permute.xlu0 %2673
    %v2691 = vsel %vm303, 0.0, %v2644
    %v2692 = vsel %vm303, 0.0, %v2646
    %v2693 = vsel %vm303, 0.0, %v2648
    %v2694 = vsel %vm303, 0.0, %v2650
    %v2695 = vsel %vm303, 0.0, %v2652
    %v2696 = vsel %vm303, 0.0, %v2654
    %v2697 = vsel %vm303, 0.0, %v2656
    %v2698 = vsel %vm303, 0.0, %v2658
    %v2699 = vsel %vm303, 0.0, %v2660
    %v2700 = vsel %vm303, 0.0, %v2662
    %v2701 = vsel %vm303, 0.0, %v2664
    %v2702 = vsel %vm303, 0.0, %v2666
    %v2703 = vsel %vm303, 0.0, %v2668
    %v2704 = vsel %vm303, 0.0, %v2670
    %v2705 = vsel %vm303, 0.0, %v2672
    %v2706 = vsel %vm303, 0.0, %v2674
    %v2707 = vsel %vm312, %v2691, 0.0
    %v2708 = vsel %vm312, %v2692, 0.0
    %v2709 = vsel %vm312, %v2693, 0.0
    %v2710 = vsel %vm312, %v2694, 0.0
    %v2711 = vsel %vm312, %v2695, 0.0
    %v2712 = vsel %vm312, %v2696, 0.0
    %v2713 = vsel %vm312, %v2697, 0.0
    %v2714 = vsel %vm312, %v2698, 0.0
    %v2715 = vsel %vm312, %v2699, 0.0
    %v2716 = vsel %vm312, %v2700, 0.0
    %v2717 = vsel %vm312, %v2701, 0.0
    %v2718 = vsel %vm312, %v2702, 0.0
    %v2719 = vsel %vm312, %v2703, 0.0
    %v2720 = vsel %vm312, %v2704, 0.0
    %v2721 = vsel %vm312, %v2705, 0.0
    %v2722 = vsel %vm312, %v2706, 0.0
    %2723 = vst.msk [vmem:[#allocation3 + $0x1] sm:$0xff] %vm321, %v2707
    %2724 = vst.msk [vmem:[#allocation3 + $0x9] sm:$0xff] %vm321, %v2708
    %2725 = vst.msk [vmem:[#allocation3 + $0x19] sm:$0xff] %vm321, %v2709
    %2726 = vst.msk [vmem:[#allocation3 + $0x21] sm:$0xff] %vm321, %v2710
    %2727 = vst.msk [vmem:[#allocation3 + $0x31] sm:$0xff] %vm321, %v2711
    %2728 = vst.msk [vmem:[#allocation3 + $0x39] sm:$0xff] %vm321, %v2712
    %2729 = vst.msk [vmem:[#allocation3 + $0x49] sm:$0xff] %vm321, %v2713
    %2730 = vst.msk [vmem:[#allocation3 + $0x51] sm:$0xff] %vm321, %v2714
    %2731 = vst.msk [vmem:[#allocation3 + $0x61] sm:$0xff] %vm321, %v2715
    %2732 = vst.msk [vmem:[#allocation3 + $0x69] sm:$0xff] %vm321, %v2716
    %2733 = vst.msk [vmem:[#allocation3 + $0x79] sm:$0xff] %vm321, %v2717
    %2734 = vst.msk [vmem:[#allocation3 + $0x81] sm:$0xff] %vm321, %v2718
    %2735 = vst.msk [vmem:[#allocation3 + $0x91] sm:$0xff] %vm321, %v2719
    %2736 = vst.msk [vmem:[#allocation3 + $0x99] sm:$0xff] %vm321, %v2720
    %2737 = vst.msk [vmem:[#allocation3 + $0xa9] sm:$0xff] %vm321, %v2721
    %2738 = vst.msk [vmem:[#allocation3 + $0xb1] sm:$0xff] %vm321, %v2722
    %v2739 = vld [vmem:[#allocation3] sm:$0xff]
    %v2740 = vld [vmem:[#allocation3 + $0x8] sm:$0xff]
    %v2741 = vld [vmem:[#allocation3 + $0x10] sm:$0x3]
    %v2742 = vld [vmem:[#allocation3 + $0x18] sm:$0xff]
    %v2743 = vld [vmem:[#allocation3 + $0x20] sm:$0xff]
    %v2744 = vld [vmem:[#allocation3 + $0x28] sm:$0x3]
    %v2745 = vld [vmem:[#allocation3 + $0x30] sm:$0xff]
    %v2746 = vld [vmem:[#allocation3 + $0x38] sm:$0xff]
    %v2747 = vld [vmem:[#allocation3 + $0x40] sm:$0x3]
    %v2748 = vld [vmem:[#allocation3 + $0x48] sm:$0xff]
    %v2749 = vld [vmem:[#allocation3 + $0x50] sm:$0xff]
    %v2750 = vld [vmem:[#allocation3 + $0x58] sm:$0x3]
    %v2751 = vld [vmem:[#allocation3 + $0x60] sm:$0xff]
    %v2752 = vld [vmem:[#allocation3 + $0x68] sm:$0xff]
    %v2753 = vld [vmem:[#allocation3 + $0x70] sm:$0x3]
    %v2754 = vld [vmem:[#allocation3 + $0x78] sm:$0xff]
    %v2755 = vld [vmem:[#allocation3 + $0x80] sm:$0xff]
    %v2756 = vld [vmem:[#allocation3 + $0x88] sm:$0x3]
    %v2757 = vld [vmem:[#allocation3 + $0x90] sm:$0xff]
    %v2758 = vld [vmem:[#allocation3 + $0x98] sm:$0xff]
    %v2759 = vld [vmem:[#allocation3 + $0xa0] sm:$0x3]
    %v2760 = vld [vmem:[#allocation3 + $0xa8] sm:$0xff]
    %v2761 = vld [vmem:[#allocation3 + $0xb0] sm:$0xff]
    %v2762 = vld [vmem:[#allocation3 + $0xb8] sm:$0x3]
    %v2763 = vrot.slane %v2745, 4
    %v2764 = vsel %vm120, %v2763, %v2739
    %v2765 = vrot.slane %v2739, 4
    %v2766 = vsel %vm120, %v2745, %v2765
    %v2768 = vunpack.c.l.s4 1983009808
    %v2769 = vunpack.c.0.s8 %v2768
    %v2770 = vperm.slane %v2764, %v2769
    %v2772 = vunpack.c.l.s4 1983009808
    %v2773 = vunpack.c.0.s8 %v2772
    %v2774 = vperm.slane %v2766, %v2773
    %v2775 = vrot.slane %v2748, 4
    %v2776 = vsel %vm120, %v2775, %v2742
    %v2777 = vrot.slane %v2742, 4
    %v2778 = vsel %vm120, %v2748, %v2777
    %v2780 = vunpack.c.l.s4 1983009808
    %v2781 = vunpack.c.0.s8 %v2780
    %v2782 = vperm.slane %v2776, %v2781
    %v2784 = vunpack.c.l.s4 1983009808
    %v2785 = vunpack.c.0.s8 %v2784
    %v2786 = vperm.slane %v2778, %v2785
    %v2787 = vrot.slane %v2757, 4
    %v2788 = vsel %vm120, %v2787, %v2751
    %v2789 = vrot.slane %v2751, 4
    %v2790 = vsel %vm120, %v2757, %v2789
    %v2792 = vunpack.c.l.s4 1983009808
    %v2793 = vunpack.c.0.s8 %v2792
    %v2794 = vperm.slane %v2788, %v2793
    %v2796 = vunpack.c.l.s4 1983009808
    %v2797 = vunpack.c.0.s8 %v2796
    %v2798 = vperm.slane %v2790, %v2797
    %v2799 = vrot.slane %v2760, 4
    %v2800 = vsel %vm120, %v2799, %v2754
    %v2801 = vrot.slane %v2754, 4
    %v2802 = vsel %vm120, %v2760, %v2801
    %v2804 = vunpack.c.l.s4 1983009808
    %v2805 = vunpack.c.0.s8 %v2804
    %v2806 = vperm.slane %v2800, %v2805
    %v2808 = vunpack.c.l.s4 1983009808
    %v2809 = vunpack.c.0.s8 %v2808
    %v2810 = vperm.slane %v2802, %v2809
    %v2811 = vrot.slane %v2782, 4
    %v2812 = vsel %vm120, %v2811, %v2770
    %v2813 = vrot.slane %v2770, 4
    %v2814 = vsel %vm120, %v2782, %v2813
    %v2816 = vunpack.c.l.s4 1934713408
    %v2817 = vunpack.c.0.s8 %v2816
    %v2818 = vperm.slane %v2812, %v2817
    %v2820 = vunpack.c.l.s4 1934713408
    %v2821 = vunpack.c.0.s8 %v2820
    %v2822 = vperm.slane %v2814, %v2821
    %v2823 = vrot.slane %v2786, 4
    %v2824 = vsel %vm120, %v2823, %v2774
    %v2825 = vrot.slane %v2774, 4
    %v2826 = vsel %vm120, %v2786, %v2825
    %v2828 = vunpack.c.l.s4 1934713408
    %v2829 = vunpack.c.0.s8 %v2828
    %v2830 = vperm.slane %v2824, %v2829
    %v2832 = vunpack.c.l.s4 1934713408
    %v2833 = vunpack.c.0.s8 %v2832
    %v2834 = vperm.slane %v2826, %v2833
    %v2835 = vrot.slane %v2806, 4
    %v2836 = vsel %vm120, %v2835, %v2794
    %v2837 = vrot.slane %v2794, 4
    %v2838 = vsel %vm120, %v2806, %v2837
    %v2840 = vunpack.c.l.s4 1934713408
    %v2841 = vunpack.c.0.s8 %v2840
    %v2842 = vperm.slane %v2836, %v2841
    %v2844 = vunpack.c.l.s4 1934713408
    %v2845 = vunpack.c.0.s8 %v2844
    %v2846 = vperm.slane %v2838, %v2845
    %v2847 = vrot.slane %v2810, 4
    %v2848 = vsel %vm120, %v2847, %v2798
    %v2849 = vrot.slane %v2798, 4
    %v2850 = vsel %vm120, %v2810, %v2849
    %v2852 = vunpack.c.l.s4 1934713408
    %v2853 = vunpack.c.0.s8 %v2852
    %v2854 = vperm.slane %v2848, %v2853
    %v2856 = vunpack.c.l.s4 1934713408
    %v2857 = vunpack.c.0.s8 %v2856
    %v2858 = vperm.slane %v2850, %v2857
    %v2859 = vrot.slane %v2842, 4
    %v2860 = vsel %vm120, %v2859, %v2818
    %v2861 = vrot.slane %v2818, 4
    %v2862 = vsel %vm120, %v2842, %v2861
    %v2863 = vrot.slane %v2846, 4
    %v2864 = vsel %vm120, %v2863, %v2822
    %v2865 = vrot.slane %v2822, 4
    %v2866 = vsel %vm120, %v2846, %v2865
    %v2867 = vrot.slane %v2854, 4
    %v2868 = vsel %vm120, %v2867, %v2830
    %v2869 = vrot.slane %v2830, 4
    %v2870 = vsel %vm120, %v2854, %v2869
    %v2871 = vrot.slane %v2858, 4
    %v2872 = vsel %vm120, %v2871, %v2834
    %v2873 = vrot.slane %v2834, 4
    %v2874 = vsel %vm120, %v2858, %v2873
    %v2875 = vrot.slane %v2746, 4
    %v2876 = vsel %vm120, %v2875, %v2740
    %v2877 = vrot.slane %v2740, 4
    %v2878 = vsel %vm120, %v2746, %v2877
    %v2880 = vunpack.c.l.s4 1983009808
    %v2881 = vunpack.c.0.s8 %v2880
    %v2882 = vperm.slane %v2876, %v2881
    %v2884 = vunpack.c.l.s4 1983009808
    %v2885 = vunpack.c.0.s8 %v2884
    %v2886 = vperm.slane %v2878, %v2885
    %v2887 = vrot.slane %v2749, 4
    %v2888 = vsel %vm120, %v2887, %v2743
    %v2889 = vrot.slane %v2743, 4
    %v2890 = vsel %vm120, %v2749, %v2889
    %v2892 = vunpack.c.l.s4 1983009808
    %v2893 = vunpack.c.0.s8 %v2892
    %v2894 = vperm.slane %v2888, %v2893
    %v2896 = vunpack.c.l.s4 1983009808
    %v2897 = vunpack.c.0.s8 %v2896
    %v2898 = vperm.slane %v2890, %v2897
    %v2899 = vrot.slane %v2758, 4
    %v2900 = vsel %vm120, %v2899, %v2752
    %v2901 = vrot.slane %v2752, 4
    %v2902 = vsel %vm120, %v2758, %v2901
    %v2904 = vunpack.c.l.s4 1983009808
    %v2905 = vunpack.c.0.s8 %v2904
    %v2906 = vperm.slane %v2900, %v2905
    %v2908 = vunpack.c.l.s4 1983009808
    %v2909 = vunpack.c.0.s8 %v2908
    %v2910 = vperm.slane %v2902, %v2909
    %v2911 = vrot.slane %v2761, 4
    %v2912 = vsel %vm120, %v2911, %v2755
    %v2913 = vrot.slane %v2755, 4
    %v2914 = vsel %vm120, %v2761, %v2913
    %v2916 = vunpack.c.l.s4 1983009808
    %v2917 = vunpack.c.0.s8 %v2916
    %v2918 = vperm.slane %v2912, %v2917
    %v2920 = vunpack.c.l.s4 1983009808
    %v2921 = vunpack.c.0.s8 %v2920
    %v2922 = vperm.slane %v2914, %v2921
    %v2923 = vrot.slane %v2894, 4
    %v2924 = vsel %vm120, %v2923, %v2882
    %v2925 = vrot.slane %v2882, 4
    %v2926 = vsel %vm120, %v2894, %v2925
    %v2928 = vunpack.c.l.s4 1934713408
    %v2929 = vunpack.c.0.s8 %v2928
    %v2930 = vperm.slane %v2924, %v2929
    %v2932 = vunpack.c.l.s4 1934713408
    %v2933 = vunpack.c.0.s8 %v2932
    %v2934 = vperm.slane %v2926, %v2933
    %v2935 = vrot.slane %v2898, 4
    %v2936 = vsel %vm120, %v2935, %v2886
    %v2937 = vrot.slane %v2886, 4
    %v2938 = vsel %vm120, %v2898, %v2937
    %v2940 = vunpack.c.l.s4 1934713408
    %v2941 = vunpack.c.0.s8 %v2940
    %v2942 = vperm.slane %v2936, %v2941
    %v2944 = vunpack.c.l.s4 1934713408
    %v2945 = vunpack.c.0.s8 %v2944
    %v2946 = vperm.slane %v2938, %v2945
    %v2947 = vrot.slane %v2918, 4
    %v2948 = vsel %vm120, %v2947, %v2906
    %v2949 = vrot.slane %v2906, 4
    %v2950 = vsel %vm120, %v2918, %v2949
    %v2952 = vunpack.c.l.s4 1934713408
    %v2953 = vunpack.c.0.s8 %v2952
    %v2954 = vperm.slane %v2948, %v2953
    %v2956 = vunpack.c.l.s4 1934713408
    %v2957 = vunpack.c.0.s8 %v2956
    %v2958 = vperm.slane %v2950, %v2957
    %v2959 = vrot.slane %v2922, 4
    %v2960 = vsel %vm120, %v2959, %v2910
    %v2961 = vrot.slane %v2910, 4
    %v2962 = vsel %vm120, %v2922, %v2961
    %v2964 = vunpack.c.l.s4 1934713408
    %v2965 = vunpack.c.0.s8 %v2964
    %v2966 = vperm.slane %v2960, %v2965
    %v2968 = vunpack.c.l.s4 1934713408
    %v2969 = vunpack.c.0.s8 %v2968
    %v2970 = vperm.slane %v2962, %v2969
    %v2971 = vrot.slane %v2954, 4
    %v2972 = vsel %vm120, %v2971, %v2930
    %v2973 = vrot.slane %v2930, 4
    %v2974 = vsel %vm120, %v2954, %v2973
    %v2975 = vrot.slane %v2958, 4
    %v2976 = vsel %vm120, %v2975, %v2934
    %v2977 = vrot.slane %v2934, 4
    %v2978 = vsel %vm120, %v2958, %v2977
    %v2979 = vrot.slane %v2966, 4
    %v2980 = vsel %vm120, %v2979, %v2942
    %v2981 = vrot.slane %v2942, 4
    %v2982 = vsel %vm120, %v2966, %v2981
    %v2983 = vrot.slane %v2970, 4
    %v2984 = vsel %vm120, %v2983, %v2946
    %v2985 = vrot.slane %v2946, 4
    %v2986 = vsel %vm120, %v2970, %v2985
    %2988 = vrot.lane.b32.xlu0 %v2862, 16
    %v2989 = vpop.permute.xlu0 %2988
    %2992 = vrot.lane.b32.xlu0 %v2864, 32
    %v2993 = vpop.permute.xlu0 %2992
    %2996 = vrot.lane.b32.xlu0 %v2866, 48
    %v2997 = vpop.permute.xlu0 %2996
    %3000 = vrot.lane.b32.xlu0 %v2868, 64
    %v3001 = vpop.permute.xlu0 %3000
    %3004 = vrot.lane.b32.xlu0 %v2870, 80
    %v3005 = vpop.permute.xlu0 %3004
    %3008 = vrot.lane.b32.xlu0 %v2872, 96
    %v3009 = vpop.permute.xlu0 %3008
    %3012 = vrot.lane.b32.xlu0 %v2874, 112
    %v3013 = vpop.permute.xlu0 %3012
    %3016 = vrot.lane.b32.xlu0 %v2974, 16
    %v3017 = vpop.permute.xlu0 %3016
    %3020 = vrot.lane.b32.xlu0 %v2976, 32
    %v3021 = vpop.permute.xlu0 %3020
    %3024 = vrot.lane.b32.xlu0 %v2978, 48
    %v3025 = vpop.permute.xlu0 %3024
    %3028 = vrot.lane.b32.xlu0 %v2980, 64
    %v3029 = vpop.permute.xlu0 %3028
    %3032 = vrot.lane.b32.xlu0 %v2982, 80
    %v3033 = vpop.permute.xlu0 %3032
    %3036 = vrot.lane.b32.xlu0 %v2984, 96
    %v3037 = vpop.permute.xlu0 %3036
    %3040 = vrot.lane.b32.xlu0 %v2986, 112
    %v3041 = vpop.permute.xlu0 %3040
    %v3043 = vsel %vm510, %v2860, %v2989
    %v3044 = vsel %vm512, %v3043, %v2993
    %v3045 = vsel %vm514, %v3044, %v2997
    %v3046 = vsel %vm516, %v3045, %v3001
    %v3047 = vsel %vm518, %v3046, %v3005
    %v3048 = vsel %vm520, %v3047, %v3009
    %v3049 = vsel %vm522, %v3048, %v3013
    %v3050 = vsel %vm510, %v2972, %v3017
    %v3051 = vsel %vm512, %v3050, %v3021
    %v3052 = vsel %vm514, %v3051, %v3025
    %v3053 = vsel %vm516, %v3052, %v3029
    %v3054 = vsel %vm518, %v3053, %v3033
    %v3055 = vsel %vm520, %v3054, %v3037
    %v3056 = vsel %vm522, %v3055, %v3041
    %3073 = vrot.lane.b32.xlu0 %v2739, 127
    %v3074 = vpop.permute.xlu0 %3073
    %3075 = vrot.lane.b32.xlu0 %v2740, 127
    %v3076 = vpop.permute.xlu0 %3075
    %3077 = vrot.lane.b32.xlu0 %v2742, 127
    %v3078 = vpop.permute.xlu0 %3077
    %3079 = vrot.lane.b32.xlu0 %v2743, 127
    %v3080 = vpop.permute.xlu0 %3079
    %3081 = vrot.lane.b32.xlu0 %v2745, 127
    %v3082 = vpop.permute.xlu0 %3081
    %3083 = vrot.lane.b32.xlu0 %v2746, 127
    %v3084 = vpop.permute.xlu0 %3083
    %3085 = vrot.lane.b32.xlu0 %v2748, 127
    %v3086 = vpop.permute.xlu0 %3085
    %3087 = vrot.lane.b32.xlu0 %v2749, 127
    %v3088 = vpop.permute.xlu0 %3087
    %3089 = vrot.lane.b32.xlu0 %v2751, 127
    %v3090 = vpop.permute.xlu0 %3089
    %3091 = vrot.lane.b32.xlu0 %v2752, 127
    %v3092 = vpop.permute.xlu0 %3091
    %3093 = vrot.lane.b32.xlu0 %v2754, 127
    %v3094 = vpop.permute.xlu0 %3093
    %3095 = vrot.lane.b32.xlu0 %v2755, 127
    %v3096 = vpop.permute.xlu0 %3095
    %3097 = vrot.lane.b32.xlu0 %v2757, 127
    %v3098 = vpop.permute.xlu0 %3097
    %3099 = vrot.lane.b32.xlu0 %v2758, 127
    %v3100 = vpop.permute.xlu0 %3099
    %3101 = vrot.lane.b32.xlu0 %v2760, 127
    %v3102 = vpop.permute.xlu0 %3101
    %3103 = vrot.lane.b32.xlu0 %v2761, 127
    %v3104 = vpop.permute.xlu0 %3103
    %v3121 = vrot.slane %v3082, 4
    %v3122 = vsel %vm120, %v3121, %v3074
    %v3123 = vrot.slane %v3074, 4
    %v3124 = vsel %vm120, %v3082, %v3123
    %v3126 = vunpack.c.l.s4 1983009808
    %v3127 = vunpack.c.0.s8 %v3126
    %v3128 = vperm.slane %v3122, %v3127
    %v3130 = vunpack.c.l.s4 1983009808
    %v3131 = vunpack.c.0.s8 %v3130
    %v3132 = vperm.slane %v3124, %v3131
    %v3133 = vrot.slane %v3086, 4
    %v3134 = vsel %vm120, %v3133, %v3078
    %v3135 = vrot.slane %v3078, 4
    %v3136 = vsel %vm120, %v3086, %v3135
    %v3138 = vunpack.c.l.s4 1983009808
    %v3139 = vunpack.c.0.s8 %v3138
    %v3140 = vperm.slane %v3134, %v3139
    %v3142 = vunpack.c.l.s4 1983009808
    %v3143 = vunpack.c.0.s8 %v3142
    %v3144 = vperm.slane %v3136, %v3143
    %v3145 = vrot.slane %v3098, 4
    %v3146 = vsel %vm120, %v3145, %v3090
    %v3147 = vrot.slane %v3090, 4
    %v3148 = vsel %vm120, %v3098, %v3147
    %v3150 = vunpack.c.l.s4 1983009808
    %v3151 = vunpack.c.0.s8 %v3150
    %v3152 = vperm.slane %v3146, %v3151
    %v3154 = vunpack.c.l.s4 1983009808
    %v3155 = vunpack.c.0.s8 %v3154
    %v3156 = vperm.slane %v3148, %v3155
    %v3157 = vrot.slane %v3102, 4
    %v3158 = vsel %vm120, %v3157, %v3094
    %v3159 = vrot.slane %v3094, 4
    %v3160 = vsel %vm120, %v3102, %v3159
    %v3162 = vunpack.c.l.s4 1983009808
    %v3163 = vunpack.c.0.s8 %v3162
    %v3164 = vperm.slane %v3158, %v3163
    %v3166 = vunpack.c.l.s4 1983009808
    %v3167 = vunpack.c.0.s8 %v3166
    %v3168 = vperm.slane %v3160, %v3167
    %v3169 = vrot.slane %v3140, 4
    %v3170 = vsel %vm120, %v3169, %v3128
    %v3171 = vrot.slane %v3128, 4
    %v3172 = vsel %vm120, %v3140, %v3171
    %v3174 = vunpack.c.l.s4 1934713408
    %v3175 = vunpack.c.0.s8 %v3174
    %v3176 = vperm.slane %v3170, %v3175
    %v3178 = vunpack.c.l.s4 1934713408
    %v3179 = vunpack.c.0.s8 %v3178
    %v3180 = vperm.slane %v3172, %v3179
    %v3181 = vrot.slane %v3144, 4
    %v3182 = vsel %vm120, %v3181, %v3132
    %v3183 = vrot.slane %v3132, 4
    %v3184 = vsel %vm120, %v3144, %v3183
    %v3186 = vunpack.c.l.s4 1934713408
    %v3187 = vunpack.c.0.s8 %v3186
    %v3188 = vperm.slane %v3182, %v3187
    %v3190 = vunpack.c.l.s4 1934713408
    %v3191 = vunpack.c.0.s8 %v3190
    %v3192 = vperm.slane %v3184, %v3191
    %v3193 = vrot.slane %v3164, 4
    %v3194 = vsel %vm120, %v3193, %v3152
    %v3195 = vrot.slane %v3152, 4
    %v3196 = vsel %vm120, %v3164, %v3195
    %v3198 = vunpack.c.l.s4 1934713408
    %v3199 = vunpack.c.0.s8 %v3198
    %v3200 = vperm.slane %v3194, %v3199
    %v3202 = vunpack.c.l.s4 1934713408
    %v3203 = vunpack.c.0.s8 %v3202
    %v3204 = vperm.slane %v3196, %v3203
    %v3205 = vrot.slane %v3168, 4
    %v3206 = vsel %vm120, %v3205, %v3156
    %v3207 = vrot.slane %v3156, 4
    %v3208 = vsel %vm120, %v3168, %v3207
    %v3210 = vunpack.c.l.s4 1934713408
    %v3211 = vunpack.c.0.s8 %v3210
    %v3212 = vperm.slane %v3206, %v3211
    %v3214 = vunpack.c.l.s4 1934713408
    %v3215 = vunpack.c.0.s8 %v3214
    %v3216 = vperm.slane %v3208, %v3215
    %v3217 = vrot.slane %v3200, 4
    %v3218 = vsel %vm120, %v3217, %v3176
    %v3219 = vrot.slane %v3176, 4
    %v3220 = vsel %vm120, %v3200, %v3219
    %v3221 = vrot.slane %v3204, 4
    %v3222 = vsel %vm120, %v3221, %v3180
    %v3223 = vrot.slane %v3180, 4
    %v3224 = vsel %vm120, %v3204, %v3223
    %v3225 = vrot.slane %v3212, 4
    %v3226 = vsel %vm120, %v3225, %v3188
    %v3227 = vrot.slane %v3188, 4
    %v3228 = vsel %vm120, %v3212, %v3227
    %v3229 = vrot.slane %v3216, 4
    %v3230 = vsel %vm120, %v3229, %v3192
    %v3231 = vrot.slane %v3192, 4
    %v3232 = vsel %vm120, %v3216, %v3231
    %v3233 = vrot.slane %v3084, 4
    %v3234 = vsel %vm120, %v3233, %v3076
    %v3235 = vrot.slane %v3076, 4
    %v3236 = vsel %vm120, %v3084, %v3235
    %v3238 = vunpack.c.l.s4 1983009808
    %v3239 = vunpack.c.0.s8 %v3238
    %v3240 = vperm.slane %v3234, %v3239
    %v3242 = vunpack.c.l.s4 1983009808
    %v3243 = vunpack.c.0.s8 %v3242
    %v3244 = vperm.slane %v3236, %v3243
    %v3245 = vrot.slane %v3088, 4
    %v3246 = vsel %vm120, %v3245, %v3080
    %v3247 = vrot.slane %v3080, 4
    %v3248 = vsel %vm120, %v3088, %v3247
    %v3250 = vunpack.c.l.s4 1983009808
    %v3251 = vunpack.c.0.s8 %v3250
    %v3252 = vperm.slane %v3246, %v3251
    %v3254 = vunpack.c.l.s4 1983009808
    %v3255 = vunpack.c.0.s8 %v3254
    %v3256 = vperm.slane %v3248, %v3255
    %v3257 = vrot.slane %v3100, 4
    %v3258 = vsel %vm120, %v3257, %v3092
    %v3259 = vrot.slane %v3092, 4
    %v3260 = vsel %vm120, %v3100, %v3259
    %v3262 = vunpack.c.l.s4 1983009808
    %v3263 = vunpack.c.0.s8 %v3262
    %v3264 = vperm.slane %v3258, %v3263
    %v3266 = vunpack.c.l.s4 1983009808
    %v3267 = vunpack.c.0.s8 %v3266
    %v3268 = vperm.slane %v3260, %v3267
    %v3269 = vrot.slane %v3104, 4
    %v3270 = vsel %vm120, %v3269, %v3096
    %v3271 = vrot.slane %v3096, 4
    %v3272 = vsel %vm120, %v3104, %v3271
    %v3274 = vunpack.c.l.s4 1983009808
    %v3275 = vunpack.c.0.s8 %v3274
    %v3276 = vperm.slane %v3270, %v3275
    %v3278 = vunpack.c.l.s4 1983009808
    %v3279 = vunpack.c.0.s8 %v3278
    %v3280 = vperm.slane %v3272, %v3279
    %v3281 = vrot.slane %v3252, 4
    %v3282 = vsel %vm120, %v3281, %v3240
    %v3283 = vrot.slane %v3240, 4
    %v3284 = vsel %vm120, %v3252, %v3283
    %v3286 = vunpack.c.l.s4 1934713408
    %v3287 = vunpack.c.0.s8 %v3286
    %v3288 = vperm.slane %v3282, %v3287
    %v3290 = vunpack.c.l.s4 1934713408
    %v3291 = vunpack.c.0.s8 %v3290
    %v3292 = vperm.slane %v3284, %v3291
    %v3293 = vrot.slane %v3256, 4
    %v3294 = vsel %vm120, %v3293, %v3244
    %v3295 = vrot.slane %v3244, 4
    %v3296 = vsel %vm120, %v3256, %v3295
    %v3298 = vunpack.c.l.s4 1934713408
    %v3299 = vunpack.c.0.s8 %v3298
    %v3300 = vperm.slane %v3294, %v3299
    %v3302 = vunpack.c.l.s4 1934713408
    %v3303 = vunpack.c.0.s8 %v3302
    %v3304 = vperm.slane %v3296, %v3303
    %v3305 = vrot.slane %v3276, 4
    %v3306 = vsel %vm120, %v3305, %v3264
    %v3307 = vrot.slane %v3264, 4
    %v3308 = vsel %vm120, %v3276, %v3307
    %v3310 = vunpack.c.l.s4 1934713408
    %v3311 = vunpack.c.0.s8 %v3310
    %v3312 = vperm.slane %v3306, %v3311
    %v3314 = vunpack.c.l.s4 1934713408
    %v3315 = vunpack.c.0.s8 %v3314
    %v3316 = vperm.slane %v3308, %v3315
    %v3317 = vrot.slane %v3280, 4
    %v3318 = vsel %vm120, %v3317, %v3268
    %v3319 = vrot.slane %v3268, 4
    %v3320 = vsel %vm120, %v3280, %v3319
    %v3322 = vunpack.c.l.s4 1934713408
    %v3323 = vunpack.c.0.s8 %v3322
    %v3324 = vperm.slane %v3318, %v3323
    %v3326 = vunpack.c.l.s4 1934713408
    %v3327 = vunpack.c.0.s8 %v3326
    %v3328 = vperm.slane %v3320, %v3327
    %v3329 = vrot.slane %v3312, 4
    %v3330 = vsel %vm120, %v3329, %v3288
    %v3331 = vrot.slane %v3288, 4
    %v3332 = vsel %vm120, %v3312, %v3331
    %v3333 = vrot.slane %v3316, 4
    %v3334 = vsel %vm120, %v3333, %v3292
    %v3335 = vrot.slane %v3292, 4
    %v3336 = vsel %vm120, %v3316, %v3335
    %v3337 = vrot.slane %v3324, 4
    %v3338 = vsel %vm120, %v3337, %v3300
    %v3339 = vrot.slane %v3300, 4
    %v3340 = vsel %vm120, %v3324, %v3339
    %v3341 = vrot.slane %v3328, 4
    %v3342 = vsel %vm120, %v3341, %v3304
    %v3343 = vrot.slane %v3304, 4
    %v3344 = vsel %vm120, %v3328, %v3343
    %3346 = vrot.lane.b32.xlu0 %v3220, 16
    %v3347 = vpop.permute.xlu0 %3346
    %3350 = vrot.lane.b32.xlu0 %v3222, 32
    %v3351 = vpop.permute.xlu0 %3350
    %3354 = vrot.lane.b32.xlu0 %v3224, 48
    %v3355 = vpop.permute.xlu0 %3354
    %3358 = vrot.lane.b32.xlu0 %v3226, 64
    %v3359 = vpop.permute.xlu0 %3358
    %3362 = vrot.lane.b32.xlu0 %v3228, 80
    %v3363 = vpop.permute.xlu0 %3362
    %3366 = vrot.lane.b32.xlu0 %v3230, 96
    %v3367 = vpop.permute.xlu0 %3366
    %3370 = vrot.lane.b32.xlu0 %v3232, 112
    %v3371 = vpop.permute.xlu0 %3370
    %3374 = vrot.lane.b32.xlu0 %v3332, 16
    %v3375 = vpop.permute.xlu0 %3374
    %3378 = vrot.lane.b32.xlu0 %v3334, 32
    %v3379 = vpop.permute.xlu0 %3378
    %3382 = vrot.lane.b32.xlu0 %v3336, 48
    %v3383 = vpop.permute.xlu0 %3382
    %3386 = vrot.lane.b32.xlu0 %v3338, 64
    %v3387 = vpop.permute.xlu0 %3386
    %3390 = vrot.lane.b32.xlu0 %v3340, 80
    %v3391 = vpop.permute.xlu0 %3390
    %3394 = vrot.lane.b32.xlu0 %v3342, 96
    %v3395 = vpop.permute.xlu0 %3394
    %3398 = vrot.lane.b32.xlu0 %v3344, 112
    %v3399 = vpop.permute.xlu0 %3398
    %v3401 = vsel %vm510, %v3218, %v3347
    %v3402 = vsel %vm512, %v3401, %v3351
    %v3403 = vsel %vm514, %v3402, %v3355
    %v3404 = vsel %vm516, %v3403, %v3359
    %v3405 = vsel %vm518, %v3404, %v3363
    %v3406 = vsel %vm520, %v3405, %v3367
    %v3407 = vsel %vm522, %v3406, %v3371
    %v3408 = vsel %vm510, %v3330, %v3375
    %v3409 = vsel %vm512, %v3408, %v3379
    %v3410 = vsel %vm514, %v3409, %v3383
    %v3411 = vsel %vm516, %v3410, %v3387
    %v3412 = vsel %vm518, %v3411, %v3391
    %v3413 = vsel %vm520, %v3412, %v3395
    %v3414 = vsel %vm522, %v3413, %v3399
    %3415 = vrot.lane.b32.xlu0 %v2739, 126
    %v3416 = vpop.permute.xlu0 %3415
    %3417 = vrot.lane.b32.xlu0 %v2740, 126
    %v3418 = vpop.permute.xlu0 %3417
    %3419 = vrot.lane.b32.xlu0 %v2742, 126
    %v3420 = vpop.permute.xlu0 %3419
    %3421 = vrot.lane.b32.xlu0 %v2743, 126
    %v3422 = vpop.permute.xlu0 %3421
    %3423 = vrot.lane.b32.xlu0 %v2745, 126
    %v3424 = vpop.permute.xlu0 %3423
    %3425 = vrot.lane.b32.xlu0 %v2746, 126
    %v3426 = vpop.permute.xlu0 %3425
    %3427 = vrot.lane.b32.xlu0 %v2748, 126
    %v3428 = vpop.permute.xlu0 %3427
    %3429 = vrot.lane.b32.xlu0 %v2749, 126
    %v3430 = vpop.permute.xlu0 %3429
    %3431 = vrot.lane.b32.xlu0 %v2751, 126
    %v3432 = vpop.permute.xlu0 %3431
    %3433 = vrot.lane.b32.xlu0 %v2752, 126
    %v3434 = vpop.permute.xlu0 %3433
    %3435 = vrot.lane.b32.xlu0 %v2754, 126
    %v3436 = vpop.permute.xlu0 %3435
    %3437 = vrot.lane.b32.xlu0 %v2755, 126
    %v3438 = vpop.permute.xlu0 %3437
    %3439 = vrot.lane.b32.xlu0 %v2757, 126
    %v3440 = vpop.permute.xlu0 %3439
    %3441 = vrot.lane.b32.xlu0 %v2758, 126
    %v3442 = vpop.permute.xlu0 %3441
    %3443 = vrot.lane.b32.xlu0 %v2760, 126
    %v3444 = vpop.permute.xlu0 %3443
    %3445 = vrot.lane.b32.xlu0 %v2761, 126
    %v3446 = vpop.permute.xlu0 %3445
    %v3463 = vrot.slane %v3424, 4
    %v3464 = vsel %vm120, %v3463, %v3416
    %v3465 = vrot.slane %v3416, 4
    %v3466 = vsel %vm120, %v3424, %v3465
    %v3468 = vunpack.c.l.s4 1983009808
    %v3469 = vunpack.c.0.s8 %v3468
    %v3470 = vperm.slane %v3464, %v3469
    %v3472 = vunpack.c.l.s4 1983009808
    %v3473 = vunpack.c.0.s8 %v3472
    %v3474 = vperm.slane %v3466, %v3473
    %v3475 = vrot.slane %v3428, 4
    %v3476 = vsel %vm120, %v3475, %v3420
    %v3477 = vrot.slane %v3420, 4
    %v3478 = vsel %vm120, %v3428, %v3477
    %v3480 = vunpack.c.l.s4 1983009808
    %v3481 = vunpack.c.0.s8 %v3480
    %v3482 = vperm.slane %v3476, %v3481
    %v3484 = vunpack.c.l.s4 1983009808
    %v3485 = vunpack.c.0.s8 %v3484
    %v3486 = vperm.slane %v3478, %v3485
    %v3487 = vrot.slane %v3440, 4
    %v3488 = vsel %vm120, %v3487, %v3432
    %v3489 = vrot.slane %v3432, 4
    %v3490 = vsel %vm120, %v3440, %v3489
    %v3492 = vunpack.c.l.s4 1983009808
    %v3493 = vunpack.c.0.s8 %v3492
    %v3494 = vperm.slane %v3488, %v3493
    %v3496 = vunpack.c.l.s4 1983009808
    %v3497 = vunpack.c.0.s8 %v3496
    %v3498 = vperm.slane %v3490, %v3497
    %v3499 = vrot.slane %v3444, 4
    %v3500 = vsel %vm120, %v3499, %v3436
    %v3501 = vrot.slane %v3436, 4
    %v3502 = vsel %vm120, %v3444, %v3501
    %v3504 = vunpack.c.l.s4 1983009808
    %v3505 = vunpack.c.0.s8 %v3504
    %v3506 = vperm.slane %v3500, %v3505
    %v3508 = vunpack.c.l.s4 1983009808
    %v3509 = vunpack.c.0.s8 %v3508
    %v3510 = vperm.slane %v3502, %v3509
    %v3511 = vrot.slane %v3482, 4
    %v3512 = vsel %vm120, %v3511, %v3470
    %v3513 = vrot.slane %v3470, 4
    %v3514 = vsel %vm120, %v3482, %v3513
    %v3516 = vunpack.c.l.s4 1934713408
    %v3517 = vunpack.c.0.s8 %v3516
    %v3518 = vperm.slane %v3512, %v3517
    %v3520 = vunpack.c.l.s4 1934713408
    %v3521 = vunpack.c.0.s8 %v3520
    %v3522 = vperm.slane %v3514, %v3521
    %v3523 = vrot.slane %v3486, 4
    %v3524 = vsel %vm120, %v3523, %v3474
    %v3525 = vrot.slane %v3474, 4
    %v3526 = vsel %vm120, %v3486, %v3525
    %v3528 = vunpack.c.l.s4 1934713408
    %v3529 = vunpack.c.0.s8 %v3528
    %v3530 = vperm.slane %v3524, %v3529
    %v3532 = vunpack.c.l.s4 1934713408
    %v3533 = vunpack.c.0.s8 %v3532
    %v3534 = vperm.slane %v3526, %v3533
    %v3535 = vrot.slane %v3506, 4
    %v3536 = vsel %vm120, %v3535, %v3494
    %v3537 = vrot.slane %v3494, 4
    %v3538 = vsel %vm120, %v3506, %v3537
    %v3540 = vunpack.c.l.s4 1934713408
    %v3541 = vunpack.c.0.s8 %v3540
    %v3542 = vperm.slane %v3536, %v3541
    %v3544 = vunpack.c.l.s4 1934713408
    %v3545 = vunpack.c.0.s8 %v3544
    %v3546 = vperm.slane %v3538, %v3545
    %v3547 = vrot.slane %v3510, 4
    %v3548 = vsel %vm120, %v3547, %v3498
    %v3549 = vrot.slane %v3498, 4
    %v3550 = vsel %vm120, %v3510, %v3549
    %v3552 = vunpack.c.l.s4 1934713408
    %v3553 = vunpack.c.0.s8 %v3552
    %v3554 = vperm.slane %v3548, %v3553
    %v3556 = vunpack.c.l.s4 1934713408
    %v3557 = vunpack.c.0.s8 %v3556
    %v3558 = vperm.slane %v3550, %v3557
    %v3559 = vrot.slane %v3542, 4
    %v3560 = vsel %vm120, %v3559, %v3518
    %v3561 = vrot.slane %v3518, 4
    %v3562 = vsel %vm120, %v3542, %v3561
    %v3563 = vrot.slane %v3546, 4
    %v3564 = vsel %vm120, %v3563, %v3522
    %v3565 = vrot.slane %v3522, 4
    %v3566 = vsel %vm120, %v3546, %v3565
    %v3567 = vrot.slane %v3554, 4
    %v3568 = vsel %vm120, %v3567, %v3530
    %v3569 = vrot.slane %v3530, 4
    %v3570 = vsel %vm120, %v3554, %v3569
    %v3571 = vrot.slane %v3558, 4
    %v3572 = vsel %vm120, %v3571, %v3534
    %v3573 = vrot.slane %v3534, 4
    %v3574 = vsel %vm120, %v3558, %v3573
    %v3575 = vrot.slane %v3426, 4
    %v3576 = vsel %vm120, %v3575, %v3418
    %v3577 = vrot.slane %v3418, 4
    %v3578 = vsel %vm120, %v3426, %v3577
    %v3580 = vunpack.c.l.s4 1983009808
    %v3581 = vunpack.c.0.s8 %v3580
    %v3582 = vperm.slane %v3576, %v3581
    %v3584 = vunpack.c.l.s4 1983009808
    %v3585 = vunpack.c.0.s8 %v3584
    %v3586 = vperm.slane %v3578, %v3585
    %v3587 = vrot.slane %v3430, 4
    %v3588 = vsel %vm120, %v3587, %v3422
    %v3589 = vrot.slane %v3422, 4
    %v3590 = vsel %vm120, %v3430, %v3589
    %v3592 = vunpack.c.l.s4 1983009808
    %v3593 = vunpack.c.0.s8 %v3592
    %v3594 = vperm.slane %v3588, %v3593
    %v3596 = vunpack.c.l.s4 1983009808
    %v3597 = vunpack.c.0.s8 %v3596
    %v3598 = vperm.slane %v3590, %v3597
    %v3599 = vrot.slane %v3442, 4
    %v3600 = vsel %vm120, %v3599, %v3434
    %v3601 = vrot.slane %v3434, 4
    %v3602 = vsel %vm120, %v3442, %v3601
    %v3604 = vunpack.c.l.s4 1983009808
    %v3605 = vunpack.c.0.s8 %v3604
    %v3606 = vperm.slane %v3600, %v3605
    %v3608 = vunpack.c.l.s4 1983009808
    %v3609 = vunpack.c.0.s8 %v3608
    %v3610 = vperm.slane %v3602, %v3609
    %v3611 = vrot.slane %v3446, 4
    %v3612 = vsel %vm120, %v3611, %v3438
    %v3613 = vrot.slane %v3438, 4
    %v3614 = vsel %vm120, %v3446, %v3613
    %v3616 = vunpack.c.l.s4 1983009808
    %v3617 = vunpack.c.0.s8 %v3616
    %v3618 = vperm.slane %v3612, %v3617
    %v3620 = vunpack.c.l.s4 1983009808
    %v3621 = vunpack.c.0.s8 %v3620
    %v3622 = vperm.slane %v3614, %v3621
    %v3623 = vrot.slane %v3594, 4
    %v3624 = vsel %vm120, %v3623, %v3582
    %v3625 = vrot.slane %v3582, 4
    %v3626 = vsel %vm120, %v3594, %v3625
    %v3628 = vunpack.c.l.s4 1934713408
    %v3629 = vunpack.c.0.s8 %v3628
    %v3630 = vperm.slane %v3624, %v3629
    %v3632 = vunpack.c.l.s4 1934713408
    %v3633 = vunpack.c.0.s8 %v3632
    %v3634 = vperm.slane %v3626, %v3633
    %v3635 = vrot.slane %v3598, 4
    %v3636 = vsel %vm120, %v3635, %v3586
    %v3637 = vrot.slane %v3586, 4
    %v3638 = vsel %vm120, %v3598, %v3637
    %v3640 = vunpack.c.l.s4 1934713408
    %v3641 = vunpack.c.0.s8 %v3640
    %v3642 = vperm.slane %v3636, %v3641
    %v3644 = vunpack.c.l.s4 1934713408
    %v3645 = vunpack.c.0.s8 %v3644
    %v3646 = vperm.slane %v3638, %v3645
    %v3647 = vrot.slane %v3618, 4
    %v3648 = vsel %vm120, %v3647, %v3606
    %v3649 = vrot.slane %v3606, 4
    %v3650 = vsel %vm120, %v3618, %v3649
    %v3652 = vunpack.c.l.s4 1934713408
    %v3653 = vunpack.c.0.s8 %v3652
    %v3654 = vperm.slane %v3648, %v3653
    %v3656 = vunpack.c.l.s4 1934713408
    %v3657 = vunpack.c.0.s8 %v3656
    %v3658 = vperm.slane %v3650, %v3657
    %v3659 = vrot.slane %v3622, 4
    %v3660 = vsel %vm120, %v3659, %v3610
    %v3661 = vrot.slane %v3610, 4
    %v3662 = vsel %vm120, %v3622, %v3661
    %v3664 = vunpack.c.l.s4 1934713408
    %v3665 = vunpack.c.0.s8 %v3664
    %v3666 = vperm.slane %v3660, %v3665
    %v3668 = vunpack.c.l.s4 1934713408
    %v3669 = vunpack.c.0.s8 %v3668
    %v3670 = vperm.slane %v3662, %v3669
    %v3671 = vrot.slane %v3654, 4
    %v3672 = vsel %vm120, %v3671, %v3630
    %v3673 = vrot.slane %v3630, 4
    %v3674 = vsel %vm120, %v3654, %v3673
    %v3675 = vrot.slane %v3658, 4
    %v3676 = vsel %vm120, %v3675, %v3634
    %v3677 = vrot.slane %v3634, 4
    %v3678 = vsel %vm120, %v3658, %v3677
    %v3679 = vrot.slane %v3666, 4
    %v3680 = vsel %vm120, %v3679, %v3642
    %v3681 = vrot.slane %v3642, 4
    %v3682 = vsel %vm120, %v3666, %v3681
    %v3683 = vrot.slane %v3670, 4
    %v3684 = vsel %vm120, %v3683, %v3646
    %v3685 = vrot.slane %v3646, 4
    %v3686 = vsel %vm120, %v3670, %v3685
    %3688 = vrot.lane.b32.xlu0 %v3562, 16
    %v3689 = vpop.permute.xlu0 %3688
    %3692 = vrot.lane.b32.xlu0 %v3564, 32
    %v3693 = vpop.permute.xlu0 %3692
    %3696 = vrot.lane.b32.xlu0 %v3566, 48
    %v3697 = vpop.permute.xlu0 %3696
    %3700 = vrot.lane.b32.xlu0 %v3568, 64
    %v3701 = vpop.permute.xlu0 %3700
    %3704 = vrot.lane.b32.xlu0 %v3570, 80
    %v3705 = vpop.permute.xlu0 %3704
    %3708 = vrot.lane.b32.xlu0 %v3572, 96
    %v3709 = vpop.permute.xlu0 %3708
    %3712 = vrot.lane.b32.xlu0 %v3574, 112
    %v3713 = vpop.permute.xlu0 %3712
    %3716 = vrot.lane.b32.xlu0 %v3674, 16
    %v3717 = vpop.permute.xlu0 %3716
    %3720 = vrot.lane.b32.xlu0 %v3676, 32
    %v3721 = vpop.permute.xlu0 %3720
    %3724 = vrot.lane.b32.xlu0 %v3678, 48
    %v3725 = vpop.permute.xlu0 %3724
    %3728 = vrot.lane.b32.xlu0 %v3680, 64
    %v3729 = vpop.permute.xlu0 %3728
    %3732 = vrot.lane.b32.xlu0 %v3682, 80
    %v3733 = vpop.permute.xlu0 %3732
    %3736 = vrot.lane.b32.xlu0 %v3684, 96
    %v3737 = vpop.permute.xlu0 %3736
    %3740 = vrot.lane.b32.xlu0 %v3686, 112
    %v3741 = vpop.permute.xlu0 %3740
    %v3743 = vsel %vm510, %v3560, %v3689
    %v3744 = vsel %vm512, %v3743, %v3693
    %v3745 = vsel %vm514, %v3744, %v3697
    %v3746 = vsel %vm516, %v3745, %v3701
    %v3747 = vsel %vm518, %v3746, %v3705
    %v3748 = vsel %vm520, %v3747, %v3709
    %v3749 = vsel %vm522, %v3748, %v3713
    %v3750 = vsel %vm510, %v3672, %v3717
    %v3751 = vsel %vm512, %v3750, %v3721
    %v3752 = vsel %vm514, %v3751, %v3725
    %v3753 = vsel %vm516, %v3752, %v3729
    %v3754 = vsel %vm518, %v3753, %v3733
    %v3755 = vsel %vm520, %v3754, %v3737
    %v3756 = vsel %vm522, %v3755, %v3741
    %v3765 = vrot.slane %v2739, 1
    %v3766 = vrot.slane %v2740, 1
    %v3767 = vsel %vm955, %v3765, %v3766
    %v3768 = vrot.slane %v2741, 1
    %v3769 = vsel %vm955, %v3766, %v3768
    %v3770 = vrot.slane %v2742, 1
    %v3771 = vrot.slane %v2743, 1
    %v3772 = vsel %vm955, %v3770, %v3771
    %v3773 = vrot.slane %v2744, 1
    %v3774 = vsel %vm955, %v3771, %v3773
    %v3775 = vrot.slane %v2745, 1
    %v3776 = vrot.slane %v2746, 1
    %v3777 = vsel %vm955, %v3775, %v3776
    %v3778 = vrot.slane %v2747, 1
    %v3779 = vsel %vm955, %v3776, %v3778
    %v3780 = vrot.slane %v2748, 1
    %v3781 = vrot.slane %v2749, 1
    %v3782 = vsel %vm955, %v3780, %v3781
    %v3783 = vrot.slane %v2750, 1
    %v3784 = vsel %vm955, %v3781, %v3783
    %v3785 = vrot.slane %v2751, 1
    %v3786 = vrot.slane %v2752, 1
    %v3787 = vsel %vm955, %v3785, %v3786
    %v3788 = vrot.slane %v2753, 1
    %v3789 = vsel %vm955, %v3786, %v3788
    %v3790 = vrot.slane %v2754, 1
    %v3791 = vrot.slane %v2755, 1
    %v3792 = vsel %vm955, %v3790, %v3791
    %v3793 = vrot.slane %v2756, 1
    %v3794 = vsel %vm955, %v3791, %v3793
    %v3795 = vrot.slane %v2757, 1
    %v3796 = vrot.slane %v2758, 1
    %v3797 = vsel %vm955, %v3795, %v3796
    %v3798 = vrot.slane %v2759, 1
    %v3799 = vsel %vm955, %v3796, %v3798
    %v3800 = vrot.slane %v2760, 1
    %v3801 = vrot.slane %v2761, 1
    %v3802 = vsel %vm955, %v3800, %v3801
    %v3803 = vrot.slane %v2762, 1
    %v3804 = vsel %vm955, %v3801, %v3803
    %v3821 = vrot.slane %v3777, 4
    %v3822 = vsel %vm120, %v3821, %v3767
    %v3823 = vrot.slane %v3767, 4
    %v3824 = vsel %vm120, %v3777, %v3823
    %v3826 = vunpack.c.l.s4 1983009808
    %v3827 = vunpack.c.0.s8 %v3826
    %v3828 = vperm.slane %v3822, %v3827
    %v3830 = vunpack.c.l.s4 1983009808
    %v3831 = vunpack.c.0.s8 %v3830
    %v3832 = vperm.slane %v3824, %v3831
    %v3833 = vrot.slane %v3782, 4
    %v3834 = vsel %vm120, %v3833, %v3772
    %v3835 = vrot.slane %v3772, 4
    %v3836 = vsel %vm120, %v3782, %v3835
    %v3838 = vunpack.c.l.s4 1983009808
    %v3839 = vunpack.c.0.s8 %v3838
    %v3840 = vperm.slane %v3834, %v3839
    %v3842 = vunpack.c.l.s4 1983009808
    %v3843 = vunpack.c.0.s8 %v3842
    %v3844 = vperm.slane %v3836, %v3843
    %v3845 = vrot.slane %v3797, 4
    %v3846 = vsel %vm120, %v3845, %v3787
    %v3847 = vrot.slane %v3787, 4
    %v3848 = vsel %vm120, %v3797, %v3847
    %v3850 = vunpack.c.l.s4 1983009808
    %v3851 = vunpack.c.0.s8 %v3850
    %v3852 = vperm.slane %v3846, %v3851
    %v3854 = vunpack.c.l.s4 1983009808
    %v3855 = vunpack.c.0.s8 %v3854
    %v3856 = vperm.slane %v3848, %v3855
    %v3857 = vrot.slane %v3802, 4
    %v3858 = vsel %vm120, %v3857, %v3792
    %v3859 = vrot.slane %v3792, 4
    %v3860 = vsel %vm120, %v3802, %v3859
    %v3862 = vunpack.c.l.s4 1983009808
    %v3863 = vunpack.c.0.s8 %v3862
    %v3864 = vperm.slane %v3858, %v3863
    %v3866 = vunpack.c.l.s4 1983009808
    %v3867 = vunpack.c.0.s8 %v3866
    %v3868 = vperm.slane %v3860, %v3867
    %v3869 = vrot.slane %v3840, 4
    %v3870 = vsel %vm120, %v3869, %v3828
    %v3871 = vrot.slane %v3828, 4
    %v3872 = vsel %vm120, %v3840, %v3871
    %v3874 = vunpack.c.l.s4 1934713408
    %v3875 = vunpack.c.0.s8 %v3874
    %v3876 = vperm.slane %v3870, %v3875
    %v3878 = vunpack.c.l.s4 1934713408
    %v3879 = vunpack.c.0.s8 %v3878
    %v3880 = vperm.slane %v3872, %v3879
    %v3881 = vrot.slane %v3844, 4
    %v3882 = vsel %vm120, %v3881, %v3832
    %v3883 = vrot.slane %v3832, 4
    %v3884 = vsel %vm120, %v3844, %v3883
    %v3886 = vunpack.c.l.s4 1934713408
    %v3887 = vunpack.c.0.s8 %v3886
    %v3888 = vperm.slane %v3882, %v3887
    %v3890 = vunpack.c.l.s4 1934713408
    %v3891 = vunpack.c.0.s8 %v3890
    %v3892 = vperm.slane %v3884, %v3891
    %v3893 = vrot.slane %v3864, 4
    %v3894 = vsel %vm120, %v3893, %v3852
    %v3895 = vrot.slane %v3852, 4
    %v3896 = vsel %vm120, %v3864, %v3895
    %v3898 = vunpack.c.l.s4 1934713408
    %v3899 = vunpack.c.0.s8 %v3898
    %v3900 = vperm.slane %v3894, %v3899
    %v3902 = vunpack.c.l.s4 1934713408
    %v3903 = vunpack.c.0.s8 %v3902
    %v3904 = vperm.slane %v3896, %v3903
    %v3905 = vrot.slane %v3868, 4
    %v3906 = vsel %vm120, %v3905, %v3856
    %v3907 = vrot.slane %v3856, 4
    %v3908 = vsel %vm120, %v3868, %v3907
    %v3910 = vunpack.c.l.s4 1934713408
    %v3911 = vunpack.c.0.s8 %v3910
    %v3912 = vperm.slane %v3906, %v3911
    %v3914 = vunpack.c.l.s4 1934713408
    %v3915 = vunpack.c.0.s8 %v3914
    %v3916 = vperm.slane %v3908, %v3915
    %v3917 = vrot.slane %v3900, 4
    %v3918 = vsel %vm120, %v3917, %v3876
    %v3919 = vrot.slane %v3876, 4
    %v3920 = vsel %vm120, %v3900, %v3919
    %v3921 = vrot.slane %v3904, 4
    %v3922 = vsel %vm120, %v3921, %v3880
    %v3923 = vrot.slane %v3880, 4
    %v3924 = vsel %vm120, %v3904, %v3923
    %v3925 = vrot.slane %v3912, 4
    %v3926 = vsel %vm120, %v3925, %v3888
    %v3927 = vrot.slane %v3888, 4
    %v3928 = vsel %vm120, %v3912, %v3927
    %v3929 = vrot.slane %v3916, 4
    %v3930 = vsel %vm120, %v3929, %v3892
    %v3931 = vrot.slane %v3892, 4
    %v3932 = vsel %vm120, %v3916, %v3931
    %v3933 = vrot.slane %v3779, 4
    %v3934 = vsel %vm120, %v3933, %v3769
    %v3935 = vrot.slane %v3769, 4
    %v3936 = vsel %vm120, %v3779, %v3935
    %v3938 = vunpack.c.l.s4 1983009808
    %v3939 = vunpack.c.0.s8 %v3938
    %v3940 = vperm.slane %v3934, %v3939
    %v3942 = vunpack.c.l.s4 1983009808
    %v3943 = vunpack.c.0.s8 %v3942
    %v3944 = vperm.slane %v3936, %v3943
    %v3945 = vrot.slane %v3784, 4
    %v3946 = vsel %vm120, %v3945, %v3774
    %v3947 = vrot.slane %v3774, 4
    %v3948 = vsel %vm120, %v3784, %v3947
    %v3950 = vunpack.c.l.s4 1983009808
    %v3951 = vunpack.c.0.s8 %v3950
    %v3952 = vperm.slane %v3946, %v3951
    %v3954 = vunpack.c.l.s4 1983009808
    %v3955 = vunpack.c.0.s8 %v3954
    %v3956 = vperm.slane %v3948, %v3955
    %v3957 = vrot.slane %v3799, 4
    %v3958 = vsel %vm120, %v3957, %v3789
    %v3959 = vrot.slane %v3789, 4
    %v3960 = vsel %vm120, %v3799, %v3959
    %v3962 = vunpack.c.l.s4 1983009808
    %v3963 = vunpack.c.0.s8 %v3962
    %v3964 = vperm.slane %v3958, %v3963
    %v3966 = vunpack.c.l.s4 1983009808
    %v3967 = vunpack.c.0.s8 %v3966
    %v3968 = vperm.slane %v3960, %v3967
    %v3969 = vrot.slane %v3804, 4
    %v3970 = vsel %vm120, %v3969, %v3794
    %v3971 = vrot.slane %v3794, 4
    %v3972 = vsel %vm120, %v3804, %v3971
    %v3974 = vunpack.c.l.s4 1983009808
    %v3975 = vunpack.c.0.s8 %v3974
    %v3976 = vperm.slane %v3970, %v3975
    %v3978 = vunpack.c.l.s4 1983009808
    %v3979 = vunpack.c.0.s8 %v3978
    %v3980 = vperm.slane %v3972, %v3979
    %v3981 = vrot.slane %v3952, 4
    %v3982 = vsel %vm120, %v3981, %v3940
    %v3983 = vrot.slane %v3940, 4
    %v3984 = vsel %vm120, %v3952, %v3983
    %v3986 = vunpack.c.l.s4 1934713408
    %v3987 = vunpack.c.0.s8 %v3986
    %v3988 = vperm.slane %v3982, %v3987
    %v3990 = vunpack.c.l.s4 1934713408
    %v3991 = vunpack.c.0.s8 %v3990
    %v3992 = vperm.slane %v3984, %v3991
    %v3993 = vrot.slane %v3956, 4
    %v3994 = vsel %vm120, %v3993, %v3944
    %v3995 = vrot.slane %v3944, 4
    %v3996 = vsel %vm120, %v3956, %v3995
    %v3998 = vunpack.c.l.s4 1934713408
    %v3999 = vunpack.c.0.s8 %v3998
    %v4000 = vperm.slane %v3994, %v3999
    %v4002 = vunpack.c.l.s4 1934713408
    %v4003 = vunpack.c.0.s8 %v4002
    %v4004 = vperm.slane %v3996, %v4003
    %v4005 = vrot.slane %v3976, 4
    %v4006 = vsel %vm120, %v4005, %v3964
    %v4007 = vrot.slane %v3964, 4
    %v4008 = vsel %vm120, %v3976, %v4007
    %v4010 = vunpack.c.l.s4 1934713408
    %v4011 = vunpack.c.0.s8 %v4010
    %v4012 = vperm.slane %v4006, %v4011
    %v4014 = vunpack.c.l.s4 1934713408
    %v4015 = vunpack.c.0.s8 %v4014
    %v4016 = vperm.slane %v4008, %v4015
    %v4017 = vrot.slane %v3980, 4
    %v4018 = vsel %vm120, %v4017, %v3968
    %v4019 = vrot.slane %v3968, 4
    %v4020 = vsel %vm120, %v3980, %v4019
    %v4022 = vunpack.c.l.s4 1934713408
    %v4023 = vunpack.c.0.s8 %v4022
    %v4024 = vperm.slane %v4018, %v4023
    %v4026 = vunpack.c.l.s4 1934713408
    %v4027 = vunpack.c.0.s8 %v4026
    %v4028 = vperm.slane %v4020, %v4027
    %v4029 = vrot.slane %v4012, 4
    %v4030 = vsel %vm120, %v4029, %v3988
    %v4031 = vrot.slane %v3988, 4
    %v4032 = vsel %vm120, %v4012, %v4031
    %v4033 = vrot.slane %v4016, 4
    %v4034 = vsel %vm120, %v4033, %v3992
    %v4035 = vrot.slane %v3992, 4
    %v4036 = vsel %vm120, %v4016, %v4035
    %v4037 = vrot.slane %v4024, 4
    %v4038 = vsel %vm120, %v4037, %v4000
    %v4039 = vrot.slane %v4000, 4
    %v4040 = vsel %vm120, %v4024, %v4039
    %v4041 = vrot.slane %v4028, 4
    %v4042 = vsel %vm120, %v4041, %v4004
    %v4043 = vrot.slane %v4004, 4
    %v4044 = vsel %vm120, %v4028, %v4043
    %4046 = vrot.lane.b32.xlu0 %v3920, 16
    %v4047 = vpop.permute.xlu0 %4046
    %4050 = vrot.lane.b32.xlu0 %v3922, 32
    %v4051 = vpop.permute.xlu0 %4050
    %4054 = vrot.lane.b32.xlu0 %v3924, 48
    %v4055 = vpop.permute.xlu0 %4054
    %4058 = vrot.lane.b32.xlu0 %v3926, 64
    %v4059 = vpop.permute.xlu0 %4058
    %4062 = vrot.lane.b32.xlu0 %v3928, 80
    %v4063 = vpop.permute.xlu0 %4062
    %4066 = vrot.lane.b32.xlu0 %v3930, 96
    %v4067 = vpop.permute.xlu0 %4066
    %4070 = vrot.lane.b32.xlu0 %v3932, 112
    %v4071 = vpop.permute.xlu0 %4070
    %4074 = vrot.lane.b32.xlu0 %v4032, 16
    %v4075 = vpop.permute.xlu0 %4074
    %4078 = vrot.lane.b32.xlu0 %v4034, 32
    %v4079 = vpop.permute.xlu0 %4078
    %4082 = vrot.lane.b32.xlu0 %v4036, 48
    %v4083 = vpop.permute.xlu0 %4082
    %4086 = vrot.lane.b32.xlu0 %v4038, 64
    %v4087 = vpop.permute.xlu0 %4086
    %4090 = vrot.lane.b32.xlu0 %v4040, 80
    %v4091 = vpop.permute.xlu0 %4090
    %4094 = vrot.lane.b32.xlu0 %v4042, 96
    %v4095 = vpop.permute.xlu0 %4094
    %4098 = vrot.lane.b32.xlu0 %v4044, 112
    %v4099 = vpop.permute.xlu0 %4098
    %v4101 = vsel %vm510, %v3918, %v4047
    %v4102 = vsel %vm512, %v4101, %v4051
    %v4103 = vsel %vm514, %v4102, %v4055
    %v4104 = vsel %vm516, %v4103, %v4059
    %v4105 = vsel %vm518, %v4104, %v4063
    %v4106 = vsel %vm520, %v4105, %v4067
    %v4107 = vsel %vm522, %v4106, %v4071
    %v4108 = vsel %vm510, %v4030, %v4075
    %v4109 = vsel %vm512, %v4108, %v4079
    %v4110 = vsel %vm514, %v4109, %v4083
    %v4111 = vsel %vm516, %v4110, %v4087
    %v4112 = vsel %vm518, %v4111, %v4091
    %v4113 = vsel %vm520, %v4112, %v4095
    %v4114 = vsel %vm522, %v4113, %v4099
    %4115 = vrot.lane.b32.xlu0 %v3767, 127
    %v4116 = vpop.permute.xlu0 %4115
    %4117 = vrot.lane.b32.xlu0 %v3769, 127
    %v4118 = vpop.permute.xlu0 %4117
    %4119 = vrot.lane.b32.xlu0 %v3772, 127
    %v4120 = vpop.permute.xlu0 %4119
    %4121 = vrot.lane.b32.xlu0 %v3774, 127
    %v4122 = vpop.permute.xlu0 %4121
    %4123 = vrot.lane.b32.xlu0 %v3777, 127
    %v4124 = vpop.permute.xlu0 %4123
    %4125 = vrot.lane.b32.xlu0 %v3779, 127
    %v4126 = vpop.permute.xlu0 %4125
    %4127 = vrot.lane.b32.xlu0 %v3782, 127
    %v4128 = vpop.permute.xlu0 %4127
    %4129 = vrot.lane.b32.xlu0 %v3784, 127
    %v4130 = vpop.permute.xlu0 %4129
    %4131 = vrot.lane.b32.xlu0 %v3787, 127
    %v4132 = vpop.permute.xlu0 %4131
    %4133 = vrot.lane.b32.xlu0 %v3789, 127
    %v4134 = vpop.permute.xlu0 %4133
    %4135 = vrot.lane.b32.xlu0 %v3792, 127
    %v4136 = vpop.permute.xlu0 %4135
    %4137 = vrot.lane.b32.xlu0 %v3794, 127
    %v4138 = vpop.permute.xlu0 %4137
    %4139 = vrot.lane.b32.xlu0 %v3797, 127
    %v4140 = vpop.permute.xlu0 %4139
    %4141 = vrot.lane.b32.xlu0 %v3799, 127
    %v4142 = vpop.permute.xlu0 %4141
    %4143 = vrot.lane.b32.xlu0 %v3802, 127
    %v4144 = vpop.permute.xlu0 %4143
    %4145 = vrot.lane.b32.xlu0 %v3804, 127
    %v4146 = vpop.permute.xlu0 %4145
    %v4163 = vrot.slane %v4124, 4
    %v4164 = vsel %vm120, %v4163, %v4116
    %v4165 = vrot.slane %v4116, 4
    %v4166 = vsel %vm120, %v4124, %v4165
    %v4168 = vunpack.c.l.s4 1983009808
    %v4169 = vunpack.c.0.s8 %v4168
    %v4170 = vperm.slane %v4164, %v4169
    %v4172 = vunpack.c.l.s4 1983009808
    %v4173 = vunpack.c.0.s8 %v4172
    %v4174 = vperm.slane %v4166, %v4173
    %v4175 = vrot.slane %v4128, 4
    %v4176 = vsel %vm120, %v4175, %v4120
    %v4177 = vrot.slane %v4120, 4
    %v4178 = vsel %vm120, %v4128, %v4177
    %v4180 = vunpack.c.l.s4 1983009808
    %v4181 = vunpack.c.0.s8 %v4180
    %v4182 = vperm.slane %v4176, %v4181
    %v4184 = vunpack.c.l.s4 1983009808
    %v4185 = vunpack.c.0.s8 %v4184
    %v4186 = vperm.slane %v4178, %v4185
    %v4187 = vrot.slane %v4140, 4
    %v4188 = vsel %vm120, %v4187, %v4132
    %v4189 = vrot.slane %v4132, 4
    %v4190 = vsel %vm120, %v4140, %v4189
    %v4192 = vunpack.c.l.s4 1983009808
    %v4193 = vunpack.c.0.s8 %v4192
    %v4194 = vperm.slane %v4188, %v4193
    %v4196 = vunpack.c.l.s4 1983009808
    %v4197 = vunpack.c.0.s8 %v4196
    %v4198 = vperm.slane %v4190, %v4197
    %v4199 = vrot.slane %v4144, 4
    %v4200 = vsel %vm120, %v4199, %v4136
    %v4201 = vrot.slane %v4136, 4
    %v4202 = vsel %vm120, %v4144, %v4201
    %v4204 = vunpack.c.l.s4 1983009808
    %v4205 = vunpack.c.0.s8 %v4204
    %v4206 = vperm.slane %v4200, %v4205
    %v4208 = vunpack.c.l.s4 1983009808
    %v4209 = vunpack.c.0.s8 %v4208
    %v4210 = vperm.slane %v4202, %v4209
    %v4211 = vrot.slane %v4182, 4
    %v4212 = vsel %vm120, %v4211, %v4170
    %v4213 = vrot.slane %v4170, 4
    %v4214 = vsel %vm120, %v4182, %v4213
    %v4216 = vunpack.c.l.s4 1934713408
    %v4217 = vunpack.c.0.s8 %v4216
    %v4218 = vperm.slane %v4212, %v4217
    %v4220 = vunpack.c.l.s4 1934713408
    %v4221 = vunpack.c.0.s8 %v4220
    %v4222 = vperm.slane %v4214, %v4221
    %v4223 = vrot.slane %v4186, 4
    %v4224 = vsel %vm120, %v4223, %v4174
    %v4225 = vrot.slane %v4174, 4
    %v4226 = vsel %vm120, %v4186, %v4225
    %v4228 = vunpack.c.l.s4 1934713408
    %v4229 = vunpack.c.0.s8 %v4228
    %v4230 = vperm.slane %v4224, %v4229
    %v4232 = vunpack.c.l.s4 1934713408
    %v4233 = vunpack.c.0.s8 %v4232
    %v4234 = vperm.slane %v4226, %v4233
    %v4235 = vrot.slane %v4206, 4
    %v4236 = vsel %vm120, %v4235, %v4194
    %v4237 = vrot.slane %v4194, 4
    %v4238 = vsel %vm120, %v4206, %v4237
    %v4240 = vunpack.c.l.s4 1934713408
    %v4241 = vunpack.c.0.s8 %v4240
    %v4242 = vperm.slane %v4236, %v4241
    %v4244 = vunpack.c.l.s4 1934713408
    %v4245 = vunpack.c.0.s8 %v4244
    %v4246 = vperm.slane %v4238, %v4245
    %v4247 = vrot.slane %v4210, 4
    %v4248 = vsel %vm120, %v4247, %v4198
    %v4249 = vrot.slane %v4198, 4
    %v4250 = vsel %vm120, %v4210, %v4249
    %v4252 = vunpack.c.l.s4 1934713408
    %v4253 = vunpack.c.0.s8 %v4252
    %v4254 = vperm.slane %v4248, %v4253
    %v4256 = vunpack.c.l.s4 1934713408
    %v4257 = vunpack.c.0.s8 %v4256
    %v4258 = vperm.slane %v4250, %v4257
    %v4259 = vrot.slane %v4242, 4
    %v4260 = vsel %vm120, %v4259, %v4218
    %v4261 = vrot.slane %v4218, 4
    %v4262 = vsel %vm120, %v4242, %v4261
    %v4263 = vrot.slane %v4246, 4
    %v4264 = vsel %vm120, %v4263, %v4222
    %v4265 = vrot.slane %v4222, 4
    %v4266 = vsel %vm120, %v4246, %v4265
    %v4267 = vrot.slane %v4254, 4
    %v4268 = vsel %vm120, %v4267, %v4230
    %v4269 = vrot.slane %v4230, 4
    %v4270 = vsel %vm120, %v4254, %v4269
    %v4271 = vrot.slane %v4258, 4
    %v4272 = vsel %vm120, %v4271, %v4234
    %v4273 = vrot.slane %v4234, 4
    %v4274 = vsel %vm120, %v4258, %v4273
    %v4275 = vrot.slane %v4126, 4
    %v4276 = vsel %vm120, %v4275, %v4118
    %v4277 = vrot.slane %v4118, 4
    %v4278 = vsel %vm120, %v4126, %v4277
    %v4280 = vunpack.c.l.s4 1983009808
    %v4281 = vunpack.c.0.s8 %v4280
    %v4282 = vperm.slane %v4276, %v4281
    %v4284 = vunpack.c.l.s4 1983009808
    %v4285 = vunpack.c.0.s8 %v4284
    %v4286 = vperm.slane %v4278, %v4285
    %v4287 = vrot.slane %v4130, 4
    %v4288 = vsel %vm120, %v4287, %v4122
    %v4289 = vrot.slane %v4122, 4
    %v4290 = vsel %vm120, %v4130, %v4289
    %v4292 = vunpack.c.l.s4 1983009808
    %v4293 = vunpack.c.0.s8 %v4292
    %v4294 = vperm.slane %v4288, %v4293
    %v4296 = vunpack.c.l.s4 1983009808
    %v4297 = vunpack.c.0.s8 %v4296
    %v4298 = vperm.slane %v4290, %v4297
    %v4299 = vrot.slane %v4142, 4
    %v4300 = vsel %vm120, %v4299, %v4134
    %v4301 = vrot.slane %v4134, 4
    %v4302 = vsel %vm120, %v4142, %v4301
    %v4304 = vunpack.c.l.s4 1983009808
    %v4305 = vunpack.c.0.s8 %v4304
    %v4306 = vperm.slane %v4300, %v4305
    %v4308 = vunpack.c.l.s4 1983009808
    %v4309 = vunpack.c.0.s8 %v4308
    %v4310 = vperm.slane %v4302, %v4309
    %v4311 = vrot.slane %v4146, 4
    %v4312 = vsel %vm120, %v4311, %v4138
    %v4313 = vrot.slane %v4138, 4
    %v4314 = vsel %vm120, %v4146, %v4313
    %v4316 = vunpack.c.l.s4 1983009808
    %v4317 = vunpack.c.0.s8 %v4316
    %v4318 = vperm.slane %v4312, %v4317
    %v4320 = vunpack.c.l.s4 1983009808
    %v4321 = vunpack.c.0.s8 %v4320
    %v4322 = vperm.slane %v4314, %v4321
    %v4323 = vrot.slane %v4294, 4
    %v4324 = vsel %vm120, %v4323, %v4282
    %v4325 = vrot.slane %v4282, 4
    %v4326 = vsel %vm120, %v4294, %v4325
    %v4328 = vunpack.c.l.s4 1934713408
    %v4329 = vunpack.c.0.s8 %v4328
    %v4330 = vperm.slane %v4324, %v4329
    %v4332 = vunpack.c.l.s4 1934713408
    %v4333 = vunpack.c.0.s8 %v4332
    %v4334 = vperm.slane %v4326, %v4333
    %v4335 = vrot.slane %v4298, 4
    %v4336 = vsel %vm120, %v4335, %v4286
    %v4337 = vrot.slane %v4286, 4
    %v4338 = vsel %vm120, %v4298, %v4337
    %v4340 = vunpack.c.l.s4 1934713408
    %v4341 = vunpack.c.0.s8 %v4340
    %v4342 = vperm.slane %v4336, %v4341
    %v4344 = vunpack.c.l.s4 1934713408
    %v4345 = vunpack.c.0.s8 %v4344
    %v4346 = vperm.slane %v4338, %v4345
    %v4347 = vrot.slane %v4318, 4
    %v4348 = vsel %vm120, %v4347, %v4306
    %v4349 = vrot.slane %v4306, 4
    %v4350 = vsel %vm120, %v4318, %v4349
    %v4352 = vunpack.c.l.s4 1934713408
    %v4353 = vunpack.c.0.s8 %v4352
    %v4354 = vperm.slane %v4348, %v4353
    %v4356 = vunpack.c.l.s4 1934713408
    %v4357 = vunpack.c.0.s8 %v4356
    %v4358 = vperm.slane %v4350, %v4357
    %v4359 = vrot.slane %v4322, 4
    %v4360 = vsel %vm120, %v4359, %v4310
    %v4361 = vrot.slane %v4310, 4
    %v4362 = vsel %vm120, %v4322, %v4361
    %v4364 = vunpack.c.l.s4 1934713408
    %v4365 = vunpack.c.0.s8 %v4364
    %v4366 = vperm.slane %v4360, %v4365
    %v4368 = vunpack.c.l.s4 1934713408
    %v4369 = vunpack.c.0.s8 %v4368
    %v4370 = vperm.slane %v4362, %v4369
    %v4371 = vrot.slane %v4354, 4
    %v4372 = vsel %vm120, %v4371, %v4330
    %v4373 = vrot.slane %v4330, 4
    %v4374 = vsel %vm120, %v4354, %v4373
    %v4375 = vrot.slane %v4358, 4
    %v4376 = vsel %vm120, %v4375, %v4334
    %v4377 = vrot.slane %v4334, 4
    %v4378 = vsel %vm120, %v4358, %v4377
    %v4379 = vrot.slane %v4366, 4
    %v4380 = vsel %vm120, %v4379, %v4342
    %v4381 = vrot.slane %v4342, 4
    %v4382 = vsel %vm120, %v4366, %v4381
    %v4383 = vrot.slane %v4370, 4
    %v4384 = vsel %vm120, %v4383, %v4346
    %v4385 = vrot.slane %v4346, 4
    %v4386 = vsel %vm120, %v4370, %v4385
    %4388 = vrot.lane.b32.xlu0 %v4262, 16
    %v4389 = vpop.permute.xlu0 %4388
    %4392 = vrot.lane.b32.xlu0 %v4264, 32
    %v4393 = vpop.permute.xlu0 %4392
    %4396 = vrot.lane.b32.xlu0 %v4266, 48
    %v4397 = vpop.permute.xlu0 %4396
    %4400 = vrot.lane.b32.xlu0 %v4268, 64
    %v4401 = vpop.permute.xlu0 %4400
    %4404 = vrot.lane.b32.xlu0 %v4270, 80
    %v4405 = vpop.permute.xlu0 %4404
    %4408 = vrot.lane.b32.xlu0 %v4272, 96
    %v4409 = vpop.permute.xlu0 %4408
    %4412 = vrot.lane.b32.xlu0 %v4274, 112
    %v4413 = vpop.permute.xlu0 %4412
    %4416 = vrot.lane.b32.xlu0 %v4374, 16
    %v4417 = vpop.permute.xlu0 %4416
    %4420 = vrot.lane.b32.xlu0 %v4376, 32
    %v4421 = vpop.permute.xlu0 %4420
    %4424 = vrot.lane.b32.xlu0 %v4378, 48
    %v4425 = vpop.permute.xlu0 %4424
    %4428 = vrot.lane.b32.xlu0 %v4380, 64
    %v4429 = vpop.permute.xlu0 %4428
    %4432 = vrot.lane.b32.xlu0 %v4382, 80
    %v4433 = vpop.permute.xlu0 %4432
    %4436 = vrot.lane.b32.xlu0 %v4384, 96
    %v4437 = vpop.permute.xlu0 %4436
    %4440 = vrot.lane.b32.xlu0 %v4386, 112
    %v4441 = vpop.permute.xlu0 %4440
    %v4443 = vsel %vm510, %v4260, %v4389
    %v4444 = vsel %vm512, %v4443, %v4393
    %v4445 = vsel %vm514, %v4444, %v4397
    %v4446 = vsel %vm516, %v4445, %v4401
    %v4447 = vsel %vm518, %v4446, %v4405
    %v4448 = vsel %vm520, %v4447, %v4409
    %v4449 = vsel %vm522, %v4448, %v4413
    %v4450 = vsel %vm510, %v4372, %v4417
    %v4451 = vsel %vm512, %v4450, %v4421
    %v4452 = vsel %vm514, %v4451, %v4425
    %v4453 = vsel %vm516, %v4452, %v4429
    %v4454 = vsel %vm518, %v4453, %v4433
    %v4455 = vsel %vm520, %v4454, %v4437
    %v4456 = vsel %vm522, %v4455, %v4441
    %4457 = vrot.lane.b32.xlu0 %v3767, 126
    %v4458 = vpop.permute.xlu0 %4457
    %4459 = vrot.lane.b32.xlu0 %v3769, 126
    %v4460 = vpop.permute.xlu0 %4459
    %4461 = vrot.lane.b32.xlu0 %v3772, 126
    %v4462 = vpop.permute.xlu0 %4461
    %4463 = vrot.lane.b32.xlu0 %v3774, 126
    %v4464 = vpop.permute.xlu0 %4463
    %4465 = vrot.lane.b32.xlu0 %v3777, 126
    %v4466 = vpop.permute.xlu0 %4465
    %4467 = vrot.lane.b32.xlu0 %v3779, 126
    %v4468 = vpop.permute.xlu0 %4467
    %4469 = vrot.lane.b32.xlu0 %v3782, 126
    %v4470 = vpop.permute.xlu0 %4469
    %4471 = vrot.lane.b32.xlu0 %v3784, 126
    %v4472 = vpop.permute.xlu0 %4471
    %4473 = vrot.lane.b32.xlu0 %v3787, 126
    %v4474 = vpop.permute.xlu0 %4473
    %4475 = vrot.lane.b32.xlu0 %v3789, 126
    %v4476 = vpop.permute.xlu0 %4475
    %4477 = vrot.lane.b32.xlu0 %v3792, 126
    %v4478 = vpop.permute.xlu0 %4477
    %4479 = vrot.lane.b32.xlu0 %v3794, 126
    %v4480 = vpop.permute.xlu0 %4479
    %4481 = vrot.lane.b32.xlu0 %v3797, 126
    %v4482 = vpop.permute.xlu0 %4481
    %4483 = vrot.lane.b32.xlu0 %v3799, 126
    %v4484 = vpop.permute.xlu0 %4483
    %4485 = vrot.lane.b32.xlu0 %v3802, 126
    %v4486 = vpop.permute.xlu0 %4485
    %4487 = vrot.lane.b32.xlu0 %v3804, 126
    %v4488 = vpop.permute.xlu0 %4487
    %v4505 = vrot.slane %v4466, 4
    %v4506 = vsel %vm120, %v4505, %v4458
    %v4507 = vrot.slane %v4458, 4
    %v4508 = vsel %vm120, %v4466, %v4507
    %v4510 = vunpack.c.l.s4 1983009808
    %v4511 = vunpack.c.0.s8 %v4510
    %v4512 = vperm.slane %v4506, %v4511
    %v4514 = vunpack.c.l.s4 1983009808
    %v4515 = vunpack.c.0.s8 %v4514
    %v4516 = vperm.slane %v4508, %v4515
    %v4517 = vrot.slane %v4470, 4
    %v4518 = vsel %vm120, %v4517, %v4462
    %v4519 = vrot.slane %v4462, 4
    %v4520 = vsel %vm120, %v4470, %v4519
    %v4522 = vunpack.c.l.s4 1983009808
    %v4523 = vunpack.c.0.s8 %v4522
    %v4524 = vperm.slane %v4518, %v4523
    %v4526 = vunpack.c.l.s4 1983009808
    %v4527 = vunpack.c.0.s8 %v4526
    %v4528 = vperm.slane %v4520, %v4527
    %v4529 = vrot.slane %v4482, 4
    %v4530 = vsel %vm120, %v4529, %v4474
    %v4531 = vrot.slane %v4474, 4
    %v4532 = vsel %vm120, %v4482, %v4531
    %v4534 = vunpack.c.l.s4 1983009808
    %v4535 = vunpack.c.0.s8 %v4534
    %v4536 = vperm.slane %v4530, %v4535
    %v4538 = vunpack.c.l.s4 1983009808
    %v4539 = vunpack.c.0.s8 %v4538
    %v4540 = vperm.slane %v4532, %v4539
    %v4541 = vrot.slane %v4486, 4
    %v4542 = vsel %vm120, %v4541, %v4478
    %v4543 = vrot.slane %v4478, 4
    %v4544 = vsel %vm120, %v4486, %v4543
    %v4546 = vunpack.c.l.s4 1983009808
    %v4547 = vunpack.c.0.s8 %v4546
    %v4548 = vperm.slane %v4542, %v4547
    %v4550 = vunpack.c.l.s4 1983009808
    %v4551 = vunpack.c.0.s8 %v4550
    %v4552 = vperm.slane %v4544, %v4551
    %v4553 = vrot.slane %v4524, 4
    %v4554 = vsel %vm120, %v4553, %v4512
    %v4555 = vrot.slane %v4512, 4
    %v4556 = vsel %vm120, %v4524, %v4555
    %v4558 = vunpack.c.l.s4 1934713408
    %v4559 = vunpack.c.0.s8 %v4558
    %v4560 = vperm.slane %v4554, %v4559
    %v4562 = vunpack.c.l.s4 1934713408
    %v4563 = vunpack.c.0.s8 %v4562
    %v4564 = vperm.slane %v4556, %v4563
    %v4565 = vrot.slane %v4528, 4
    %v4566 = vsel %vm120, %v4565, %v4516
    %v4567 = vrot.slane %v4516, 4
    %v4568 = vsel %vm120, %v4528, %v4567
    %v4570 = vunpack.c.l.s4 1934713408
    %v4571 = vunpack.c.0.s8 %v4570
    %v4572 = vperm.slane %v4566, %v4571
    %v4574 = vunpack.c.l.s4 1934713408
    %v4575 = vunpack.c.0.s8 %v4574
    %v4576 = vperm.slane %v4568, %v4575
    %v4577 = vrot.slane %v4548, 4
    %v4578 = vsel %vm120, %v4577, %v4536
    %v4579 = vrot.slane %v4536, 4
    %v4580 = vsel %vm120, %v4548, %v4579
    %v4582 = vunpack.c.l.s4 1934713408
    %v4583 = vunpack.c.0.s8 %v4582
    %v4584 = vperm.slane %v4578, %v4583
    %v4586 = vunpack.c.l.s4 1934713408
    %v4587 = vunpack.c.0.s8 %v4586
    %v4588 = vperm.slane %v4580, %v4587
    %v4589 = vrot.slane %v4552, 4
    %v4590 = vsel %vm120, %v4589, %v4540
    %v4591 = vrot.slane %v4540, 4
    %v4592 = vsel %vm120, %v4552, %v4591
    %v4594 = vunpack.c.l.s4 1934713408
    %v4595 = vunpack.c.0.s8 %v4594
    %v4596 = vperm.slane %v4590, %v4595
    %v4598 = vunpack.c.l.s4 1934713408
    %v4599 = vunpack.c.0.s8 %v4598
    %v4600 = vperm.slane %v4592, %v4599
    %v4601 = vrot.slane %v4584, 4
    %v4602 = vsel %vm120, %v4601, %v4560
    %v4603 = vrot.slane %v4560, 4
    %v4604 = vsel %vm120, %v4584, %v4603
    %v4605 = vrot.slane %v4588, 4
    %v4606 = vsel %vm120, %v4605, %v4564
    %v4607 = vrot.slane %v4564, 4
    %v4608 = vsel %vm120, %v4588, %v4607
    %v4609 = vrot.slane %v4596, 4
    %v4610 = vsel %vm120, %v4609, %v4572
    %v4611 = vrot.slane %v4572, 4
    %v4612 = vsel %vm120, %v4596, %v4611
    %v4613 = vrot.slane %v4600, 4
    %v4614 = vsel %vm120, %v4613, %v4576
    %v4615 = vrot.slane %v4576, 4
    %v4616 = vsel %vm120, %v4600, %v4615
    %v4617 = vrot.slane %v4468, 4
    %v4618 = vsel %vm120, %v4617, %v4460
    %v4619 = vrot.slane %v4460, 4
    %v4620 = vsel %vm120, %v4468, %v4619
    %v4622 = vunpack.c.l.s4 1983009808
    %v4623 = vunpack.c.0.s8 %v4622
    %v4624 = vperm.slane %v4618, %v4623
    %v4626 = vunpack.c.l.s4 1983009808
    %v4627 = vunpack.c.0.s8 %v4626
    %v4628 = vperm.slane %v4620, %v4627
    %v4629 = vrot.slane %v4472, 4
    %v4630 = vsel %vm120, %v4629, %v4464
    %v4631 = vrot.slane %v4464, 4
    %v4632 = vsel %vm120, %v4472, %v4631
    %v4634 = vunpack.c.l.s4 1983009808
    %v4635 = vunpack.c.0.s8 %v4634
    %v4636 = vperm.slane %v4630, %v4635
    %v4638 = vunpack.c.l.s4 1983009808
    %v4639 = vunpack.c.0.s8 %v4638
    %v4640 = vperm.slane %v4632, %v4639
    %v4641 = vrot.slane %v4484, 4
    %v4642 = vsel %vm120, %v4641, %v4476
    %v4643 = vrot.slane %v4476, 4
    %v4644 = vsel %vm120, %v4484, %v4643
    %v4646 = vunpack.c.l.s4 1983009808
    %v4647 = vunpack.c.0.s8 %v4646
    %v4648 = vperm.slane %v4642, %v4647
    %v4650 = vunpack.c.l.s4 1983009808
    %v4651 = vunpack.c.0.s8 %v4650
    %v4652 = vperm.slane %v4644, %v4651
    %v4653 = vrot.slane %v4488, 4
    %v4654 = vsel %vm120, %v4653, %v4480
    %v4655 = vrot.slane %v4480, 4
    %v4656 = vsel %vm120, %v4488, %v4655
    %v4658 = vunpack.c.l.s4 1983009808
    %v4659 = vunpack.c.0.s8 %v4658
    %v4660 = vperm.slane %v4654, %v4659
    %v4662 = vunpack.c.l.s4 1983009808
    %v4663 = vunpack.c.0.s8 %v4662
    %v4664 = vperm.slane %v4656, %v4663
    %v4665 = vrot.slane %v4636, 4
    %v4666 = vsel %vm120, %v4665, %v4624
    %v4667 = vrot.slane %v4624, 4
    %v4668 = vsel %vm120, %v4636, %v4667
    %v4670 = vunpack.c.l.s4 1934713408
    %v4671 = vunpack.c.0.s8 %v4670
    %v4672 = vperm.slane %v4666, %v4671
    %v4674 = vunpack.c.l.s4 1934713408
    %v4675 = vunpack.c.0.s8 %v4674
    %v4676 = vperm.slane %v4668, %v4675
    %v4677 = vrot.slane %v4640, 4
    %v4678 = vsel %vm120, %v4677, %v4628
    %v4679 = vrot.slane %v4628, 4
    %v4680 = vsel %vm120, %v4640, %v4679
    %v4682 = vunpack.c.l.s4 1934713408
    %v4683 = vunpack.c.0.s8 %v4682
    %v4684 = vperm.slane %v4678, %v4683
    %v4686 = vunpack.c.l.s4 1934713408
    %v4687 = vunpack.c.0.s8 %v4686
    %v4688 = vperm.slane %v4680, %v4687
    %v4689 = vrot.slane %v4660, 4
    %v4690 = vsel %vm120, %v4689, %v4648
    %v4691 = vrot.slane %v4648, 4
    %v4692 = vsel %vm120, %v4660, %v4691
    %v4694 = vunpack.c.l.s4 1934713408
    %v4695 = vunpack.c.0.s8 %v4694
    %v4696 = vperm.slane %v4690, %v4695
    %v4698 = vunpack.c.l.s4 1934713408
    %v4699 = vunpack.c.0.s8 %v4698
    %v4700 = vperm.slane %v4692, %v4699
    %v4701 = vrot.slane %v4664, 4
    %v4702 = vsel %vm120, %v4701, %v4652
    %v4703 = vrot.slane %v4652, 4
    %v4704 = vsel %vm120, %v4664, %v4703
    %v4706 = vunpack.c.l.s4 1934713408
    %v4707 = vunpack.c.0.s8 %v4706
    %v4708 = vperm.slane %v4702, %v4707
    %v4710 = vunpack.c.l.s4 1934713408
    %v4711 = vunpack.c.0.s8 %v4710
    %v4712 = vperm.slane %v4704, %v4711
    %v4713 = vrot.slane %v4696, 4
    %v4714 = vsel %vm120, %v4713, %v4672
    %v4715 = vrot.slane %v4672, 4
    %v4716 = vsel %vm120, %v4696, %v4715
    %v4717 = vrot.slane %v4700, 4
    %v4718 = vsel %vm120, %v4717, %v4676
    %v4719 = vrot.slane %v4676, 4
    %v4720 = vsel %vm120, %v4700, %v4719
    %v4721 = vrot.slane %v4708, 4
    %v4722 = vsel %vm120, %v4721, %v4684
    %v4723 = vrot.slane %v4684, 4
    %v4724 = vsel %vm120, %v4708, %v4723
    %v4725 = vrot.slane %v4712, 4
    %v4726 = vsel %vm120, %v4725, %v4688
    %v4727 = vrot.slane %v4688, 4
    %v4728 = vsel %vm120, %v4712, %v4727
    %4730 = vrot.lane.b32.xlu0 %v4604, 16
    %v4731 = vpop.permute.xlu0 %4730
    %4734 = vrot.lane.b32.xlu0 %v4606, 32
    %v4735 = vpop.permute.xlu0 %4734
    %4738 = vrot.lane.b32.xlu0 %v4608, 48
    %v4739 = vpop.permute.xlu0 %4738
    %4742 = vrot.lane.b32.xlu0 %v4610, 64
    %v4743 = vpop.permute.xlu0 %4742
    %4746 = vrot.lane.b32.xlu0 %v4612, 80
    %v4747 = vpop.permute.xlu0 %4746
    %4750 = vrot.lane.b32.xlu0 %v4614, 96
    %v4751 = vpop.permute.xlu0 %4750
    %4754 = vrot.lane.b32.xlu0 %v4616, 112
    %v4755 = vpop.permute.xlu0 %4754
    %4758 = vrot.lane.b32.xlu0 %v4716, 16
    %v4759 = vpop.permute.xlu0 %4758
    %4762 = vrot.lane.b32.xlu0 %v4718, 32
    %v4763 = vpop.permute.xlu0 %4762
    %4766 = vrot.lane.b32.xlu0 %v4720, 48
    %v4767 = vpop.permute.xlu0 %4766
    %4770 = vrot.lane.b32.xlu0 %v4722, 64
    %v4771 = vpop.permute.xlu0 %4770
    %4774 = vrot.lane.b32.xlu0 %v4724, 80
    %v4775 = vpop.permute.xlu0 %4774
    %4778 = vrot.lane.b32.xlu0 %v4726, 96
    %v4779 = vpop.permute.xlu0 %4778
    %4782 = vrot.lane.b32.xlu0 %v4728, 112
    %v4783 = vpop.permute.xlu0 %4782
    %v4785 = vsel %vm510, %v4602, %v4731
    %v4786 = vsel %vm512, %v4785, %v4735
    %v4787 = vsel %vm514, %v4786, %v4739
    %v4788 = vsel %vm516, %v4787, %v4743
    %v4789 = vsel %vm518, %v4788, %v4747
    %v4790 = vsel %vm520, %v4789, %v4751
    %v4791 = vsel %vm522, %v4790, %v4755
    %v4792 = vsel %vm510, %v4714, %v4759
    %v4793 = vsel %vm512, %v4792, %v4763
    %v4794 = vsel %vm514, %v4793, %v4767
    %v4795 = vsel %vm516, %v4794, %v4771
    %v4796 = vsel %vm518, %v4795, %v4775
    %v4797 = vsel %vm520, %v4796, %v4779
    %v4798 = vsel %vm522, %v4797, %v4783
    %v4799 = vrot.slane %v2739, 2
    %v4800 = vrot.slane %v2740, 2
    %v4801 = vsel %vm1578, %v4799, %v4800
    %v4802 = vrot.slane %v2741, 2
    %v4803 = vsel %vm1578, %v4800, %v4802
    %v4804 = vrot.slane %v2742, 2
    %v4805 = vrot.slane %v2743, 2
    %v4806 = vsel %vm1578, %v4804, %v4805
    %v4807 = vrot.slane %v2744, 2
    %v4808 = vsel %vm1578, %v4805, %v4807
    %v4809 = vrot.slane %v2745, 2
    %v4810 = vrot.slane %v2746, 2
    %v4811 = vsel %vm1578, %v4809, %v4810
    %v4812 = vrot.slane %v2747, 2
    %v4813 = vsel %vm1578, %v4810, %v4812
    %v4814 = vrot.slane %v2748, 2
    %v4815 = vrot.slane %v2749, 2
    %v4816 = vsel %vm1578, %v4814, %v4815
    %v4817 = vrot.slane %v2750, 2
    %v4818 = vsel %vm1578, %v4815, %v4817
    %v4819 = vrot.slane %v2751, 2
    %v4820 = vrot.slane %v2752, 2
    %v4821 = vsel %vm1578, %v4819, %v4820
    %v4822 = vrot.slane %v2753, 2
    %v4823 = vsel %vm1578, %v4820, %v4822
    %v4824 = vrot.slane %v2754, 2
    %v4825 = vrot.slane %v2755, 2
    %v4826 = vsel %vm1578, %v4824, %v4825
    %v4827 = vrot.slane %v2756, 2
    %v4828 = vsel %vm1578, %v4825, %v4827
    %v4829 = vrot.slane %v2757, 2
    %v4830 = vrot.slane %v2758, 2
    %v4831 = vsel %vm1578, %v4829, %v4830
    %v4832 = vrot.slane %v2759, 2
    %v4833 = vsel %vm1578, %v4830, %v4832
    %v4834 = vrot.slane %v2760, 2
    %v4835 = vrot.slane %v2761, 2
    %v4836 = vsel %vm1578, %v4834, %v4835
    %v4837 = vrot.slane %v2762, 2
    %v4838 = vsel %vm1578, %v4835, %v4837
    %v4855 = vrot.slane %v4811, 4
    %v4856 = vsel %vm120, %v4855, %v4801
    %v4857 = vrot.slane %v4801, 4
    %v4858 = vsel %vm120, %v4811, %v4857
    %v4860 = vunpack.c.l.s4 1983009808
    %v4861 = vunpack.c.0.s8 %v4860
    %v4862 = vperm.slane %v4856, %v4861
    %v4864 = vunpack.c.l.s4 1983009808
    %v4865 = vunpack.c.0.s8 %v4864
    %v4866 = vperm.slane %v4858, %v4865
    %v4867 = vrot.slane %v4816, 4
    %v4868 = vsel %vm120, %v4867, %v4806
    %v4869 = vrot.slane %v4806, 4
    %v4870 = vsel %vm120, %v4816, %v4869
    %v4872 = vunpack.c.l.s4 1983009808
    %v4873 = vunpack.c.0.s8 %v4872
    %v4874 = vperm.slane %v4868, %v4873
    %v4876 = vunpack.c.l.s4 1983009808
    %v4877 = vunpack.c.0.s8 %v4876
    %v4878 = vperm.slane %v4870, %v4877
    %v4879 = vrot.slane %v4831, 4
    %v4880 = vsel %vm120, %v4879, %v4821
    %v4881 = vrot.slane %v4821, 4
    %v4882 = vsel %vm120, %v4831, %v4881
    %v4884 = vunpack.c.l.s4 1983009808
    %v4885 = vunpack.c.0.s8 %v4884
    %v4886 = vperm.slane %v4880, %v4885
    %v4888 = vunpack.c.l.s4 1983009808
    %v4889 = vunpack.c.0.s8 %v4888
    %v4890 = vperm.slane %v4882, %v4889
    %v4891 = vrot.slane %v4836, 4
    %v4892 = vsel %vm120, %v4891, %v4826
    %v4893 = vrot.slane %v4826, 4
    %v4894 = vsel %vm120, %v4836, %v4893
    %v4896 = vunpack.c.l.s4 1983009808
    %v4897 = vunpack.c.0.s8 %v4896
    %v4898 = vperm.slane %v4892, %v4897
    %v4900 = vunpack.c.l.s4 1983009808
    %v4901 = vunpack.c.0.s8 %v4900
    %v4902 = vperm.slane %v4894, %v4901
    %v4903 = vrot.slane %v4874, 4
    %v4904 = vsel %vm120, %v4903, %v4862
    %v4905 = vrot.slane %v4862, 4
    %v4906 = vsel %vm120, %v4874, %v4905
    %v4908 = vunpack.c.l.s4 1934713408
    %v4909 = vunpack.c.0.s8 %v4908
    %v4910 = vperm.slane %v4904, %v4909
    %v4912 = vunpack.c.l.s4 1934713408
    %v4913 = vunpack.c.0.s8 %v4912
    %v4914 = vperm.slane %v4906, %v4913
    %v4915 = vrot.slane %v4878, 4
    %v4916 = vsel %vm120, %v4915, %v4866
    %v4917 = vrot.slane %v4866, 4
    %v4918 = vsel %vm120, %v4878, %v4917
    %v4920 = vunpack.c.l.s4 1934713408
    %v4921 = vunpack.c.0.s8 %v4920
    %v4922 = vperm.slane %v4916, %v4921
    %v4924 = vunpack.c.l.s4 1934713408
    %v4925 = vunpack.c.0.s8 %v4924
    %v4926 = vperm.slane %v4918, %v4925
    %v4927 = vrot.slane %v4898, 4
    %v4928 = vsel %vm120, %v4927, %v4886
    %v4929 = vrot.slane %v4886, 4
    %v4930 = vsel %vm120, %v4898, %v4929
    %v4932 = vunpack.c.l.s4 1934713408
    %v4933 = vunpack.c.0.s8 %v4932
    %v4934 = vperm.slane %v4928, %v4933
    %v4936 = vunpack.c.l.s4 1934713408
    %v4937 = vunpack.c.0.s8 %v4936
    %v4938 = vperm.slane %v4930, %v4937
    %v4939 = vrot.slane %v4902, 4
    %v4940 = vsel %vm120, %v4939, %v4890
    %v4941 = vrot.slane %v4890, 4
    %v4942 = vsel %vm120, %v4902, %v4941
    %v4944 = vunpack.c.l.s4 1934713408
    %v4945 = vunpack.c.0.s8 %v4944
    %v4946 = vperm.slane %v4940, %v4945
    %v4948 = vunpack.c.l.s4 1934713408
    %v4949 = vunpack.c.0.s8 %v4948
    %v4950 = vperm.slane %v4942, %v4949
    %v4951 = vrot.slane %v4934, 4
    %v4952 = vsel %vm120, %v4951, %v4910
    %v4953 = vrot.slane %v4910, 4
    %v4954 = vsel %vm120, %v4934, %v4953
    %v4955 = vrot.slane %v4938, 4
    %v4956 = vsel %vm120, %v4955, %v4914
    %v4957 = vrot.slane %v4914, 4
    %v4958 = vsel %vm120, %v4938, %v4957
    %v4959 = vrot.slane %v4946, 4
    %v4960 = vsel %vm120, %v4959, %v4922
    %v4961 = vrot.slane %v4922, 4
    %v4962 = vsel %vm120, %v4946, %v4961
    %v4963 = vrot.slane %v4950, 4
    %v4964 = vsel %vm120, %v4963, %v4926
    %v4965 = vrot.slane %v4926, 4
    %v4966 = vsel %vm120, %v4950, %v4965
    %v4967 = vrot.slane %v4813, 4
    %v4968 = vsel %vm120, %v4967, %v4803
    %v4969 = vrot.slane %v4803, 4
    %v4970 = vsel %vm120, %v4813, %v4969
    %v4972 = vunpack.c.l.s4 1983009808
    %v4973 = vunpack.c.0.s8 %v4972
    %v4974 = vperm.slane %v4968, %v4973
    %v4976 = vunpack.c.l.s4 1983009808
    %v4977 = vunpack.c.0.s8 %v4976
    %v4978 = vperm.slane %v4970, %v4977
    %v4979 = vrot.slane %v4818, 4
    %v4980 = vsel %vm120, %v4979, %v4808
    %v4981 = vrot.slane %v4808, 4
    %v4982 = vsel %vm120, %v4818, %v4981
    %v4984 = vunpack.c.l.s4 1983009808
    %v4985 = vunpack.c.0.s8 %v4984
    %v4986 = vperm.slane %v4980, %v4985
    %v4988 = vunpack.c.l.s4 1983009808
    %v4989 = vunpack.c.0.s8 %v4988
    %v4990 = vperm.slane %v4982, %v4989
    %v4991 = vrot.slane %v4833, 4
    %v4992 = vsel %vm120, %v4991, %v4823
    %v4993 = vrot.slane %v4823, 4
    %v4994 = vsel %vm120, %v4833, %v4993
    %v4996 = vunpack.c.l.s4 1983009808
    %v4997 = vunpack.c.0.s8 %v4996
    %v4998 = vperm.slane %v4992, %v4997
    %v5000 = vunpack.c.l.s4 1983009808
    %v5001 = vunpack.c.0.s8 %v5000
    %v5002 = vperm.slane %v4994, %v5001
    %v5003 = vrot.slane %v4838, 4
    %v5004 = vsel %vm120, %v5003, %v4828
    %v5005 = vrot.slane %v4828, 4
    %v5006 = vsel %vm120, %v4838, %v5005
    %v5008 = vunpack.c.l.s4 1983009808
    %v5009 = vunpack.c.0.s8 %v5008
    %v5010 = vperm.slane %v5004, %v5009
    %v5012 = vunpack.c.l.s4 1983009808
    %v5013 = vunpack.c.0.s8 %v5012
    %v5014 = vperm.slane %v5006, %v5013
    %v5015 = vrot.slane %v4986, 4
    %v5016 = vsel %vm120, %v5015, %v4974
    %v5017 = vrot.slane %v4974, 4
    %v5018 = vsel %vm120, %v4986, %v5017
    %v5020 = vunpack.c.l.s4 1934713408
    %v5021 = vunpack.c.0.s8 %v5020
    %v5022 = vperm.slane %v5016, %v5021
    %v5024 = vunpack.c.l.s4 1934713408
    %v5025 = vunpack.c.0.s8 %v5024
    %v5026 = vperm.slane %v5018, %v5025
    %v5027 = vrot.slane %v4990, 4
    %v5028 = vsel %vm120, %v5027, %v4978
    %v5029 = vrot.slane %v4978, 4
    %v5030 = vsel %vm120, %v4990, %v5029
    %v5032 = vunpack.c.l.s4 1934713408
    %v5033 = vunpack.c.0.s8 %v5032
    %v5034 = vperm.slane %v5028, %v5033
    %v5036 = vunpack.c.l.s4 1934713408
    %v5037 = vunpack.c.0.s8 %v5036
    %v5038 = vperm.slane %v5030, %v5037
    %v5039 = vrot.slane %v5010, 4
    %v5040 = vsel %vm120, %v5039, %v4998
    %v5041 = vrot.slane %v4998, 4
    %v5042 = vsel %vm120, %v5010, %v5041
    %v5044 = vunpack.c.l.s4 1934713408
    %v5045 = vunpack.c.0.s8 %v5044
    %v5046 = vperm.slane %v5040, %v5045
    %v5048 = vunpack.c.l.s4 1934713408
    %v5049 = vunpack.c.0.s8 %v5048
    %v5050 = vperm.slane %v5042, %v5049
    %v5051 = vrot.slane %v5014, 4
    %v5052 = vsel %vm120, %v5051, %v5002
    %v5053 = vrot.slane %v5002, 4
    %v5054 = vsel %vm120, %v5014, %v5053
    %v5056 = vunpack.c.l.s4 1934713408
    %v5057 = vunpack.c.0.s8 %v5056
    %v5058 = vperm.slane %v5052, %v5057
    %v5060 = vunpack.c.l.s4 1934713408
    %v5061 = vunpack.c.0.s8 %v5060
    %v5062 = vperm.slane %v5054, %v5061
    %v5063 = vrot.slane %v5046, 4
    %v5064 = vsel %vm120, %v5063, %v5022
    %v5065 = vrot.slane %v5022, 4
    %v5066 = vsel %vm120, %v5046, %v5065
    %v5067 = vrot.slane %v5050, 4
    %v5068 = vsel %vm120, %v5067, %v5026
    %v5069 = vrot.slane %v5026, 4
    %v5070 = vsel %vm120, %v5050, %v5069
    %v5071 = vrot.slane %v5058, 4
    %v5072 = vsel %vm120, %v5071, %v5034
    %v5073 = vrot.slane %v5034, 4
    %v5074 = vsel %vm120, %v5058, %v5073
    %v5075 = vrot.slane %v5062, 4
    %v5076 = vsel %vm120, %v5075, %v5038
    %v5077 = vrot.slane %v5038, 4
    %v5078 = vsel %vm120, %v5062, %v5077
    %5080 = vrot.lane.b32.xlu0 %v4954, 16
    %v5081 = vpop.permute.xlu0 %5080
    %5084 = vrot.lane.b32.xlu0 %v4956, 32
    %v5085 = vpop.permute.xlu0 %5084
    %5088 = vrot.lane.b32.xlu0 %v4958, 48
    %v5089 = vpop.permute.xlu0 %5088
    %5092 = vrot.lane.b32.xlu0 %v4960, 64
    %v5093 = vpop.permute.xlu0 %5092
    %5096 = vrot.lane.b32.xlu0 %v4962, 80
    %v5097 = vpop.permute.xlu0 %5096
    %5100 = vrot.lane.b32.xlu0 %v4964, 96
    %v5101 = vpop.permute.xlu0 %5100
    %5104 = vrot.lane.b32.xlu0 %v4966, 112
    %v5105 = vpop.permute.xlu0 %5104
    %5108 = vrot.lane.b32.xlu0 %v5066, 16
    %v5109 = vpop.permute.xlu0 %5108
    %5112 = vrot.lane.b32.xlu0 %v5068, 32
    %v5113 = vpop.permute.xlu0 %5112
    %5116 = vrot.lane.b32.xlu0 %v5070, 48
    %v5117 = vpop.permute.xlu0 %5116
    %5120 = vrot.lane.b32.xlu0 %v5072, 64
    %v5121 = vpop.permute.xlu0 %5120
    %5124 = vrot.lane.b32.xlu0 %v5074, 80
    %v5125 = vpop.permute.xlu0 %5124
    %5128 = vrot.lane.b32.xlu0 %v5076, 96
    %v5129 = vpop.permute.xlu0 %5128
    %5132 = vrot.lane.b32.xlu0 %v5078, 112
    %v5133 = vpop.permute.xlu0 %5132
    %v5135 = vsel %vm510, %v4952, %v5081
    %v5136 = vsel %vm512, %v5135, %v5085
    %v5137 = vsel %vm514, %v5136, %v5089
    %v5138 = vsel %vm516, %v5137, %v5093
    %v5139 = vsel %vm518, %v5138, %v5097
    %v5140 = vsel %vm520, %v5139, %v5101
    %v5141 = vsel %vm522, %v5140, %v5105
    %v5142 = vsel %vm510, %v5064, %v5109
    %v5143 = vsel %vm512, %v5142, %v5113
    %v5144 = vsel %vm514, %v5143, %v5117
    %v5145 = vsel %vm516, %v5144, %v5121
    %v5146 = vsel %vm518, %v5145, %v5125
    %v5147 = vsel %vm520, %v5146, %v5129
    %v5148 = vsel %vm522, %v5147, %v5133
    %5149 = vrot.lane.b32.xlu0 %v4801, 127
    %v5150 = vpop.permute.xlu0 %5149
    %5151 = vrot.lane.b32.xlu0 %v4803, 127
    %v5152 = vpop.permute.xlu0 %5151
    %5153 = vrot.lane.b32.xlu0 %v4806, 127
    %v5154 = vpop.permute.xlu0 %5153
    %5155 = vrot.lane.b32.xlu0 %v4808, 127
    %v5156 = vpop.permute.xlu0 %5155
    %5157 = vrot.lane.b32.xlu0 %v4811, 127
    %v5158 = vpop.permute.xlu0 %5157
    %5159 = vrot.lane.b32.xlu0 %v4813, 127
    %v5160 = vpop.permute.xlu0 %5159
    %5161 = vrot.lane.b32.xlu0 %v4816, 127
    %v5162 = vpop.permute.xlu0 %5161
    %5163 = vrot.lane.b32.xlu0 %v4818, 127
    %v5164 = vpop.permute.xlu0 %5163
    %5165 = vrot.lane.b32.xlu0 %v4821, 127
    %v5166 = vpop.permute.xlu0 %5165
    %5167 = vrot.lane.b32.xlu0 %v4823, 127
    %v5168 = vpop.permute.xlu0 %5167
    %5169 = vrot.lane.b32.xlu0 %v4826, 127
    %v5170 = vpop.permute.xlu0 %5169
    %5171 = vrot.lane.b32.xlu0 %v4828, 127
    %v5172 = vpop.permute.xlu0 %5171
    %5173 = vrot.lane.b32.xlu0 %v4831, 127
    %v5174 = vpop.permute.xlu0 %5173
    %5175 = vrot.lane.b32.xlu0 %v4833, 127
    %v5176 = vpop.permute.xlu0 %5175
    %5177 = vrot.lane.b32.xlu0 %v4836, 127
    %v5178 = vpop.permute.xlu0 %5177
    %5179 = vrot.lane.b32.xlu0 %v4838, 127
    %v5180 = vpop.permute.xlu0 %5179
    %v5197 = vrot.slane %v5158, 4
    %v5198 = vsel %vm120, %v5197, %v5150
    %v5199 = vrot.slane %v5150, 4
    %v5200 = vsel %vm120, %v5158, %v5199
    %v5202 = vunpack.c.l.s4 1983009808
    %v5203 = vunpack.c.0.s8 %v5202
    %v5204 = vperm.slane %v5198, %v5203
    %v5206 = vunpack.c.l.s4 1983009808
    %v5207 = vunpack.c.0.s8 %v5206
    %v5208 = vperm.slane %v5200, %v5207
    %v5209 = vrot.slane %v5162, 4
    %v5210 = vsel %vm120, %v5209, %v5154
    %v5211 = vrot.slane %v5154, 4
    %v5212 = vsel %vm120, %v5162, %v5211
    %v5214 = vunpack.c.l.s4 1983009808
    %v5215 = vunpack.c.0.s8 %v5214
    %v5216 = vperm.slane %v5210, %v5215
    %v5218 = vunpack.c.l.s4 1983009808
    %v5219 = vunpack.c.0.s8 %v5218
    %v5220 = vperm.slane %v5212, %v5219
    %v5221 = vrot.slane %v5174, 4
    %v5222 = vsel %vm120, %v5221, %v5166
    %v5223 = vrot.slane %v5166, 4
    %v5224 = vsel %vm120, %v5174, %v5223
    %v5226 = vunpack.c.l.s4 1983009808
    %v5227 = vunpack.c.0.s8 %v5226
    %v5228 = vperm.slane %v5222, %v5227
    %v5230 = vunpack.c.l.s4 1983009808
    %v5231 = vunpack.c.0.s8 %v5230
    %v5232 = vperm.slane %v5224, %v5231
    %v5233 = vrot.slane %v5178, 4
    %v5234 = vsel %vm120, %v5233, %v5170
    %v5235 = vrot.slane %v5170, 4
    %v5236 = vsel %vm120, %v5178, %v5235
    %v5238 = vunpack.c.l.s4 1983009808
    %v5239 = vunpack.c.0.s8 %v5238
    %v5240 = vperm.slane %v5234, %v5239
    %v5242 = vunpack.c.l.s4 1983009808
    %v5243 = vunpack.c.0.s8 %v5242
    %v5244 = vperm.slane %v5236, %v5243
    %v5245 = vrot.slane %v5216, 4
    %v5246 = vsel %vm120, %v5245, %v5204
    %v5247 = vrot.slane %v5204, 4
    %v5248 = vsel %vm120, %v5216, %v5247
    %v5250 = vunpack.c.l.s4 1934713408
    %v5251 = vunpack.c.0.s8 %v5250
    %v5252 = vperm.slane %v5246, %v5251
    %v5254 = vunpack.c.l.s4 1934713408
    %v5255 = vunpack.c.0.s8 %v5254
    %v5256 = vperm.slane %v5248, %v5255
    %v5257 = vrot.slane %v5220, 4
    %v5258 = vsel %vm120, %v5257, %v5208
    %v5259 = vrot.slane %v5208, 4
    %v5260 = vsel %vm120, %v5220, %v5259
    %v5262 = vunpack.c.l.s4 1934713408
    %v5263 = vunpack.c.0.s8 %v5262
    %v5264 = vperm.slane %v5258, %v5263
    %v5266 = vunpack.c.l.s4 1934713408
    %v5267 = vunpack.c.0.s8 %v5266
    %v5268 = vperm.slane %v5260, %v5267
    %v5269 = vrot.slane %v5240, 4
    %v5270 = vsel %vm120, %v5269, %v5228
    %v5271 = vrot.slane %v5228, 4
    %v5272 = vsel %vm120, %v5240, %v5271
    %v5274 = vunpack.c.l.s4 1934713408
    %v5275 = vunpack.c.0.s8 %v5274
    %v5276 = vperm.slane %v5270, %v5275
    %v5278 = vunpack.c.l.s4 1934713408
    %v5279 = vunpack.c.0.s8 %v5278
    %v5280 = vperm.slane %v5272, %v5279
    %v5281 = vrot.slane %v5244, 4
    %v5282 = vsel %vm120, %v5281, %v5232
    %v5283 = vrot.slane %v5232, 4
    %v5284 = vsel %vm120, %v5244, %v5283
    %v5286 = vunpack.c.l.s4 1934713408
    %v5287 = vunpack.c.0.s8 %v5286
    %v5288 = vperm.slane %v5282, %v5287
    %v5290 = vunpack.c.l.s4 1934713408
    %v5291 = vunpack.c.0.s8 %v5290
    %v5292 = vperm.slane %v5284, %v5291
    %v5293 = vrot.slane %v5276, 4
    %v5294 = vsel %vm120, %v5293, %v5252
    %v5295 = vrot.slane %v5252, 4
    %v5296 = vsel %vm120, %v5276, %v5295
    %v5297 = vrot.slane %v5280, 4
    %v5298 = vsel %vm120, %v5297, %v5256
    %v5299 = vrot.slane %v5256, 4
    %v5300 = vsel %vm120, %v5280, %v5299
    %v5301 = vrot.slane %v5288, 4
    %v5302 = vsel %vm120, %v5301, %v5264
    %v5303 = vrot.slane %v5264, 4
    %v5304 = vsel %vm120, %v5288, %v5303
    %v5305 = vrot.slane %v5292, 4
    %v5306 = vsel %vm120, %v5305, %v5268
    %v5307 = vrot.slane %v5268, 4
    %v5308 = vsel %vm120, %v5292, %v5307
    %v5309 = vrot.slane %v5160, 4
    %v5310 = vsel %vm120, %v5309, %v5152
    %v5311 = vrot.slane %v5152, 4
    %v5312 = vsel %vm120, %v5160, %v5311
    %v5314 = vunpack.c.l.s4 1983009808
    %v5315 = vunpack.c.0.s8 %v5314
    %v5316 = vperm.slane %v5310, %v5315
    %v5318 = vunpack.c.l.s4 1983009808
    %v5319 = vunpack.c.0.s8 %v5318
    %v5320 = vperm.slane %v5312, %v5319
    %v5321 = vrot.slane %v5164, 4
    %v5322 = vsel %vm120, %v5321, %v5156
    %v5323 = vrot.slane %v5156, 4
    %v5324 = vsel %vm120, %v5164, %v5323
    %v5326 = vunpack.c.l.s4 1983009808
    %v5327 = vunpack.c.0.s8 %v5326
    %v5328 = vperm.slane %v5322, %v5327
    %v5330 = vunpack.c.l.s4 1983009808
    %v5331 = vunpack.c.0.s8 %v5330
    %v5332 = vperm.slane %v5324, %v5331
    %v5333 = vrot.slane %v5176, 4
    %v5334 = vsel %vm120, %v5333, %v5168
    %v5335 = vrot.slane %v5168, 4
    %v5336 = vsel %vm120, %v5176, %v5335
    %v5338 = vunpack.c.l.s4 1983009808
    %v5339 = vunpack.c.0.s8 %v5338
    %v5340 = vperm.slane %v5334, %v5339
    %v5342 = vunpack.c.l.s4 1983009808
    %v5343 = vunpack.c.0.s8 %v5342
    %v5344 = vperm.slane %v5336, %v5343
    %v5345 = vrot.slane %v5180, 4
    %v5346 = vsel %vm120, %v5345, %v5172
    %v5347 = vrot.slane %v5172, 4
    %v5348 = vsel %vm120, %v5180, %v5347
    %v5350 = vunpack.c.l.s4 1983009808
    %v5351 = vunpack.c.0.s8 %v5350
    %v5352 = vperm.slane %v5346, %v5351
    %v5354 = vunpack.c.l.s4 1983009808
    %v5355 = vunpack.c.0.s8 %v5354
    %v5356 = vperm.slane %v5348, %v5355
    %v5357 = vrot.slane %v5328, 4
    %v5358 = vsel %vm120, %v5357, %v5316
    %v5359 = vrot.slane %v5316, 4
    %v5360 = vsel %vm120, %v5328, %v5359
    %v5362 = vunpack.c.l.s4 1934713408
    %v5363 = vunpack.c.0.s8 %v5362
    %v5364 = vperm.slane %v5358, %v5363
    %v5366 = vunpack.c.l.s4 1934713408
    %v5367 = vunpack.c.0.s8 %v5366
    %v5368 = vperm.slane %v5360, %v5367
    %v5369 = vrot.slane %v5332, 4
    %v5370 = vsel %vm120, %v5369, %v5320
    %v5371 = vrot.slane %v5320, 4
    %v5372 = vsel %vm120, %v5332, %v5371
    %v5374 = vunpack.c.l.s4 1934713408
    %v5375 = vunpack.c.0.s8 %v5374
    %v5376 = vperm.slane %v5370, %v5375
    %v5378 = vunpack.c.l.s4 1934713408
    %v5379 = vunpack.c.0.s8 %v5378
    %v5380 = vperm.slane %v5372, %v5379
    %v5381 = vrot.slane %v5352, 4
    %v5382 = vsel %vm120, %v5381, %v5340
    %v5383 = vrot.slane %v5340, 4
    %v5384 = vsel %vm120, %v5352, %v5383
    %v5386 = vunpack.c.l.s4 1934713408
    %v5387 = vunpack.c.0.s8 %v5386
    %v5388 = vperm.slane %v5382, %v5387
    %v5390 = vunpack.c.l.s4 1934713408
    %v5391 = vunpack.c.0.s8 %v5390
    %v5392 = vperm.slane %v5384, %v5391
    %v5393 = vrot.slane %v5356, 4
    %v5394 = vsel %vm120, %v5393, %v5344
    %v5395 = vrot.slane %v5344, 4
    %v5396 = vsel %vm120, %v5356, %v5395
    %v5398 = vunpack.c.l.s4 1934713408
    %v5399 = vunpack.c.0.s8 %v5398
    %v5400 = vperm.slane %v5394, %v5399
    %v5402 = vunpack.c.l.s4 1934713408
    %v5403 = vunpack.c.0.s8 %v5402
    %v5404 = vperm.slane %v5396, %v5403
    %v5405 = vrot.slane %v5388, 4
    %v5406 = vsel %vm120, %v5405, %v5364
    %v5407 = vrot.slane %v5364, 4
    %v5408 = vsel %vm120, %v5388, %v5407
    %v5409 = vrot.slane %v5392, 4
    %v5410 = vsel %vm120, %v5409, %v5368
    %v5411 = vrot.slane %v5368, 4
    %v5412 = vsel %vm120, %v5392, %v5411
    %v5413 = vrot.slane %v5400, 4
    %v5414 = vsel %vm120, %v5413, %v5376
    %v5415 = vrot.slane %v5376, 4
    %v5416 = vsel %vm120, %v5400, %v5415
    %v5417 = vrot.slane %v5404, 4
    %v5418 = vsel %vm120, %v5417, %v5380
    %v5419 = vrot.slane %v5380, 4
    %v5420 = vsel %vm120, %v5404, %v5419
    %5422 = vrot.lane.b32.xlu0 %v5296, 16
    %v5423 = vpop.permute.xlu0 %5422
    %5426 = vrot.lane.b32.xlu0 %v5298, 32
    %v5427 = vpop.permute.xlu0 %5426
    %5430 = vrot.lane.b32.xlu0 %v5300, 48
    %v5431 = vpop.permute.xlu0 %5430
    %5434 = vrot.lane.b32.xlu0 %v5302, 64
    %v5435 = vpop.permute.xlu0 %5434
    %5438 = vrot.lane.b32.xlu0 %v5304, 80
    %v5439 = vpop.permute.xlu0 %5438
    %5442 = vrot.lane.b32.xlu0 %v5306, 96
    %v5443 = vpop.permute.xlu0 %5442
    %5446 = vrot.lane.b32.xlu0 %v5308, 112
    %v5447 = vpop.permute.xlu0 %5446
    %5450 = vrot.lane.b32.xlu0 %v5408, 16
    %v5451 = vpop.permute.xlu0 %5450
    %5454 = vrot.lane.b32.xlu0 %v5410, 32
    %v5455 = vpop.permute.xlu0 %5454
    %5458 = vrot.lane.b32.xlu0 %v5412, 48
    %v5459 = vpop.permute.xlu0 %5458
    %5462 = vrot.lane.b32.xlu0 %v5414, 64
    %v5463 = vpop.permute.xlu0 %5462
    %5466 = vrot.lane.b32.xlu0 %v5416, 80
    %v5467 = vpop.permute.xlu0 %5466
    %5470 = vrot.lane.b32.xlu0 %v5418, 96
    %v5471 = vpop.permute.xlu0 %5470
    %5474 = vrot.lane.b32.xlu0 %v5420, 112
    %v5475 = vpop.permute.xlu0 %5474
    %v5477 = vsel %vm510, %v5294, %v5423
    %v5478 = vsel %vm512, %v5477, %v5427
    %v5479 = vsel %vm514, %v5478, %v5431
    %v5480 = vsel %vm516, %v5479, %v5435
    %v5481 = vsel %vm518, %v5480, %v5439
    %v5482 = vsel %vm520, %v5481, %v5443
    %v5483 = vsel %vm522, %v5482, %v5447
    %v5484 = vsel %vm510, %v5406, %v5451
    %v5485 = vsel %vm512, %v5484, %v5455
    %v5486 = vsel %vm514, %v5485, %v5459
    %v5487 = vsel %vm516, %v5486, %v5463
    %v5488 = vsel %vm518, %v5487, %v5467
    %v5489 = vsel %vm520, %v5488, %v5471
    %v5490 = vsel %vm522, %v5489, %v5475
    %5491 = vrot.lane.b32.xlu0 %v4801, 126
    %v5492 = vpop.permute.xlu0 %5491
    %5493 = vrot.lane.b32.xlu0 %v4803, 126
    %v5494 = vpop.permute.xlu0 %5493
    %5495 = vrot.lane.b32.xlu0 %v4806, 126
    %v5496 = vpop.permute.xlu0 %5495
    %5497 = vrot.lane.b32.xlu0 %v4808, 126
    %v5498 = vpop.permute.xlu0 %5497
    %5499 = vrot.lane.b32.xlu0 %v4811, 126
    %v5500 = vpop.permute.xlu0 %5499
    %5501 = vrot.lane.b32.xlu0 %v4813, 126
    %v5502 = vpop.permute.xlu0 %5501
    %5503 = vrot.lane.b32.xlu0 %v4816, 126
    %v5504 = vpop.permute.xlu0 %5503
    %5505 = vrot.lane.b32.xlu0 %v4818, 126
    %v5506 = vpop.permute.xlu0 %5505
    %5507 = vrot.lane.b32.xlu0 %v4821, 126
    %v5508 = vpop.permute.xlu0 %5507
    %5509 = vrot.lane.b32.xlu0 %v4823, 126
    %v5510 = vpop.permute.xlu0 %5509
    %5511 = vrot.lane.b32.xlu0 %v4826, 126
    %v5512 = vpop.permute.xlu0 %5511
    %5513 = vrot.lane.b32.xlu0 %v4828, 126
    %v5514 = vpop.permute.xlu0 %5513
    %5515 = vrot.lane.b32.xlu0 %v4831, 126
    %v5516 = vpop.permute.xlu0 %5515
    %5517 = vrot.lane.b32.xlu0 %v4833, 126
    %v5518 = vpop.permute.xlu0 %5517
    %5519 = vrot.lane.b32.xlu0 %v4836, 126
    %v5520 = vpop.permute.xlu0 %5519
    %5521 = vrot.lane.b32.xlu0 %v4838, 126
    %v5522 = vpop.permute.xlu0 %5521
    %v5539 = vrot.slane %v5500, 4
    %v5540 = vsel %vm120, %v5539, %v5492
    %v5541 = vrot.slane %v5492, 4
    %v5542 = vsel %vm120, %v5500, %v5541
    %v5544 = vunpack.c.l.s4 1983009808
    %v5545 = vunpack.c.0.s8 %v5544
    %v5546 = vperm.slane %v5540, %v5545
    %v5548 = vunpack.c.l.s4 1983009808
    %v5549 = vunpack.c.0.s8 %v5548
    %v5550 = vperm.slane %v5542, %v5549
    %v5551 = vrot.slane %v5504, 4
    %v5552 = vsel %vm120, %v5551, %v5496
    %v5553 = vrot.slane %v5496, 4
    %v5554 = vsel %vm120, %v5504, %v5553
    %v5556 = vunpack.c.l.s4 1983009808
    %v5557 = vunpack.c.0.s8 %v5556
    %v5558 = vperm.slane %v5552, %v5557
    %v5560 = vunpack.c.l.s4 1983009808
    %v5561 = vunpack.c.0.s8 %v5560
    %v5562 = vperm.slane %v5554, %v5561
    %v5563 = vrot.slane %v5516, 4
    %v5564 = vsel %vm120, %v5563, %v5508
    %v5565 = vrot.slane %v5508, 4
    %v5566 = vsel %vm120, %v5516, %v5565
    %v5568 = vunpack.c.l.s4 1983009808
    %v5569 = vunpack.c.0.s8 %v5568
    %v5570 = vperm.slane %v5564, %v5569
    %v5572 = vunpack.c.l.s4 1983009808
    %v5573 = vunpack.c.0.s8 %v5572
    %v5574 = vperm.slane %v5566, %v5573
    %v5575 = vrot.slane %v5520, 4
    %v5576 = vsel %vm120, %v5575, %v5512
    %v5577 = vrot.slane %v5512, 4
    %v5578 = vsel %vm120, %v5520, %v5577
    %v5580 = vunpack.c.l.s4 1983009808
    %v5581 = vunpack.c.0.s8 %v5580
    %v5582 = vperm.slane %v5576, %v5581
    %v5584 = vunpack.c.l.s4 1983009808
    %v5585 = vunpack.c.0.s8 %v5584
    %v5586 = vperm.slane %v5578, %v5585
    %v5587 = vrot.slane %v5558, 4
    %v5588 = vsel %vm120, %v5587, %v5546
    %v5589 = vrot.slane %v5546, 4
    %v5590 = vsel %vm120, %v5558, %v5589
    %v5592 = vunpack.c.l.s4 1934713408
    %v5593 = vunpack.c.0.s8 %v5592
    %v5594 = vperm.slane %v5588, %v5593
    %v5596 = vunpack.c.l.s4 1934713408
    %v5597 = vunpack.c.0.s8 %v5596
    %v5598 = vperm.slane %v5590, %v5597
    %v5599 = vrot.slane %v5562, 4
    %v5600 = vsel %vm120, %v5599, %v5550
    %v5601 = vrot.slane %v5550, 4
    %v5602 = vsel %vm120, %v5562, %v5601
    %v5604 = vunpack.c.l.s4 1934713408
    %v5605 = vunpack.c.0.s8 %v5604
    %v5606 = vperm.slane %v5600, %v5605
    %v5608 = vunpack.c.l.s4 1934713408
    %v5609 = vunpack.c.0.s8 %v5608
    %v5610 = vperm.slane %v5602, %v5609
    %v5611 = vrot.slane %v5582, 4
    %v5612 = vsel %vm120, %v5611, %v5570
    %v5613 = vrot.slane %v5570, 4
    %v5614 = vsel %vm120, %v5582, %v5613
    %v5616 = vunpack.c.l.s4 1934713408
    %v5617 = vunpack.c.0.s8 %v5616
    %v5618 = vperm.slane %v5612, %v5617
    %v5620 = vunpack.c.l.s4 1934713408
    %v5621 = vunpack.c.0.s8 %v5620
    %v5622 = vperm.slane %v5614, %v5621
    %v5623 = vrot.slane %v5586, 4
    %v5624 = vsel %vm120, %v5623, %v5574
    %v5625 = vrot.slane %v5574, 4
    %v5626 = vsel %vm120, %v5586, %v5625
    %v5628 = vunpack.c.l.s4 1934713408
    %v5629 = vunpack.c.0.s8 %v5628
    %v5630 = vperm.slane %v5624, %v5629
    %v5632 = vunpack.c.l.s4 1934713408
    %v5633 = vunpack.c.0.s8 %v5632
    %v5634 = vperm.slane %v5626, %v5633
    %v5635 = vrot.slane %v5618, 4
    %v5636 = vsel %vm120, %v5635, %v5594
    %v5637 = vrot.slane %v5594, 4
    %v5638 = vsel %vm120, %v5618, %v5637
    %v5639 = vrot.slane %v5622, 4
    %v5640 = vsel %vm120, %v5639, %v5598
    %v5641 = vrot.slane %v5598, 4
    %v5642 = vsel %vm120, %v5622, %v5641
    %v5643 = vrot.slane %v5630, 4
    %v5644 = vsel %vm120, %v5643, %v5606
    %v5645 = vrot.slane %v5606, 4
    %v5646 = vsel %vm120, %v5630, %v5645
    %v5647 = vrot.slane %v5634, 4
    %v5648 = vsel %vm120, %v5647, %v5610
    %v5649 = vrot.slane %v5610, 4
    %v5650 = vsel %vm120, %v5634, %v5649
    %v5651 = vrot.slane %v5502, 4
    %v5652 = vsel %vm120, %v5651, %v5494
    %v5653 = vrot.slane %v5494, 4
    %v5654 = vsel %vm120, %v5502, %v5653
    %v5656 = vunpack.c.l.s4 1983009808
    %v5657 = vunpack.c.0.s8 %v5656
    %v5658 = vperm.slane %v5652, %v5657
    %v5660 = vunpack.c.l.s4 1983009808
    %v5661 = vunpack.c.0.s8 %v5660
    %v5662 = vperm.slane %v5654, %v5661
    %v5663 = vrot.slane %v5506, 4
    %v5664 = vsel %vm120, %v5663, %v5498
    %v5665 = vrot.slane %v5498, 4
    %v5666 = vsel %vm120, %v5506, %v5665
    %v5668 = vunpack.c.l.s4 1983009808
    %v5669 = vunpack.c.0.s8 %v5668
    %v5670 = vperm.slane %v5664, %v5669
    %v5672 = vunpack.c.l.s4 1983009808
    %v5673 = vunpack.c.0.s8 %v5672
    %v5674 = vperm.slane %v5666, %v5673
    %v5675 = vrot.slane %v5518, 4
    %v5676 = vsel %vm120, %v5675, %v5510
    %v5677 = vrot.slane %v5510, 4
    %v5678 = vsel %vm120, %v5518, %v5677
    %v5680 = vunpack.c.l.s4 1983009808
    %v5681 = vunpack.c.0.s8 %v5680
    %v5682 = vperm.slane %v5676, %v5681
    %v5684 = vunpack.c.l.s4 1983009808
    %v5685 = vunpack.c.0.s8 %v5684
    %v5686 = vperm.slane %v5678, %v5685
    %v5687 = vrot.slane %v5522, 4
    %v5688 = vsel %vm120, %v5687, %v5514
    %v5689 = vrot.slane %v5514, 4
    %v5690 = vsel %vm120, %v5522, %v5689
    %v5692 = vunpack.c.l.s4 1983009808
    %v5693 = vunpack.c.0.s8 %v5692
    %v5694 = vperm.slane %v5688, %v5693
    %v5696 = vunpack.c.l.s4 1983009808
    %v5697 = vunpack.c.0.s8 %v5696
    %v5698 = vperm.slane %v5690, %v5697
    %v5699 = vrot.slane %v5670, 4
    %v5700 = vsel %vm120, %v5699, %v5658
    %v5701 = vrot.slane %v5658, 4
    %v5702 = vsel %vm120, %v5670, %v5701
    %v5704 = vunpack.c.l.s4 1934713408
    %v5705 = vunpack.c.0.s8 %v5704
    %v5706 = vperm.slane %v5700, %v5705
    %v5708 = vunpack.c.l.s4 1934713408
    %v5709 = vunpack.c.0.s8 %v5708
    %v5710 = vperm.slane %v5702, %v5709
    %v5711 = vrot.slane %v5674, 4
    %v5712 = vsel %vm120, %v5711, %v5662
    %v5713 = vrot.slane %v5662, 4
    %v5714 = vsel %vm120, %v5674, %v5713
    %v5716 = vunpack.c.l.s4 1934713408
    %v5717 = vunpack.c.0.s8 %v5716
    %v5718 = vperm.slane %v5712, %v5717
    %v5720 = vunpack.c.l.s4 1934713408
    %v5721 = vunpack.c.0.s8 %v5720
    %v5722 = vperm.slane %v5714, %v5721
    %v5723 = vrot.slane %v5694, 4
    %v5724 = vsel %vm120, %v5723, %v5682
    %v5725 = vrot.slane %v5682, 4
    %v5726 = vsel %vm120, %v5694, %v5725
    %v5728 = vunpack.c.l.s4 1934713408
    %v5729 = vunpack.c.0.s8 %v5728
    %v5730 = vperm.slane %v5724, %v5729
    %v5732 = vunpack.c.l.s4 1934713408
    %v5733 = vunpack.c.0.s8 %v5732
    %v5734 = vperm.slane %v5726, %v5733
    %v5735 = vrot.slane %v5698, 4
    %v5736 = vsel %vm120, %v5735, %v5686
    %v5737 = vrot.slane %v5686, 4
    %v5738 = vsel %vm120, %v5698, %v5737
    %v5740 = vunpack.c.l.s4 1934713408
    %v5741 = vunpack.c.0.s8 %v5740
    %v5742 = vperm.slane %v5736, %v5741
    %v5744 = vunpack.c.l.s4 1934713408
    %v5745 = vunpack.c.0.s8 %v5744
    %v5746 = vperm.slane %v5738, %v5745
    %v5747 = vrot.slane %v5730, 4
    %v5748 = vsel %vm120, %v5747, %v5706
    %v5749 = vrot.slane %v5706, 4
    %v5750 = vsel %vm120, %v5730, %v5749
    %v5751 = vrot.slane %v5734, 4
    %v5752 = vsel %vm120, %v5751, %v5710
    %v5753 = vrot.slane %v5710, 4
    %v5754 = vsel %vm120, %v5734, %v5753
    %v5755 = vrot.slane %v5742, 4
    %v5756 = vsel %vm120, %v5755, %v5718
    %v5757 = vrot.slane %v5718, 4
    %v5758 = vsel %vm120, %v5742, %v5757
    %v5759 = vrot.slane %v5746, 4
    %v5760 = vsel %vm120, %v5759, %v5722
    %v5761 = vrot.slane %v5722, 4
    %v5762 = vsel %vm120, %v5746, %v5761
    %5764 = vrot.lane.b32.xlu0 %v5638, 16
    %v5765 = vpop.permute.xlu0 %5764
    %5768 = vrot.lane.b32.xlu0 %v5640, 32
    %v5769 = vpop.permute.xlu0 %5768
    %5772 = vrot.lane.b32.xlu0 %v5642, 48
    %v5773 = vpop.permute.xlu0 %5772
    %5776 = vrot.lane.b32.xlu0 %v5644, 64
    %v5777 = vpop.permute.xlu0 %5776
    %5780 = vrot.lane.b32.xlu0 %v5646, 80
    %v5781 = vpop.permute.xlu0 %5780
    %5784 = vrot.lane.b32.xlu0 %v5648, 96
    %v5785 = vpop.permute.xlu0 %5784
    %5788 = vrot.lane.b32.xlu0 %v5650, 112
    %v5789 = vpop.permute.xlu0 %5788
    %5792 = vrot.lane.b32.xlu0 %v5750, 16
    %v5793 = vpop.permute.xlu0 %5792
    %5796 = vrot.lane.b32.xlu0 %v5752, 32
    %v5797 = vpop.permute.xlu0 %5796
    %5800 = vrot.lane.b32.xlu0 %v5754, 48
    %v5801 = vpop.permute.xlu0 %5800
    %5804 = vrot.lane.b32.xlu0 %v5756, 64
    %v5805 = vpop.permute.xlu0 %5804
    %5808 = vrot.lane.b32.xlu0 %v5758, 80
    %v5809 = vpop.permute.xlu0 %5808
    %5812 = vrot.lane.b32.xlu0 %v5760, 96
    %v5813 = vpop.permute.xlu0 %5812
    %5816 = vrot.lane.b32.xlu0 %v5762, 112
    %v5817 = vpop.permute.xlu0 %5816
    %v5819 = vsel %vm510, %v5636, %v5765
    %v5820 = vsel %vm512, %v5819, %v5769
    %v5821 = vsel %vm514, %v5820, %v5773
    %v5822 = vsel %vm516, %v5821, %v5777
    %v5823 = vsel %vm518, %v5822, %v5781
    %v5824 = vsel %vm520, %v5823, %v5785
    %v5825 = vsel %vm522, %v5824, %v5789
    %v5826 = vsel %vm510, %v5748, %v5793
    %v5827 = vsel %vm512, %v5826, %v5797
    %v5828 = vsel %vm514, %v5827, %v5801
    %v5829 = vsel %vm516, %v5828, %v5805
    %v5830 = vsel %vm518, %v5829, %v5809
    %v5831 = vsel %vm520, %v5830, %v5813
    %v5832 = vsel %vm522, %v5831, %v5817
    %v5833 = vld [vmem:[#allocation4] sm:$0xff]
    %v5834 = vld [vmem:[%s4] sm:$0xff]
    %5836 = vset.pattern.permute.xlu0 0
    %5837 = vperm.xlu0 %5836, %v5834
    %v5838 = vpop.permute.xlu0 %5837
    %vm5840 = vcmask 588800
    %v5842 = vsel %vm5840, %v5833, 0
    %5844 = vmatpush.msra.mxu0 0.0
    %5845 = vmatpush.msra.mxu0 0.0
    %5846 = vmatpush.msra.mxu0 0.0
    %5847 = vmatpush.msra.mxu0 0.0
    %5848 = vmatpush.msra.mxu0 0.0
    %5849 = vmatpush.msra.mxu0 0.0
    %5850 = vmatpush.msra.mxu0 0.0
    %5851 = vmatpush.msra.mxu0 %v5825
    %5852 = vmatpush.msra.mxu0 %v5483
    %5853 = vmatpush.msra.mxu0 %v5141
    %5854 = vmatpush.msra.mxu0 %v4791
    %5855 = vmatpush.msra.mxu0 %v4449
    %5856 = vmatpush.msra.mxu0 %v4107
    %5857 = vmatpush.msra.mxu0 %v3749
    %5858 = vmatpush.msra.mxu0 %v3407
    %5859 = vmatpush.msra.mxu0 %v3049
    %5860 = vmatmul.f32.gmra.mxu0 %v5842
    %v5861 = vpop.f32.mrf.mxu0
    %v5862 = vadd.f32 %v5838, %v5861
    %5863 = vdwg.mxu0
    %5864 = vmatpush.msra.mxu0 0.0
    %5865 = vmatpush.msra.mxu0 0.0
    %5866 = vmatpush.msra.mxu0 0.0
    %5867 = vmatpush.msra.mxu0 0.0
    %5868 = vmatpush.msra.mxu0 0.0
    %5869 = vmatpush.msra.mxu0 0.0
    %5870 = vmatpush.msra.mxu0 0.0
    %5871 = vmatpush.msra.mxu0 %v5832
    %5872 = vmatpush.msra.mxu0 %v5490
    %5873 = vmatpush.msra.mxu0 %v5148
    %5874 = vmatpush.msra.mxu0 %v4798
    %5875 = vmatpush.msra.mxu0 %v4456
    %5876 = vmatpush.msra.mxu0 %v4114
    %5877 = vmatpush.msra.mxu0 %v3756
    %5878 = vmatpush.msra.mxu0 %v3414
    %5879 = vmatpush.msra.mxu0 %v3056
    %5880 = vmatmul.f32.gmra.mxu0 %v5842
    %v5881 = vpop.f32.mrf.mxu0
    %v5882 = vadd.f32 %v5838, %v5881
    %5883 = vdwg.mxu0
    %v5884 = vadd.f32 %v5862, %v2335
    %v5885 = vadd.f32 %v5882, %v2355
    %5886 = vst [vmem:[#allocation9] sm:$0xff] %v5884
    %5887 = vst [vmem:[#allocation9 + $0x8] sm:$0xff] %v5885
    %s5888 = scalar_lea.vmem %s0, 8
    %v5889 = vld [vmem:[%s5888] sm:$0xff]
    %v5891 = vrot.slane %v5889, 4
    %5893 = vrot.lane.b32.xlu0 %v5889, 112
    %v5894 = vpop.permute.xlu0 %5893
    %v5895 = vrot.slane %v5894, 4
    %5897 = vrot.lane.b32.xlu0 %v5889, 96
    %v5898 = vpop.permute.xlu0 %5897
    %v5899 = vrot.slane %v5898, 4
    %5901 = vrot.lane.b32.xlu0 %v5889, 80
    %v5902 = vpop.permute.xlu0 %5901
    %v5903 = vrot.slane %v5902, 4
    %5905 = vrot.lane.b32.xlu0 %v5889, 64
    %v5906 = vpop.permute.xlu0 %5905
    %v5907 = vrot.slane %v5906, 4
    %5909 = vrot.lane.b32.xlu0 %v5889, 48
    %v5910 = vpop.permute.xlu0 %5909
    %v5911 = vrot.slane %v5910, 4
    %5913 = vrot.lane.b32.xlu0 %v5889, 32
    %v5914 = vpop.permute.xlu0 %5913
    %v5915 = vrot.slane %v5914, 4
    %5917 = vrot.lane.b32.xlu0 %v5889, 16
    %v5918 = vpop.permute.xlu0 %5917
    %v5919 = vrot.slane %v5918, 4
    %v5928 = vrot.slane %v5898, 4
    %v5929 = vsel %vm120, %v5928, %v5889
    %v5931 = vunpack.c.l.s4 1983009808
    %v5932 = vunpack.c.0.s8 %v5931
    %v5933 = vperm.slane %v5929, %v5932
    %v5934 = vrot.slane %v5902, 4
    %v5935 = vsel %vm120, %v5934, %v5894
    %v5937 = vunpack.c.l.s4 1983009808
    %v5938 = vunpack.c.0.s8 %v5937
    %v5939 = vperm.slane %v5935, %v5938
    %v5940 = vrot.slane %v5939, 4
    %v5941 = vsel %vm120, %v5940, %v5933
    %v5942 = vrot.slane %v5933, 4
    %v5943 = vsel %vm120, %v5939, %v5942
    %v5945 = vunpack.c.l.s4 1934713408
    %v5946 = vunpack.c.0.s8 %v5945
    %v5947 = vperm.slane %v5941, %v5946
    %v5949 = vunpack.c.l.s4 1934713408
    %v5950 = vunpack.c.0.s8 %v5949
    %v5951 = vperm.slane %v5943, %v5950
    %v5952 = vrot.slane %v5947, 4
    %v5953 = vsel %vm120, 0.0, %v5952
    %v5954 = vrot.slane %v5951, 4
    %v5955 = vsel %vm120, 0.0, %v5954
    %v5956 = vrot.slane %v5914, 4
    %v5957 = vsel %vm120, %v5956, %v5906
    %v5959 = vunpack.c.l.s4 1983009808
    %v5960 = vunpack.c.0.s8 %v5959
    %v5961 = vperm.slane %v5957, %v5960
    %v5962 = vrot.slane %v5918, 4
    %v5963 = vsel %vm120, %v5962, %v5910
    %v5965 = vunpack.c.l.s4 1983009808
    %v5966 = vunpack.c.0.s8 %v5965
    %v5967 = vperm.slane %v5963, %v5966
    %v5968 = vrot.slane %v5967, 4
    %v5969 = vsel %vm120, %v5968, %v5961
    %v5970 = vrot.slane %v5961, 4
    %v5971 = vsel %vm120, %v5967, %v5970
    %v5973 = vunpack.c.l.s4 1934713408
    %v5974 = vunpack.c.0.s8 %v5973
    %v5975 = vperm.slane %v5969, %v5974
    %v5977 = vunpack.c.l.s4 1934713408
    %v5978 = vunpack.c.0.s8 %v5977
    %v5979 = vperm.slane %v5971, %v5978
    %v5980 = vrot.slane %v5975, 4
    %v5981 = vsel %vm120, 0.0, %v5980
    %v5982 = vrot.slane %v5979, 4
    %v5983 = vsel %vm120, 0.0, %v5982
    %v5984 = vrot.slane %v5899, 4
    %v5985 = vsel %vm120, %v5984, %v5891
    %v5987 = vunpack.c.l.s4 1983009808
    %v5988 = vunpack.c.0.s8 %v5987
    %v5989 = vperm.slane %v5985, %v5988
    %v5990 = vrot.slane %v5903, 4
    %v5991 = vsel %vm120, %v5990, %v5895
    %v5993 = vunpack.c.l.s4 1983009808
    %v5994 = vunpack.c.0.s8 %v5993
    %v5995 = vperm.slane %v5991, %v5994
    %v5996 = vrot.slane %v5995, 4
    %v5997 = vsel %vm120, %v5996, %v5989
    %v5998 = vrot.slane %v5989, 4
    %v5999 = vsel %vm120, %v5995, %v5998
    %v6001 = vunpack.c.l.s4 1934713408
    %v6002 = vunpack.c.0.s8 %v6001
    %v6003 = vperm.slane %v5997, %v6002
    %v6005 = vunpack.c.l.s4 1934713408
    %v6006 = vunpack.c.0.s8 %v6005
    %v6007 = vperm.slane %v5999, %v6006
    %v6008 = vrot.slane %v6003, 4
    %v6009 = vsel %vm120, 0.0, %v6008
    %v6010 = vrot.slane %v6007, 4
    %v6011 = vsel %vm120, 0.0, %v6010
    %v6012 = vrot.slane %v5915, 4
    %v6013 = vsel %vm120, %v6012, %v5907
    %v6015 = vunpack.c.l.s4 1983009808
    %v6016 = vunpack.c.0.s8 %v6015
    %v6017 = vperm.slane %v6013, %v6016
    %v6018 = vrot.slane %v5919, 4
    %v6019 = vsel %vm120, %v6018, %v5911
    %v6021 = vunpack.c.l.s4 1983009808
    %v6022 = vunpack.c.0.s8 %v6021
    %v6023 = vperm.slane %v6019, %v6022
    %v6024 = vrot.slane %v6023, 4
    %v6025 = vsel %vm120, %v6024, %v6017
    %v6026 = vrot.slane %v6017, 4
    %v6027 = vsel %vm120, %v6023, %v6026
    %v6029 = vunpack.c.l.s4 1934713408
    %v6030 = vunpack.c.0.s8 %v6029
    %v6031 = vperm.slane %v6025, %v6030
    %v6033 = vunpack.c.l.s4 1934713408
    %v6034 = vunpack.c.0.s8 %v6033
    %v6035 = vperm.slane %v6027, %v6034
    %v6036 = vrot.slane %v6031, 4
    %v6037 = vsel %vm120, 0.0, %v6036
    %v6038 = vrot.slane %v6035, 4
    %v6039 = vsel %vm120, 0.0, %v6038
    %6056 = vst [vmem:[#allocation1] ss:$2 sm:$0xff] %v5947
    %s6057 = scalar_lea.vmem [#allocation1], 1
    %6058 = vst [vmem:[%s6057] ss:$2 sm:$0xff] %v5975
    %s6059 = scalar_lea.vmem [#allocation1], 16
    %6060 = vst [vmem:[%s6059] ss:$2 sm:$0xff] %v6003
    %s6061 = scalar_lea.vmem [#allocation1], 17
    %6062 = vst [vmem:[%s6061] ss:$2 sm:$0xff] %v6031
    %v6063 = vld.sshfl [vmem:[#allocation1] sm:$0xff pattern:$0x75316420]
    %v6064 = vld.sshfl [vmem:[#allocation1 + $0x10] sm:$0xff pattern:$0x75316420]
    %s6065 = scalar_lea.vmem [#allocation1], 32
    %6066 = vst [vmem:[%s6065] ss:$2 sm:$0xff] %v5953
    %s6067 = scalar_lea.vmem [#allocation1], 33
    %6068 = vst [vmem:[%s6067] ss:$2 sm:$0xff] %v5981
    %s6069 = scalar_lea.vmem [#allocation1], 48
    %6070 = vst [vmem:[%s6069] ss:$2 sm:$0xff] %v6009
    %s6071 = scalar_lea.vmem [#allocation1], 49
    %6072 = vst [vmem:[%s6071] ss:$2 sm:$0xff] %v6037
    %v6073 = vld.sshfl [vmem:[#allocation1 + $0x20] sm:$0xff pattern:$0x75316420]
    %v6074 = vld.sshfl [vmem:[#allocation1 + $0x30] sm:$0xff pattern:$0x75316420]
    %6075 = vst [vmem:[#allocation1] ss:$2 sm:$0xff] %v5951
    %6076 = vst [vmem:[%s6057] ss:$2 sm:$0xff] %v5979
    %6077 = vst [vmem:[%s6059] ss:$2 sm:$0xff] %v6007
    %6078 = vst [vmem:[%s6061] ss:$2 sm:$0xff] %v6035
    %v6079 = vld.sshfl [vmem:[#allocation1] sm:$0xff pattern:$0x75316420]
    %v6080 = vld.sshfl [vmem:[#allocation1 + $0x10] sm:$0xff pattern:$0x75316420]
    %6081 = vst [vmem:[%s6065] ss:$2 sm:$0xff] %v5955
    %6082 = vst [vmem:[%s6067] ss:$2 sm:$0xff] %v5983
    %6083 = vst [vmem:[%s6069] ss:$2 sm:$0xff] %v6011
    %6084 = vst [vmem:[%s6071] ss:$2 sm:$0xff] %v6039
    %v6085 = vld.sshfl [vmem:[#allocation1 + $0x20] sm:$0xff pattern:$0x75316420]
    %v6086 = vld.sshfl [vmem:[#allocation1 + $0x30] sm:$0xff pattern:$0x75316420]
    %6087 = vrot.lane.b32.xlu0 %v6063, 1
    %v6088 = vpop.permute.xlu0 %6087
    %6089 = vrot.lane.b32.xlu0 %v6064, 1
    %v6090 = vpop.permute.xlu0 %6089
    %6091 = vrot.lane.b32.xlu0 %v6073, 1
    %v6092 = vpop.permute.xlu0 %6091
    %6093 = vrot.lane.b32.xlu0 %v6074, 1
    %v6094 = vpop.permute.xlu0 %6093
    %6095 = vrot.lane.b32.xlu0 %v6079, 1
    %v6096 = vpop.permute.xlu0 %6095
    %6097 = vrot.lane.b32.xlu0 %v6080, 1
    %v6098 = vpop.permute.xlu0 %6097
    %6099 = vrot.lane.b32.xlu0 %v6085, 1
    %v6100 = vpop.permute.xlu0 %6099
    %6101 = vrot.lane.b32.xlu0 %v6086, 1
    %v6102 = vpop.permute.xlu0 %6101
    %v6111 = vsel %vm303, 0.0, %v6088
    %v6112 = vsel %vm303, 0.0, %v6090
    %v6113 = vsel %vm303, 0.0, %v6092
    %v6114 = vsel %vm303, 0.0, %v6094
    %v6115 = vsel %vm303, 0.0, %v6096
    %v6116 = vsel %vm303, 0.0, %v6098
    %v6117 = vsel %vm303, 0.0, %v6100
    %v6118 = vsel %vm303, 0.0, %v6102
    %v6119 = vsel %vm312, %v6111, 0.0
    %v6120 = vsel %vm312, %v6112, 0.0
    %v6121 = vsel %vm312, %v6113, 0.0
    %v6122 = vsel %vm312, %v6114, 0.0
    %v6123 = vsel %vm312, %v6115, 0.0
    %v6124 = vsel %vm312, %v6116, 0.0
    %v6125 = vsel %vm312, %v6117, 0.0
    %v6126 = vsel %vm312, %v6118, 0.0
    %6127 = vst.msk [vmem:[#allocation2 + $0x1] sm:$0xff] %vm321, %v6119
    %6128 = vst.msk [vmem:[#allocation2 + $0x9] sm:$0xff] %vm321, %v6120
    %6129 = vst.msk [vmem:[#allocation2 + $0x19] sm:$0xff] %vm321, %v6121
    %6130 = vst.msk [vmem:[#allocation2 + $0x21] sm:$0xff] %vm321, %v6122
    %6131 = vst.msk [vmem:[#allocation2 + $0x31] sm:$0xff] %vm321, %v6123
    %6132 = vst.msk [vmem:[#allocation2 + $0x39] sm:$0xff] %vm321, %v6124
    %6133 = vst.msk [vmem:[#allocation2 + $0x49] sm:$0xff] %vm321, %v6125
    %6134 = vst.msk [vmem:[#allocation2 + $0x51] sm:$0xff] %vm321, %v6126
    %v6135 = vld [vmem:[#allocation2] sm:$0xff]
    %v6136 = vld [vmem:[#allocation2 + $0x8] sm:$0xff]
    %v6137 = vld [vmem:[#allocation2 + $0x10] sm:$0x3]
    %v6138 = vld [vmem:[#allocation2 + $0x18] sm:$0xff]
    %v6139 = vld [vmem:[#allocation2 + $0x20] sm:$0xff]
    %v6140 = vld [vmem:[#allocation2 + $0x28] sm:$0x3]
    %v6141 = vld [vmem:[#allocation2 + $0x30] sm:$0xff]
    %v6142 = vld [vmem:[#allocation2 + $0x38] sm:$0xff]
    %v6143 = vld [vmem:[#allocation2 + $0x40] sm:$0x3]
    %v6144 = vld [vmem:[#allocation2 + $0x48] sm:$0xff]
    %v6145 = vld [vmem:[#allocation2 + $0x50] sm:$0xff]
    %v6146 = vld [vmem:[#allocation2 + $0x58] sm:$0x3]
    %v6147 = vrot.slane %v6141, 4
    %v6148 = vsel %vm120, %v6147, %v6135
    %v6149 = vrot.slane %v6135, 4
    %v6150 = vsel %vm120, %v6141, %v6149
    %v6152 = vunpack.c.l.s4 1983009808
    %v6153 = vunpack.c.0.s8 %v6152
    %v6154 = vperm.slane %v6148, %v6153
    %v6156 = vunpack.c.l.s4 1983009808
    %v6157 = vunpack.c.0.s8 %v6156
    %v6158 = vperm.slane %v6150, %v6157
    %v6159 = vrot.slane %v6144, 4
    %v6160 = vsel %vm120, %v6159, %v6138
    %v6161 = vrot.slane %v6138, 4
    %v6162 = vsel %vm120, %v6144, %v6161
    %v6164 = vunpack.c.l.s4 1983009808
    %v6165 = vunpack.c.0.s8 %v6164
    %v6166 = vperm.slane %v6160, %v6165
    %v6168 = vunpack.c.l.s4 1983009808
    %v6169 = vunpack.c.0.s8 %v6168
    %v6170 = vperm.slane %v6162, %v6169
    %v6171 = vrot.slane %v6166, 4
    %v6172 = vsel %vm120, %v6171, %v6154
    %v6173 = vrot.slane %v6154, 4
    %v6174 = vsel %vm120, %v6166, %v6173
    %v6176 = vunpack.c.l.s4 1934713408
    %v6177 = vunpack.c.0.s8 %v6176
    %v6178 = vperm.slane %v6172, %v6177
    %v6180 = vunpack.c.l.s4 1934713408
    %v6181 = vunpack.c.0.s8 %v6180
    %v6182 = vperm.slane %v6174, %v6181
    %v6183 = vrot.slane %v6170, 4
    %v6184 = vsel %vm120, %v6183, %v6158
    %v6185 = vrot.slane %v6158, 4
    %v6186 = vsel %vm120, %v6170, %v6185
    %v6188 = vunpack.c.l.s4 1934713408
    %v6189 = vunpack.c.0.s8 %v6188
    %v6190 = vperm.slane %v6184, %v6189
    %v6192 = vunpack.c.l.s4 1934713408
    %v6193 = vunpack.c.0.s8 %v6192
    %v6194 = vperm.slane %v6186, %v6193
    %v6195 = vrot.slane %v6178, 4
    %v6196 = vsel %vm120, 0.0, %v6195
    %v6197 = vrot.slane %v6182, 4
    %v6198 = vsel %vm120, 0.0, %v6197
    %v6199 = vrot.slane %v6190, 4
    %v6200 = vsel %vm120, 0.0, %v6199
    %v6201 = vrot.slane %v6194, 4
    %v6202 = vsel %vm120, 0.0, %v6201
    %v6203 = vrot.slane %v6142, 4
    %v6204 = vsel %vm120, %v6203, %v6136
    %v6205 = vrot.slane %v6136, 4
    %v6206 = vsel %vm120, %v6142, %v6205
    %v6208 = vunpack.c.l.s4 1983009808
    %v6209 = vunpack.c.0.s8 %v6208
    %v6210 = vperm.slane %v6204, %v6209
    %v6212 = vunpack.c.l.s4 1983009808
    %v6213 = vunpack.c.0.s8 %v6212
    %v6214 = vperm.slane %v6206, %v6213
    %v6215 = vrot.slane %v6145, 4
    %v6216 = vsel %vm120, %v6215, %v6139
    %v6217 = vrot.slane %v6139, 4
    %v6218 = vsel %vm120, %v6145, %v6217
    %v6220 = vunpack.c.l.s4 1983009808
    %v6221 = vunpack.c.0.s8 %v6220
    %v6222 = vperm.slane %v6216, %v6221
    %v6224 = vunpack.c.l.s4 1983009808
    %v6225 = vunpack.c.0.s8 %v6224
    %v6226 = vperm.slane %v6218, %v6225
    %v6227 = vrot.slane %v6222, 4
    %v6228 = vsel %vm120, %v6227, %v6210
    %v6229 = vrot.slane %v6210, 4
    %v6230 = vsel %vm120, %v6222, %v6229
    %v6232 = vunpack.c.l.s4 1934713408
    %v6233 = vunpack.c.0.s8 %v6232
    %v6234 = vperm.slane %v6228, %v6233
    %v6236 = vunpack.c.l.s4 1934713408
    %v6237 = vunpack.c.0.s8 %v6236
    %v6238 = vperm.slane %v6230, %v6237
    %v6239 = vrot.slane %v6226, 4
    %v6240 = vsel %vm120, %v6239, %v6214
    %v6241 = vrot.slane %v6214, 4
    %v6242 = vsel %vm120, %v6226, %v6241
    %v6244 = vunpack.c.l.s4 1934713408
    %v6245 = vunpack.c.0.s8 %v6244
    %v6246 = vperm.slane %v6240, %v6245
    %v6248 = vunpack.c.l.s4 1934713408
    %v6249 = vunpack.c.0.s8 %v6248
    %v6250 = vperm.slane %v6242, %v6249
    %v6251 = vrot.slane %v6234, 4
    %v6252 = vsel %vm120, 0.0, %v6251
    %v6253 = vrot.slane %v6238, 4
    %v6254 = vsel %vm120, 0.0, %v6253
    %v6255 = vrot.slane %v6246, 4
    %v6256 = vsel %vm120, 0.0, %v6255
    %v6257 = vrot.slane %v6250, 4
    %v6258 = vsel %vm120, 0.0, %v6257
    %6260 = vrot.lane.b32.xlu0 %v6196, 16
    %v6261 = vpop.permute.xlu0 %6260
    %6264 = vrot.lane.b32.xlu0 %v6182, 32
    %v6265 = vpop.permute.xlu0 %6264
    %6268 = vrot.lane.b32.xlu0 %v6198, 48
    %v6269 = vpop.permute.xlu0 %6268
    %6272 = vrot.lane.b32.xlu0 %v6190, 64
    %v6273 = vpop.permute.xlu0 %6272
    %6276 = vrot.lane.b32.xlu0 %v6200, 80
    %v6277 = vpop.permute.xlu0 %6276
    %6280 = vrot.lane.b32.xlu0 %v6194, 96
    %v6281 = vpop.permute.xlu0 %6280
    %6284 = vrot.lane.b32.xlu0 %v6202, 112
    %v6285 = vpop.permute.xlu0 %6284
    %6288 = vrot.lane.b32.xlu0 %v6252, 16
    %v6289 = vpop.permute.xlu0 %6288
    %6292 = vrot.lane.b32.xlu0 %v6238, 32
    %v6293 = vpop.permute.xlu0 %6292
    %6296 = vrot.lane.b32.xlu0 %v6254, 48
    %v6297 = vpop.permute.xlu0 %6296
    %6300 = vrot.lane.b32.xlu0 %v6246, 64
    %v6301 = vpop.permute.xlu0 %6300
    %6304 = vrot.lane.b32.xlu0 %v6256, 80
    %v6305 = vpop.permute.xlu0 %6304
    %6308 = vrot.lane.b32.xlu0 %v6250, 96
    %v6309 = vpop.permute.xlu0 %6308
    %6312 = vrot.lane.b32.xlu0 %v6258, 112
    %v6313 = vpop.permute.xlu0 %6312
    %v6315 = vsel %vm510, %v6178, %v6261
    %v6316 = vsel %vm512, %v6315, %v6265
    %v6317 = vsel %vm514, %v6316, %v6269
    %v6318 = vsel %vm516, %v6317, %v6273
    %v6319 = vsel %vm518, %v6318, %v6277
    %v6320 = vsel %vm520, %v6319, %v6281
    %v6321 = vsel %vm522, %v6320, %v6285
    %v6322 = vsel %vm510, %v6234, %v6289
    %v6323 = vsel %vm512, %v6322, %v6293
    %v6324 = vsel %vm514, %v6323, %v6297
    %v6325 = vsel %vm516, %v6324, %v6301
    %v6326 = vsel %vm518, %v6325, %v6305
    %v6327 = vsel %vm520, %v6326, %v6309
    %v6328 = vsel %vm522, %v6327, %v6313
    %6337 = vrot.lane.b32.xlu0 %v6135, 127
    %v6338 = vpop.permute.xlu0 %6337
    %6339 = vrot.lane.b32.xlu0 %v6136, 127
    %v6340 = vpop.permute.xlu0 %6339
    %6341 = vrot.lane.b32.xlu0 %v6138, 127
    %v6342 = vpop.permute.xlu0 %6341
    %6343 = vrot.lane.b32.xlu0 %v6139, 127
    %v6344 = vpop.permute.xlu0 %6343
    %6345 = vrot.lane.b32.xlu0 %v6141, 127
    %v6346 = vpop.permute.xlu0 %6345
    %6347 = vrot.lane.b32.xlu0 %v6142, 127
    %v6348 = vpop.permute.xlu0 %6347
    %6349 = vrot.lane.b32.xlu0 %v6144, 127
    %v6350 = vpop.permute.xlu0 %6349
    %6351 = vrot.lane.b32.xlu0 %v6145, 127
    %v6352 = vpop.permute.xlu0 %6351
    %v6361 = vrot.slane %v6346, 4
    %v6362 = vsel %vm120, %v6361, %v6338
    %v6363 = vrot.slane %v6338, 4
    %v6364 = vsel %vm120, %v6346, %v6363
    %v6366 = vunpack.c.l.s4 1983009808
    %v6367 = vunpack.c.0.s8 %v6366
    %v6368 = vperm.slane %v6362, %v6367
    %v6370 = vunpack.c.l.s4 1983009808
    %v6371 = vunpack.c.0.s8 %v6370
    %v6372 = vperm.slane %v6364, %v6371
    %v6373 = vrot.slane %v6350, 4
    %v6374 = vsel %vm120, %v6373, %v6342
    %v6375 = vrot.slane %v6342, 4
    %v6376 = vsel %vm120, %v6350, %v6375
    %v6378 = vunpack.c.l.s4 1983009808
    %v6379 = vunpack.c.0.s8 %v6378
    %v6380 = vperm.slane %v6374, %v6379
    %v6382 = vunpack.c.l.s4 1983009808
    %v6383 = vunpack.c.0.s8 %v6382
    %v6384 = vperm.slane %v6376, %v6383
    %v6385 = vrot.slane %v6380, 4
    %v6386 = vsel %vm120, %v6385, %v6368
    %v6387 = vrot.slane %v6368, 4
    %v6388 = vsel %vm120, %v6380, %v6387
    %v6390 = vunpack.c.l.s4 1934713408
    %v6391 = vunpack.c.0.s8 %v6390
    %v6392 = vperm.slane %v6386, %v6391
    %v6394 = vunpack.c.l.s4 1934713408
    %v6395 = vunpack.c.0.s8 %v6394
    %v6396 = vperm.slane %v6388, %v6395
    %v6397 = vrot.slane %v6384, 4
    %v6398 = vsel %vm120, %v6397, %v6372
    %v6399 = vrot.slane %v6372, 4
    %v6400 = vsel %vm120, %v6384, %v6399
    %v6402 = vunpack.c.l.s4 1934713408
    %v6403 = vunpack.c.0.s8 %v6402
    %v6404 = vperm.slane %v6398, %v6403
    %v6406 = vunpack.c.l.s4 1934713408
    %v6407 = vunpack.c.0.s8 %v6406
    %v6408 = vperm.slane %v6400, %v6407
    %v6409 = vrot.slane %v6392, 4
    %v6410 = vsel %vm120, 0.0, %v6409
    %v6411 = vrot.slane %v6396, 4
    %v6412 = vsel %vm120, 0.0, %v6411
    %v6413 = vrot.slane %v6404, 4
    %v6414 = vsel %vm120, 0.0, %v6413
    %v6415 = vrot.slane %v6408, 4
    %v6416 = vsel %vm120, 0.0, %v6415
    %v6417 = vrot.slane %v6348, 4
    %v6418 = vsel %vm120, %v6417, %v6340
    %v6419 = vrot.slane %v6340, 4
    %v6420 = vsel %vm120, %v6348, %v6419
    %v6422 = vunpack.c.l.s4 1983009808
    %v6423 = vunpack.c.0.s8 %v6422
    %v6424 = vperm.slane %v6418, %v6423
    %v6426 = vunpack.c.l.s4 1983009808
    %v6427 = vunpack.c.0.s8 %v6426
    %v6428 = vperm.slane %v6420, %v6427
    %v6429 = vrot.slane %v6352, 4
    %v6430 = vsel %vm120, %v6429, %v6344
    %v6431 = vrot.slane %v6344, 4
    %v6432 = vsel %vm120, %v6352, %v6431
    %v6434 = vunpack.c.l.s4 1983009808
    %v6435 = vunpack.c.0.s8 %v6434
    %v6436 = vperm.slane %v6430, %v6435
    %v6438 = vunpack.c.l.s4 1983009808
    %v6439 = vunpack.c.0.s8 %v6438
    %v6440 = vperm.slane %v6432, %v6439
    %v6441 = vrot.slane %v6436, 4
    %v6442 = vsel %vm120, %v6441, %v6424
    %v6443 = vrot.slane %v6424, 4
    %v6444 = vsel %vm120, %v6436, %v6443
    %v6446 = vunpack.c.l.s4 1934713408
    %v6447 = vunpack.c.0.s8 %v6446
    %v6448 = vperm.slane %v6442, %v6447
    %v6450 = vunpack.c.l.s4 1934713408
    %v6451 = vunpack.c.0.s8 %v6450
    %v6452 = vperm.slane %v6444, %v6451
    %v6453 = vrot.slane %v6440, 4
    %v6454 = vsel %vm120, %v6453, %v6428
    %v6455 = vrot.slane %v6428, 4
    %v6456 = vsel %vm120, %v6440, %v6455
    %v6458 = vunpack.c.l.s4 1934713408
    %v6459 = vunpack.c.0.s8 %v6458
    %v6460 = vperm.slane %v6454, %v6459
    %v6462 = vunpack.c.l.s4 1934713408
    %v6463 = vunpack.c.0.s8 %v6462
    %v6464 = vperm.slane %v6456, %v6463
    %v6465 = vrot.slane %v6448, 4
    %v6466 = vsel %vm120, 0.0, %v6465
    %v6467 = vrot.slane %v6452, 4
    %v6468 = vsel %vm120, 0.0, %v6467
    %v6469 = vrot.slane %v6460, 4
    %v6470 = vsel %vm120, 0.0, %v6469
    %v6471 = vrot.slane %v6464, 4
    %v6472 = vsel %vm120, 0.0, %v6471
    %6474 = vrot.lane.b32.xlu0 %v6410, 16
    %v6475 = vpop.permute.xlu0 %6474
    %6478 = vrot.lane.b32.xlu0 %v6396, 32
    %v6479 = vpop.permute.xlu0 %6478
    %6482 = vrot.lane.b32.xlu0 %v6412, 48
    %v6483 = vpop.permute.xlu0 %6482
    %6486 = vrot.lane.b32.xlu0 %v6404, 64
    %v6487 = vpop.permute.xlu0 %6486
    %6490 = vrot.lane.b32.xlu0 %v6414, 80
    %v6491 = vpop.permute.xlu0 %6490
    %6494 = vrot.lane.b32.xlu0 %v6408, 96
    %v6495 = vpop.permute.xlu0 %6494
    %6498 = vrot.lane.b32.xlu0 %v6416, 112
    %v6499 = vpop.permute.xlu0 %6498
    %6502 = vrot.lane.b32.xlu0 %v6466, 16
    %v6503 = vpop.permute.xlu0 %6502
    %6506 = vrot.lane.b32.xlu0 %v6452, 32
    %v6507 = vpop.permute.xlu0 %6506
    %6510 = vrot.lane.b32.xlu0 %v6468, 48
    %v6511 = vpop.permute.xlu0 %6510
    %6514 = vrot.lane.b32.xlu0 %v6460, 64
    %v6515 = vpop.permute.xlu0 %6514
    %6518 = vrot.lane.b32.xlu0 %v6470, 80
    %v6519 = vpop.permute.xlu0 %6518
    %6522 = vrot.lane.b32.xlu0 %v6464, 96
    %v6523 = vpop.permute.xlu0 %6522
    %6526 = vrot.lane.b32.xlu0 %v6472, 112
    %v6527 = vpop.permute.xlu0 %6526
    %v6529 = vsel %vm510, %v6392, %v6475
    %v6530 = vsel %vm512, %v6529, %v6479
    %v6531 = vsel %vm514, %v6530, %v6483
    %v6532 = vsel %vm516, %v6531, %v6487
    %v6533 = vsel %vm518, %v6532, %v6491
    %v6534 = vsel %vm520, %v6533, %v6495
    %v6535 = vsel %vm522, %v6534, %v6499
    %v6536 = vsel %vm510, %v6448, %v6503
    %v6537 = vsel %vm512, %v6536, %v6507
    %v6538 = vsel %vm514, %v6537, %v6511
    %v6539 = vsel %vm516, %v6538, %v6515
    %v6540 = vsel %vm518, %v6539, %v6519
    %v6541 = vsel %vm520, %v6540, %v6523
    %v6542 = vsel %vm522, %v6541, %v6527
    %6543 = vrot.lane.b32.xlu0 %v6135, 126
    %v6544 = vpop.permute.xlu0 %6543
    %6545 = vrot.lane.b32.xlu0 %v6136, 126
    %v6546 = vpop.permute.xlu0 %6545
    %6547 = vrot.lane.b32.xlu0 %v6138, 126
    %v6548 = vpop.permute.xlu0 %6547
    %6549 = vrot.lane.b32.xlu0 %v6139, 126
    %v6550 = vpop.permute.xlu0 %6549
    %6551 = vrot.lane.b32.xlu0 %v6141, 126
    %v6552 = vpop.permute.xlu0 %6551
    %6553 = vrot.lane.b32.xlu0 %v6142, 126
    %v6554 = vpop.permute.xlu0 %6553
    %6555 = vrot.lane.b32.xlu0 %v6144, 126
    %v6556 = vpop.permute.xlu0 %6555
    %6557 = vrot.lane.b32.xlu0 %v6145, 126
    %v6558 = vpop.permute.xlu0 %6557
    %v6567 = vrot.slane %v6552, 4
    %v6568 = vsel %vm120, %v6567, %v6544
    %v6569 = vrot.slane %v6544, 4
    %v6570 = vsel %vm120, %v6552, %v6569
    %v6572 = vunpack.c.l.s4 1983009808
    %v6573 = vunpack.c.0.s8 %v6572
    %v6574 = vperm.slane %v6568, %v6573
    %v6576 = vunpack.c.l.s4 1983009808
    %v6577 = vunpack.c.0.s8 %v6576
    %v6578 = vperm.slane %v6570, %v6577
    %v6579 = vrot.slane %v6556, 4
    %v6580 = vsel %vm120, %v6579, %v6548
    %v6581 = vrot.slane %v6548, 4
    %v6582 = vsel %vm120, %v6556, %v6581
    %v6584 = vunpack.c.l.s4 1983009808
    %v6585 = vunpack.c.0.s8 %v6584
    %v6586 = vperm.slane %v6580, %v6585
    %v6588 = vunpack.c.l.s4 1983009808
    %v6589 = vunpack.c.0.s8 %v6588
    %v6590 = vperm.slane %v6582, %v6589
    %v6591 = vrot.slane %v6586, 4
    %v6592 = vsel %vm120, %v6591, %v6574
    %v6593 = vrot.slane %v6574, 4
    %v6594 = vsel %vm120, %v6586, %v6593
    %v6596 = vunpack.c.l.s4 1934713408
    %v6597 = vunpack.c.0.s8 %v6596
    %v6598 = vperm.slane %v6592, %v6597
    %v6600 = vunpack.c.l.s4 1934713408
    %v6601 = vunpack.c.0.s8 %v6600
    %v6602 = vperm.slane %v6594, %v6601
    %v6603 = vrot.slane %v6590, 4
    %v6604 = vsel %vm120, %v6603, %v6578
    %v6605 = vrot.slane %v6578, 4
    %v6606 = vsel %vm120, %v6590, %v6605
    %v6608 = vunpack.c.l.s4 1934713408
    %v6609 = vunpack.c.0.s8 %v6608
    %v6610 = vperm.slane %v6604, %v6609
    %v6612 = vunpack.c.l.s4 1934713408
    %v6613 = vunpack.c.0.s8 %v6612
    %v6614 = vperm.slane %v6606, %v6613
    %v6615 = vrot.slane %v6598, 4
    %v6616 = vsel %vm120, 0.0, %v6615
    %v6617 = vrot.slane %v6602, 4
    %v6618 = vsel %vm120, 0.0, %v6617
    %v6619 = vrot.slane %v6610, 4
    %v6620 = vsel %vm120, 0.0, %v6619
    %v6621 = vrot.slane %v6614, 4
    %v6622 = vsel %vm120, 0.0, %v6621
    %v6623 = vrot.slane %v6554, 4
    %v6624 = vsel %vm120, %v6623, %v6546
    %v6625 = vrot.slane %v6546, 4
    %v6626 = vsel %vm120, %v6554, %v6625
    %v6628 = vunpack.c.l.s4 1983009808
    %v6629 = vunpack.c.0.s8 %v6628
    %v6630 = vperm.slane %v6624, %v6629
    %v6632 = vunpack.c.l.s4 1983009808
    %v6633 = vunpack.c.0.s8 %v6632
    %v6634 = vperm.slane %v6626, %v6633
    %v6635 = vrot.slane %v6558, 4
    %v6636 = vsel %vm120, %v6635, %v6550
    %v6637 = vrot.slane %v6550, 4
    %v6638 = vsel %vm120, %v6558, %v6637
    %v6640 = vunpack.c.l.s4 1983009808
    %v6641 = vunpack.c.0.s8 %v6640
    %v6642 = vperm.slane %v6636, %v6641
    %v6644 = vunpack.c.l.s4 1983009808
    %v6645 = vunpack.c.0.s8 %v6644
    %v6646 = vperm.slane %v6638, %v6645
    %v6647 = vrot.slane %v6642, 4
    %v6648 = vsel %vm120, %v6647, %v6630
    %v6649 = vrot.slane %v6630, 4
    %v6650 = vsel %vm120, %v6642, %v6649
    %v6652 = vunpack.c.l.s4 1934713408
    %v6653 = vunpack.c.0.s8 %v6652
    %v6654 = vperm.slane %v6648, %v6653
    %v6656 = vunpack.c.l.s4 1934713408
    %v6657 = vunpack.c.0.s8 %v6656
    %v6658 = vperm.slane %v6650, %v6657
    %v6659 = vrot.slane %v6646, 4
    %v6660 = vsel %vm120, %v6659, %v6634
    %v6661 = vrot.slane %v6634, 4
    %v6662 = vsel %vm120, %v6646, %v6661
    %v6664 = vunpack.c.l.s4 1934713408
    %v6665 = vunpack.c.0.s8 %v6664
    %v6666 = vperm.slane %v6660, %v6665
    %v6668 = vunpack.c.l.s4 1934713408
    %v6669 = vunpack.c.0.s8 %v6668
    %v6670 = vperm.slane %v6662, %v6669
    %v6671 = vrot.slane %v6654, 4
    %v6672 = vsel %vm120, 0.0, %v6671
    %v6673 = vrot.slane %v6658, 4
    %v6674 = vsel %vm120, 0.0, %v6673
    %v6675 = vrot.slane %v6666, 4
    %v6676 = vsel %vm120, 0.0, %v6675
    %v6677 = vrot.slane %v6670, 4
    %v6678 = vsel %vm120, 0.0, %v6677
    %6680 = vrot.lane.b32.xlu0 %v6616, 16
    %v6681 = vpop.permute.xlu0 %6680
    %6684 = vrot.lane.b32.xlu0 %v6602, 32
    %v6685 = vpop.permute.xlu0 %6684
    %6688 = vrot.lane.b32.xlu0 %v6618, 48
    %v6689 = vpop.permute.xlu0 %6688
    %6692 = vrot.lane.b32.xlu0 %v6610, 64
    %v6693 = vpop.permute.xlu0 %6692
    %6696 = vrot.lane.b32.xlu0 %v6620, 80
    %v6697 = vpop.permute.xlu0 %6696
    %6700 = vrot.lane.b32.xlu0 %v6614, 96
    %v6701 = vpop.permute.xlu0 %6700
    %6704 = vrot.lane.b32.xlu0 %v6622, 112
    %v6705 = vpop.permute.xlu0 %6704
    %6708 = vrot.lane.b32.xlu0 %v6672, 16
    %v6709 = vpop.permute.xlu0 %6708
    %6712 = vrot.lane.b32.xlu0 %v6658, 32
    %v6713 = vpop.permute.xlu0 %6712
    %6716 = vrot.lane.b32.xlu0 %v6674, 48
    %v6717 = vpop.permute.xlu0 %6716
    %6720 = vrot.lane.b32.xlu0 %v6666, 64
    %v6721 = vpop.permute.xlu0 %6720
    %6724 = vrot.lane.b32.xlu0 %v6676, 80
    %v6725 = vpop.permute.xlu0 %6724
    %6728 = vrot.lane.b32.xlu0 %v6670, 96
    %v6729 = vpop.permute.xlu0 %6728
    %6732 = vrot.lane.b32.xlu0 %v6678, 112
    %v6733 = vpop.permute.xlu0 %6732
    %v6735 = vsel %vm510, %v6598, %v6681
    %v6736 = vsel %vm512, %v6735, %v6685
    %v6737 = vsel %vm514, %v6736, %v6689
    %v6738 = vsel %vm516, %v6737, %v6693
    %v6739 = vsel %vm518, %v6738, %v6697
    %v6740 = vsel %vm520, %v6739, %v6701
    %v6741 = vsel %vm522, %v6740, %v6705
    %v6742 = vsel %vm510, %v6654, %v6709
    %v6743 = vsel %vm512, %v6742, %v6713
    %v6744 = vsel %vm514, %v6743, %v6717
    %v6745 = vsel %vm516, %v6744, %v6721
    %v6746 = vsel %vm518, %v6745, %v6725
    %v6747 = vsel %vm520, %v6746, %v6729
    %v6748 = vsel %vm522, %v6747, %v6733
    %v6753 = vrot.slane %v6135, 1
    %v6754 = vrot.slane %v6136, 1
    %v6755 = vsel %vm955, %v6753, %v6754
    %v6756 = vrot.slane %v6137, 1
    %v6757 = vsel %vm955, %v6754, %v6756
    %v6758 = vrot.slane %v6138, 1
    %v6759 = vrot.slane %v6139, 1
    %v6760 = vsel %vm955, %v6758, %v6759
    %v6761 = vrot.slane %v6140, 1
    %v6762 = vsel %vm955, %v6759, %v6761
    %v6763 = vrot.slane %v6141, 1
    %v6764 = vrot.slane %v6142, 1
    %v6765 = vsel %vm955, %v6763, %v6764
    %v6766 = vrot.slane %v6143, 1
    %v6767 = vsel %vm955, %v6764, %v6766
    %v6768 = vrot.slane %v6144, 1
    %v6769 = vrot.slane %v6145, 1
    %v6770 = vsel %vm955, %v6768, %v6769
    %v6771 = vrot.slane %v6146, 1
    %v6772 = vsel %vm955, %v6769, %v6771
    %v6781 = vrot.slane %v6765, 4
    %v6782 = vsel %vm120, %v6781, %v6755
    %v6783 = vrot.slane %v6755, 4
    %v6784 = vsel %vm120, %v6765, %v6783
    %v6786 = vunpack.c.l.s4 1983009808
    %v6787 = vunpack.c.0.s8 %v6786
    %v6788 = vperm.slane %v6782, %v6787
    %v6790 = vunpack.c.l.s4 1983009808
    %v6791 = vunpack.c.0.s8 %v6790
    %v6792 = vperm.slane %v6784, %v6791
    %v6793 = vrot.slane %v6770, 4
    %v6794 = vsel %vm120, %v6793, %v6760
    %v6795 = vrot.slane %v6760, 4
    %v6796 = vsel %vm120, %v6770, %v6795
    %v6798 = vunpack.c.l.s4 1983009808
    %v6799 = vunpack.c.0.s8 %v6798
    %v6800 = vperm.slane %v6794, %v6799
    %v6802 = vunpack.c.l.s4 1983009808
    %v6803 = vunpack.c.0.s8 %v6802
    %v6804 = vperm.slane %v6796, %v6803
    %v6805 = vrot.slane %v6800, 4
    %v6806 = vsel %vm120, %v6805, %v6788
    %v6807 = vrot.slane %v6788, 4
    %v6808 = vsel %vm120, %v6800, %v6807
    %v6810 = vunpack.c.l.s4 1934713408
    %v6811 = vunpack.c.0.s8 %v6810
    %v6812 = vperm.slane %v6806, %v6811
    %v6814 = vunpack.c.l.s4 1934713408
    %v6815 = vunpack.c.0.s8 %v6814
    %v6816 = vperm.slane %v6808, %v6815
    %v6817 = vrot.slane %v6804, 4
    %v6818 = vsel %vm120, %v6817, %v6792
    %v6819 = vrot.slane %v6792, 4
    %v6820 = vsel %vm120, %v6804, %v6819
    %v6822 = vunpack.c.l.s4 1934713408
    %v6823 = vunpack.c.0.s8 %v6822
    %v6824 = vperm.slane %v6818, %v6823
    %v6826 = vunpack.c.l.s4 1934713408
    %v6827 = vunpack.c.0.s8 %v6826
    %v6828 = vperm.slane %v6820, %v6827
    %v6829 = vrot.slane %v6812, 4
    %v6830 = vsel %vm120, 0.0, %v6829
    %v6831 = vrot.slane %v6816, 4
    %v6832 = vsel %vm120, 0.0, %v6831
    %v6833 = vrot.slane %v6824, 4
    %v6834 = vsel %vm120, 0.0, %v6833
    %v6835 = vrot.slane %v6828, 4
    %v6836 = vsel %vm120, 0.0, %v6835
    %v6837 = vrot.slane %v6767, 4
    %v6838 = vsel %vm120, %v6837, %v6757
    %v6839 = vrot.slane %v6757, 4
    %v6840 = vsel %vm120, %v6767, %v6839
    %v6842 = vunpack.c.l.s4 1983009808
    %v6843 = vunpack.c.0.s8 %v6842
    %v6844 = vperm.slane %v6838, %v6843
    %v6846 = vunpack.c.l.s4 1983009808
    %v6847 = vunpack.c.0.s8 %v6846
    %v6848 = vperm.slane %v6840, %v6847
    %v6849 = vrot.slane %v6772, 4
    %v6850 = vsel %vm120, %v6849, %v6762
    %v6851 = vrot.slane %v6762, 4
    %v6852 = vsel %vm120, %v6772, %v6851
    %v6854 = vunpack.c.l.s4 1983009808
    %v6855 = vunpack.c.0.s8 %v6854
    %v6856 = vperm.slane %v6850, %v6855
    %v6858 = vunpack.c.l.s4 1983009808
    %v6859 = vunpack.c.0.s8 %v6858
    %v6860 = vperm.slane %v6852, %v6859
    %v6861 = vrot.slane %v6856, 4
    %v6862 = vsel %vm120, %v6861, %v6844
    %v6863 = vrot.slane %v6844, 4
    %v6864 = vsel %vm120, %v6856, %v6863
    %v6866 = vunpack.c.l.s4 1934713408
    %v6867 = vunpack.c.0.s8 %v6866
    %v6868 = vperm.slane %v6862, %v6867
    %v6870 = vunpack.c.l.s4 1934713408
    %v6871 = vunpack.c.0.s8 %v6870
    %v6872 = vperm.slane %v6864, %v6871
    %v6873 = vrot.slane %v6860, 4
    %v6874 = vsel %vm120, %v6873, %v6848
    %v6875 = vrot.slane %v6848, 4
    %v6876 = vsel %vm120, %v6860, %v6875
    %v6878 = vunpack.c.l.s4 1934713408
    %v6879 = vunpack.c.0.s8 %v6878
    %v6880 = vperm.slane %v6874, %v6879
    %v6882 = vunpack.c.l.s4 1934713408
    %v6883 = vunpack.c.0.s8 %v6882
    %v6884 = vperm.slane %v6876, %v6883
    %v6885 = vrot.slane %v6868, 4
    %v6886 = vsel %vm120, 0.0, %v6885
    %v6887 = vrot.slane %v6872, 4
    %v6888 = vsel %vm120, 0.0, %v6887
    %v6889 = vrot.slane %v6880, 4
    %v6890 = vsel %vm120, 0.0, %v6889
    %v6891 = vrot.slane %v6884, 4
    %v6892 = vsel %vm120, 0.0, %v6891
    %6894 = vrot.lane.b32.xlu0 %v6830, 16
    %v6895 = vpop.permute.xlu0 %6894
    %6898 = vrot.lane.b32.xlu0 %v6816, 32
    %v6899 = vpop.permute.xlu0 %6898
    %6902 = vrot.lane.b32.xlu0 %v6832, 48
    %v6903 = vpop.permute.xlu0 %6902
    %6906 = vrot.lane.b32.xlu0 %v6824, 64
    %v6907 = vpop.permute.xlu0 %6906
    %6910 = vrot.lane.b32.xlu0 %v6834, 80
    %v6911 = vpop.permute.xlu0 %6910
    %6914 = vrot.lane.b32.xlu0 %v6828, 96
    %v6915 = vpop.permute.xlu0 %6914
    %6918 = vrot.lane.b32.xlu0 %v6836, 112
    %v6919 = vpop.permute.xlu0 %6918
    %6922 = vrot.lane.b32.xlu0 %v6886, 16
    %v6923 = vpop.permute.xlu0 %6922
    %6926 = vrot.lane.b32.xlu0 %v6872, 32
    %v6927 = vpop.permute.xlu0 %6926
    %6930 = vrot.lane.b32.xlu0 %v6888, 48
    %v6931 = vpop.permute.xlu0 %6930
    %6934 = vrot.lane.b32.xlu0 %v6880, 64
    %v6935 = vpop.permute.xlu0 %6934
    %6938 = vrot.lane.b32.xlu0 %v6890, 80
    %v6939 = vpop.permute.xlu0 %6938
    %6942 = vrot.lane.b32.xlu0 %v6884, 96
    %v6943 = vpop.permute.xlu0 %6942
    %6946 = vrot.lane.b32.xlu0 %v6892, 112
    %v6947 = vpop.permute.xlu0 %6946
    %v6949 = vsel %vm510, %v6812, %v6895
    %v6950 = vsel %vm512, %v6949, %v6899
    %v6951 = vsel %vm514, %v6950, %v6903
    %v6952 = vsel %vm516, %v6951, %v6907
    %v6953 = vsel %vm518, %v6952, %v6911
    %v6954 = vsel %vm520, %v6953, %v6915
    %v6955 = vsel %vm522, %v6954, %v6919
    %v6956 = vsel %vm510, %v6868, %v6923
    %v6957 = vsel %vm512, %v6956, %v6927
    %v6958 = vsel %vm514, %v6957, %v6931
    %v6959 = vsel %vm516, %v6958, %v6935
    %v6960 = vsel %vm518, %v6959, %v6939
    %v6961 = vsel %vm520, %v6960, %v6943
    %v6962 = vsel %vm522, %v6961, %v6947
    %6963 = vrot.lane.b32.xlu0 %v6755, 127
    %v6964 = vpop.permute.xlu0 %6963
    %6965 = vrot.lane.b32.xlu0 %v6757, 127
    %v6966 = vpop.permute.xlu0 %6965
    %6967 = vrot.lane.b32.xlu0 %v6760, 127
    %v6968 = vpop.permute.xlu0 %6967
    %6969 = vrot.lane.b32.xlu0 %v6762, 127
    %v6970 = vpop.permute.xlu0 %6969
    %6971 = vrot.lane.b32.xlu0 %v6765, 127
    %v6972 = vpop.permute.xlu0 %6971
    %6973 = vrot.lane.b32.xlu0 %v6767, 127
    %v6974 = vpop.permute.xlu0 %6973
    %6975 = vrot.lane.b32.xlu0 %v6770, 127
    %v6976 = vpop.permute.xlu0 %6975
    %6977 = vrot.lane.b32.xlu0 %v6772, 127
    %v6978 = vpop.permute.xlu0 %6977
    %v6987 = vrot.slane %v6972, 4
    %v6988 = vsel %vm120, %v6987, %v6964
    %v6989 = vrot.slane %v6964, 4
    %v6990 = vsel %vm120, %v6972, %v6989
    %v6992 = vunpack.c.l.s4 1983009808
    %v6993 = vunpack.c.0.s8 %v6992
    %v6994 = vperm.slane %v6988, %v6993
    %v6996 = vunpack.c.l.s4 1983009808
    %v6997 = vunpack.c.0.s8 %v6996
    %v6998 = vperm.slane %v6990, %v6997
    %v6999 = vrot.slane %v6976, 4
    %v7000 = vsel %vm120, %v6999, %v6968
    %v7001 = vrot.slane %v6968, 4
    %v7002 = vsel %vm120, %v6976, %v7001
    %v7004 = vunpack.c.l.s4 1983009808
    %v7005 = vunpack.c.0.s8 %v7004
    %v7006 = vperm.slane %v7000, %v7005
    %v7008 = vunpack.c.l.s4 1983009808
    %v7009 = vunpack.c.0.s8 %v7008
    %v7010 = vperm.slane %v7002, %v7009
    %v7011 = vrot.slane %v7006, 4
    %v7012 = vsel %vm120, %v7011, %v6994
    %v7013 = vrot.slane %v6994, 4
    %v7014 = vsel %vm120, %v7006, %v7013
    %v7016 = vunpack.c.l.s4 1934713408
    %v7017 = vunpack.c.0.s8 %v7016
    %v7018 = vperm.slane %v7012, %v7017
    %v7020 = vunpack.c.l.s4 1934713408
    %v7021 = vunpack.c.0.s8 %v7020
    %v7022 = vperm.slane %v7014, %v7021
    %v7023 = vrot.slane %v7010, 4
    %v7024 = vsel %vm120, %v7023, %v6998
    %v7025 = vrot.slane %v6998, 4
    %v7026 = vsel %vm120, %v7010, %v7025
    %v7028 = vunpack.c.l.s4 1934713408
    %v7029 = vunpack.c.0.s8 %v7028
    %v7030 = vperm.slane %v7024, %v7029
    %v7032 = vunpack.c.l.s4 1934713408
    %v7033 = vunpack.c.0.s8 %v7032
    %v7034 = vperm.slane %v7026, %v7033
    %v7035 = vrot.slane %v7018, 4
    %v7036 = vsel %vm120, 0.0, %v7035
    %v7037 = vrot.slane %v7022, 4
    %v7038 = vsel %vm120, 0.0, %v7037
    %v7039 = vrot.slane %v7030, 4
    %v7040 = vsel %vm120, 0.0, %v7039
    %v7041 = vrot.slane %v7034, 4
    %v7042 = vsel %vm120, 0.0, %v7041
    %v7043 = vrot.slane %v6974, 4
    %v7044 = vsel %vm120, %v7043, %v6966
    %v7045 = vrot.slane %v6966, 4
    %v7046 = vsel %vm120, %v6974, %v7045
    %v7048 = vunpack.c.l.s4 1983009808
    %v7049 = vunpack.c.0.s8 %v7048
    %v7050 = vperm.slane %v7044, %v7049
    %v7052 = vunpack.c.l.s4 1983009808
    %v7053 = vunpack.c.0.s8 %v7052
    %v7054 = vperm.slane %v7046, %v7053
    %v7055 = vrot.slane %v6978, 4
    %v7056 = vsel %vm120, %v7055, %v6970
    %v7057 = vrot.slane %v6970, 4
    %v7058 = vsel %vm120, %v6978, %v7057
    %v7060 = vunpack.c.l.s4 1983009808
    %v7061 = vunpack.c.0.s8 %v7060
    %v7062 = vperm.slane %v7056, %v7061
    %v7064 = vunpack.c.l.s4 1983009808
    %v7065 = vunpack.c.0.s8 %v7064
    %v7066 = vperm.slane %v7058, %v7065
    %v7067 = vrot.slane %v7062, 4
    %v7068 = vsel %vm120, %v7067, %v7050
    %v7069 = vrot.slane %v7050, 4
    %v7070 = vsel %vm120, %v7062, %v7069
    %v7072 = vunpack.c.l.s4 1934713408
    %v7073 = vunpack.c.0.s8 %v7072
    %v7074 = vperm.slane %v7068, %v7073
    %v7076 = vunpack.c.l.s4 1934713408
    %v7077 = vunpack.c.0.s8 %v7076
    %v7078 = vperm.slane %v7070, %v7077
    %v7079 = vrot.slane %v7066, 4
    %v7080 = vsel %vm120, %v7079, %v7054
    %v7081 = vrot.slane %v7054, 4
    %v7082 = vsel %vm120, %v7066, %v7081
    %v7084 = vunpack.c.l.s4 1934713408
    %v7085 = vunpack.c.0.s8 %v7084
    %v7086 = vperm.slane %v7080, %v7085
    %v7088 = vunpack.c.l.s4 1934713408
    %v7089 = vunpack.c.0.s8 %v7088
    %v7090 = vperm.slane %v7082, %v7089
    %v7091 = vrot.slane %v7074, 4
    %v7092 = vsel %vm120, 0.0, %v7091
    %v7093 = vrot.slane %v7078, 4
    %v7094 = vsel %vm120, 0.0, %v7093
    %v7095 = vrot.slane %v7086, 4
    %v7096 = vsel %vm120, 0.0, %v7095
    %v7097 = vrot.slane %v7090, 4
    %v7098 = vsel %vm120, 0.0, %v7097
    %7100 = vrot.lane.b32.xlu0 %v7036, 16
    %v7101 = vpop.permute.xlu0 %7100
    %7104 = vrot.lane.b32.xlu0 %v7022, 32
    %v7105 = vpop.permute.xlu0 %7104
    %7108 = vrot.lane.b32.xlu0 %v7038, 48
    %v7109 = vpop.permute.xlu0 %7108
    %7112 = vrot.lane.b32.xlu0 %v7030, 64
    %v7113 = vpop.permute.xlu0 %7112
    %7116 = vrot.lane.b32.xlu0 %v7040, 80
    %v7117 = vpop.permute.xlu0 %7116
    %7120 = vrot.lane.b32.xlu0 %v7034, 96
    %v7121 = vpop.permute.xlu0 %7120
    %7124 = vrot.lane.b32.xlu0 %v7042, 112
    %v7125 = vpop.permute.xlu0 %7124
    %7128 = vrot.lane.b32.xlu0 %v7092, 16
    %v7129 = vpop.permute.xlu0 %7128
    %7132 = vrot.lane.b32.xlu0 %v7078, 32
    %v7133 = vpop.permute.xlu0 %7132
    %7136 = vrot.lane.b32.xlu0 %v7094, 48
    %v7137 = vpop.permute.xlu0 %7136
    %7140 = vrot.lane.b32.xlu0 %v7086, 64
    %v7141 = vpop.permute.xlu0 %7140
    %7144 = vrot.lane.b32.xlu0 %v7096, 80
    %v7145 = vpop.permute.xlu0 %7144
    %7148 = vrot.lane.b32.xlu0 %v7090, 96
    %v7149 = vpop.permute.xlu0 %7148
    %7152 = vrot.lane.b32.xlu0 %v7098, 112
    %v7153 = vpop.permute.xlu0 %7152
    %v7155 = vsel %vm510, %v7018, %v7101
    %v7156 = vsel %vm512, %v7155, %v7105
    %v7157 = vsel %vm514, %v7156, %v7109
    %v7158 = vsel %vm516, %v7157, %v7113
    %v7159 = vsel %vm518, %v7158, %v7117
    %v7160 = vsel %vm520, %v7159, %v7121
    %v7161 = vsel %vm522, %v7160, %v7125
    %v7162 = vsel %vm510, %v7074, %v7129
    %v7163 = vsel %vm512, %v7162, %v7133
    %v7164 = vsel %vm514, %v7163, %v7137
    %v7165 = vsel %vm516, %v7164, %v7141
    %v7166 = vsel %vm518, %v7165, %v7145
    %v7167 = vsel %vm520, %v7166, %v7149
    %v7168 = vsel %vm522, %v7167, %v7153
    %7169 = vrot.lane.b32.xlu0 %v6755, 126
    %v7170 = vpop.permute.xlu0 %7169
    %7171 = vrot.lane.b32.xlu0 %v6757, 126
    %v7172 = vpop.permute.xlu0 %7171
    %7173 = vrot.lane.b32.xlu0 %v6760, 126
    %v7174 = vpop.permute.xlu0 %7173
    %7175 = vrot.lane.b32.xlu0 %v6762, 126
    %v7176 = vpop.permute.xlu0 %7175
    %7177 = vrot.lane.b32.xlu0 %v6765, 126
    %v7178 = vpop.permute.xlu0 %7177
    %7179 = vrot.lane.b32.xlu0 %v6767, 126
    %v7180 = vpop.permute.xlu0 %7179
    %7181 = vrot.lane.b32.xlu0 %v6770, 126
    %v7182 = vpop.permute.xlu0 %7181
    %7183 = vrot.lane.b32.xlu0 %v6772, 126
    %v7184 = vpop.permute.xlu0 %7183
    %v7193 = vrot.slane %v7178, 4
    %v7194 = vsel %vm120, %v7193, %v7170
    %v7195 = vrot.slane %v7170, 4
    %v7196 = vsel %vm120, %v7178, %v7195
    %v7198 = vunpack.c.l.s4 1983009808
    %v7199 = vunpack.c.0.s8 %v7198
    %v7200 = vperm.slane %v7194, %v7199
    %v7202 = vunpack.c.l.s4 1983009808
    %v7203 = vunpack.c.0.s8 %v7202
    %v7204 = vperm.slane %v7196, %v7203
    %v7205 = vrot.slane %v7182, 4
    %v7206 = vsel %vm120, %v7205, %v7174
    %v7207 = vrot.slane %v7174, 4
    %v7208 = vsel %vm120, %v7182, %v7207
    %v7210 = vunpack.c.l.s4 1983009808
    %v7211 = vunpack.c.0.s8 %v7210
    %v7212 = vperm.slane %v7206, %v7211
    %v7214 = vunpack.c.l.s4 1983009808
    %v7215 = vunpack.c.0.s8 %v7214
    %v7216 = vperm.slane %v7208, %v7215
    %v7217 = vrot.slane %v7212, 4
    %v7218 = vsel %vm120, %v7217, %v7200
    %v7219 = vrot.slane %v7200, 4
    %v7220 = vsel %vm120, %v7212, %v7219
    %v7222 = vunpack.c.l.s4 1934713408
    %v7223 = vunpack.c.0.s8 %v7222
    %v7224 = vperm.slane %v7218, %v7223
    %v7226 = vunpack.c.l.s4 1934713408
    %v7227 = vunpack.c.0.s8 %v7226
    %v7228 = vperm.slane %v7220, %v7227
    %v7229 = vrot.slane %v7216, 4
    %v7230 = vsel %vm120, %v7229, %v7204
    %v7231 = vrot.slane %v7204, 4
    %v7232 = vsel %vm120, %v7216, %v7231
    %v7234 = vunpack.c.l.s4 1934713408
    %v7235 = vunpack.c.0.s8 %v7234
    %v7236 = vperm.slane %v7230, %v7235
    %v7238 = vunpack.c.l.s4 1934713408
    %v7239 = vunpack.c.0.s8 %v7238
    %v7240 = vperm.slane %v7232, %v7239
    %v7241 = vrot.slane %v7224, 4
    %v7242 = vsel %vm120, 0.0, %v7241
    %v7243 = vrot.slane %v7228, 4
    %v7244 = vsel %vm120, 0.0, %v7243
    %v7245 = vrot.slane %v7236, 4
    %v7246 = vsel %vm120, 0.0, %v7245
    %v7247 = vrot.slane %v7240, 4
    %v7248 = vsel %vm120, 0.0, %v7247
    %v7249 = vrot.slane %v7180, 4
    %v7250 = vsel %vm120, %v7249, %v7172
    %v7251 = vrot.slane %v7172, 4
    %v7252 = vsel %vm120, %v7180, %v7251
    %v7254 = vunpack.c.l.s4 1983009808
    %v7255 = vunpack.c.0.s8 %v7254
    %v7256 = vperm.slane %v7250, %v7255
    %v7258 = vunpack.c.l.s4 1983009808
    %v7259 = vunpack.c.0.s8 %v7258
    %v7260 = vperm.slane %v7252, %v7259
    %v7261 = vrot.slane %v7184, 4
    %v7262 = vsel %vm120, %v7261, %v7176
    %v7263 = vrot.slane %v7176, 4
    %v7264 = vsel %vm120, %v7184, %v7263
    %v7266 = vunpack.c.l.s4 1983009808
    %v7267 = vunpack.c.0.s8 %v7266
    %v7268 = vperm.slane %v7262, %v7267
    %v7270 = vunpack.c.l.s4 1983009808
    %v7271 = vunpack.c.0.s8 %v7270
    %v7272 = vperm.slane %v7264, %v7271
    %v7273 = vrot.slane %v7268, 4
    %v7274 = vsel %vm120, %v7273, %v7256
    %v7275 = vrot.slane %v7256, 4
    %v7276 = vsel %vm120, %v7268, %v7275
    %v7278 = vunpack.c.l.s4 1934713408
    %v7279 = vunpack.c.0.s8 %v7278
    %v7280 = vperm.slane %v7274, %v7279
    %v7282 = vunpack.c.l.s4 1934713408
    %v7283 = vunpack.c.0.s8 %v7282
    %v7284 = vperm.slane %v7276, %v7283
    %v7285 = vrot.slane %v7272, 4
    %v7286 = vsel %vm120, %v7285, %v7260
    %v7287 = vrot.slane %v7260, 4
    %v7288 = vsel %vm120, %v7272, %v7287
    %v7290 = vunpack.c.l.s4 1934713408
    %v7291 = vunpack.c.0.s8 %v7290
    %v7292 = vperm.slane %v7286, %v7291
    %v7294 = vunpack.c.l.s4 1934713408
    %v7295 = vunpack.c.0.s8 %v7294
    %v7296 = vperm.slane %v7288, %v7295
    %v7297 = vrot.slane %v7280, 4
    %v7298 = vsel %vm120, 0.0, %v7297
    %v7299 = vrot.slane %v7284, 4
    %v7300 = vsel %vm120, 0.0, %v7299
    %v7301 = vrot.slane %v7292, 4
    %v7302 = vsel %vm120, 0.0, %v7301
    %v7303 = vrot.slane %v7296, 4
    %v7304 = vsel %vm120, 0.0, %v7303
    %7306 = vrot.lane.b32.xlu0 %v7242, 16
    %v7307 = vpop.permute.xlu0 %7306
    %7310 = vrot.lane.b32.xlu0 %v7228, 32
    %v7311 = vpop.permute.xlu0 %7310
    %7314 = vrot.lane.b32.xlu0 %v7244, 48
    %v7315 = vpop.permute.xlu0 %7314
    %7318 = vrot.lane.b32.xlu0 %v7236, 64
    %v7319 = vpop.permute.xlu0 %7318
    %7322 = vrot.lane.b32.xlu0 %v7246, 80
    %v7323 = vpop.permute.xlu0 %7322
    %7326 = vrot.lane.b32.xlu0 %v7240, 96
    %v7327 = vpop.permute.xlu0 %7326
    %7330 = vrot.lane.b32.xlu0 %v7248, 112
    %v7331 = vpop.permute.xlu0 %7330
    %7334 = vrot.lane.b32.xlu0 %v7298, 16
    %v7335 = vpop.permute.xlu0 %7334
    %7338 = vrot.lane.b32.xlu0 %v7284, 32
    %v7339 = vpop.permute.xlu0 %7338
    %7342 = vrot.lane.b32.xlu0 %v7300, 48
    %v7343 = vpop.permute.xlu0 %7342
    %7346 = vrot.lane.b32.xlu0 %v7292, 64
    %v7347 = vpop.permute.xlu0 %7346
    %7350 = vrot.lane.b32.xlu0 %v7302, 80
    %v7351 = vpop.permute.xlu0 %7350
    %7354 = vrot.lane.b32.xlu0 %v7296, 96
    %v7355 = vpop.permute.xlu0 %7354
    %7358 = vrot.lane.b32.xlu0 %v7304, 112
    %v7359 = vpop.permute.xlu0 %7358
    %v7361 = vsel %vm510, %v7224, %v7307
    %v7362 = vsel %vm512, %v7361, %v7311
    %v7363 = vsel %vm514, %v7362, %v7315
    %v7364 = vsel %vm516, %v7363, %v7319
    %v7365 = vsel %vm518, %v7364, %v7323
    %v7366 = vsel %vm520, %v7365, %v7327
    %v7367 = vsel %vm522, %v7366, %v7331
    %v7368 = vsel %vm510, %v7280, %v7335
    %v7369 = vsel %vm512, %v7368, %v7339
    %v7370 = vsel %vm514, %v7369, %v7343
    %v7371 = vsel %vm516, %v7370, %v7347
    %v7372 = vsel %vm518, %v7371, %v7351
    %v7373 = vsel %vm520, %v7372, %v7355
    %v7374 = vsel %vm522, %v7373, %v7359
    %v7375 = vrot.slane %v6135, 2
    %v7376 = vrot.slane %v6136, 2
    %v7377 = vsel %vm1578, %v7375, %v7376
    %v7378 = vrot.slane %v6137, 2
    %v7379 = vsel %vm1578, %v7376, %v7378
    %v7380 = vrot.slane %v6138, 2
    %v7381 = vrot.slane %v6139, 2
    %v7382 = vsel %vm1578, %v7380, %v7381
    %v7383 = vrot.slane %v6140, 2
    %v7384 = vsel %vm1578, %v7381, %v7383
    %v7385 = vrot.slane %v6141, 2
    %v7386 = vrot.slane %v6142, 2
    %v7387 = vsel %vm1578, %v7385, %v7386
    %v7388 = vrot.slane %v6143, 2
    %v7389 = vsel %vm1578, %v7386, %v7388
    %v7390 = vrot.slane %v6144, 2
    %v7391 = vrot.slane %v6145, 2
    %v7392 = vsel %vm1578, %v7390, %v7391
    %v7393 = vrot.slane %v6146, 2
    %v7394 = vsel %vm1578, %v7391, %v7393
    %v7403 = vrot.slane %v7387, 4
    %v7404 = vsel %vm120, %v7403, %v7377
    %v7405 = vrot.slane %v7377, 4
    %v7406 = vsel %vm120, %v7387, %v7405
    %v7408 = vunpack.c.l.s4 1983009808
    %v7409 = vunpack.c.0.s8 %v7408
    %v7410 = vperm.slane %v7404, %v7409
    %v7412 = vunpack.c.l.s4 1983009808
    %v7413 = vunpack.c.0.s8 %v7412
    %v7414 = vperm.slane %v7406, %v7413
    %v7415 = vrot.slane %v7392, 4
    %v7416 = vsel %vm120, %v7415, %v7382
    %v7417 = vrot.slane %v7382, 4
    %v7418 = vsel %vm120, %v7392, %v7417
    %v7420 = vunpack.c.l.s4 1983009808
    %v7421 = vunpack.c.0.s8 %v7420
    %v7422 = vperm.slane %v7416, %v7421
    %v7424 = vunpack.c.l.s4 1983009808
    %v7425 = vunpack.c.0.s8 %v7424
    %v7426 = vperm.slane %v7418, %v7425
    %v7427 = vrot.slane %v7422, 4
    %v7428 = vsel %vm120, %v7427, %v7410
    %v7429 = vrot.slane %v7410, 4
    %v7430 = vsel %vm120, %v7422, %v7429
    %v7432 = vunpack.c.l.s4 1934713408
    %v7433 = vunpack.c.0.s8 %v7432
    %v7434 = vperm.slane %v7428, %v7433
    %v7436 = vunpack.c.l.s4 1934713408
    %v7437 = vunpack.c.0.s8 %v7436
    %v7438 = vperm.slane %v7430, %v7437
    %v7439 = vrot.slane %v7426, 4
    %v7440 = vsel %vm120, %v7439, %v7414
    %v7441 = vrot.slane %v7414, 4
    %v7442 = vsel %vm120, %v7426, %v7441
    %v7444 = vunpack.c.l.s4 1934713408
    %v7445 = vunpack.c.0.s8 %v7444
    %v7446 = vperm.slane %v7440, %v7445
    %v7448 = vunpack.c.l.s4 1934713408
    %v7449 = vunpack.c.0.s8 %v7448
    %v7450 = vperm.slane %v7442, %v7449
    %v7451 = vrot.slane %v7434, 4
    %v7452 = vsel %vm120, 0.0, %v7451
    %v7453 = vrot.slane %v7438, 4
    %v7454 = vsel %vm120, 0.0, %v7453
    %v7455 = vrot.slane %v7446, 4
    %v7456 = vsel %vm120, 0.0, %v7455
    %v7457 = vrot.slane %v7450, 4
    %v7458 = vsel %vm120, 0.0, %v7457
    %v7459 = vrot.slane %v7389, 4
    %v7460 = vsel %vm120, %v7459, %v7379
    %v7461 = vrot.slane %v7379, 4
    %v7462 = vsel %vm120, %v7389, %v7461
    %v7464 = vunpack.c.l.s4 1983009808
    %v7465 = vunpack.c.0.s8 %v7464
    %v7466 = vperm.slane %v7460, %v7465
    %v7468 = vunpack.c.l.s4 1983009808
    %v7469 = vunpack.c.0.s8 %v7468
    %v7470 = vperm.slane %v7462, %v7469
    %v7471 = vrot.slane %v7394, 4
    %v7472 = vsel %vm120, %v7471, %v7384
    %v7473 = vrot.slane %v7384, 4
    %v7474 = vsel %vm120, %v7394, %v7473
    %v7476 = vunpack.c.l.s4 1983009808
    %v7477 = vunpack.c.0.s8 %v7476
    %v7478 = vperm.slane %v7472, %v7477
    %v7480 = vunpack.c.l.s4 1983009808
    %v7481 = vunpack.c.0.s8 %v7480
    %v7482 = vperm.slane %v7474, %v7481
    %v7483 = vrot.slane %v7478, 4
    %v7484 = vsel %vm120, %v7483, %v7466
    %v7485 = vrot.slane %v7466, 4
    %v7486 = vsel %vm120, %v7478, %v7485
    %v7488 = vunpack.c.l.s4 1934713408
    %v7489 = vunpack.c.0.s8 %v7488
    %v7490 = vperm.slane %v7484, %v7489
    %v7492 = vunpack.c.l.s4 1934713408
    %v7493 = vunpack.c.0.s8 %v7492
    %v7494 = vperm.slane %v7486, %v7493
    %v7495 = vrot.slane %v7482, 4
    %v7496 = vsel %vm120, %v7495, %v7470
    %v7497 = vrot.slane %v7470, 4
    %v7498 = vsel %vm120, %v7482, %v7497
    %v7500 = vunpack.c.l.s4 1934713408
    %v7501 = vunpack.c.0.s8 %v7500
    %v7502 = vperm.slane %v7496, %v7501
    %v7504 = vunpack.c.l.s4 1934713408
    %v7505 = vunpack.c.0.s8 %v7504
    %v7506 = vperm.slane %v7498, %v7505
    %v7507 = vrot.slane %v7490, 4
    %v7508 = vsel %vm120, 0.0, %v7507
    %v7509 = vrot.slane %v7494, 4
    %v7510 = vsel %vm120, 0.0, %v7509
    %v7511 = vrot.slane %v7502, 4
    %v7512 = vsel %vm120, 0.0, %v7511
    %v7513 = vrot.slane %v7506, 4
    %v7514 = vsel %vm120, 0.0, %v7513
    %7516 = vrot.lane.b32.xlu0 %v7452, 16
    %v7517 = vpop.permute.xlu0 %7516
    %7520 = vrot.lane.b32.xlu0 %v7438, 32
    %v7521 = vpop.permute.xlu0 %7520
    %7524 = vrot.lane.b32.xlu0 %v7454, 48
    %v7525 = vpop.permute.xlu0 %7524
    %7528 = vrot.lane.b32.xlu0 %v7446, 64
    %v7529 = vpop.permute.xlu0 %7528
    %7532 = vrot.lane.b32.xlu0 %v7456, 80
    %v7533 = vpop.permute.xlu0 %7532
    %7536 = vrot.lane.b32.xlu0 %v7450, 96
    %v7537 = vpop.permute.xlu0 %7536
    %7540 = vrot.lane.b32.xlu0 %v7458, 112
    %v7541 = vpop.permute.xlu0 %7540
    %7544 = vrot.lane.b32.xlu0 %v7508, 16
    %v7545 = vpop.permute.xlu0 %7544
    %7548 = vrot.lane.b32.xlu0 %v7494, 32
    %v7549 = vpop.permute.xlu0 %7548
    %7552 = vrot.lane.b32.xlu0 %v7510, 48
    %v7553 = vpop.permute.xlu0 %7552
    %7556 = vrot.lane.b32.xlu0 %v7502, 64
    %v7557 = vpop.permute.xlu0 %7556
    %7560 = vrot.lane.b32.xlu0 %v7512, 80
    %v7561 = vpop.permute.xlu0 %7560
    %7564 = vrot.lane.b32.xlu0 %v7506, 96
    %v7565 = vpop.permute.xlu0 %7564
    %7568 = vrot.lane.b32.xlu0 %v7514, 112
    %v7569 = vpop.permute.xlu0 %7568
    %v7571 = vsel %vm510, %v7434, %v7517
    %v7572 = vsel %vm512, %v7571, %v7521
    %v7573 = vsel %vm514, %v7572, %v7525
    %v7574 = vsel %vm516, %v7573, %v7529
    %v7575 = vsel %vm518, %v7574, %v7533
    %v7576 = vsel %vm520, %v7575, %v7537
    %v7577 = vsel %vm522, %v7576, %v7541
    %v7578 = vsel %vm510, %v7490, %v7545
    %v7579 = vsel %vm512, %v7578, %v7549
    %v7580 = vsel %vm514, %v7579, %v7553
    %v7581 = vsel %vm516, %v7580, %v7557
    %v7582 = vsel %vm518, %v7581, %v7561
    %v7583 = vsel %vm520, %v7582, %v7565
    %v7584 = vsel %vm522, %v7583, %v7569
    %7585 = vrot.lane.b32.xlu0 %v7377, 127
    %v7586 = vpop.permute.xlu0 %7585
    %7587 = vrot.lane.b32.xlu0 %v7379, 127
    %v7588 = vpop.permute.xlu0 %7587
    %7589 = vrot.lane.b32.xlu0 %v7382, 127
    %v7590 = vpop.permute.xlu0 %7589
    %7591 = vrot.lane.b32.xlu0 %v7384, 127
    %v7592 = vpop.permute.xlu0 %7591
    %7593 = vrot.lane.b32.xlu0 %v7387, 127
    %v7594 = vpop.permute.xlu0 %7593
    %7595 = vrot.lane.b32.xlu0 %v7389, 127
    %v7596 = vpop.permute.xlu0 %7595
    %7597 = vrot.lane.b32.xlu0 %v7392, 127
    %v7598 = vpop.permute.xlu0 %7597
    %7599 = vrot.lane.b32.xlu0 %v7394, 127
    %v7600 = vpop.permute.xlu0 %7599
    %v7609 = vrot.slane %v7594, 4
    %v7610 = vsel %vm120, %v7609, %v7586
    %v7611 = vrot.slane %v7586, 4
    %v7612 = vsel %vm120, %v7594, %v7611
    %v7614 = vunpack.c.l.s4 1983009808
    %v7615 = vunpack.c.0.s8 %v7614
    %v7616 = vperm.slane %v7610, %v7615
    %v7618 = vunpack.c.l.s4 1983009808
    %v7619 = vunpack.c.0.s8 %v7618
    %v7620 = vperm.slane %v7612, %v7619
    %v7621 = vrot.slane %v7598, 4
    %v7622 = vsel %vm120, %v7621, %v7590
    %v7623 = vrot.slane %v7590, 4
    %v7624 = vsel %vm120, %v7598, %v7623
    %v7626 = vunpack.c.l.s4 1983009808
    %v7627 = vunpack.c.0.s8 %v7626
    %v7628 = vperm.slane %v7622, %v7627
    %v7630 = vunpack.c.l.s4 1983009808
    %v7631 = vunpack.c.0.s8 %v7630
    %v7632 = vperm.slane %v7624, %v7631
    %v7633 = vrot.slane %v7628, 4
    %v7634 = vsel %vm120, %v7633, %v7616
    %v7635 = vrot.slane %v7616, 4
    %v7636 = vsel %vm120, %v7628, %v7635
    %v7638 = vunpack.c.l.s4 1934713408
    %v7639 = vunpack.c.0.s8 %v7638
    %v7640 = vperm.slane %v7634, %v7639
    %v7642 = vunpack.c.l.s4 1934713408
    %v7643 = vunpack.c.0.s8 %v7642
    %v7644 = vperm.slane %v7636, %v7643
    %v7645 = vrot.slane %v7632, 4
    %v7646 = vsel %vm120, %v7645, %v7620
    %v7647 = vrot.slane %v7620, 4
    %v7648 = vsel %vm120, %v7632, %v7647
    %v7650 = vunpack.c.l.s4 1934713408
    %v7651 = vunpack.c.0.s8 %v7650
    %v7652 = vperm.slane %v7646, %v7651
    %v7654 = vunpack.c.l.s4 1934713408
    %v7655 = vunpack.c.0.s8 %v7654
    %v7656 = vperm.slane %v7648, %v7655
    %v7657 = vrot.slane %v7640, 4
    %v7658 = vsel %vm120, 0.0, %v7657
    %v7659 = vrot.slane %v7644, 4
    %v7660 = vsel %vm120, 0.0, %v7659
    %v7661 = vrot.slane %v7652, 4
    %v7662 = vsel %vm120, 0.0, %v7661
    %v7663 = vrot.slane %v7656, 4
    %v7664 = vsel %vm120, 0.0, %v7663
    %v7665 = vrot.slane %v7596, 4
    %v7666 = vsel %vm120, %v7665, %v7588
    %v7667 = vrot.slane %v7588, 4
    %v7668 = vsel %vm120, %v7596, %v7667
    %v7670 = vunpack.c.l.s4 1983009808
    %v7671 = vunpack.c.0.s8 %v7670
    %v7672 = vperm.slane %v7666, %v7671
    %v7674 = vunpack.c.l.s4 1983009808
    %v7675 = vunpack.c.0.s8 %v7674
    %v7676 = vperm.slane %v7668, %v7675
    %v7677 = vrot.slane %v7600, 4
    %v7678 = vsel %vm120, %v7677, %v7592
    %v7679 = vrot.slane %v7592, 4
    %v7680 = vsel %vm120, %v7600, %v7679
    %v7682 = vunpack.c.l.s4 1983009808
    %v7683 = vunpack.c.0.s8 %v7682
    %v7684 = vperm.slane %v7678, %v7683
    %v7686 = vunpack.c.l.s4 1983009808
    %v7687 = vunpack.c.0.s8 %v7686
    %v7688 = vperm.slane %v7680, %v7687
    %v7689 = vrot.slane %v7684, 4
    %v7690 = vsel %vm120, %v7689, %v7672
    %v7691 = vrot.slane %v7672, 4
    %v7692 = vsel %vm120, %v7684, %v7691
    %v7694 = vunpack.c.l.s4 1934713408
    %v7695 = vunpack.c.0.s8 %v7694
    %v7696 = vperm.slane %v7690, %v7695
    %v7698 = vunpack.c.l.s4 1934713408
    %v7699 = vunpack.c.0.s8 %v7698
    %v7700 = vperm.slane %v7692, %v7699
    %v7701 = vrot.slane %v7688, 4
    %v7702 = vsel %vm120, %v7701, %v7676
    %v7703 = vrot.slane %v7676, 4
    %v7704 = vsel %vm120, %v7688, %v7703
    %v7706 = vunpack.c.l.s4 1934713408
    %v7707 = vunpack.c.0.s8 %v7706
    %v7708 = vperm.slane %v7702, %v7707
    %v7710 = vunpack.c.l.s4 1934713408
    %v7711 = vunpack.c.0.s8 %v7710
    %v7712 = vperm.slane %v7704, %v7711
    %v7713 = vrot.slane %v7696, 4
    %v7714 = vsel %vm120, 0.0, %v7713
    %v7715 = vrot.slane %v7700, 4
    %v7716 = vsel %vm120, 0.0, %v7715
    %v7717 = vrot.slane %v7708, 4
    %v7718 = vsel %vm120, 0.0, %v7717
    %v7719 = vrot.slane %v7712, 4
    %v7720 = vsel %vm120, 0.0, %v7719
    %7722 = vrot.lane.b32.xlu0 %v7658, 16
    %v7723 = vpop.permute.xlu0 %7722
    %7726 = vrot.lane.b32.xlu0 %v7644, 32
    %v7727 = vpop.permute.xlu0 %7726
    %7730 = vrot.lane.b32.xlu0 %v7660, 48
    %v7731 = vpop.permute.xlu0 %7730
    %7734 = vrot.lane.b32.xlu0 %v7652, 64
    %v7735 = vpop.permute.xlu0 %7734
    %7738 = vrot.lane.b32.xlu0 %v7662, 80
    %v7739 = vpop.permute.xlu0 %7738
    %7742 = vrot.lane.b32.xlu0 %v7656, 96
    %v7743 = vpop.permute.xlu0 %7742
    %7746 = vrot.lane.b32.xlu0 %v7664, 112
    %v7747 = vpop.permute.xlu0 %7746
    %7750 = vrot.lane.b32.xlu0 %v7714, 16
    %v7751 = vpop.permute.xlu0 %7750
    %7754 = vrot.lane.b32.xlu0 %v7700, 32
    %v7755 = vpop.permute.xlu0 %7754
    %7758 = vrot.lane.b32.xlu0 %v7716, 48
    %v7759 = vpop.permute.xlu0 %7758
    %7762 = vrot.lane.b32.xlu0 %v7708, 64
    %v7763 = vpop.permute.xlu0 %7762
    %7766 = vrot.lane.b32.xlu0 %v7718, 80
    %v7767 = vpop.permute.xlu0 %7766
    %7770 = vrot.lane.b32.xlu0 %v7712, 96
    %v7771 = vpop.permute.xlu0 %7770
    %7774 = vrot.lane.b32.xlu0 %v7720, 112
    %v7775 = vpop.permute.xlu0 %7774
    %v7777 = vsel %vm510, %v7640, %v7723
    %v7778 = vsel %vm512, %v7777, %v7727
    %v7779 = vsel %vm514, %v7778, %v7731
    %v7780 = vsel %vm516, %v7779, %v7735
    %v7781 = vsel %vm518, %v7780, %v7739
    %v7782 = vsel %vm520, %v7781, %v7743
    %v7783 = vsel %vm522, %v7782, %v7747
    %v7784 = vsel %vm510, %v7696, %v7751
    %v7785 = vsel %vm512, %v7784, %v7755
    %v7786 = vsel %vm514, %v7785, %v7759
    %v7787 = vsel %vm516, %v7786, %v7763
    %v7788 = vsel %vm518, %v7787, %v7767
    %v7789 = vsel %vm520, %v7788, %v7771
    %v7790 = vsel %vm522, %v7789, %v7775
    %7791 = vrot.lane.b32.xlu0 %v7377, 126
    %v7792 = vpop.permute.xlu0 %7791
    %7793 = vrot.lane.b32.xlu0 %v7379, 126
    %v7794 = vpop.permute.xlu0 %7793
    %7795 = vrot.lane.b32.xlu0 %v7382, 126
    %v7796 = vpop.permute.xlu0 %7795
    %7797 = vrot.lane.b32.xlu0 %v7384, 126
    %v7798 = vpop.permute.xlu0 %7797
    %7799 = vrot.lane.b32.xlu0 %v7387, 126
    %v7800 = vpop.permute.xlu0 %7799
    %7801 = vrot.lane.b32.xlu0 %v7389, 126
    %v7802 = vpop.permute.xlu0 %7801
    %7803 = vrot.lane.b32.xlu0 %v7392, 126
    %v7804 = vpop.permute.xlu0 %7803
    %7805 = vrot.lane.b32.xlu0 %v7394, 126
    %v7806 = vpop.permute.xlu0 %7805
    %v7815 = vrot.slane %v7800, 4
    %v7816 = vsel %vm120, %v7815, %v7792
    %v7817 = vrot.slane %v7792, 4
    %v7818 = vsel %vm120, %v7800, %v7817
    %v7820 = vunpack.c.l.s4 1983009808
    %v7821 = vunpack.c.0.s8 %v7820
    %v7822 = vperm.slane %v7816, %v7821
    %v7824 = vunpack.c.l.s4 1983009808
    %v7825 = vunpack.c.0.s8 %v7824
    %v7826 = vperm.slane %v7818, %v7825
    %v7827 = vrot.slane %v7804, 4
    %v7828 = vsel %vm120, %v7827, %v7796
    %v7829 = vrot.slane %v7796, 4
    %v7830 = vsel %vm120, %v7804, %v7829
    %v7832 = vunpack.c.l.s4 1983009808
    %v7833 = vunpack.c.0.s8 %v7832
    %v7834 = vperm.slane %v7828, %v7833
    %v7836 = vunpack.c.l.s4 1983009808
    %v7837 = vunpack.c.0.s8 %v7836
    %v7838 = vperm.slane %v7830, %v7837
    %v7839 = vrot.slane %v7834, 4
    %v7840 = vsel %vm120, %v7839, %v7822
    %v7841 = vrot.slane %v7822, 4
    %v7842 = vsel %vm120, %v7834, %v7841
    %v7844 = vunpack.c.l.s4 1934713408
    %v7845 = vunpack.c.0.s8 %v7844
    %v7846 = vperm.slane %v7840, %v7845
    %v7848 = vunpack.c.l.s4 1934713408
    %v7849 = vunpack.c.0.s8 %v7848
    %v7850 = vperm.slane %v7842, %v7849
    %v7851 = vrot.slane %v7838, 4
    %v7852 = vsel %vm120, %v7851, %v7826
    %v7853 = vrot.slane %v7826, 4
    %v7854 = vsel %vm120, %v7838, %v7853
    %v7856 = vunpack.c.l.s4 1934713408
    %v7857 = vunpack.c.0.s8 %v7856
    %v7858 = vperm.slane %v7852, %v7857
    %v7860 = vunpack.c.l.s4 1934713408
    %v7861 = vunpack.c.0.s8 %v7860
    %v7862 = vperm.slane %v7854, %v7861
    %v7863 = vrot.slane %v7846, 4
    %v7864 = vsel %vm120, 0.0, %v7863
    %v7865 = vrot.slane %v7850, 4
    %v7866 = vsel %vm120, 0.0, %v7865
    %v7867 = vrot.slane %v7858, 4
    %v7868 = vsel %vm120, 0.0, %v7867
    %v7869 = vrot.slane %v7862, 4
    %v7870 = vsel %vm120, 0.0, %v7869
    %v7871 = vrot.slane %v7802, 4
    %v7872 = vsel %vm120, %v7871, %v7794
    %v7873 = vrot.slane %v7794, 4
    %v7874 = vsel %vm120, %v7802, %v7873
    %v7876 = vunpack.c.l.s4 1983009808
    %v7877 = vunpack.c.0.s8 %v7876
    %v7878 = vperm.slane %v7872, %v7877
    %v7880 = vunpack.c.l.s4 1983009808
    %v7881 = vunpack.c.0.s8 %v7880
    %v7882 = vperm.slane %v7874, %v7881
    %v7883 = vrot.slane %v7806, 4
    %v7884 = vsel %vm120, %v7883, %v7798
    %v7885 = vrot.slane %v7798, 4
    %v7886 = vsel %vm120, %v7806, %v7885
    %v7888 = vunpack.c.l.s4 1983009808
    %v7889 = vunpack.c.0.s8 %v7888
    %v7890 = vperm.slane %v7884, %v7889
    %v7892 = vunpack.c.l.s4 1983009808
    %v7893 = vunpack.c.0.s8 %v7892
    %v7894 = vperm.slane %v7886, %v7893
    %v7895 = vrot.slane %v7890, 4
    %v7896 = vsel %vm120, %v7895, %v7878
    %v7897 = vrot.slane %v7878, 4
    %v7898 = vsel %vm120, %v7890, %v7897
    %v7900 = vunpack.c.l.s4 1934713408
    %v7901 = vunpack.c.0.s8 %v7900
    %v7902 = vperm.slane %v7896, %v7901
    %v7904 = vunpack.c.l.s4 1934713408
    %v7905 = vunpack.c.0.s8 %v7904
    %v7906 = vperm.slane %v7898, %v7905
    %v7907 = vrot.slane %v7894, 4
    %v7908 = vsel %vm120, %v7907, %v7882
    %v7909 = vrot.slane %v7882, 4
    %v7910 = vsel %vm120, %v7894, %v7909
    %v7912 = vunpack.c.l.s4 1934713408
    %v7913 = vunpack.c.0.s8 %v7912
    %v7914 = vperm.slane %v7908, %v7913
    %v7916 = vunpack.c.l.s4 1934713408
    %v7917 = vunpack.c.0.s8 %v7916
    %v7918 = vperm.slane %v7910, %v7917
    %v7919 = vrot.slane %v7902, 4
    %v7920 = vsel %vm120, 0.0, %v7919
    %v7921 = vrot.slane %v7906, 4
    %v7922 = vsel %vm120, 0.0, %v7921
    %v7923 = vrot.slane %v7914, 4
    %v7924 = vsel %vm120, 0.0, %v7923
    %v7925 = vrot.slane %v7918, 4
    %v7926 = vsel %vm120, 0.0, %v7925
    %7928 = vrot.lane.b32.xlu0 %v7864, 16
    %v7929 = vpop.permute.xlu0 %7928
    %7932 = vrot.lane.b32.xlu0 %v7850, 32
    %v7933 = vpop.permute.xlu0 %7932
    %7936 = vrot.lane.b32.xlu0 %v7866, 48
    %v7937 = vpop.permute.xlu0 %7936
    %7940 = vrot.lane.b32.xlu0 %v7858, 64
    %v7941 = vpop.permute.xlu0 %7940
    %7944 = vrot.lane.b32.xlu0 %v7868, 80
    %v7945 = vpop.permute.xlu0 %7944
    %7948 = vrot.lane.b32.xlu0 %v7862, 96
    %v7949 = vpop.permute.xlu0 %7948
    %7952 = vrot.lane.b32.xlu0 %v7870, 112
    %v7953 = vpop.permute.xlu0 %7952
    %7956 = vrot.lane.b32.xlu0 %v7920, 16
    %v7957 = vpop.permute.xlu0 %7956
    %7960 = vrot.lane.b32.xlu0 %v7906, 32
    %v7961 = vpop.permute.xlu0 %7960
    %7964 = vrot.lane.b32.xlu0 %v7922, 48
    %v7965 = vpop.permute.xlu0 %7964
    %7968 = vrot.lane.b32.xlu0 %v7914, 64
    %v7969 = vpop.permute.xlu0 %7968
    %7972 = vrot.lane.b32.xlu0 %v7924, 80
    %v7973 = vpop.permute.xlu0 %7972
    %7976 = vrot.lane.b32.xlu0 %v7918, 96
    %v7977 = vpop.permute.xlu0 %7976
    %7980 = vrot.lane.b32.xlu0 %v7926, 112
    %v7981 = vpop.permute.xlu0 %7980
    %v7983 = vsel %vm510, %v7846, %v7929
    %v7984 = vsel %vm512, %v7983, %v7933
    %v7985 = vsel %vm514, %v7984, %v7937
    %v7986 = vsel %vm516, %v7985, %v7941
    %v7987 = vsel %vm518, %v7986, %v7945
    %v7988 = vsel %vm520, %v7987, %v7949
    %v7989 = vsel %vm522, %v7988, %v7953
    %v7990 = vsel %vm510, %v7902, %v7957
    %v7991 = vsel %vm512, %v7990, %v7961
    %v7992 = vsel %vm514, %v7991, %v7965
    %v7993 = vsel %vm516, %v7992, %v7969
    %v7994 = vsel %vm518, %v7993, %v7973
    %v7995 = vsel %vm520, %v7994, %v7977
    %v7996 = vsel %vm522, %v7995, %v7981
    %v7999 = vrot.slane %v6535, 4
    %v8000 = vrot.slane %v6542, 4
    %v8005 = vrot.slane %v6955, 4
    %v8006 = vrot.slane %v6962, 4
    %v8011 = vrot.slane %v7367, 4
    %v8012 = vrot.slane %v7374, 4
    %v8017 = vrot.slane %v7783, 4
    %v8018 = vrot.slane %v7790, 4
    %v8021 = vsel %vm2225, %v6321, %v7999
    %v8022 = vsel %vm2225, %v6328, %v8000
    %v8023 = vsel %vm2225, %v6741, %v8005
    %v8024 = vsel %vm2225, %v6748, %v8006
    %v8025 = vsel %vm2225, %v7161, %v8011
    %v8026 = vsel %vm2225, %v7168, %v8012
    %v8027 = vsel %vm2225, %v7577, %v8017
    %v8028 = vsel %vm2225, %v7584, %v8018
    %v8029 = vmax.f32 %v8021, 0.0
    %v8030 = vmax.f32 %v8022, 0.0
    %v8031 = vmax.f32 %v8023, 0.0
    %v8032 = vmax.f32 %v8024, 0.0
    %v8033 = vmax.f32 %v8025, 0.0
    %v8034 = vmax.f32 %v8026, 0.0
    %v8035 = vmax.f32 %v8027, 0.0
    %v8036 = vmax.f32 %v8028, 0.0
    %v8037 = vmax.f32 %v7989, 0.0
    %v8038 = vmax.f32 %v7996, 0.0
    %v8039 = vld [vmem:[%s1] sm:$0xff]
    %v8040 = vld [vmem:[%s2] sm:$0xff]
    %8042 = vset.pattern.permute.xlu0 0
    %8043 = vperm.xlu0 %8042, %v8040
    %v8044 = vpop.permute.xlu0 %8043
    %v8047 = vsel %vm2251, %v8039, 0
    %v8050 = vsel %vm2225, %v8037, 0
    %v8053 = vsel %vm2225, %v8038, 0
    %8055 = vmatpush.msra.mxu0 0.0
    %8056 = vmatpush.msra.mxu0 0.0
    %8057 = vmatpush.msra.mxu0 0.0
    %8058 = vmatpush.msra.mxu0 0.0
    %8059 = vmatpush.msra.mxu0 0.0
    %8060 = vmatpush.msra.mxu0 0.0
    %8061 = vmatpush.msra.mxu0 0.0
    %8062 = vmatpush.msra.mxu0 0.0
    %8063 = vmatpush.msra.mxu0 0.0
    %8064 = vmatpush.msra.mxu0 0.0
    %8065 = vmatpush.msra.mxu0 0.0
    %8066 = vmatpush.msra.mxu0 %v8050
    %8067 = vmatpush.msra.mxu0 %v8035
    %8068 = vmatpush.msra.mxu0 %v8033
    %8069 = vmatpush.msra.mxu0 %v8031
    %8070 = vmatpush.msra.mxu0 %v8029
    %8071 = vmatmul.f32.gmra.mxu0 %v8047
    %v8072 = vpop.f32.mrf.mxu0
    %v8073 = vadd.f32 %v8044, %v8072
    %8074 = vdwg.mxu0
    %8075 = vmatpush.msra.mxu0 0.0
    %8076 = vmatpush.msra.mxu0 0.0
    %8077 = vmatpush.msra.mxu0 0.0
    %8078 = vmatpush.msra.mxu0 0.0
    %8079 = vmatpush.msra.mxu0 0.0
    %8080 = vmatpush.msra.mxu0 0.0
    %8081 = vmatpush.msra.mxu0 0.0
    %8082 = vmatpush.msra.mxu0 0.0
    %8083 = vmatpush.msra.mxu0 0.0
    %8084 = vmatpush.msra.mxu0 0.0
    %8085 = vmatpush.msra.mxu0 0.0
    %8086 = vmatpush.msra.mxu0 %v8053
    %8087 = vmatpush.msra.mxu0 %v8036
    %8088 = vmatpush.msra.mxu0 %v8034
    %8089 = vmatpush.msra.mxu0 %v8032
    %8090 = vmatpush.msra.mxu0 %v8030
    %8091 = vmatmul.f32.gmra.mxu0 %v8047
    %v8092 = vpop.f32.mrf.mxu0
    %v8093 = vadd.f32 %v8044, %v8092
    %8094 = vdwg.mxu0
    %v8095 = vld [vmem:[#allocation7] sm:$0xff]
    %v8096 = vld [vmem:[%s6] sm:$0xff]
    %8098 = vset.pattern.permute.xlu0 0
    %8099 = vperm.xlu0 %8098, %v8096
    %v8100 = vpop.permute.xlu0 %8099
    %v8103 = vsel %vm2251, %v8095, 0
    %v8106 = vsel %vm2225, %v7989, 0
    %v8109 = vsel %vm2225, %v7996, 0
    %8111 = vmatpush.msra.mxu0 0.0
    %8112 = vmatpush.msra.mxu0 0.0
    %8113 = vmatpush.msra.mxu0 0.0
    %8114 = vmatpush.msra.mxu0 0.0
    %8115 = vmatpush.msra.mxu0 0.0
    %8116 = vmatpush.msra.mxu0 0.0
    %8117 = vmatpush.msra.mxu0 0.0
    %8118 = vmatpush.msra.mxu0 0.0
    %8119 = vmatpush.msra.mxu0 0.0
    %8120 = vmatpush.msra.mxu0 0.0
    %8121 = vmatpush.msra.mxu0 0.0
    %8122 = vmatpush.msra.mxu0 %v8106
    %8123 = vmatpush.msra.mxu0 %v8027
    %8124 = vmatpush.msra.mxu0 %v8025
    %8125 = vmatpush.msra.mxu0 %v8023
    %8126 = vmatpush.msra.mxu0 %v8021
    %8127 = vmatmul.f32.gmra.mxu0 %v8103
    %v8128 = vpop.f32.mrf.mxu0
    %v8129 = vadd.f32 %v8100, %v8128
    %8130 = vdwg.mxu0
    %8131 = vmatpush.msra.mxu0 0.0
    %8132 = vmatpush.msra.mxu0 0.0
    %8133 = vmatpush.msra.mxu0 0.0
    %8134 = vmatpush.msra.mxu0 0.0
    %8135 = vmatpush.msra.mxu0 0.0
    %8136 = vmatpush.msra.mxu0 0.0
    %8137 = vmatpush.msra.mxu0 0.0
    %8138 = vmatpush.msra.mxu0 0.0
    %8139 = vmatpush.msra.mxu0 0.0
    %8140 = vmatpush.msra.mxu0 0.0
    %8141 = vmatpush.msra.mxu0 0.0
    %8142 = vmatpush.msra.mxu0 %v8109
    %8143 = vmatpush.msra.mxu0 %v8028
    %8144 = vmatpush.msra.mxu0 %v8026
    %8145 = vmatpush.msra.mxu0 %v8024
    %8146 = vmatpush.msra.mxu0 %v8022
    %8147 = vmatmul.f32.gmra.mxu0 %v8103
    %v8148 = vpop.f32.mrf.mxu0
    %v8149 = vadd.f32 %v8100, %v8148
    %8150 = vdwg.mxu0
    %v8151 = vmax.f32 %v8073, 0.0
    %v8152 = vmax.f32 %v8093, 0.0
    %8154 = vrot.lane.b32.xlu0 %v8151, 112
    %v8155 = vpop.permute.xlu0 %8154
    %8157 = vrot.lane.b32.xlu0 %v8151, 96
    %v8158 = vpop.permute.xlu0 %8157
    %8160 = vrot.lane.b32.xlu0 %v8151, 80
    %v8161 = vpop.permute.xlu0 %8160
    %8163 = vrot.lane.b32.xlu0 %v8151, 64
    %v8164 = vpop.permute.xlu0 %8163
    %8166 = vrot.lane.b32.xlu0 %v8151, 48
    %v8167 = vpop.permute.xlu0 %8166
    %8169 = vrot.lane.b32.xlu0 %v8151, 32
    %v8170 = vpop.permute.xlu0 %8169
    %8172 = vrot.lane.b32.xlu0 %v8151, 16
    %v8173 = vpop.permute.xlu0 %8172
    %8176 = vrot.lane.b32.xlu0 %v8152, 112
    %v8177 = vpop.permute.xlu0 %8176
    %8179 = vrot.lane.b32.xlu0 %v8152, 96
    %v8180 = vpop.permute.xlu0 %8179
    %8182 = vrot.lane.b32.xlu0 %v8152, 80
    %v8183 = vpop.permute.xlu0 %8182
    %8185 = vrot.lane.b32.xlu0 %v8152, 64
    %v8186 = vpop.permute.xlu0 %8185
    %8188 = vrot.lane.b32.xlu0 %v8152, 48
    %v8189 = vpop.permute.xlu0 %8188
    %8191 = vrot.lane.b32.xlu0 %v8152, 32
    %v8192 = vpop.permute.xlu0 %8191
    %8194 = vrot.lane.b32.xlu0 %v8152, 16
    %v8195 = vpop.permute.xlu0 %8194
    %v8197 = vrot.slane %v8158, 4
    %v8198 = vsel %vm120, %v8197, %v8151
    %v8199 = vrot.slane %v8151, 4
    %v8200 = vsel %vm120, %v8158, %v8199
    %v8202 = vunpack.c.l.s4 1983009808
    %v8203 = vunpack.c.0.s8 %v8202
    %v8204 = vperm.slane %v8198, %v8203
    %v8206 = vunpack.c.l.s4 1983009808
    %v8207 = vunpack.c.0.s8 %v8206
    %v8208 = vperm.slane %v8200, %v8207
    %v8209 = vrot.slane %v8161, 4
    %v8210 = vsel %vm120, %v8209, %v8155
    %v8211 = vrot.slane %v8155, 4
    %v8212 = vsel %vm120, %v8161, %v8211
    %v8214 = vunpack.c.l.s4 1983009808
    %v8215 = vunpack.c.0.s8 %v8214
    %v8216 = vperm.slane %v8210, %v8215
    %v8218 = vunpack.c.l.s4 1983009808
    %v8219 = vunpack.c.0.s8 %v8218
    %v8220 = vperm.slane %v8212, %v8219
    %v8221 = vrot.slane %v8170, 4
    %v8222 = vsel %vm120, %v8221, %v8164
    %v8223 = vrot.slane %v8164, 4
    %v8224 = vsel %vm120, %v8170, %v8223
    %v8226 = vunpack.c.l.s4 1983009808
    %v8227 = vunpack.c.0.s8 %v8226
    %v8228 = vperm.slane %v8222, %v8227
    %v8230 = vunpack.c.l.s4 1983009808
    %v8231 = vunpack.c.0.s8 %v8230
    %v8232 = vperm.slane %v8224, %v8231
    %v8233 = vrot.slane %v8173, 4
    %v8234 = vsel %vm120, %v8233, %v8167
    %v8235 = vrot.slane %v8167, 4
    %v8236 = vsel %vm120, %v8173, %v8235
    %v8238 = vunpack.c.l.s4 1983009808
    %v8239 = vunpack.c.0.s8 %v8238
    %v8240 = vperm.slane %v8234, %v8239
    %v8242 = vunpack.c.l.s4 1983009808
    %v8243 = vunpack.c.0.s8 %v8242
    %v8244 = vperm.slane %v8236, %v8243
    %v8245 = vrot.slane %v8216, 4
    %v8246 = vsel %vm120, %v8245, %v8204
    %v8247 = vrot.slane %v8204, 4
    %v8248 = vsel %vm120, %v8216, %v8247
    %v8250 = vunpack.c.l.s4 1934713408
    %v8251 = vunpack.c.0.s8 %v8250
    %v8252 = vperm.slane %v8246, %v8251
    %v8254 = vunpack.c.l.s4 1934713408
    %v8255 = vunpack.c.0.s8 %v8254
    %v8256 = vperm.slane %v8248, %v8255
    %v8257 = vrot.slane %v8220, 4
    %v8258 = vsel %vm120, %v8257, %v8208
    %v8259 = vrot.slane %v8208, 4
    %v8260 = vsel %vm120, %v8220, %v8259
    %v8262 = vunpack.c.l.s4 1934713408
    %v8263 = vunpack.c.0.s8 %v8262
    %v8264 = vperm.slane %v8258, %v8263
    %v8266 = vunpack.c.l.s4 1934713408
    %v8267 = vunpack.c.0.s8 %v8266
    %v8268 = vperm.slane %v8260, %v8267
    %v8269 = vrot.slane %v8240, 4
    %v8270 = vsel %vm120, %v8269, %v8228
    %v8271 = vrot.slane %v8228, 4
    %v8272 = vsel %vm120, %v8240, %v8271
    %v8274 = vunpack.c.l.s4 1934713408
    %v8275 = vunpack.c.0.s8 %v8274
    %v8276 = vperm.slane %v8270, %v8275
    %v8278 = vunpack.c.l.s4 1934713408
    %v8279 = vunpack.c.0.s8 %v8278
    %v8280 = vperm.slane %v8272, %v8279
    %v8281 = vrot.slane %v8244, 4
    %v8282 = vsel %vm120, %v8281, %v8232
    %v8283 = vrot.slane %v8232, 4
    %v8284 = vsel %vm120, %v8244, %v8283
    %v8286 = vunpack.c.l.s4 1934713408
    %v8287 = vunpack.c.0.s8 %v8286
    %v8288 = vperm.slane %v8282, %v8287
    %v8290 = vunpack.c.l.s4 1934713408
    %v8291 = vunpack.c.0.s8 %v8290
    %v8292 = vperm.slane %v8284, %v8291
    %v8293 = vrot.slane %v8276, 4
    %v8294 = vsel %vm120, %v8293, %v8252
    %v8295 = vrot.slane %v8252, 4
    %v8296 = vsel %vm120, %v8276, %v8295
    %v8297 = vrot.slane %v8280, 4
    %v8298 = vsel %vm120, %v8297, %v8256
    %v8299 = vrot.slane %v8256, 4
    %v8300 = vsel %vm120, %v8280, %v8299
    %v8301 = vrot.slane %v8288, 4
    %v8302 = vsel %vm120, %v8301, %v8264
    %v8303 = vrot.slane %v8264, 4
    %v8304 = vsel %vm120, %v8288, %v8303
    %v8305 = vrot.slane %v8292, 4
    %v8306 = vsel %vm120, %v8305, %v8268
    %v8307 = vrot.slane %v8268, 4
    %v8308 = vsel %vm120, %v8292, %v8307
    %v8309 = vrot.slane %v8180, 4
    %v8310 = vsel %vm120, %v8309, %v8152
    %v8311 = vrot.slane %v8152, 4
    %v8312 = vsel %vm120, %v8180, %v8311
    %v8314 = vunpack.c.l.s4 1983009808
    %v8315 = vunpack.c.0.s8 %v8314
    %v8316 = vperm.slane %v8310, %v8315
    %v8318 = vunpack.c.l.s4 1983009808
    %v8319 = vunpack.c.0.s8 %v8318
    %v8320 = vperm.slane %v8312, %v8319
    %v8321 = vrot.slane %v8183, 4
    %v8322 = vsel %vm120, %v8321, %v8177
    %v8323 = vrot.slane %v8177, 4
    %v8324 = vsel %vm120, %v8183, %v8323
    %v8326 = vunpack.c.l.s4 1983009808
    %v8327 = vunpack.c.0.s8 %v8326
    %v8328 = vperm.slane %v8322, %v8327
    %v8330 = vunpack.c.l.s4 1983009808
    %v8331 = vunpack.c.0.s8 %v8330
    %v8332 = vperm.slane %v8324, %v8331
    %v8333 = vrot.slane %v8192, 4
    %v8334 = vsel %vm120, %v8333, %v8186
    %v8335 = vrot.slane %v8186, 4
    %v8336 = vsel %vm120, %v8192, %v8335
    %v8338 = vunpack.c.l.s4 1983009808
    %v8339 = vunpack.c.0.s8 %v8338
    %v8340 = vperm.slane %v8334, %v8339
    %v8342 = vunpack.c.l.s4 1983009808
    %v8343 = vunpack.c.0.s8 %v8342
    %v8344 = vperm.slane %v8336, %v8343
    %v8345 = vrot.slane %v8195, 4
    %v8346 = vsel %vm120, %v8345, %v8189
    %v8347 = vrot.slane %v8189, 4
    %v8348 = vsel %vm120, %v8195, %v8347
    %v8350 = vunpack.c.l.s4 1983009808
    %v8351 = vunpack.c.0.s8 %v8350
    %v8352 = vperm.slane %v8346, %v8351
    %v8354 = vunpack.c.l.s4 1983009808
    %v8355 = vunpack.c.0.s8 %v8354
    %v8356 = vperm.slane %v8348, %v8355
    %v8357 = vrot.slane %v8328, 4
    %v8358 = vsel %vm120, %v8357, %v8316
    %v8359 = vrot.slane %v8316, 4
    %v8360 = vsel %vm120, %v8328, %v8359
    %v8362 = vunpack.c.l.s4 1934713408
    %v8363 = vunpack.c.0.s8 %v8362
    %v8364 = vperm.slane %v8358, %v8363
    %v8366 = vunpack.c.l.s4 1934713408
    %v8367 = vunpack.c.0.s8 %v8366
    %v8368 = vperm.slane %v8360, %v8367
    %v8369 = vrot.slane %v8332, 4
    %v8370 = vsel %vm120, %v8369, %v8320
    %v8371 = vrot.slane %v8320, 4
    %v8372 = vsel %vm120, %v8332, %v8371
    %v8374 = vunpack.c.l.s4 1934713408
    %v8375 = vunpack.c.0.s8 %v8374
    %v8376 = vperm.slane %v8370, %v8375
    %v8378 = vunpack.c.l.s4 1934713408
    %v8379 = vunpack.c.0.s8 %v8378
    %v8380 = vperm.slane %v8372, %v8379
    %v8381 = vrot.slane %v8352, 4
    %v8382 = vsel %vm120, %v8381, %v8340
    %v8383 = vrot.slane %v8340, 4
    %v8384 = vsel %vm120, %v8352, %v8383
    %v8386 = vunpack.c.l.s4 1934713408
    %v8387 = vunpack.c.0.s8 %v8386
    %v8388 = vperm.slane %v8382, %v8387
    %v8390 = vunpack.c.l.s4 1934713408
    %v8391 = vunpack.c.0.s8 %v8390
    %v8392 = vperm.slane %v8384, %v8391
    %v8393 = vrot.slane %v8356, 4
    %v8394 = vsel %vm120, %v8393, %v8344
    %v8395 = vrot.slane %v8344, 4
    %v8396 = vsel %vm120, %v8356, %v8395
    %v8398 = vunpack.c.l.s4 1934713408
    %v8399 = vunpack.c.0.s8 %v8398
    %v8400 = vperm.slane %v8394, %v8399
    %v8402 = vunpack.c.l.s4 1934713408
    %v8403 = vunpack.c.0.s8 %v8402
    %v8404 = vperm.slane %v8396, %v8403
    %v8405 = vrot.slane %v8388, 4
    %v8406 = vsel %vm120, %v8405, %v8364
    %v8407 = vrot.slane %v8364, 4
    %v8408 = vsel %vm120, %v8388, %v8407
    %v8409 = vrot.slane %v8392, 4
    %v8410 = vsel %vm120, %v8409, %v8368
    %v8411 = vrot.slane %v8368, 4
    %v8412 = vsel %vm120, %v8392, %v8411
    %v8413 = vrot.slane %v8400, 4
    %v8414 = vsel %vm120, %v8413, %v8376
    %v8415 = vrot.slane %v8376, 4
    %v8416 = vsel %vm120, %v8400, %v8415
    %v8417 = vrot.slane %v8404, 4
    %v8418 = vsel %vm120, %v8417, %v8380
    %v8419 = vrot.slane %v8380, 4
    %v8420 = vsel %vm120, %v8404, %v8419
    %8437 = vrot.lane.b32.xlu0 %v8294, 1
    %v8438 = vpop.permute.xlu0 %8437
    %8439 = vrot.lane.b32.xlu0 %v8406, 1
    %v8440 = vpop.permute.xlu0 %8439
    %8441 = vrot.lane.b32.xlu0 %v8296, 1
    %v8442 = vpop.permute.xlu0 %8441
    %8443 = vrot.lane.b32.xlu0 %v8408, 1
    %v8444 = vpop.permute.xlu0 %8443
    %8445 = vrot.lane.b32.xlu0 %v8298, 1
    %v8446 = vpop.permute.xlu0 %8445
    %8447 = vrot.lane.b32.xlu0 %v8410, 1
    %v8448 = vpop.permute.xlu0 %8447
    %8449 = vrot.lane.b32.xlu0 %v8300, 1
    %v8450 = vpop.permute.xlu0 %8449
    %8451 = vrot.lane.b32.xlu0 %v8412, 1
    %v8452 = vpop.permute.xlu0 %8451
    %8453 = vrot.lane.b32.xlu0 %v8302, 1
    %v8454 = vpop.permute.xlu0 %8453
    %8455 = vrot.lane.b32.xlu0 %v8414, 1
    %v8456 = vpop.permute.xlu0 %8455
    %8457 = vrot.lane.b32.xlu0 %v8304, 1
    %v8458 = vpop.permute.xlu0 %8457
    %8459 = vrot.lane.b32.xlu0 %v8416, 1
    %v8460 = vpop.permute.xlu0 %8459
    %8461 = vrot.lane.b32.xlu0 %v8306, 1
    %v8462 = vpop.permute.xlu0 %8461
    %8463 = vrot.lane.b32.xlu0 %v8418, 1
    %v8464 = vpop.permute.xlu0 %8463
    %8465 = vrot.lane.b32.xlu0 %v8308, 1
    %v8466 = vpop.permute.xlu0 %8465
    %8467 = vrot.lane.b32.xlu0 %v8420, 1
    %v8468 = vpop.permute.xlu0 %8467
    %v8485 = vsel %vm303, 0.0, %v8438
    %v8486 = vsel %vm303, 0.0, %v8440
    %v8487 = vsel %vm303, 0.0, %v8442
    %v8488 = vsel %vm303, 0.0, %v8444
    %v8489 = vsel %vm303, 0.0, %v8446
    %v8490 = vsel %vm303, 0.0, %v8448
    %v8491 = vsel %vm303, 0.0, %v8450
    %v8492 = vsel %vm303, 0.0, %v8452
    %v8493 = vsel %vm303, 0.0, %v8454
    %v8494 = vsel %vm303, 0.0, %v8456
    %v8495 = vsel %vm303, 0.0, %v8458
    %v8496 = vsel %vm303, 0.0, %v8460
    %v8497 = vsel %vm303, 0.0, %v8462
    %v8498 = vsel %vm303, 0.0, %v8464
    %v8499 = vsel %vm303, 0.0, %v8466
    %v8500 = vsel %vm303, 0.0, %v8468
    %v8501 = vsel %vm312, %v8485, 0.0
    %v8502 = vsel %vm312, %v8486, 0.0
    %v8503 = vsel %vm312, %v8487, 0.0
    %v8504 = vsel %vm312, %v8488, 0.0
    %v8505 = vsel %vm312, %v8489, 0.0
    %v8506 = vsel %vm312, %v8490, 0.0
    %v8507 = vsel %vm312, %v8491, 0.0
    %v8508 = vsel %vm312, %v8492, 0.0
    %v8509 = vsel %vm312, %v8493, 0.0
    %v8510 = vsel %vm312, %v8494, 0.0
    %v8511 = vsel %vm312, %v8495, 0.0
    %v8512 = vsel %vm312, %v8496, 0.0
    %v8513 = vsel %vm312, %v8497, 0.0
    %v8514 = vsel %vm312, %v8498, 0.0
    %v8515 = vsel %vm312, %v8499, 0.0
    %v8516 = vsel %vm312, %v8500, 0.0
    %8517 = vst.msk [vmem:[#allocation3 + $0x1] sm:$0xff] %vm321, %v8501
    %8518 = vst.msk [vmem:[#allocation3 + $0x9] sm:$0xff] %vm321, %v8502
    %8519 = vst.msk [vmem:[#allocation3 + $0x19] sm:$0xff] %vm321, %v8503
    %8520 = vst.msk [vmem:[#allocation3 + $0x21] sm:$0xff] %vm321, %v8504
    %8521 = vst.msk [vmem:[#allocation3 + $0x31] sm:$0xff] %vm321, %v8505
    %8522 = vst.msk [vmem:[#allocation3 + $0x39] sm:$0xff] %vm321, %v8506
    %8523 = vst.msk [vmem:[#allocation3 + $0x49] sm:$0xff] %vm321, %v8507
    %8524 = vst.msk [vmem:[#allocation3 + $0x51] sm:$0xff] %vm321, %v8508
    %8525 = vst.msk [vmem:[#allocation3 + $0x61] sm:$0xff] %vm321, %v8509
    %8526 = vst.msk [vmem:[#allocation3 + $0x69] sm:$0xff] %vm321, %v8510
    %8527 = vst.msk [vmem:[#allocation3 + $0x79] sm:$0xff] %vm321, %v8511
    %8528 = vst.msk [vmem:[#allocation3 + $0x81] sm:$0xff] %vm321, %v8512
    %8529 = vst.msk [vmem:[#allocation3 + $0x91] sm:$0xff] %vm321, %v8513
    %8530 = vst.msk [vmem:[#allocation3 + $0x99] sm:$0xff] %vm321, %v8514
    %8531 = vst.msk [vmem:[#allocation3 + $0xa9] sm:$0xff] %vm321, %v8515
    %8532 = vst.msk [vmem:[#allocation3 + $0xb1] sm:$0xff] %vm321, %v8516
    %v8533 = vld [vmem:[#allocation3] sm:$0xff]
    %v8534 = vld [vmem:[#allocation3 + $0x8] sm:$0xff]
    %v8535 = vld [vmem:[#allocation3 + $0x10] sm:$0x3]
    %v8536 = vld [vmem:[#allocation3 + $0x18] sm:$0xff]
    %v8537 = vld [vmem:[#allocation3 + $0x20] sm:$0xff]
    %v8538 = vld [vmem:[#allocation3 + $0x28] sm:$0x3]
    %v8539 = vld [vmem:[#allocation3 + $0x30] sm:$0xff]
    %v8540 = vld [vmem:[#allocation3 + $0x38] sm:$0xff]
    %v8541 = vld [vmem:[#allocation3 + $0x40] sm:$0x3]
    %v8542 = vld [vmem:[#allocation3 + $0x48] sm:$0xff]
    %v8543 = vld [vmem:[#allocation3 + $0x50] sm:$0xff]
    %v8544 = vld [vmem:[#allocation3 + $0x58] sm:$0x3]
    %v8545 = vld [vmem:[#allocation3 + $0x60] sm:$0xff]
    %v8546 = vld [vmem:[#allocation3 + $0x68] sm:$0xff]
    %v8547 = vld [vmem:[#allocation3 + $0x70] sm:$0x3]
    %v8548 = vld [vmem:[#allocation3 + $0x78] sm:$0xff]
    %v8549 = vld [vmem:[#allocation3 + $0x80] sm:$0xff]
    %v8550 = vld [vmem:[#allocation3 + $0x88] sm:$0x3]
    %v8551 = vld [vmem:[#allocation3 + $0x90] sm:$0xff]
    %v8552 = vld [vmem:[#allocation3 + $0x98] sm:$0xff]
    %v8553 = vld [vmem:[#allocation3 + $0xa0] sm:$0x3]
    %v8554 = vld [vmem:[#allocation3 + $0xa8] sm:$0xff]
    %v8555 = vld [vmem:[#allocation3 + $0xb0] sm:$0xff]
    %v8556 = vld [vmem:[#allocation3 + $0xb8] sm:$0x3]
    %v8557 = vrot.slane %v8539, 4
    %v8558 = vsel %vm120, %v8557, %v8533
    %v8559 = vrot.slane %v8533, 4
    %v8560 = vsel %vm120, %v8539, %v8559
    %v8562 = vunpack.c.l.s4 1983009808
    %v8563 = vunpack.c.0.s8 %v8562
    %v8564 = vperm.slane %v8558, %v8563
    %v8566 = vunpack.c.l.s4 1983009808
    %v8567 = vunpack.c.0.s8 %v8566
    %v8568 = vperm.slane %v8560, %v8567
    %v8569 = vrot.slane %v8542, 4
    %v8570 = vsel %vm120, %v8569, %v8536
    %v8571 = vrot.slane %v8536, 4
    %v8572 = vsel %vm120, %v8542, %v8571
    %v8574 = vunpack.c.l.s4 1983009808
    %v8575 = vunpack.c.0.s8 %v8574
    %v8576 = vperm.slane %v8570, %v8575
    %v8578 = vunpack.c.l.s4 1983009808
    %v8579 = vunpack.c.0.s8 %v8578
    %v8580 = vperm.slane %v8572, %v8579
    %v8581 = vrot.slane %v8551, 4
    %v8582 = vsel %vm120, %v8581, %v8545
    %v8583 = vrot.slane %v8545, 4
    %v8584 = vsel %vm120, %v8551, %v8583
    %v8586 = vunpack.c.l.s4 1983009808
    %v8587 = vunpack.c.0.s8 %v8586
    %v8588 = vperm.slane %v8582, %v8587
    %v8590 = vunpack.c.l.s4 1983009808
    %v8591 = vunpack.c.0.s8 %v8590
    %v8592 = vperm.slane %v8584, %v8591
    %v8593 = vrot.slane %v8554, 4
    %v8594 = vsel %vm120, %v8593, %v8548
    %v8595 = vrot.slane %v8548, 4
    %v8596 = vsel %vm120, %v8554, %v8595
    %v8598 = vunpack.c.l.s4 1983009808
    %v8599 = vunpack.c.0.s8 %v8598
    %v8600 = vperm.slane %v8594, %v8599
    %v8602 = vunpack.c.l.s4 1983009808
    %v8603 = vunpack.c.0.s8 %v8602
    %v8604 = vperm.slane %v8596, %v8603
    %v8605 = vrot.slane %v8576, 4
    %v8606 = vsel %vm120, %v8605, %v8564
    %v8607 = vrot.slane %v8564, 4
    %v8608 = vsel %vm120, %v8576, %v8607
    %v8610 = vunpack.c.l.s4 1934713408
    %v8611 = vunpack.c.0.s8 %v8610
    %v8612 = vperm.slane %v8606, %v8611
    %v8614 = vunpack.c.l.s4 1934713408
    %v8615 = vunpack.c.0.s8 %v8614
    %v8616 = vperm.slane %v8608, %v8615
    %v8617 = vrot.slane %v8580, 4
    %v8618 = vsel %vm120, %v8617, %v8568
    %v8619 = vrot.slane %v8568, 4
    %v8620 = vsel %vm120, %v8580, %v8619
    %v8622 = vunpack.c.l.s4 1934713408
    %v8623 = vunpack.c.0.s8 %v8622
    %v8624 = vperm.slane %v8618, %v8623
    %v8626 = vunpack.c.l.s4 1934713408
    %v8627 = vunpack.c.0.s8 %v8626
    %v8628 = vperm.slane %v8620, %v8627
    %v8629 = vrot.slane %v8600, 4
    %v8630 = vsel %vm120, %v8629, %v8588
    %v8631 = vrot.slane %v8588, 4
    %v8632 = vsel %vm120, %v8600, %v8631
    %v8634 = vunpack.c.l.s4 1934713408
    %v8635 = vunpack.c.0.s8 %v8634
    %v8636 = vperm.slane %v8630, %v8635
    %v8638 = vunpack.c.l.s4 1934713408
    %v8639 = vunpack.c.0.s8 %v8638
    %v8640 = vperm.slane %v8632, %v8639
    %v8641 = vrot.slane %v8604, 4
    %v8642 = vsel %vm120, %v8641, %v8592
    %v8643 = vrot.slane %v8592, 4
    %v8644 = vsel %vm120, %v8604, %v8643
    %v8646 = vunpack.c.l.s4 1934713408
    %v8647 = vunpack.c.0.s8 %v8646
    %v8648 = vperm.slane %v8642, %v8647
    %v8650 = vunpack.c.l.s4 1934713408
    %v8651 = vunpack.c.0.s8 %v8650
    %v8652 = vperm.slane %v8644, %v8651
    %v8653 = vrot.slane %v8636, 4
    %v8654 = vsel %vm120, %v8653, %v8612
    %v8655 = vrot.slane %v8612, 4
    %v8656 = vsel %vm120, %v8636, %v8655
    %v8657 = vrot.slane %v8640, 4
    %v8658 = vsel %vm120, %v8657, %v8616
    %v8659 = vrot.slane %v8616, 4
    %v8660 = vsel %vm120, %v8640, %v8659
    %v8661 = vrot.slane %v8648, 4
    %v8662 = vsel %vm120, %v8661, %v8624
    %v8663 = vrot.slane %v8624, 4
    %v8664 = vsel %vm120, %v8648, %v8663
    %v8665 = vrot.slane %v8652, 4
    %v8666 = vsel %vm120, %v8665, %v8628
    %v8667 = vrot.slane %v8628, 4
    %v8668 = vsel %vm120, %v8652, %v8667
    %v8669 = vrot.slane %v8540, 4
    %v8670 = vsel %vm120, %v8669, %v8534
    %v8671 = vrot.slane %v8534, 4
    %v8672 = vsel %vm120, %v8540, %v8671
    %v8674 = vunpack.c.l.s4 1983009808
    %v8675 = vunpack.c.0.s8 %v8674
    %v8676 = vperm.slane %v8670, %v8675
    %v8678 = vunpack.c.l.s4 1983009808
    %v8679 = vunpack.c.0.s8 %v8678
    %v8680 = vperm.slane %v8672, %v8679
    %v8681 = vrot.slane %v8543, 4
    %v8682 = vsel %vm120, %v8681, %v8537
    %v8683 = vrot.slane %v8537, 4
    %v8684 = vsel %vm120, %v8543, %v8683
    %v8686 = vunpack.c.l.s4 1983009808
    %v8687 = vunpack.c.0.s8 %v8686
    %v8688 = vperm.slane %v8682, %v8687
    %v8690 = vunpack.c.l.s4 1983009808
    %v8691 = vunpack.c.0.s8 %v8690
    %v8692 = vperm.slane %v8684, %v8691
    %v8693 = vrot.slane %v8552, 4
    %v8694 = vsel %vm120, %v8693, %v8546
    %v8695 = vrot.slane %v8546, 4
    %v8696 = vsel %vm120, %v8552, %v8695
    %v8698 = vunpack.c.l.s4 1983009808
    %v8699 = vunpack.c.0.s8 %v8698
    %v8700 = vperm.slane %v8694, %v8699
    %v8702 = vunpack.c.l.s4 1983009808
    %v8703 = vunpack.c.0.s8 %v8702
    %v8704 = vperm.slane %v8696, %v8703
    %v8705 = vrot.slane %v8555, 4
    %v8706 = vsel %vm120, %v8705, %v8549
    %v8707 = vrot.slane %v8549, 4
    %v8708 = vsel %vm120, %v8555, %v8707
    %v8710 = vunpack.c.l.s4 1983009808
    %v8711 = vunpack.c.0.s8 %v8710
    %v8712 = vperm.slane %v8706, %v8711
    %v8714 = vunpack.c.l.s4 1983009808
    %v8715 = vunpack.c.0.s8 %v8714
    %v8716 = vperm.slane %v8708, %v8715
    %v8717 = vrot.slane %v8688, 4
    %v8718 = vsel %vm120, %v8717, %v8676
    %v8719 = vrot.slane %v8676, 4
    %v8720 = vsel %vm120, %v8688, %v8719
    %v8722 = vunpack.c.l.s4 1934713408
    %v8723 = vunpack.c.0.s8 %v8722
    %v8724 = vperm.slane %v8718, %v8723
    %v8726 = vunpack.c.l.s4 1934713408
    %v8727 = vunpack.c.0.s8 %v8726
    %v8728 = vperm.slane %v8720, %v8727
    %v8729 = vrot.slane %v8692, 4
    %v8730 = vsel %vm120, %v8729, %v8680
    %v8731 = vrot.slane %v8680, 4
    %v8732 = vsel %vm120, %v8692, %v8731
    %v8734 = vunpack.c.l.s4 1934713408
    %v8735 = vunpack.c.0.s8 %v8734
    %v8736 = vperm.slane %v8730, %v8735
    %v8738 = vunpack.c.l.s4 1934713408
    %v8739 = vunpack.c.0.s8 %v8738
    %v8740 = vperm.slane %v8732, %v8739
    %v8741 = vrot.slane %v8712, 4
    %v8742 = vsel %vm120, %v8741, %v8700
    %v8743 = vrot.slane %v8700, 4
    %v8744 = vsel %vm120, %v8712, %v8743
    %v8746 = vunpack.c.l.s4 1934713408
    %v8747 = vunpack.c.0.s8 %v8746
    %v8748 = vperm.slane %v8742, %v8747
    %v8750 = vunpack.c.l.s4 1934713408
    %v8751 = vunpack.c.0.s8 %v8750
    %v8752 = vperm.slane %v8744, %v8751
    %v8753 = vrot.slane %v8716, 4
    %v8754 = vsel %vm120, %v8753, %v8704
    %v8755 = vrot.slane %v8704, 4
    %v8756 = vsel %vm120, %v8716, %v8755
    %v8758 = vunpack.c.l.s4 1934713408
    %v8759 = vunpack.c.0.s8 %v8758
    %v8760 = vperm.slane %v8754, %v8759
    %v8762 = vunpack.c.l.s4 1934713408
    %v8763 = vunpack.c.0.s8 %v8762
    %v8764 = vperm.slane %v8756, %v8763
    %v8765 = vrot.slane %v8748, 4
    %v8766 = vsel %vm120, %v8765, %v8724
    %v8767 = vrot.slane %v8724, 4
    %v8768 = vsel %vm120, %v8748, %v8767
    %v8769 = vrot.slane %v8752, 4
    %v8770 = vsel %vm120, %v8769, %v8728
    %v8771 = vrot.slane %v8728, 4
    %v8772 = vsel %vm120, %v8752, %v8771
    %v8773 = vrot.slane %v8760, 4
    %v8774 = vsel %vm120, %v8773, %v8736
    %v8775 = vrot.slane %v8736, 4
    %v8776 = vsel %vm120, %v8760, %v8775
    %v8777 = vrot.slane %v8764, 4
    %v8778 = vsel %vm120, %v8777, %v8740
    %v8779 = vrot.slane %v8740, 4
    %v8780 = vsel %vm120, %v8764, %v8779
    %8782 = vrot.lane.b32.xlu0 %v8656, 16
    %v8783 = vpop.permute.xlu0 %8782
    %8786 = vrot.lane.b32.xlu0 %v8658, 32
    %v8787 = vpop.permute.xlu0 %8786
    %8790 = vrot.lane.b32.xlu0 %v8660, 48
    %v8791 = vpop.permute.xlu0 %8790
    %8794 = vrot.lane.b32.xlu0 %v8662, 64
    %v8795 = vpop.permute.xlu0 %8794
    %8798 = vrot.lane.b32.xlu0 %v8664, 80
    %v8799 = vpop.permute.xlu0 %8798
    %8802 = vrot.lane.b32.xlu0 %v8666, 96
    %v8803 = vpop.permute.xlu0 %8802
    %8806 = vrot.lane.b32.xlu0 %v8668, 112
    %v8807 = vpop.permute.xlu0 %8806
    %8810 = vrot.lane.b32.xlu0 %v8768, 16
    %v8811 = vpop.permute.xlu0 %8810
    %8814 = vrot.lane.b32.xlu0 %v8770, 32
    %v8815 = vpop.permute.xlu0 %8814
    %8818 = vrot.lane.b32.xlu0 %v8772, 48
    %v8819 = vpop.permute.xlu0 %8818
    %8822 = vrot.lane.b32.xlu0 %v8774, 64
    %v8823 = vpop.permute.xlu0 %8822
    %8826 = vrot.lane.b32.xlu0 %v8776, 80
    %v8827 = vpop.permute.xlu0 %8826
    %8830 = vrot.lane.b32.xlu0 %v8778, 96
    %v8831 = vpop.permute.xlu0 %8830
    %8834 = vrot.lane.b32.xlu0 %v8780, 112
    %v8835 = vpop.permute.xlu0 %8834
    %v8837 = vsel %vm510, %v8654, %v8783
    %v8838 = vsel %vm512, %v8837, %v8787
    %v8839 = vsel %vm514, %v8838, %v8791
    %v8840 = vsel %vm516, %v8839, %v8795
    %v8841 = vsel %vm518, %v8840, %v8799
    %v8842 = vsel %vm520, %v8841, %v8803
    %v8843 = vsel %vm522, %v8842, %v8807
    %v8844 = vsel %vm510, %v8766, %v8811
    %v8845 = vsel %vm512, %v8844, %v8815
    %v8846 = vsel %vm514, %v8845, %v8819
    %v8847 = vsel %vm516, %v8846, %v8823
    %v8848 = vsel %vm518, %v8847, %v8827
    %v8849 = vsel %vm520, %v8848, %v8831
    %v8850 = vsel %vm522, %v8849, %v8835
    %8867 = vrot.lane.b32.xlu0 %v8533, 127
    %v8868 = vpop.permute.xlu0 %8867
    %8869 = vrot.lane.b32.xlu0 %v8534, 127
    %v8870 = vpop.permute.xlu0 %8869
    %8871 = vrot.lane.b32.xlu0 %v8536, 127
    %v8872 = vpop.permute.xlu0 %8871
    %8873 = vrot.lane.b32.xlu0 %v8537, 127
    %v8874 = vpop.permute.xlu0 %8873
    %8875 = vrot.lane.b32.xlu0 %v8539, 127
    %v8876 = vpop.permute.xlu0 %8875
    %8877 = vrot.lane.b32.xlu0 %v8540, 127
    %v8878 = vpop.permute.xlu0 %8877
    %8879 = vrot.lane.b32.xlu0 %v8542, 127
    %v8880 = vpop.permute.xlu0 %8879
    %8881 = vrot.lane.b32.xlu0 %v8543, 127
    %v8882 = vpop.permute.xlu0 %8881
    %8883 = vrot.lane.b32.xlu0 %v8545, 127
    %v8884 = vpop.permute.xlu0 %8883
    %8885 = vrot.lane.b32.xlu0 %v8546, 127
    %v8886 = vpop.permute.xlu0 %8885
    %8887 = vrot.lane.b32.xlu0 %v8548, 127
    %v8888 = vpop.permute.xlu0 %8887
    %8889 = vrot.lane.b32.xlu0 %v8549, 127
    %v8890 = vpop.permute.xlu0 %8889
    %8891 = vrot.lane.b32.xlu0 %v8551, 127
    %v8892 = vpop.permute.xlu0 %8891
    %8893 = vrot.lane.b32.xlu0 %v8552, 127
    %v8894 = vpop.permute.xlu0 %8893
    %8895 = vrot.lane.b32.xlu0 %v8554, 127
    %v8896 = vpop.permute.xlu0 %8895
    %8897 = vrot.lane.b32.xlu0 %v8555, 127
    %v8898 = vpop.permute.xlu0 %8897
    %v8915 = vrot.slane %v8876, 4
    %v8916 = vsel %vm120, %v8915, %v8868
    %v8917 = vrot.slane %v8868, 4
    %v8918 = vsel %vm120, %v8876, %v8917
    %v8920 = vunpack.c.l.s4 1983009808
    %v8921 = vunpack.c.0.s8 %v8920
    %v8922 = vperm.slane %v8916, %v8921
    %v8924 = vunpack.c.l.s4 1983009808
    %v8925 = vunpack.c.0.s8 %v8924
    %v8926 = vperm.slane %v8918, %v8925
    %v8927 = vrot.slane %v8880, 4
    %v8928 = vsel %vm120, %v8927, %v8872
    %v8929 = vrot.slane %v8872, 4
    %v8930 = vsel %vm120, %v8880, %v8929
    %v8932 = vunpack.c.l.s4 1983009808
    %v8933 = vunpack.c.0.s8 %v8932
    %v8934 = vperm.slane %v8928, %v8933
    %v8936 = vunpack.c.l.s4 1983009808
    %v8937 = vunpack.c.0.s8 %v8936
    %v8938 = vperm.slane %v8930, %v8937
    %v8939 = vrot.slane %v8892, 4
    %v8940 = vsel %vm120, %v8939, %v8884
    %v8941 = vrot.slane %v8884, 4
    %v8942 = vsel %vm120, %v8892, %v8941
    %v8944 = vunpack.c.l.s4 1983009808
    %v8945 = vunpack.c.0.s8 %v8944
    %v8946 = vperm.slane %v8940, %v8945
    %v8948 = vunpack.c.l.s4 1983009808
    %v8949 = vunpack.c.0.s8 %v8948
    %v8950 = vperm.slane %v8942, %v8949
    %v8951 = vrot.slane %v8896, 4
    %v8952 = vsel %vm120, %v8951, %v8888
    %v8953 = vrot.slane %v8888, 4
    %v8954 = vsel %vm120, %v8896, %v8953
    %v8956 = vunpack.c.l.s4 1983009808
    %v8957 = vunpack.c.0.s8 %v8956
    %v8958 = vperm.slane %v8952, %v8957
    %v8960 = vunpack.c.l.s4 1983009808
    %v8961 = vunpack.c.0.s8 %v8960
    %v8962 = vperm.slane %v8954, %v8961
    %v8963 = vrot.slane %v8934, 4
    %v8964 = vsel %vm120, %v8963, %v8922
    %v8965 = vrot.slane %v8922, 4
    %v8966 = vsel %vm120, %v8934, %v8965
    %v8968 = vunpack.c.l.s4 1934713408
    %v8969 = vunpack.c.0.s8 %v8968
    %v8970 = vperm.slane %v8964, %v8969
    %v8972 = vunpack.c.l.s4 1934713408
    %v8973 = vunpack.c.0.s8 %v8972
    %v8974 = vperm.slane %v8966, %v8973
    %v8975 = vrot.slane %v8938, 4
    %v8976 = vsel %vm120, %v8975, %v8926
    %v8977 = vrot.slane %v8926, 4
    %v8978 = vsel %vm120, %v8938, %v8977
    %v8980 = vunpack.c.l.s4 1934713408
    %v8981 = vunpack.c.0.s8 %v8980
    %v8982 = vperm.slane %v8976, %v8981
    %v8984 = vunpack.c.l.s4 1934713408
    %v8985 = vunpack.c.0.s8 %v8984
    %v8986 = vperm.slane %v8978, %v8985
    %v8987 = vrot.slane %v8958, 4
    %v8988 = vsel %vm120, %v8987, %v8946
    %v8989 = vrot.slane %v8946, 4
    %v8990 = vsel %vm120, %v8958, %v8989
    %v8992 = vunpack.c.l.s4 1934713408
    %v8993 = vunpack.c.0.s8 %v8992
    %v8994 = vperm.slane %v8988, %v8993
    %v8996 = vunpack.c.l.s4 1934713408
    %v8997 = vunpack.c.0.s8 %v8996
    %v8998 = vperm.slane %v8990, %v8997
    %v8999 = vrot.slane %v8962, 4
    %v9000 = vsel %vm120, %v8999, %v8950
    %v9001 = vrot.slane %v8950, 4
    %v9002 = vsel %vm120, %v8962, %v9001
    %v9004 = vunpack.c.l.s4 1934713408
    %v9005 = vunpack.c.0.s8 %v9004
    %v9006 = vperm.slane %v9000, %v9005
    %v9008 = vunpack.c.l.s4 1934713408
    %v9009 = vunpack.c.0.s8 %v9008
    %v9010 = vperm.slane %v9002, %v9009
    %v9011 = vrot.slane %v8994, 4
    %v9012 = vsel %vm120, %v9011, %v8970
    %v9013 = vrot.slane %v8970, 4
    %v9014 = vsel %vm120, %v8994, %v9013
    %v9015 = vrot.slane %v8998, 4
    %v9016 = vsel %vm120, %v9015, %v8974
    %v9017 = vrot.slane %v8974, 4
    %v9018 = vsel %vm120, %v8998, %v9017
    %v9019 = vrot.slane %v9006, 4
    %v9020 = vsel %vm120, %v9019, %v8982
    %v9021 = vrot.slane %v8982, 4
    %v9022 = vsel %vm120, %v9006, %v9021
    %v9023 = vrot.slane %v9010, 4
    %v9024 = vsel %vm120, %v9023, %v8986
    %v9025 = vrot.slane %v8986, 4
    %v9026 = vsel %vm120, %v9010, %v9025
    %v9027 = vrot.slane %v8878, 4
    %v9028 = vsel %vm120, %v9027, %v8870
    %v9029 = vrot.slane %v8870, 4
    %v9030 = vsel %vm120, %v8878, %v9029
    %v9032 = vunpack.c.l.s4 1983009808
    %v9033 = vunpack.c.0.s8 %v9032
    %v9034 = vperm.slane %v9028, %v9033
    %v9036 = vunpack.c.l.s4 1983009808
    %v9037 = vunpack.c.0.s8 %v9036
    %v9038 = vperm.slane %v9030, %v9037
    %v9039 = vrot.slane %v8882, 4
    %v9040 = vsel %vm120, %v9039, %v8874
    %v9041 = vrot.slane %v8874, 4
    %v9042 = vsel %vm120, %v8882, %v9041
    %v9044 = vunpack.c.l.s4 1983009808
    %v9045 = vunpack.c.0.s8 %v9044
    %v9046 = vperm.slane %v9040, %v9045
    %v9048 = vunpack.c.l.s4 1983009808
    %v9049 = vunpack.c.0.s8 %v9048
    %v9050 = vperm.slane %v9042, %v9049
    %v9051 = vrot.slane %v8894, 4
    %v9052 = vsel %vm120, %v9051, %v8886
    %v9053 = vrot.slane %v8886, 4
    %v9054 = vsel %vm120, %v8894, %v9053
    %v9056 = vunpack.c.l.s4 1983009808
    %v9057 = vunpack.c.0.s8 %v9056
    %v9058 = vperm.slane %v9052, %v9057
    %v9060 = vunpack.c.l.s4 1983009808
    %v9061 = vunpack.c.0.s8 %v9060
    %v9062 = vperm.slane %v9054, %v9061
    %v9063 = vrot.slane %v8898, 4
    %v9064 = vsel %vm120, %v9063, %v8890
    %v9065 = vrot.slane %v8890, 4
    %v9066 = vsel %vm120, %v8898, %v9065
    %v9068 = vunpack.c.l.s4 1983009808
    %v9069 = vunpack.c.0.s8 %v9068
    %v9070 = vperm.slane %v9064, %v9069
    %v9072 = vunpack.c.l.s4 1983009808
    %v9073 = vunpack.c.0.s8 %v9072
    %v9074 = vperm.slane %v9066, %v9073
    %v9075 = vrot.slane %v9046, 4
    %v9076 = vsel %vm120, %v9075, %v9034
    %v9077 = vrot.slane %v9034, 4
    %v9078 = vsel %vm120, %v9046, %v9077
    %v9080 = vunpack.c.l.s4 1934713408
    %v9081 = vunpack.c.0.s8 %v9080
    %v9082 = vperm.slane %v9076, %v9081
    %v9084 = vunpack.c.l.s4 1934713408
    %v9085 = vunpack.c.0.s8 %v9084
    %v9086 = vperm.slane %v9078, %v9085
    %v9087 = vrot.slane %v9050, 4
    %v9088 = vsel %vm120, %v9087, %v9038
    %v9089 = vrot.slane %v9038, 4
    %v9090 = vsel %vm120, %v9050, %v9089
    %v9092 = vunpack.c.l.s4 1934713408
    %v9093 = vunpack.c.0.s8 %v9092
    %v9094 = vperm.slane %v9088, %v9093
    %v9096 = vunpack.c.l.s4 1934713408
    %v9097 = vunpack.c.0.s8 %v9096
    %v9098 = vperm.slane %v9090, %v9097
    %v9099 = vrot.slane %v9070, 4
    %v9100 = vsel %vm120, %v9099, %v9058
    %v9101 = vrot.slane %v9058, 4
    %v9102 = vsel %vm120, %v9070, %v9101
    %v9104 = vunpack.c.l.s4 1934713408
    %v9105 = vunpack.c.0.s8 %v9104
    %v9106 = vperm.slane %v9100, %v9105
    %v9108 = vunpack.c.l.s4 1934713408
    %v9109 = vunpack.c.0.s8 %v9108
    %v9110 = vperm.slane %v9102, %v9109
    %v9111 = vrot.slane %v9074, 4
    %v9112 = vsel %vm120, %v9111, %v9062
    %v9113 = vrot.slane %v9062, 4
    %v9114 = vsel %vm120, %v9074, %v9113
    %v9116 = vunpack.c.l.s4 1934713408
    %v9117 = vunpack.c.0.s8 %v9116
    %v9118 = vperm.slane %v9112, %v9117
    %v9120 = vunpack.c.l.s4 1934713408
    %v9121 = vunpack.c.0.s8 %v9120
    %v9122 = vperm.slane %v9114, %v9121
    %v9123 = vrot.slane %v9106, 4
    %v9124 = vsel %vm120, %v9123, %v9082
    %v9125 = vrot.slane %v9082, 4
    %v9126 = vsel %vm120, %v9106, %v9125
    %v9127 = vrot.slane %v9110, 4
    %v9128 = vsel %vm120, %v9127, %v9086
    %v9129 = vrot.slane %v9086, 4
    %v9130 = vsel %vm120, %v9110, %v9129
    %v9131 = vrot.slane %v9118, 4
    %v9132 = vsel %vm120, %v9131, %v9094
    %v9133 = vrot.slane %v9094, 4
    %v9134 = vsel %vm120, %v9118, %v9133
    %v9135 = vrot.slane %v9122, 4
    %v9136 = vsel %vm120, %v9135, %v9098
    %v9137 = vrot.slane %v9098, 4
    %v9138 = vsel %vm120, %v9122, %v9137
    %9140 = vrot.lane.b32.xlu0 %v9014, 16
    %v9141 = vpop.permute.xlu0 %9140
    %9144 = vrot.lane.b32.xlu0 %v9016, 32
    %v9145 = vpop.permute.xlu0 %9144
    %9148 = vrot.lane.b32.xlu0 %v9018, 48
    %v9149 = vpop.permute.xlu0 %9148
    %9152 = vrot.lane.b32.xlu0 %v9020, 64
    %v9153 = vpop.permute.xlu0 %9152
    %9156 = vrot.lane.b32.xlu0 %v9022, 80
    %v9157 = vpop.permute.xlu0 %9156
    %9160 = vrot.lane.b32.xlu0 %v9024, 96
    %v9161 = vpop.permute.xlu0 %9160
    %9164 = vrot.lane.b32.xlu0 %v9026, 112
    %v9165 = vpop.permute.xlu0 %9164
    %9168 = vrot.lane.b32.xlu0 %v9126, 16
    %v9169 = vpop.permute.xlu0 %9168
    %9172 = vrot.lane.b32.xlu0 %v9128, 32
    %v9173 = vpop.permute.xlu0 %9172
    %9176 = vrot.lane.b32.xlu0 %v9130, 48
    %v9177 = vpop.permute.xlu0 %9176
    %9180 = vrot.lane.b32.xlu0 %v9132, 64
    %v9181 = vpop.permute.xlu0 %9180
    %9184 = vrot.lane.b32.xlu0 %v9134, 80
    %v9185 = vpop.permute.xlu0 %9184
    %9188 = vrot.lane.b32.xlu0 %v9136, 96
    %v9189 = vpop.permute.xlu0 %9188
    %9192 = vrot.lane.b32.xlu0 %v9138, 112
    %v9193 = vpop.permute.xlu0 %9192
    %v9195 = vsel %vm510, %v9012, %v9141
    %v9196 = vsel %vm512, %v9195, %v9145
    %v9197 = vsel %vm514, %v9196, %v9149
    %v9198 = vsel %vm516, %v9197, %v9153
    %v9199 = vsel %vm518, %v9198, %v9157
    %v9200 = vsel %vm520, %v9199, %v9161
    %v9201 = vsel %vm522, %v9200, %v9165
    %v9202 = vsel %vm510, %v9124, %v9169
    %v9203 = vsel %vm512, %v9202, %v9173
    %v9204 = vsel %vm514, %v9203, %v9177
    %v9205 = vsel %vm516, %v9204, %v9181
    %v9206 = vsel %vm518, %v9205, %v9185
    %v9207 = vsel %vm520, %v9206, %v9189
    %v9208 = vsel %vm522, %v9207, %v9193
    %9209 = vrot.lane.b32.xlu0 %v8533, 126
    %v9210 = vpop.permute.xlu0 %9209
    %9211 = vrot.lane.b32.xlu0 %v8534, 126
    %v9212 = vpop.permute.xlu0 %9211
    %9213 = vrot.lane.b32.xlu0 %v8536, 126
    %v9214 = vpop.permute.xlu0 %9213
    %9215 = vrot.lane.b32.xlu0 %v8537, 126
    %v9216 = vpop.permute.xlu0 %9215
    %9217 = vrot.lane.b32.xlu0 %v8539, 126
    %v9218 = vpop.permute.xlu0 %9217
    %9219 = vrot.lane.b32.xlu0 %v8540, 126
    %v9220 = vpop.permute.xlu0 %9219
    %9221 = vrot.lane.b32.xlu0 %v8542, 126
    %v9222 = vpop.permute.xlu0 %9221
    %9223 = vrot.lane.b32.xlu0 %v8543, 126
    %v9224 = vpop.permute.xlu0 %9223
    %9225 = vrot.lane.b32.xlu0 %v8545, 126
    %v9226 = vpop.permute.xlu0 %9225
    %9227 = vrot.lane.b32.xlu0 %v8546, 126
    %v9228 = vpop.permute.xlu0 %9227
    %9229 = vrot.lane.b32.xlu0 %v8548, 126
    %v9230 = vpop.permute.xlu0 %9229
    %9231 = vrot.lane.b32.xlu0 %v8549, 126
    %v9232 = vpop.permute.xlu0 %9231
    %9233 = vrot.lane.b32.xlu0 %v8551, 126
    %v9234 = vpop.permute.xlu0 %9233
    %9235 = vrot.lane.b32.xlu0 %v8552, 126
    %v9236 = vpop.permute.xlu0 %9235
    %9237 = vrot.lane.b32.xlu0 %v8554, 126
    %v9238 = vpop.permute.xlu0 %9237
    %9239 = vrot.lane.b32.xlu0 %v8555, 126
    %v9240 = vpop.permute.xlu0 %9239
    %v9257 = vrot.slane %v9218, 4
    %v9258 = vsel %vm120, %v9257, %v9210
    %v9259 = vrot.slane %v9210, 4
    %v9260 = vsel %vm120, %v9218, %v9259
    %v9262 = vunpack.c.l.s4 1983009808
    %v9263 = vunpack.c.0.s8 %v9262
    %v9264 = vperm.slane %v9258, %v9263
    %v9266 = vunpack.c.l.s4 1983009808
    %v9267 = vunpack.c.0.s8 %v9266
    %v9268 = vperm.slane %v9260, %v9267
    %v9269 = vrot.slane %v9222, 4
    %v9270 = vsel %vm120, %v9269, %v9214
    %v9271 = vrot.slane %v9214, 4
    %v9272 = vsel %vm120, %v9222, %v9271
    %v9274 = vunpack.c.l.s4 1983009808
    %v9275 = vunpack.c.0.s8 %v9274
    %v9276 = vperm.slane %v9270, %v9275
    %v9278 = vunpack.c.l.s4 1983009808
    %v9279 = vunpack.c.0.s8 %v9278
    %v9280 = vperm.slane %v9272, %v9279
    %v9281 = vrot.slane %v9234, 4
    %v9282 = vsel %vm120, %v9281, %v9226
    %v9283 = vrot.slane %v9226, 4
    %v9284 = vsel %vm120, %v9234, %v9283
    %v9286 = vunpack.c.l.s4 1983009808
    %v9287 = vunpack.c.0.s8 %v9286
    %v9288 = vperm.slane %v9282, %v9287
    %v9290 = vunpack.c.l.s4 1983009808
    %v9291 = vunpack.c.0.s8 %v9290
    %v9292 = vperm.slane %v9284, %v9291
    %v9293 = vrot.slane %v9238, 4
    %v9294 = vsel %vm120, %v9293, %v9230
    %v9295 = vrot.slane %v9230, 4
    %v9296 = vsel %vm120, %v9238, %v9295
    %v9298 = vunpack.c.l.s4 1983009808
    %v9299 = vunpack.c.0.s8 %v9298
    %v9300 = vperm.slane %v9294, %v9299
    %v9302 = vunpack.c.l.s4 1983009808
    %v9303 = vunpack.c.0.s8 %v9302
    %v9304 = vperm.slane %v9296, %v9303
    %v9305 = vrot.slane %v9276, 4
    %v9306 = vsel %vm120, %v9305, %v9264
    %v9307 = vrot.slane %v9264, 4
    %v9308 = vsel %vm120, %v9276, %v9307
    %v9310 = vunpack.c.l.s4 1934713408
    %v9311 = vunpack.c.0.s8 %v9310
    %v9312 = vperm.slane %v9306, %v9311
    %v9314 = vunpack.c.l.s4 1934713408
    %v9315 = vunpack.c.0.s8 %v9314
    %v9316 = vperm.slane %v9308, %v9315
    %v9317 = vrot.slane %v9280, 4
    %v9318 = vsel %vm120, %v9317, %v9268
    %v9319 = vrot.slane %v9268, 4
    %v9320 = vsel %vm120, %v9280, %v9319
    %v9322 = vunpack.c.l.s4 1934713408
    %v9323 = vunpack.c.0.s8 %v9322
    %v9324 = vperm.slane %v9318, %v9323
    %v9326 = vunpack.c.l.s4 1934713408
    %v9327 = vunpack.c.0.s8 %v9326
    %v9328 = vperm.slane %v9320, %v9327
    %v9329 = vrot.slane %v9300, 4
    %v9330 = vsel %vm120, %v9329, %v9288
    %v9331 = vrot.slane %v9288, 4
    %v9332 = vsel %vm120, %v9300, %v9331
    %v9334 = vunpack.c.l.s4 1934713408
    %v9335 = vunpack.c.0.s8 %v9334
    %v9336 = vperm.slane %v9330, %v9335
    %v9338 = vunpack.c.l.s4 1934713408
    %v9339 = vunpack.c.0.s8 %v9338
    %v9340 = vperm.slane %v9332, %v9339
    %v9341 = vrot.slane %v9304, 4
    %v9342 = vsel %vm120, %v9341, %v9292
    %v9343 = vrot.slane %v9292, 4
    %v9344 = vsel %vm120, %v9304, %v9343
    %v9346 = vunpack.c.l.s4 1934713408
    %v9347 = vunpack.c.0.s8 %v9346
    %v9348 = vperm.slane %v9342, %v9347
    %v9350 = vunpack.c.l.s4 1934713408
    %v9351 = vunpack.c.0.s8 %v9350
    %v9352 = vperm.slane %v9344, %v9351
    %v9353 = vrot.slane %v9336, 4
    %v9354 = vsel %vm120, %v9353, %v9312
    %v9355 = vrot.slane %v9312, 4
    %v9356 = vsel %vm120, %v9336, %v9355
    %v9357 = vrot.slane %v9340, 4
    %v9358 = vsel %vm120, %v9357, %v9316
    %v9359 = vrot.slane %v9316, 4
    %v9360 = vsel %vm120, %v9340, %v9359
    %v9361 = vrot.slane %v9348, 4
    %v9362 = vsel %vm120, %v9361, %v9324
    %v9363 = vrot.slane %v9324, 4
    %v9364 = vsel %vm120, %v9348, %v9363
    %v9365 = vrot.slane %v9352, 4
    %v9366 = vsel %vm120, %v9365, %v9328
    %v9367 = vrot.slane %v9328, 4
    %v9368 = vsel %vm120, %v9352, %v9367
    %v9369 = vrot.slane %v9220, 4
    %v9370 = vsel %vm120, %v9369, %v9212
    %v9371 = vrot.slane %v9212, 4
    %v9372 = vsel %vm120, %v9220, %v9371
    %v9374 = vunpack.c.l.s4 1983009808
    %v9375 = vunpack.c.0.s8 %v9374
    %v9376 = vperm.slane %v9370, %v9375
    %v9378 = vunpack.c.l.s4 1983009808
    %v9379 = vunpack.c.0.s8 %v9378
    %v9380 = vperm.slane %v9372, %v9379
    %v9381 = vrot.slane %v9224, 4
    %v9382 = vsel %vm120, %v9381, %v9216
    %v9383 = vrot.slane %v9216, 4
    %v9384 = vsel %vm120, %v9224, %v9383
    %v9386 = vunpack.c.l.s4 1983009808
    %v9387 = vunpack.c.0.s8 %v9386
    %v9388 = vperm.slane %v9382, %v9387
    %v9390 = vunpack.c.l.s4 1983009808
    %v9391 = vunpack.c.0.s8 %v9390
    %v9392 = vperm.slane %v9384, %v9391
    %v9393 = vrot.slane %v9236, 4
    %v9394 = vsel %vm120, %v9393, %v9228
    %v9395 = vrot.slane %v9228, 4
    %v9396 = vsel %vm120, %v9236, %v9395
    %v9398 = vunpack.c.l.s4 1983009808
    %v9399 = vunpack.c.0.s8 %v9398
    %v9400 = vperm.slane %v9394, %v9399
    %v9402 = vunpack.c.l.s4 1983009808
    %v9403 = vunpack.c.0.s8 %v9402
    %v9404 = vperm.slane %v9396, %v9403
    %v9405 = vrot.slane %v9240, 4
    %v9406 = vsel %vm120, %v9405, %v9232
    %v9407 = vrot.slane %v9232, 4
    %v9408 = vsel %vm120, %v9240, %v9407
    %v9410 = vunpack.c.l.s4 1983009808
    %v9411 = vunpack.c.0.s8 %v9410
    %v9412 = vperm.slane %v9406, %v9411
    %v9414 = vunpack.c.l.s4 1983009808
    %v9415 = vunpack.c.0.s8 %v9414
    %v9416 = vperm.slane %v9408, %v9415
    %v9417 = vrot.slane %v9388, 4
    %v9418 = vsel %vm120, %v9417, %v9376
    %v9419 = vrot.slane %v9376, 4
    %v9420 = vsel %vm120, %v9388, %v9419
    %v9422 = vunpack.c.l.s4 1934713408
    %v9423 = vunpack.c.0.s8 %v9422
    %v9424 = vperm.slane %v9418, %v9423
    %v9426 = vunpack.c.l.s4 1934713408
    %v9427 = vunpack.c.0.s8 %v9426
    %v9428 = vperm.slane %v9420, %v9427
    %v9429 = vrot.slane %v9392, 4
    %v9430 = vsel %vm120, %v9429, %v9380
    %v9431 = vrot.slane %v9380, 4
    %v9432 = vsel %vm120, %v9392, %v9431
    %v9434 = vunpack.c.l.s4 1934713408
    %v9435 = vunpack.c.0.s8 %v9434
    %v9436 = vperm.slane %v9430, %v9435
    %v9438 = vunpack.c.l.s4 1934713408
    %v9439 = vunpack.c.0.s8 %v9438
    %v9440 = vperm.slane %v9432, %v9439
    %v9441 = vrot.slane %v9412, 4
    %v9442 = vsel %vm120, %v9441, %v9400
    %v9443 = vrot.slane %v9400, 4
    %v9444 = vsel %vm120, %v9412, %v9443
    %v9446 = vunpack.c.l.s4 1934713408
    %v9447 = vunpack.c.0.s8 %v9446
    %v9448 = vperm.slane %v9442, %v9447
    %v9450 = vunpack.c.l.s4 1934713408
    %v9451 = vunpack.c.0.s8 %v9450
    %v9452 = vperm.slane %v9444, %v9451
    %v9453 = vrot.slane %v9416, 4
    %v9454 = vsel %vm120, %v9453, %v9404
    %v9455 = vrot.slane %v9404, 4
    %v9456 = vsel %vm120, %v9416, %v9455
    %v9458 = vunpack.c.l.s4 1934713408
    %v9459 = vunpack.c.0.s8 %v9458
    %v9460 = vperm.slane %v9454, %v9459
    %v9462 = vunpack.c.l.s4 1934713408
    %v9463 = vunpack.c.0.s8 %v9462
    %v9464 = vperm.slane %v9456, %v9463
    %v9465 = vrot.slane %v9448, 4
    %v9466 = vsel %vm120, %v9465, %v9424
    %v9467 = vrot.slane %v9424, 4
    %v9468 = vsel %vm120, %v9448, %v9467
    %v9469 = vrot.slane %v9452, 4
    %v9470 = vsel %vm120, %v9469, %v9428
    %v9471 = vrot.slane %v9428, 4
    %v9472 = vsel %vm120, %v9452, %v9471
    %v9473 = vrot.slane %v9460, 4
    %v9474 = vsel %vm120, %v9473, %v9436
    %v9475 = vrot.slane %v9436, 4
    %v9476 = vsel %vm120, %v9460, %v9475
    %v9477 = vrot.slane %v9464, 4
    %v9478 = vsel %vm120, %v9477, %v9440
    %v9479 = vrot.slane %v9440, 4
    %v9480 = vsel %vm120, %v9464, %v9479
    %9482 = vrot.lane.b32.xlu0 %v9356, 16
    %v9483 = vpop.permute.xlu0 %9482
    %9486 = vrot.lane.b32.xlu0 %v9358, 32
    %v9487 = vpop.permute.xlu0 %9486
    %9490 = vrot.lane.b32.xlu0 %v9360, 48
    %v9491 = vpop.permute.xlu0 %9490
    %9494 = vrot.lane.b32.xlu0 %v9362, 64
    %v9495 = vpop.permute.xlu0 %9494
    %9498 = vrot.lane.b32.xlu0 %v9364, 80
    %v9499 = vpop.permute.xlu0 %9498
    %9502 = vrot.lane.b32.xlu0 %v9366, 96
    %v9503 = vpop.permute.xlu0 %9502
    %9506 = vrot.lane.b32.xlu0 %v9368, 112
    %v9507 = vpop.permute.xlu0 %9506
    %9510 = vrot.lane.b32.xlu0 %v9468, 16
    %v9511 = vpop.permute.xlu0 %9510
    %9514 = vrot.lane.b32.xlu0 %v9470, 32
    %v9515 = vpop.permute.xlu0 %9514
    %9518 = vrot.lane.b32.xlu0 %v9472, 48
    %v9519 = vpop.permute.xlu0 %9518
    %9522 = vrot.lane.b32.xlu0 %v9474, 64
    %v9523 = vpop.permute.xlu0 %9522
    %9526 = vrot.lane.b32.xlu0 %v9476, 80
    %v9527 = vpop.permute.xlu0 %9526
    %9530 = vrot.lane.b32.xlu0 %v9478, 96
    %v9531 = vpop.permute.xlu0 %9530
    %9534 = vrot.lane.b32.xlu0 %v9480, 112
    %v9535 = vpop.permute.xlu0 %9534
    %v9537 = vsel %vm510, %v9354, %v9483
    %v9538 = vsel %vm512, %v9537, %v9487
    %v9539 = vsel %vm514, %v9538, %v9491
    %v9540 = vsel %vm516, %v9539, %v9495
    %v9541 = vsel %vm518, %v9540, %v9499
    %v9542 = vsel %vm520, %v9541, %v9503
    %v9543 = vsel %vm522, %v9542, %v9507
    %v9544 = vsel %vm510, %v9466, %v9511
    %v9545 = vsel %vm512, %v9544, %v9515
    %v9546 = vsel %vm514, %v9545, %v9519
    %v9547 = vsel %vm516, %v9546, %v9523
    %v9548 = vsel %vm518, %v9547, %v9527
    %v9549 = vsel %vm520, %v9548, %v9531
    %v9550 = vsel %vm522, %v9549, %v9535
    %v9559 = vrot.slane %v8533, 1
    %v9560 = vrot.slane %v8534, 1
    %v9561 = vsel %vm955, %v9559, %v9560
    %v9562 = vrot.slane %v8535, 1
    %v9563 = vsel %vm955, %v9560, %v9562
    %v9564 = vrot.slane %v8536, 1
    %v9565 = vrot.slane %v8537, 1
    %v9566 = vsel %vm955, %v9564, %v9565
    %v9567 = vrot.slane %v8538, 1
    %v9568 = vsel %vm955, %v9565, %v9567
    %v9569 = vrot.slane %v8539, 1
    %v9570 = vrot.slane %v8540, 1
    %v9571 = vsel %vm955, %v9569, %v9570
    %v9572 = vrot.slane %v8541, 1
    %v9573 = vsel %vm955, %v9570, %v9572
    %v9574 = vrot.slane %v8542, 1
    %v9575 = vrot.slane %v8543, 1
    %v9576 = vsel %vm955, %v9574, %v9575
    %v9577 = vrot.slane %v8544, 1
    %v9578 = vsel %vm955, %v9575, %v9577
    %v9579 = vrot.slane %v8545, 1
    %v9580 = vrot.slane %v8546, 1
    %v9581 = vsel %vm955, %v9579, %v9580
    %v9582 = vrot.slane %v8547, 1
    %v9583 = vsel %vm955, %v9580, %v9582
    %v9584 = vrot.slane %v8548, 1
    %v9585 = vrot.slane %v8549, 1
    %v9586 = vsel %vm955, %v9584, %v9585
    %v9587 = vrot.slane %v8550, 1
    %v9588 = vsel %vm955, %v9585, %v9587
    %v9589 = vrot.slane %v8551, 1
    %v9590 = vrot.slane %v8552, 1
    %v9591 = vsel %vm955, %v9589, %v9590
    %v9592 = vrot.slane %v8553, 1
    %v9593 = vsel %vm955, %v9590, %v9592
    %v9594 = vrot.slane %v8554, 1
    %v9595 = vrot.slane %v8555, 1
    %v9596 = vsel %vm955, %v9594, %v9595
    %v9597 = vrot.slane %v8556, 1
    %v9598 = vsel %vm955, %v9595, %v9597
    %v9615 = vrot.slane %v9571, 4
    %v9616 = vsel %vm120, %v9615, %v9561
    %v9617 = vrot.slane %v9561, 4
    %v9618 = vsel %vm120, %v9571, %v9617
    %v9620 = vunpack.c.l.s4 1983009808
    %v9621 = vunpack.c.0.s8 %v9620
    %v9622 = vperm.slane %v9616, %v9621
    %v9624 = vunpack.c.l.s4 1983009808
    %v9625 = vunpack.c.0.s8 %v9624
    %v9626 = vperm.slane %v9618, %v9625
    %v9627 = vrot.slane %v9576, 4
    %v9628 = vsel %vm120, %v9627, %v9566
    %v9629 = vrot.slane %v9566, 4
    %v9630 = vsel %vm120, %v9576, %v9629
    %v9632 = vunpack.c.l.s4 1983009808
    %v9633 = vunpack.c.0.s8 %v9632
    %v9634 = vperm.slane %v9628, %v9633
    %v9636 = vunpack.c.l.s4 1983009808
    %v9637 = vunpack.c.0.s8 %v9636
    %v9638 = vperm.slane %v9630, %v9637
    %v9639 = vrot.slane %v9591, 4
    %v9640 = vsel %vm120, %v9639, %v9581
    %v9641 = vrot.slane %v9581, 4
    %v9642 = vsel %vm120, %v9591, %v9641
    %v9644 = vunpack.c.l.s4 1983009808
    %v9645 = vunpack.c.0.s8 %v9644
    %v9646 = vperm.slane %v9640, %v9645
    %v9648 = vunpack.c.l.s4 1983009808
    %v9649 = vunpack.c.0.s8 %v9648
    %v9650 = vperm.slane %v9642, %v9649
    %v9651 = vrot.slane %v9596, 4
    %v9652 = vsel %vm120, %v9651, %v9586
    %v9653 = vrot.slane %v9586, 4
    %v9654 = vsel %vm120, %v9596, %v9653
    %v9656 = vunpack.c.l.s4 1983009808
    %v9657 = vunpack.c.0.s8 %v9656
    %v9658 = vperm.slane %v9652, %v9657
    %v9660 = vunpack.c.l.s4 1983009808
    %v9661 = vunpack.c.0.s8 %v9660
    %v9662 = vperm.slane %v9654, %v9661
    %v9663 = vrot.slane %v9634, 4
    %v9664 = vsel %vm120, %v9663, %v9622
    %v9665 = vrot.slane %v9622, 4
    %v9666 = vsel %vm120, %v9634, %v9665
    %v9668 = vunpack.c.l.s4 1934713408
    %v9669 = vunpack.c.0.s8 %v9668
    %v9670 = vperm.slane %v9664, %v9669
    %v9672 = vunpack.c.l.s4 1934713408
    %v9673 = vunpack.c.0.s8 %v9672
    %v9674 = vperm.slane %v9666, %v9673
    %v9675 = vrot.slane %v9638, 4
    %v9676 = vsel %vm120, %v9675, %v9626
    %v9677 = vrot.slane %v9626, 4
    %v9678 = vsel %vm120, %v9638, %v9677
    %v9680 = vunpack.c.l.s4 1934713408
    %v9681 = vunpack.c.0.s8 %v9680
    %v9682 = vperm.slane %v9676, %v9681
    %v9684 = vunpack.c.l.s4 1934713408
    %v9685 = vunpack.c.0.s8 %v9684
    %v9686 = vperm.slane %v9678, %v9685
    %v9687 = vrot.slane %v9658, 4
    %v9688 = vsel %vm120, %v9687, %v9646
    %v9689 = vrot.slane %v9646, 4
    %v9690 = vsel %vm120, %v9658, %v9689
    %v9692 = vunpack.c.l.s4 1934713408
    %v9693 = vunpack.c.0.s8 %v9692
    %v9694 = vperm.slane %v9688, %v9693
    %v9696 = vunpack.c.l.s4 1934713408
    %v9697 = vunpack.c.0.s8 %v9696
    %v9698 = vperm.slane %v9690, %v9697
    %v9699 = vrot.slane %v9662, 4
    %v9700 = vsel %vm120, %v9699, %v9650
    %v9701 = vrot.slane %v9650, 4
    %v9702 = vsel %vm120, %v9662, %v9701
    %v9704 = vunpack.c.l.s4 1934713408
    %v9705 = vunpack.c.0.s8 %v9704
    %v9706 = vperm.slane %v9700, %v9705
    %v9708 = vunpack.c.l.s4 1934713408
    %v9709 = vunpack.c.0.s8 %v9708
    %v9710 = vperm.slane %v9702, %v9709
    %v9711 = vrot.slane %v9694, 4
    %v9712 = vsel %vm120, %v9711, %v9670
    %v9713 = vrot.slane %v9670, 4
    %v9714 = vsel %vm120, %v9694, %v9713
    %v9715 = vrot.slane %v9698, 4
    %v9716 = vsel %vm120, %v9715, %v9674
    %v9717 = vrot.slane %v9674, 4
    %v9718 = vsel %vm120, %v9698, %v9717
    %v9719 = vrot.slane %v9706, 4
    %v9720 = vsel %vm120, %v9719, %v9682
    %v9721 = vrot.slane %v9682, 4
    %v9722 = vsel %vm120, %v9706, %v9721
    %v9723 = vrot.slane %v9710, 4
    %v9724 = vsel %vm120, %v9723, %v9686
    %v9725 = vrot.slane %v9686, 4
    %v9726 = vsel %vm120, %v9710, %v9725
    %v9727 = vrot.slane %v9573, 4
    %v9728 = vsel %vm120, %v9727, %v9563
    %v9729 = vrot.slane %v9563, 4
    %v9730 = vsel %vm120, %v9573, %v9729
    %v9732 = vunpack.c.l.s4 1983009808
    %v9733 = vunpack.c.0.s8 %v9732
    %v9734 = vperm.slane %v9728, %v9733
    %v9736 = vunpack.c.l.s4 1983009808
    %v9737 = vunpack.c.0.s8 %v9736
    %v9738 = vperm.slane %v9730, %v9737
    %v9739 = vrot.slane %v9578, 4
    %v9740 = vsel %vm120, %v9739, %v9568
    %v9741 = vrot.slane %v9568, 4
    %v9742 = vsel %vm120, %v9578, %v9741
    %v9744 = vunpack.c.l.s4 1983009808
    %v9745 = vunpack.c.0.s8 %v9744
    %v9746 = vperm.slane %v9740, %v9745
    %v9748 = vunpack.c.l.s4 1983009808
    %v9749 = vunpack.c.0.s8 %v9748
    %v9750 = vperm.slane %v9742, %v9749
    %v9751 = vrot.slane %v9593, 4
    %v9752 = vsel %vm120, %v9751, %v9583
    %v9753 = vrot.slane %v9583, 4
    %v9754 = vsel %vm120, %v9593, %v9753
    %v9756 = vunpack.c.l.s4 1983009808
    %v9757 = vunpack.c.0.s8 %v9756
    %v9758 = vperm.slane %v9752, %v9757
    %v9760 = vunpack.c.l.s4 1983009808
    %v9761 = vunpack.c.0.s8 %v9760
    %v9762 = vperm.slane %v9754, %v9761
    %v9763 = vrot.slane %v9598, 4
    %v9764 = vsel %vm120, %v9763, %v9588
    %v9765 = vrot.slane %v9588, 4
    %v9766 = vsel %vm120, %v9598, %v9765
    %v9768 = vunpack.c.l.s4 1983009808
    %v9769 = vunpack.c.0.s8 %v9768
    %v9770 = vperm.slane %v9764, %v9769
    %v9772 = vunpack.c.l.s4 1983009808
    %v9773 = vunpack.c.0.s8 %v9772
    %v9774 = vperm.slane %v9766, %v9773
    %v9775 = vrot.slane %v9746, 4
    %v9776 = vsel %vm120, %v9775, %v9734
    %v9777 = vrot.slane %v9734, 4
    %v9778 = vsel %vm120, %v9746, %v9777
    %v9780 = vunpack.c.l.s4 1934713408
    %v9781 = vunpack.c.0.s8 %v9780
    %v9782 = vperm.slane %v9776, %v9781
    %v9784 = vunpack.c.l.s4 1934713408
    %v9785 = vunpack.c.0.s8 %v9784
    %v9786 = vperm.slane %v9778, %v9785
    %v9787 = vrot.slane %v9750, 4
    %v9788 = vsel %vm120, %v9787, %v9738
    %v9789 = vrot.slane %v9738, 4
    %v9790 = vsel %vm120, %v9750, %v9789
    %v9792 = vunpack.c.l.s4 1934713408
    %v9793 = vunpack.c.0.s8 %v9792
    %v9794 = vperm.slane %v9788, %v9793
    %v9796 = vunpack.c.l.s4 1934713408
    %v9797 = vunpack.c.0.s8 %v9796
    %v9798 = vperm.slane %v9790, %v9797
    %v9799 = vrot.slane %v9770, 4
    %v9800 = vsel %vm120, %v9799, %v9758
    %v9801 = vrot.slane %v9758, 4
    %v9802 = vsel %vm120, %v9770, %v9801
    %v9804 = vunpack.c.l.s4 1934713408
    %v9805 = vunpack.c.0.s8 %v9804
    %v9806 = vperm.slane %v9800, %v9805
    %v9808 = vunpack.c.l.s4 1934713408
    %v9809 = vunpack.c.0.s8 %v9808
    %v9810 = vperm.slane %v9802, %v9809
    %v9811 = vrot.slane %v9774, 4
    %v9812 = vsel %vm120, %v9811, %v9762
    %v9813 = vrot.slane %v9762, 4
    %v9814 = vsel %vm120, %v9774, %v9813
    %v9816 = vunpack.c.l.s4 1934713408
    %v9817 = vunpack.c.0.s8 %v9816
    %v9818 = vperm.slane %v9812, %v9817
    %v9820 = vunpack.c.l.s4 1934713408
    %v9821 = vunpack.c.0.s8 %v9820
    %v9822 = vperm.slane %v9814, %v9821
    %v9823 = vrot.slane %v9806, 4
    %v9824 = vsel %vm120, %v9823, %v9782
    %v9825 = vrot.slane %v9782, 4
    %v9826 = vsel %vm120, %v9806, %v9825
    %v9827 = vrot.slane %v9810, 4
    %v9828 = vsel %vm120, %v9827, %v9786
    %v9829 = vrot.slane %v9786, 4
    %v9830 = vsel %vm120, %v9810, %v9829
    %v9831 = vrot.slane %v9818, 4
    %v9832 = vsel %vm120, %v9831, %v9794
    %v9833 = vrot.slane %v9794, 4
    %v9834 = vsel %vm120, %v9818, %v9833
    %v9835 = vrot.slane %v9822, 4
    %v9836 = vsel %vm120, %v9835, %v9798
    %v9837 = vrot.slane %v9798, 4
    %v9838 = vsel %vm120, %v9822, %v9837
    %9840 = vrot.lane.b32.xlu0 %v9714, 16
    %v9841 = vpop.permute.xlu0 %9840
    %9844 = vrot.lane.b32.xlu0 %v9716, 32
    %v9845 = vpop.permute.xlu0 %9844
    %9848 = vrot.lane.b32.xlu0 %v9718, 48
    %v9849 = vpop.permute.xlu0 %9848
    %9852 = vrot.lane.b32.xlu0 %v9720, 64
    %v9853 = vpop.permute.xlu0 %9852
    %9856 = vrot.lane.b32.xlu0 %v9722, 80
    %v9857 = vpop.permute.xlu0 %9856
    %9860 = vrot.lane.b32.xlu0 %v9724, 96
    %v9861 = vpop.permute.xlu0 %9860
    %9864 = vrot.lane.b32.xlu0 %v9726, 112
    %v9865 = vpop.permute.xlu0 %9864
    %9868 = vrot.lane.b32.xlu0 %v9826, 16
    %v9869 = vpop.permute.xlu0 %9868
    %9872 = vrot.lane.b32.xlu0 %v9828, 32
    %v9873 = vpop.permute.xlu0 %9872
    %9876 = vrot.lane.b32.xlu0 %v9830, 48
    %v9877 = vpop.permute.xlu0 %9876
    %9880 = vrot.lane.b32.xlu0 %v9832, 64
    %v9881 = vpop.permute.xlu0 %9880
    %9884 = vrot.lane.b32.xlu0 %v9834, 80
    %v9885 = vpop.permute.xlu0 %9884
    %9888 = vrot.lane.b32.xlu0 %v9836, 96
    %v9889 = vpop.permute.xlu0 %9888
    %9892 = vrot.lane.b32.xlu0 %v9838, 112
    %v9893 = vpop.permute.xlu0 %9892
    %v9895 = vsel %vm510, %v9712, %v9841
    %v9896 = vsel %vm512, %v9895, %v9845
    %v9897 = vsel %vm514, %v9896, %v9849
    %v9898 = vsel %vm516, %v9897, %v9853
    %v9899 = vsel %vm518, %v9898, %v9857
    %v9900 = vsel %vm520, %v9899, %v9861
    %v9901 = vsel %vm522, %v9900, %v9865
    %v9902 = vsel %vm510, %v9824, %v9869
    %v9903 = vsel %vm512, %v9902, %v9873
    %v9904 = vsel %vm514, %v9903, %v9877
    %v9905 = vsel %vm516, %v9904, %v9881
    %v9906 = vsel %vm518, %v9905, %v9885
    %v9907 = vsel %vm520, %v9906, %v9889
    %v9908 = vsel %vm522, %v9907, %v9893
    %9909 = vrot.lane.b32.xlu0 %v9561, 127
    %v9910 = vpop.permute.xlu0 %9909
    %9911 = vrot.lane.b32.xlu0 %v9563, 127
    %v9912 = vpop.permute.xlu0 %9911
    %9913 = vrot.lane.b32.xlu0 %v9566, 127
    %v9914 = vpop.permute.xlu0 %9913
    %9915 = vrot.lane.b32.xlu0 %v9568, 127
    %v9916 = vpop.permute.xlu0 %9915
    %9917 = vrot.lane.b32.xlu0 %v9571, 127
    %v9918 = vpop.permute.xlu0 %9917
    %9919 = vrot.lane.b32.xlu0 %v9573, 127
    %v9920 = vpop.permute.xlu0 %9919
    %9921 = vrot.lane.b32.xlu0 %v9576, 127
    %v9922 = vpop.permute.xlu0 %9921
    %9923 = vrot.lane.b32.xlu0 %v9578, 127
    %v9924 = vpop.permute.xlu0 %9923
    %9925 = vrot.lane.b32.xlu0 %v9581, 127
    %v9926 = vpop.permute.xlu0 %9925
    %9927 = vrot.lane.b32.xlu0 %v9583, 127
    %v9928 = vpop.permute.xlu0 %9927
    %9929 = vrot.lane.b32.xlu0 %v9586, 127
    %v9930 = vpop.permute.xlu0 %9929
    %9931 = vrot.lane.b32.xlu0 %v9588, 127
    %v9932 = vpop.permute.xlu0 %9931
    %9933 = vrot.lane.b32.xlu0 %v9591, 127
    %v9934 = vpop.permute.xlu0 %9933
    %9935 = vrot.lane.b32.xlu0 %v9593, 127
    %v9936 = vpop.permute.xlu0 %9935
    %9937 = vrot.lane.b32.xlu0 %v9596, 127
    %v9938 = vpop.permute.xlu0 %9937
    %9939 = vrot.lane.b32.xlu0 %v9598, 127
    %v9940 = vpop.permute.xlu0 %9939
    %v9957 = vrot.slane %v9918, 4
    %v9958 = vsel %vm120, %v9957, %v9910
    %v9959 = vrot.slane %v9910, 4
    %v9960 = vsel %vm120, %v9918, %v9959
    %v9962 = vunpack.c.l.s4 1983009808
    %v9963 = vunpack.c.0.s8 %v9962
    %v9964 = vperm.slane %v9958, %v9963
    %v9966 = vunpack.c.l.s4 1983009808
    %v9967 = vunpack.c.0.s8 %v9966
    %v9968 = vperm.slane %v9960, %v9967
    %v9969 = vrot.slane %v9922, 4
    %v9970 = vsel %vm120, %v9969, %v9914
    %v9971 = vrot.slane %v9914, 4
    %v9972 = vsel %vm120, %v9922, %v9971
    %v9974 = vunpack.c.l.s4 1983009808
    %v9975 = vunpack.c.0.s8 %v9974
    %v9976 = vperm.slane %v9970, %v9975
    %v9978 = vunpack.c.l.s4 1983009808
    %v9979 = vunpack.c.0.s8 %v9978
    %v9980 = vperm.slane %v9972, %v9979
    %v9981 = vrot.slane %v9934, 4
    %v9982 = vsel %vm120, %v9981, %v9926
    %v9983 = vrot.slane %v9926, 4
    %v9984 = vsel %vm120, %v9934, %v9983
    %v9986 = vunpack.c.l.s4 1983009808
    %v9987 = vunpack.c.0.s8 %v9986
    %v9988 = vperm.slane %v9982, %v9987
    %v9990 = vunpack.c.l.s4 1983009808
    %v9991 = vunpack.c.0.s8 %v9990
    %v9992 = vperm.slane %v9984, %v9991
    %v9993 = vrot.slane %v9938, 4
    %v9994 = vsel %vm120, %v9993, %v9930
    %v9995 = vrot.slane %v9930, 4
    %v9996 = vsel %vm120, %v9938, %v9995
    %v9998 = vunpack.c.l.s4 1983009808
    %v9999 = vunpack.c.0.s8 %v9998
    %v10000 = vperm.slane %v9994, %v9999
    %v10002 = vunpack.c.l.s4 1983009808
    %v10003 = vunpack.c.0.s8 %v10002
    %v10004 = vperm.slane %v9996, %v10003
    %v10005 = vrot.slane %v9976, 4
    %v10006 = vsel %vm120, %v10005, %v9964
    %v10007 = vrot.slane %v9964, 4
    %v10008 = vsel %vm120, %v9976, %v10007
    %v10010 = vunpack.c.l.s4 1934713408
    %v10011 = vunpack.c.0.s8 %v10010
    %v10012 = vperm.slane %v10006, %v10011
    %v10014 = vunpack.c.l.s4 1934713408
    %v10015 = vunpack.c.0.s8 %v10014
    %v10016 = vperm.slane %v10008, %v10015
    %v10017 = vrot.slane %v9980, 4
    %v10018 = vsel %vm120, %v10017, %v9968
    %v10019 = vrot.slane %v9968, 4
    %v10020 = vsel %vm120, %v9980, %v10019
    %v10022 = vunpack.c.l.s4 1934713408
    %v10023 = vunpack.c.0.s8 %v10022
    %v10024 = vperm.slane %v10018, %v10023
    %v10026 = vunpack.c.l.s4 1934713408
    %v10027 = vunpack.c.0.s8 %v10026
    %v10028 = vperm.slane %v10020, %v10027
    %v10029 = vrot.slane %v10000, 4
    %v10030 = vsel %vm120, %v10029, %v9988
    %v10031 = vrot.slane %v9988, 4
    %v10032 = vsel %vm120, %v10000, %v10031
    %v10034 = vunpack.c.l.s4 1934713408
    %v10035 = vunpack.c.0.s8 %v10034
    %v10036 = vperm.slane %v10030, %v10035
    %v10038 = vunpack.c.l.s4 1934713408
    %v10039 = vunpack.c.0.s8 %v10038
    %v10040 = vperm.slane %v10032, %v10039
    %v10041 = vrot.slane %v10004, 4
    %v10042 = vsel %vm120, %v10041, %v9992
    %v10043 = vrot.slane %v9992, 4
    %v10044 = vsel %vm120, %v10004, %v10043
    %v10046 = vunpack.c.l.s4 1934713408
    %v10047 = vunpack.c.0.s8 %v10046
    %v10048 = vperm.slane %v10042, %v10047
    %v10050 = vunpack.c.l.s4 1934713408
    %v10051 = vunpack.c.0.s8 %v10050
    %v10052 = vperm.slane %v10044, %v10051
    %v10053 = vrot.slane %v10036, 4
    %v10054 = vsel %vm120, %v10053, %v10012
    %v10055 = vrot.slane %v10012, 4
    %v10056 = vsel %vm120, %v10036, %v10055
    %v10057 = vrot.slane %v10040, 4
    %v10058 = vsel %vm120, %v10057, %v10016
    %v10059 = vrot.slane %v10016, 4
    %v10060 = vsel %vm120, %v10040, %v10059
    %v10061 = vrot.slane %v10048, 4
    %v10062 = vsel %vm120, %v10061, %v10024
    %v10063 = vrot.slane %v10024, 4
    %v10064 = vsel %vm120, %v10048, %v10063
    %v10065 = vrot.slane %v10052, 4
    %v10066 = vsel %vm120, %v10065, %v10028
    %v10067 = vrot.slane %v10028, 4
    %v10068 = vsel %vm120, %v10052, %v10067
    %v10069 = vrot.slane %v9920, 4
    %v10070 = vsel %vm120, %v10069, %v9912
    %v10071 = vrot.slane %v9912, 4
    %v10072 = vsel %vm120, %v9920, %v10071
    %v10074 = vunpack.c.l.s4 1983009808
    %v10075 = vunpack.c.0.s8 %v10074
    %v10076 = vperm.slane %v10070, %v10075
    %v10078 = vunpack.c.l.s4 1983009808
    %v10079 = vunpack.c.0.s8 %v10078
    %v10080 = vperm.slane %v10072, %v10079
    %v10081 = vrot.slane %v9924, 4
    %v10082 = vsel %vm120, %v10081, %v9916
    %v10083 = vrot.slane %v9916, 4
    %v10084 = vsel %vm120, %v9924, %v10083
    %v10086 = vunpack.c.l.s4 1983009808
    %v10087 = vunpack.c.0.s8 %v10086
    %v10088 = vperm.slane %v10082, %v10087
    %v10090 = vunpack.c.l.s4 1983009808
    %v10091 = vunpack.c.0.s8 %v10090
    %v10092 = vperm.slane %v10084, %v10091
    %v10093 = vrot.slane %v9936, 4
    %v10094 = vsel %vm120, %v10093, %v9928
    %v10095 = vrot.slane %v9928, 4
    %v10096 = vsel %vm120, %v9936, %v10095
    %v10098 = vunpack.c.l.s4 1983009808
    %v10099 = vunpack.c.0.s8 %v10098
    %v10100 = vperm.slane %v10094, %v10099
    %v10102 = vunpack.c.l.s4 1983009808
    %v10103 = vunpack.c.0.s8 %v10102
    %v10104 = vperm.slane %v10096, %v10103
    %v10105 = vrot.slane %v9940, 4
    %v10106 = vsel %vm120, %v10105, %v9932
    %v10107 = vrot.slane %v9932, 4
    %v10108 = vsel %vm120, %v9940, %v10107
    %v10110 = vunpack.c.l.s4 1983009808
    %v10111 = vunpack.c.0.s8 %v10110
    %v10112 = vperm.slane %v10106, %v10111
    %v10114 = vunpack.c.l.s4 1983009808
    %v10115 = vunpack.c.0.s8 %v10114
    %v10116 = vperm.slane %v10108, %v10115
    %v10117 = vrot.slane %v10088, 4
    %v10118 = vsel %vm120, %v10117, %v10076
    %v10119 = vrot.slane %v10076, 4
    %v10120 = vsel %vm120, %v10088, %v10119
    %v10122 = vunpack.c.l.s4 1934713408
    %v10123 = vunpack.c.0.s8 %v10122
    %v10124 = vperm.slane %v10118, %v10123
    %v10126 = vunpack.c.l.s4 1934713408
    %v10127 = vunpack.c.0.s8 %v10126
    %v10128 = vperm.slane %v10120, %v10127
    %v10129 = vrot.slane %v10092, 4
    %v10130 = vsel %vm120, %v10129, %v10080
    %v10131 = vrot.slane %v10080, 4
    %v10132 = vsel %vm120, %v10092, %v10131
    %v10134 = vunpack.c.l.s4 1934713408
    %v10135 = vunpack.c.0.s8 %v10134
    %v10136 = vperm.slane %v10130, %v10135
    %v10138 = vunpack.c.l.s4 1934713408
    %v10139 = vunpack.c.0.s8 %v10138
    %v10140 = vperm.slane %v10132, %v10139
    %v10141 = vrot.slane %v10112, 4
    %v10142 = vsel %vm120, %v10141, %v10100
    %v10143 = vrot.slane %v10100, 4
    %v10144 = vsel %vm120, %v10112, %v10143
    %v10146 = vunpack.c.l.s4 1934713408
    %v10147 = vunpack.c.0.s8 %v10146
    %v10148 = vperm.slane %v10142, %v10147
    %v10150 = vunpack.c.l.s4 1934713408
    %v10151 = vunpack.c.0.s8 %v10150
    %v10152 = vperm.slane %v10144, %v10151
    %v10153 = vrot.slane %v10116, 4
    %v10154 = vsel %vm120, %v10153, %v10104
    %v10155 = vrot.slane %v10104, 4
    %v10156 = vsel %vm120, %v10116, %v10155
    %v10158 = vunpack.c.l.s4 1934713408
    %v10159 = vunpack.c.0.s8 %v10158
    %v10160 = vperm.slane %v10154, %v10159
    %v10162 = vunpack.c.l.s4 1934713408
    %v10163 = vunpack.c.0.s8 %v10162
    %v10164 = vperm.slane %v10156, %v10163
    %v10165 = vrot.slane %v10148, 4
    %v10166 = vsel %vm120, %v10165, %v10124
    %v10167 = vrot.slane %v10124, 4
    %v10168 = vsel %vm120, %v10148, %v10167
    %v10169 = vrot.slane %v10152, 4
    %v10170 = vsel %vm120, %v10169, %v10128
    %v10171 = vrot.slane %v10128, 4
    %v10172 = vsel %vm120, %v10152, %v10171
    %v10173 = vrot.slane %v10160, 4
    %v10174 = vsel %vm120, %v10173, %v10136
    %v10175 = vrot.slane %v10136, 4
    %v10176 = vsel %vm120, %v10160, %v10175
    %v10177 = vrot.slane %v10164, 4
    %v10178 = vsel %vm120, %v10177, %v10140
    %v10179 = vrot.slane %v10140, 4
    %v10180 = vsel %vm120, %v10164, %v10179
    %10182 = vrot.lane.b32.xlu0 %v10056, 16
    %v10183 = vpop.permute.xlu0 %10182
    %10186 = vrot.lane.b32.xlu0 %v10058, 32
    %v10187 = vpop.permute.xlu0 %10186
    %10190 = vrot.lane.b32.xlu0 %v10060, 48
    %v10191 = vpop.permute.xlu0 %10190
    %10194 = vrot.lane.b32.xlu0 %v10062, 64
    %v10195 = vpop.permute.xlu0 %10194
    %10198 = vrot.lane.b32.xlu0 %v10064, 80
    %v10199 = vpop.permute.xlu0 %10198
    %10202 = vrot.lane.b32.xlu0 %v10066, 96
    %v10203 = vpop.permute.xlu0 %10202
    %10206 = vrot.lane.b32.xlu0 %v10068, 112
    %v10207 = vpop.permute.xlu0 %10206
    %10210 = vrot.lane.b32.xlu0 %v10168, 16
    %v10211 = vpop.permute.xlu0 %10210
    %10214 = vrot.lane.b32.xlu0 %v10170, 32
    %v10215 = vpop.permute.xlu0 %10214
    %10218 = vrot.lane.b32.xlu0 %v10172, 48
    %v10219 = vpop.permute.xlu0 %10218
    %10222 = vrot.lane.b32.xlu0 %v10174, 64
    %v10223 = vpop.permute.xlu0 %10222
    %10226 = vrot.lane.b32.xlu0 %v10176, 80
    %v10227 = vpop.permute.xlu0 %10226
    %10230 = vrot.lane.b32.xlu0 %v10178, 96
    %v10231 = vpop.permute.xlu0 %10230
    %10234 = vrot.lane.b32.xlu0 %v10180, 112
    %v10235 = vpop.permute.xlu0 %10234
    %v10237 = vsel %vm510, %v10054, %v10183
    %v10238 = vsel %vm512, %v10237, %v10187
    %v10239 = vsel %vm514, %v10238, %v10191
    %v10240 = vsel %vm516, %v10239, %v10195
    %v10241 = vsel %vm518, %v10240, %v10199
    %v10242 = vsel %vm520, %v10241, %v10203
    %v10243 = vsel %vm522, %v10242, %v10207
    %v10244 = vsel %vm510, %v10166, %v10211
    %v10245 = vsel %vm512, %v10244, %v10215
    %v10246 = vsel %vm514, %v10245, %v10219
    %v10247 = vsel %vm516, %v10246, %v10223
    %v10248 = vsel %vm518, %v10247, %v10227
    %v10249 = vsel %vm520, %v10248, %v10231
    %v10250 = vsel %vm522, %v10249, %v10235
    %10251 = vrot.lane.b32.xlu0 %v9561, 126
    %v10252 = vpop.permute.xlu0 %10251
    %10253 = vrot.lane.b32.xlu0 %v9563, 126
    %v10254 = vpop.permute.xlu0 %10253
    %10255 = vrot.lane.b32.xlu0 %v9566, 126
    %v10256 = vpop.permute.xlu0 %10255
    %10257 = vrot.lane.b32.xlu0 %v9568, 126
    %v10258 = vpop.permute.xlu0 %10257
    %10259 = vrot.lane.b32.xlu0 %v9571, 126
    %v10260 = vpop.permute.xlu0 %10259
    %10261 = vrot.lane.b32.xlu0 %v9573, 126
    %v10262 = vpop.permute.xlu0 %10261
    %10263 = vrot.lane.b32.xlu0 %v9576, 126
    %v10264 = vpop.permute.xlu0 %10263
    %10265 = vrot.lane.b32.xlu0 %v9578, 126
    %v10266 = vpop.permute.xlu0 %10265
    %10267 = vrot.lane.b32.xlu0 %v9581, 126
    %v10268 = vpop.permute.xlu0 %10267
    %10269 = vrot.lane.b32.xlu0 %v9583, 126
    %v10270 = vpop.permute.xlu0 %10269
    %10271 = vrot.lane.b32.xlu0 %v9586, 126
    %v10272 = vpop.permute.xlu0 %10271
    %10273 = vrot.lane.b32.xlu0 %v9588, 126
    %v10274 = vpop.permute.xlu0 %10273
    %10275 = vrot.lane.b32.xlu0 %v9591, 126
    %v10276 = vpop.permute.xlu0 %10275
    %10277 = vrot.lane.b32.xlu0 %v9593, 126
    %v10278 = vpop.permute.xlu0 %10277
    %10279 = vrot.lane.b32.xlu0 %v9596, 126
    %v10280 = vpop.permute.xlu0 %10279
    %10281 = vrot.lane.b32.xlu0 %v9598, 126
    %v10282 = vpop.permute.xlu0 %10281
    %v10299 = vrot.slane %v10260, 4
    %v10300 = vsel %vm120, %v10299, %v10252
    %v10301 = vrot.slane %v10252, 4
    %v10302 = vsel %vm120, %v10260, %v10301
    %v10304 = vunpack.c.l.s4 1983009808
    %v10305 = vunpack.c.0.s8 %v10304
    %v10306 = vperm.slane %v10300, %v10305
    %v10308 = vunpack.c.l.s4 1983009808
    %v10309 = vunpack.c.0.s8 %v10308
    %v10310 = vperm.slane %v10302, %v10309
    %v10311 = vrot.slane %v10264, 4
    %v10312 = vsel %vm120, %v10311, %v10256
    %v10313 = vrot.slane %v10256, 4
    %v10314 = vsel %vm120, %v10264, %v10313
    %v10316 = vunpack.c.l.s4 1983009808
    %v10317 = vunpack.c.0.s8 %v10316
    %v10318 = vperm.slane %v10312, %v10317
    %v10320 = vunpack.c.l.s4 1983009808
    %v10321 = vunpack.c.0.s8 %v10320
    %v10322 = vperm.slane %v10314, %v10321
    %v10323 = vrot.slane %v10276, 4
    %v10324 = vsel %vm120, %v10323, %v10268
    %v10325 = vrot.slane %v10268, 4
    %v10326 = vsel %vm120, %v10276, %v10325
    %v10328 = vunpack.c.l.s4 1983009808
    %v10329 = vunpack.c.0.s8 %v10328
    %v10330 = vperm.slane %v10324, %v10329
    %v10332 = vunpack.c.l.s4 1983009808
    %v10333 = vunpack.c.0.s8 %v10332
    %v10334 = vperm.slane %v10326, %v10333
    %v10335 = vrot.slane %v10280, 4
    %v10336 = vsel %vm120, %v10335, %v10272
    %v10337 = vrot.slane %v10272, 4
    %v10338 = vsel %vm120, %v10280, %v10337
    %v10340 = vunpack.c.l.s4 1983009808
    %v10341 = vunpack.c.0.s8 %v10340
    %v10342 = vperm.slane %v10336, %v10341
    %v10344 = vunpack.c.l.s4 1983009808
    %v10345 = vunpack.c.0.s8 %v10344
    %v10346 = vperm.slane %v10338, %v10345
    %v10347 = vrot.slane %v10318, 4
    %v10348 = vsel %vm120, %v10347, %v10306
    %v10349 = vrot.slane %v10306, 4
    %v10350 = vsel %vm120, %v10318, %v10349
    %v10352 = vunpack.c.l.s4 1934713408
    %v10353 = vunpack.c.0.s8 %v10352
    %v10354 = vperm.slane %v10348, %v10353
    %v10356 = vunpack.c.l.s4 1934713408
    %v10357 = vunpack.c.0.s8 %v10356
    %v10358 = vperm.slane %v10350, %v10357
    %v10359 = vrot.slane %v10322, 4
    %v10360 = vsel %vm120, %v10359, %v10310
    %v10361 = vrot.slane %v10310, 4
    %v10362 = vsel %vm120, %v10322, %v10361
    %v10364 = vunpack.c.l.s4 1934713408
    %v10365 = vunpack.c.0.s8 %v10364
    %v10366 = vperm.slane %v10360, %v10365
    %v10368 = vunpack.c.l.s4 1934713408
    %v10369 = vunpack.c.0.s8 %v10368
    %v10370 = vperm.slane %v10362, %v10369
    %v10371 = vrot.slane %v10342, 4
    %v10372 = vsel %vm120, %v10371, %v10330
    %v10373 = vrot.slane %v10330, 4
    %v10374 = vsel %vm120, %v10342, %v10373
    %v10376 = vunpack.c.l.s4 1934713408
    %v10377 = vunpack.c.0.s8 %v10376
    %v10378 = vperm.slane %v10372, %v10377
    %v10380 = vunpack.c.l.s4 1934713408
    %v10381 = vunpack.c.0.s8 %v10380
    %v10382 = vperm.slane %v10374, %v10381
    %v10383 = vrot.slane %v10346, 4
    %v10384 = vsel %vm120, %v10383, %v10334
    %v10385 = vrot.slane %v10334, 4
    %v10386 = vsel %vm120, %v10346, %v10385
    %v10388 = vunpack.c.l.s4 1934713408
    %v10389 = vunpack.c.0.s8 %v10388
    %v10390 = vperm.slane %v10384, %v10389
    %v10392 = vunpack.c.l.s4 1934713408
    %v10393 = vunpack.c.0.s8 %v10392
    %v10394 = vperm.slane %v10386, %v10393
    %v10395 = vrot.slane %v10378, 4
    %v10396 = vsel %vm120, %v10395, %v10354
    %v10397 = vrot.slane %v10354, 4
    %v10398 = vsel %vm120, %v10378, %v10397
    %v10399 = vrot.slane %v10382, 4
    %v10400 = vsel %vm120, %v10399, %v10358
    %v10401 = vrot.slane %v10358, 4
    %v10402 = vsel %vm120, %v10382, %v10401
    %v10403 = vrot.slane %v10390, 4
    %v10404 = vsel %vm120, %v10403, %v10366
    %v10405 = vrot.slane %v10366, 4
    %v10406 = vsel %vm120, %v10390, %v10405
    %v10407 = vrot.slane %v10394, 4
    %v10408 = vsel %vm120, %v10407, %v10370
    %v10409 = vrot.slane %v10370, 4
    %v10410 = vsel %vm120, %v10394, %v10409
    %v10411 = vrot.slane %v10262, 4
    %v10412 = vsel %vm120, %v10411, %v10254
    %v10413 = vrot.slane %v10254, 4
    %v10414 = vsel %vm120, %v10262, %v10413
    %v10416 = vunpack.c.l.s4 1983009808
    %v10417 = vunpack.c.0.s8 %v10416
    %v10418 = vperm.slane %v10412, %v10417
    %v10420 = vunpack.c.l.s4 1983009808
    %v10421 = vunpack.c.0.s8 %v10420
    %v10422 = vperm.slane %v10414, %v10421
    %v10423 = vrot.slane %v10266, 4
    %v10424 = vsel %vm120, %v10423, %v10258
    %v10425 = vrot.slane %v10258, 4
    %v10426 = vsel %vm120, %v10266, %v10425
    %v10428 = vunpack.c.l.s4 1983009808
    %v10429 = vunpack.c.0.s8 %v10428
    %v10430 = vperm.slane %v10424, %v10429
    %v10432 = vunpack.c.l.s4 1983009808
    %v10433 = vunpack.c.0.s8 %v10432
    %v10434 = vperm.slane %v10426, %v10433
    %v10435 = vrot.slane %v10278, 4
    %v10436 = vsel %vm120, %v10435, %v10270
    %v10437 = vrot.slane %v10270, 4
    %v10438 = vsel %vm120, %v10278, %v10437
    %v10440 = vunpack.c.l.s4 1983009808
    %v10441 = vunpack.c.0.s8 %v10440
    %v10442 = vperm.slane %v10436, %v10441
    %v10444 = vunpack.c.l.s4 1983009808
    %v10445 = vunpack.c.0.s8 %v10444
    %v10446 = vperm.slane %v10438, %v10445
    %v10447 = vrot.slane %v10282, 4
    %v10448 = vsel %vm120, %v10447, %v10274
    %v10449 = vrot.slane %v10274, 4
    %v10450 = vsel %vm120, %v10282, %v10449
    %v10452 = vunpack.c.l.s4 1983009808
    %v10453 = vunpack.c.0.s8 %v10452
    %v10454 = vperm.slane %v10448, %v10453
    %v10456 = vunpack.c.l.s4 1983009808
    %v10457 = vunpack.c.0.s8 %v10456
    %v10458 = vperm.slane %v10450, %v10457
    %v10459 = vrot.slane %v10430, 4
    %v10460 = vsel %vm120, %v10459, %v10418
    %v10461 = vrot.slane %v10418, 4
    %v10462 = vsel %vm120, %v10430, %v10461
    %v10464 = vunpack.c.l.s4 1934713408
    %v10465 = vunpack.c.0.s8 %v10464
    %v10466 = vperm.slane %v10460, %v10465
    %v10468 = vunpack.c.l.s4 1934713408
    %v10469 = vunpack.c.0.s8 %v10468
    %v10470 = vperm.slane %v10462, %v10469
    %v10471 = vrot.slane %v10434, 4
    %v10472 = vsel %vm120, %v10471, %v10422
    %v10473 = vrot.slane %v10422, 4
    %v10474 = vsel %vm120, %v10434, %v10473
    %v10476 = vunpack.c.l.s4 1934713408
    %v10477 = vunpack.c.0.s8 %v10476
    %v10478 = vperm.slane %v10472, %v10477
    %v10480 = vunpack.c.l.s4 1934713408
    %v10481 = vunpack.c.0.s8 %v10480
    %v10482 = vperm.slane %v10474, %v10481
    %v10483 = vrot.slane %v10454, 4
    %v10484 = vsel %vm120, %v10483, %v10442
    %v10485 = vrot.slane %v10442, 4
    %v10486 = vsel %vm120, %v10454, %v10485
    %v10488 = vunpack.c.l.s4 1934713408
    %v10489 = vunpack.c.0.s8 %v10488
    %v10490 = vperm.slane %v10484, %v10489
    %v10492 = vunpack.c.l.s4 1934713408
    %v10493 = vunpack.c.0.s8 %v10492
    %v10494 = vperm.slane %v10486, %v10493
    %v10495 = vrot.slane %v10458, 4
    %v10496 = vsel %vm120, %v10495, %v10446
    %v10497 = vrot.slane %v10446, 4
    %v10498 = vsel %vm120, %v10458, %v10497
    %v10500 = vunpack.c.l.s4 1934713408
    %v10501 = vunpack.c.0.s8 %v10500
    %v10502 = vperm.slane %v10496, %v10501
    %v10504 = vunpack.c.l.s4 1934713408
    %v10505 = vunpack.c.0.s8 %v10504
    %v10506 = vperm.slane %v10498, %v10505
    %v10507 = vrot.slane %v10490, 4
    %v10508 = vsel %vm120, %v10507, %v10466
    %v10509 = vrot.slane %v10466, 4
    %v10510 = vsel %vm120, %v10490, %v10509
    %v10511 = vrot.slane %v10494, 4
    %v10512 = vsel %vm120, %v10511, %v10470
    %v10513 = vrot.slane %v10470, 4
    %v10514 = vsel %vm120, %v10494, %v10513
    %v10515 = vrot.slane %v10502, 4
    %v10516 = vsel %vm120, %v10515, %v10478
    %v10517 = vrot.slane %v10478, 4
    %v10518 = vsel %vm120, %v10502, %v10517
    %v10519 = vrot.slane %v10506, 4
    %v10520 = vsel %vm120, %v10519, %v10482
    %v10521 = vrot.slane %v10482, 4
    %v10522 = vsel %vm120, %v10506, %v10521
    %10524 = vrot.lane.b32.xlu0 %v10398, 16
    %v10525 = vpop.permute.xlu0 %10524
    %10528 = vrot.lane.b32.xlu0 %v10400, 32
    %v10529 = vpop.permute.xlu0 %10528
    %10532 = vrot.lane.b32.xlu0 %v10402, 48
    %v10533 = vpop.permute.xlu0 %10532
    %10536 = vrot.lane.b32.xlu0 %v10404, 64
    %v10537 = vpop.permute.xlu0 %10536
    %10540 = vrot.lane.b32.xlu0 %v10406, 80
    %v10541 = vpop.permute.xlu0 %10540
    %10544 = vrot.lane.b32.xlu0 %v10408, 96
    %v10545 = vpop.permute.xlu0 %10544
    %10548 = vrot.lane.b32.xlu0 %v10410, 112
    %v10549 = vpop.permute.xlu0 %10548
    %10552 = vrot.lane.b32.xlu0 %v10510, 16
    %v10553 = vpop.permute.xlu0 %10552
    %10556 = vrot.lane.b32.xlu0 %v10512, 32
    %v10557 = vpop.permute.xlu0 %10556
    %10560 = vrot.lane.b32.xlu0 %v10514, 48
    %v10561 = vpop.permute.xlu0 %10560
    %10564 = vrot.lane.b32.xlu0 %v10516, 64
    %v10565 = vpop.permute.xlu0 %10564
    %10568 = vrot.lane.b32.xlu0 %v10518, 80
    %v10569 = vpop.permute.xlu0 %10568
    %10572 = vrot.lane.b32.xlu0 %v10520, 96
    %v10573 = vpop.permute.xlu0 %10572
    %10576 = vrot.lane.b32.xlu0 %v10522, 112
    %v10577 = vpop.permute.xlu0 %10576
    %v10579 = vsel %vm510, %v10396, %v10525
    %v10580 = vsel %vm512, %v10579, %v10529
    %v10581 = vsel %vm514, %v10580, %v10533
    %v10582 = vsel %vm516, %v10581, %v10537
    %v10583 = vsel %vm518, %v10582, %v10541
    %v10584 = vsel %vm520, %v10583, %v10545
    %v10585 = vsel %vm522, %v10584, %v10549
    %v10586 = vsel %vm510, %v10508, %v10553
    %v10587 = vsel %vm512, %v10586, %v10557
    %v10588 = vsel %vm514, %v10587, %v10561
    %v10589 = vsel %vm516, %v10588, %v10565
    %v10590 = vsel %vm518, %v10589, %v10569
    %v10591 = vsel %vm520, %v10590, %v10573
    %v10592 = vsel %vm522, %v10591, %v10577
    %v10593 = vrot.slane %v8533, 2
    %v10594 = vrot.slane %v8534, 2
    %v10595 = vsel %vm1578, %v10593, %v10594
    %v10596 = vrot.slane %v8535, 2
    %v10597 = vsel %vm1578, %v10594, %v10596
    %v10598 = vrot.slane %v8536, 2
    %v10599 = vrot.slane %v8537, 2
    %v10600 = vsel %vm1578, %v10598, %v10599
    %v10601 = vrot.slane %v8538, 2
    %v10602 = vsel %vm1578, %v10599, %v10601
    %v10603 = vrot.slane %v8539, 2
    %v10604 = vrot.slane %v8540, 2
    %v10605 = vsel %vm1578, %v10603, %v10604
    %v10606 = vrot.slane %v8541, 2
    %v10607 = vsel %vm1578, %v10604, %v10606
    %v10608 = vrot.slane %v8542, 2
    %v10609 = vrot.slane %v8543, 2
    %v10610 = vsel %vm1578, %v10608, %v10609
    %v10611 = vrot.slane %v8544, 2
    %v10612 = vsel %vm1578, %v10609, %v10611
    %v10613 = vrot.slane %v8545, 2
    %v10614 = vrot.slane %v8546, 2
    %v10615 = vsel %vm1578, %v10613, %v10614
    %v10616 = vrot.slane %v8547, 2
    %v10617 = vsel %vm1578, %v10614, %v10616
    %v10618 = vrot.slane %v8548, 2
    %v10619 = vrot.slane %v8549, 2
    %v10620 = vsel %vm1578, %v10618, %v10619
    %v10621 = vrot.slane %v8550, 2
    %v10622 = vsel %vm1578, %v10619, %v10621
    %v10623 = vrot.slane %v8551, 2
    %v10624 = vrot.slane %v8552, 2
    %v10625 = vsel %vm1578, %v10623, %v10624
    %v10626 = vrot.slane %v8553, 2
    %v10627 = vsel %vm1578, %v10624, %v10626
    %v10628 = vrot.slane %v8554, 2
    %v10629 = vrot.slane %v8555, 2
    %v10630 = vsel %vm1578, %v10628, %v10629
    %v10631 = vrot.slane %v8556, 2
    %v10632 = vsel %vm1578, %v10629, %v10631
    %v10649 = vrot.slane %v10605, 4
    %v10650 = vsel %vm120, %v10649, %v10595
    %v10651 = vrot.slane %v10595, 4
    %v10652 = vsel %vm120, %v10605, %v10651
    %v10654 = vunpack.c.l.s4 1983009808
    %v10655 = vunpack.c.0.s8 %v10654
    %v10656 = vperm.slane %v10650, %v10655
    %v10658 = vunpack.c.l.s4 1983009808
    %v10659 = vunpack.c.0.s8 %v10658
    %v10660 = vperm.slane %v10652, %v10659
    %v10661 = vrot.slane %v10610, 4
    %v10662 = vsel %vm120, %v10661, %v10600
    %v10663 = vrot.slane %v10600, 4
    %v10664 = vsel %vm120, %v10610, %v10663
    %v10666 = vunpack.c.l.s4 1983009808
    %v10667 = vunpack.c.0.s8 %v10666
    %v10668 = vperm.slane %v10662, %v10667
    %v10670 = vunpack.c.l.s4 1983009808
    %v10671 = vunpack.c.0.s8 %v10670
    %v10672 = vperm.slane %v10664, %v10671
    %v10673 = vrot.slane %v10625, 4
    %v10674 = vsel %vm120, %v10673, %v10615
    %v10675 = vrot.slane %v10615, 4
    %v10676 = vsel %vm120, %v10625, %v10675
    %v10678 = vunpack.c.l.s4 1983009808
    %v10679 = vunpack.c.0.s8 %v10678
    %v10680 = vperm.slane %v10674, %v10679
    %v10682 = vunpack.c.l.s4 1983009808
    %v10683 = vunpack.c.0.s8 %v10682
    %v10684 = vperm.slane %v10676, %v10683
    %v10685 = vrot.slane %v10630, 4
    %v10686 = vsel %vm120, %v10685, %v10620
    %v10687 = vrot.slane %v10620, 4
    %v10688 = vsel %vm120, %v10630, %v10687
    %v10690 = vunpack.c.l.s4 1983009808
    %v10691 = vunpack.c.0.s8 %v10690
    %v10692 = vperm.slane %v10686, %v10691
    %v10694 = vunpack.c.l.s4 1983009808
    %v10695 = vunpack.c.0.s8 %v10694
    %v10696 = vperm.slane %v10688, %v10695
    %v10697 = vrot.slane %v10668, 4
    %v10698 = vsel %vm120, %v10697, %v10656
    %v10699 = vrot.slane %v10656, 4
    %v10700 = vsel %vm120, %v10668, %v10699
    %v10702 = vunpack.c.l.s4 1934713408
    %v10703 = vunpack.c.0.s8 %v10702
    %v10704 = vperm.slane %v10698, %v10703
    %v10706 = vunpack.c.l.s4 1934713408
    %v10707 = vunpack.c.0.s8 %v10706
    %v10708 = vperm.slane %v10700, %v10707
    %v10709 = vrot.slane %v10672, 4
    %v10710 = vsel %vm120, %v10709, %v10660
    %v10711 = vrot.slane %v10660, 4
    %v10712 = vsel %vm120, %v10672, %v10711
    %v10714 = vunpack.c.l.s4 1934713408
    %v10715 = vunpack.c.0.s8 %v10714
    %v10716 = vperm.slane %v10710, %v10715
    %v10718 = vunpack.c.l.s4 1934713408
    %v10719 = vunpack.c.0.s8 %v10718
    %v10720 = vperm.slane %v10712, %v10719
    %v10721 = vrot.slane %v10692, 4
    %v10722 = vsel %vm120, %v10721, %v10680
    %v10723 = vrot.slane %v10680, 4
    %v10724 = vsel %vm120, %v10692, %v10723
    %v10726 = vunpack.c.l.s4 1934713408
    %v10727 = vunpack.c.0.s8 %v10726
    %v10728 = vperm.slane %v10722, %v10727
    %v10730 = vunpack.c.l.s4 1934713408
    %v10731 = vunpack.c.0.s8 %v10730
    %v10732 = vperm.slane %v10724, %v10731
    %v10733 = vrot.slane %v10696, 4
    %v10734 = vsel %vm120, %v10733, %v10684
    %v10735 = vrot.slane %v10684, 4
    %v10736 = vsel %vm120, %v10696, %v10735
    %v10738 = vunpack.c.l.s4 1934713408
    %v10739 = vunpack.c.0.s8 %v10738
    %v10740 = vperm.slane %v10734, %v10739
    %v10742 = vunpack.c.l.s4 1934713408
    %v10743 = vunpack.c.0.s8 %v10742
    %v10744 = vperm.slane %v10736, %v10743
    %v10745 = vrot.slane %v10728, 4
    %v10746 = vsel %vm120, %v10745, %v10704
    %v10747 = vrot.slane %v10704, 4
    %v10748 = vsel %vm120, %v10728, %v10747
    %v10749 = vrot.slane %v10732, 4
    %v10750 = vsel %vm120, %v10749, %v10708
    %v10751 = vrot.slane %v10708, 4
    %v10752 = vsel %vm120, %v10732, %v10751
    %v10753 = vrot.slane %v10740, 4
    %v10754 = vsel %vm120, %v10753, %v10716
    %v10755 = vrot.slane %v10716, 4
    %v10756 = vsel %vm120, %v10740, %v10755
    %v10757 = vrot.slane %v10744, 4
    %v10758 = vsel %vm120, %v10757, %v10720
    %v10759 = vrot.slane %v10720, 4
    %v10760 = vsel %vm120, %v10744, %v10759
    %v10761 = vrot.slane %v10607, 4
    %v10762 = vsel %vm120, %v10761, %v10597
    %v10763 = vrot.slane %v10597, 4
    %v10764 = vsel %vm120, %v10607, %v10763
    %v10766 = vunpack.c.l.s4 1983009808
    %v10767 = vunpack.c.0.s8 %v10766
    %v10768 = vperm.slane %v10762, %v10767
    %v10770 = vunpack.c.l.s4 1983009808
    %v10771 = vunpack.c.0.s8 %v10770
    %v10772 = vperm.slane %v10764, %v10771
    %v10773 = vrot.slane %v10612, 4
    %v10774 = vsel %vm120, %v10773, %v10602
    %v10775 = vrot.slane %v10602, 4
    %v10776 = vsel %vm120, %v10612, %v10775
    %v10778 = vunpack.c.l.s4 1983009808
    %v10779 = vunpack.c.0.s8 %v10778
    %v10780 = vperm.slane %v10774, %v10779
    %v10782 = vunpack.c.l.s4 1983009808
    %v10783 = vunpack.c.0.s8 %v10782
    %v10784 = vperm.slane %v10776, %v10783
    %v10785 = vrot.slane %v10627, 4
    %v10786 = vsel %vm120, %v10785, %v10617
    %v10787 = vrot.slane %v10617, 4
    %v10788 = vsel %vm120, %v10627, %v10787
    %v10790 = vunpack.c.l.s4 1983009808
    %v10791 = vunpack.c.0.s8 %v10790
    %v10792 = vperm.slane %v10786, %v10791
    %v10794 = vunpack.c.l.s4 1983009808
    %v10795 = vunpack.c.0.s8 %v10794
    %v10796 = vperm.slane %v10788, %v10795
    %v10797 = vrot.slane %v10632, 4
    %v10798 = vsel %vm120, %v10797, %v10622
    %v10799 = vrot.slane %v10622, 4
    %v10800 = vsel %vm120, %v10632, %v10799
    %v10802 = vunpack.c.l.s4 1983009808
    %v10803 = vunpack.c.0.s8 %v10802
    %v10804 = vperm.slane %v10798, %v10803
    %v10806 = vunpack.c.l.s4 1983009808
    %v10807 = vunpack.c.0.s8 %v10806
    %v10808 = vperm.slane %v10800, %v10807
    %v10809 = vrot.slane %v10780, 4
    %v10810 = vsel %vm120, %v10809, %v10768
    %v10811 = vrot.slane %v10768, 4
    %v10812 = vsel %vm120, %v10780, %v10811
    %v10814 = vunpack.c.l.s4 1934713408
    %v10815 = vunpack.c.0.s8 %v10814
    %v10816 = vperm.slane %v10810, %v10815
    %v10818 = vunpack.c.l.s4 1934713408
    %v10819 = vunpack.c.0.s8 %v10818
    %v10820 = vperm.slane %v10812, %v10819
    %v10821 = vrot.slane %v10784, 4
    %v10822 = vsel %vm120, %v10821, %v10772
    %v10823 = vrot.slane %v10772, 4
    %v10824 = vsel %vm120, %v10784, %v10823
    %v10826 = vunpack.c.l.s4 1934713408
    %v10827 = vunpack.c.0.s8 %v10826
    %v10828 = vperm.slane %v10822, %v10827
    %v10830 = vunpack.c.l.s4 1934713408
    %v10831 = vunpack.c.0.s8 %v10830
    %v10832 = vperm.slane %v10824, %v10831
    %v10833 = vrot.slane %v10804, 4
    %v10834 = vsel %vm120, %v10833, %v10792
    %v10835 = vrot.slane %v10792, 4
    %v10836 = vsel %vm120, %v10804, %v10835
    %v10838 = vunpack.c.l.s4 1934713408
    %v10839 = vunpack.c.0.s8 %v10838
    %v10840 = vperm.slane %v10834, %v10839
    %v10842 = vunpack.c.l.s4 1934713408
    %v10843 = vunpack.c.0.s8 %v10842
    %v10844 = vperm.slane %v10836, %v10843
    %v10845 = vrot.slane %v10808, 4
    %v10846 = vsel %vm120, %v10845, %v10796
    %v10847 = vrot.slane %v10796, 4
    %v10848 = vsel %vm120, %v10808, %v10847
    %v10850 = vunpack.c.l.s4 1934713408
    %v10851 = vunpack.c.0.s8 %v10850
    %v10852 = vperm.slane %v10846, %v10851
    %v10854 = vunpack.c.l.s4 1934713408
    %v10855 = vunpack.c.0.s8 %v10854
    %v10856 = vperm.slane %v10848, %v10855
    %v10857 = vrot.slane %v10840, 4
    %v10858 = vsel %vm120, %v10857, %v10816
    %v10859 = vrot.slane %v10816, 4
    %v10860 = vsel %vm120, %v10840, %v10859
    %v10861 = vrot.slane %v10844, 4
    %v10862 = vsel %vm120, %v10861, %v10820
    %v10863 = vrot.slane %v10820, 4
    %v10864 = vsel %vm120, %v10844, %v10863
    %v10865 = vrot.slane %v10852, 4
    %v10866 = vsel %vm120, %v10865, %v10828
    %v10867 = vrot.slane %v10828, 4
    %v10868 = vsel %vm120, %v10852, %v10867
    %v10869 = vrot.slane %v10856, 4
    %v10870 = vsel %vm120, %v10869, %v10832
    %v10871 = vrot.slane %v10832, 4
    %v10872 = vsel %vm120, %v10856, %v10871
    %10874 = vrot.lane.b32.xlu0 %v10748, 16
    %v10875 = vpop.permute.xlu0 %10874
    %10878 = vrot.lane.b32.xlu0 %v10750, 32
    %v10879 = vpop.permute.xlu0 %10878
    %10882 = vrot.lane.b32.xlu0 %v10752, 48
    %v10883 = vpop.permute.xlu0 %10882
    %10886 = vrot.lane.b32.xlu0 %v10754, 64
    %v10887 = vpop.permute.xlu0 %10886
    %10890 = vrot.lane.b32.xlu0 %v10756, 80
    %v10891 = vpop.permute.xlu0 %10890
    %10894 = vrot.lane.b32.xlu0 %v10758, 96
    %v10895 = vpop.permute.xlu0 %10894
    %10898 = vrot.lane.b32.xlu0 %v10760, 112
    %v10899 = vpop.permute.xlu0 %10898
    %10902 = vrot.lane.b32.xlu0 %v10860, 16
    %v10903 = vpop.permute.xlu0 %10902
    %10906 = vrot.lane.b32.xlu0 %v10862, 32
    %v10907 = vpop.permute.xlu0 %10906
    %10910 = vrot.lane.b32.xlu0 %v10864, 48
    %v10911 = vpop.permute.xlu0 %10910
    %10914 = vrot.lane.b32.xlu0 %v10866, 64
    %v10915 = vpop.permute.xlu0 %10914
    %10918 = vrot.lane.b32.xlu0 %v10868, 80
    %v10919 = vpop.permute.xlu0 %10918
    %10922 = vrot.lane.b32.xlu0 %v10870, 96
    %v10923 = vpop.permute.xlu0 %10922
    %10926 = vrot.lane.b32.xlu0 %v10872, 112
    %v10927 = vpop.permute.xlu0 %10926
    %v10929 = vsel %vm510, %v10746, %v10875
    %v10930 = vsel %vm512, %v10929, %v10879
    %v10931 = vsel %vm514, %v10930, %v10883
    %v10932 = vsel %vm516, %v10931, %v10887
    %v10933 = vsel %vm518, %v10932, %v10891
    %v10934 = vsel %vm520, %v10933, %v10895
    %v10935 = vsel %vm522, %v10934, %v10899
    %v10936 = vsel %vm510, %v10858, %v10903
    %v10937 = vsel %vm512, %v10936, %v10907
    %v10938 = vsel %vm514, %v10937, %v10911
    %v10939 = vsel %vm516, %v10938, %v10915
    %v10940 = vsel %vm518, %v10939, %v10919
    %v10941 = vsel %vm520, %v10940, %v10923
    %v10942 = vsel %vm522, %v10941, %v10927
    %10943 = vrot.lane.b32.xlu0 %v10595, 127
    %v10944 = vpop.permute.xlu0 %10943
    %10945 = vrot.lane.b32.xlu0 %v10597, 127
    %v10946 = vpop.permute.xlu0 %10945
    %10947 = vrot.lane.b32.xlu0 %v10600, 127
    %v10948 = vpop.permute.xlu0 %10947
    %10949 = vrot.lane.b32.xlu0 %v10602, 127
    %v10950 = vpop.permute.xlu0 %10949
    %10951 = vrot.lane.b32.xlu0 %v10605, 127
    %v10952 = vpop.permute.xlu0 %10951
    %10953 = vrot.lane.b32.xlu0 %v10607, 127
    %v10954 = vpop.permute.xlu0 %10953
    %10955 = vrot.lane.b32.xlu0 %v10610, 127
    %v10956 = vpop.permute.xlu0 %10955
    %10957 = vrot.lane.b32.xlu0 %v10612, 127
    %v10958 = vpop.permute.xlu0 %10957
    %10959 = vrot.lane.b32.xlu0 %v10615, 127
    %v10960 = vpop.permute.xlu0 %10959
    %10961 = vrot.lane.b32.xlu0 %v10617, 127
    %v10962 = vpop.permute.xlu0 %10961
    %10963 = vrot.lane.b32.xlu0 %v10620, 127
    %v10964 = vpop.permute.xlu0 %10963
    %10965 = vrot.lane.b32.xlu0 %v10622, 127
    %v10966 = vpop.permute.xlu0 %10965
    %10967 = vrot.lane.b32.xlu0 %v10625, 127
    %v10968 = vpop.permute.xlu0 %10967
    %10969 = vrot.lane.b32.xlu0 %v10627, 127
    %v10970 = vpop.permute.xlu0 %10969
    %10971 = vrot.lane.b32.xlu0 %v10630, 127
    %v10972 = vpop.permute.xlu0 %10971
    %10973 = vrot.lane.b32.xlu0 %v10632, 127
    %v10974 = vpop.permute.xlu0 %10973
    %v10991 = vrot.slane %v10952, 4
    %v10992 = vsel %vm120, %v10991, %v10944
    %v10993 = vrot.slane %v10944, 4
    %v10994 = vsel %vm120, %v10952, %v10993
    %v10996 = vunpack.c.l.s4 1983009808
    %v10997 = vunpack.c.0.s8 %v10996
    %v10998 = vperm.slane %v10992, %v10997
    %v11000 = vunpack.c.l.s4 1983009808
    %v11001 = vunpack.c.0.s8 %v11000
    %v11002 = vperm.slane %v10994, %v11001
    %v11003 = vrot.slane %v10956, 4
    %v11004 = vsel %vm120, %v11003, %v10948
    %v11005 = vrot.slane %v10948, 4
    %v11006 = vsel %vm120, %v10956, %v11005
    %v11008 = vunpack.c.l.s4 1983009808
    %v11009 = vunpack.c.0.s8 %v11008
    %v11010 = vperm.slane %v11004, %v11009
    %v11012 = vunpack.c.l.s4 1983009808
    %v11013 = vunpack.c.0.s8 %v11012
    %v11014 = vperm.slane %v11006, %v11013
    %v11015 = vrot.slane %v10968, 4
    %v11016 = vsel %vm120, %v11015, %v10960
    %v11017 = vrot.slane %v10960, 4
    %v11018 = vsel %vm120, %v10968, %v11017
    %v11020 = vunpack.c.l.s4 1983009808
    %v11021 = vunpack.c.0.s8 %v11020
    %v11022 = vperm.slane %v11016, %v11021
    %v11024 = vunpack.c.l.s4 1983009808
    %v11025 = vunpack.c.0.s8 %v11024
    %v11026 = vperm.slane %v11018, %v11025
    %v11027 = vrot.slane %v10972, 4
    %v11028 = vsel %vm120, %v11027, %v10964
    %v11029 = vrot.slane %v10964, 4
    %v11030 = vsel %vm120, %v10972, %v11029
    %v11032 = vunpack.c.l.s4 1983009808
    %v11033 = vunpack.c.0.s8 %v11032
    %v11034 = vperm.slane %v11028, %v11033
    %v11036 = vunpack.c.l.s4 1983009808
    %v11037 = vunpack.c.0.s8 %v11036
    %v11038 = vperm.slane %v11030, %v11037
    %v11039 = vrot.slane %v11010, 4
    %v11040 = vsel %vm120, %v11039, %v10998
    %v11041 = vrot.slane %v10998, 4
    %v11042 = vsel %vm120, %v11010, %v11041
    %v11044 = vunpack.c.l.s4 1934713408
    %v11045 = vunpack.c.0.s8 %v11044
    %v11046 = vperm.slane %v11040, %v11045
    %v11048 = vunpack.c.l.s4 1934713408
    %v11049 = vunpack.c.0.s8 %v11048
    %v11050 = vperm.slane %v11042, %v11049
    %v11051 = vrot.slane %v11014, 4
    %v11052 = vsel %vm120, %v11051, %v11002
    %v11053 = vrot.slane %v11002, 4
    %v11054 = vsel %vm120, %v11014, %v11053
    %v11056 = vunpack.c.l.s4 1934713408
    %v11057 = vunpack.c.0.s8 %v11056
    %v11058 = vperm.slane %v11052, %v11057
    %v11060 = vunpack.c.l.s4 1934713408
    %v11061 = vunpack.c.0.s8 %v11060
    %v11062 = vperm.slane %v11054, %v11061
    %v11063 = vrot.slane %v11034, 4
    %v11064 = vsel %vm120, %v11063, %v11022
    %v11065 = vrot.slane %v11022, 4
    %v11066 = vsel %vm120, %v11034, %v11065
    %v11068 = vunpack.c.l.s4 1934713408
    %v11069 = vunpack.c.0.s8 %v11068
    %v11070 = vperm.slane %v11064, %v11069
    %v11072 = vunpack.c.l.s4 1934713408
    %v11073 = vunpack.c.0.s8 %v11072
    %v11074 = vperm.slane %v11066, %v11073
    %v11075 = vrot.slane %v11038, 4
    %v11076 = vsel %vm120, %v11075, %v11026
    %v11077 = vrot.slane %v11026, 4
    %v11078 = vsel %vm120, %v11038, %v11077
    %v11080 = vunpack.c.l.s4 1934713408
    %v11081 = vunpack.c.0.s8 %v11080
    %v11082 = vperm.slane %v11076, %v11081
    %v11084 = vunpack.c.l.s4 1934713408
    %v11085 = vunpack.c.0.s8 %v11084
    %v11086 = vperm.slane %v11078, %v11085
    %v11087 = vrot.slane %v11070, 4
    %v11088 = vsel %vm120, %v11087, %v11046
    %v11089 = vrot.slane %v11046, 4
    %v11090 = vsel %vm120, %v11070, %v11089
    %v11091 = vrot.slane %v11074, 4
    %v11092 = vsel %vm120, %v11091, %v11050
    %v11093 = vrot.slane %v11050, 4
    %v11094 = vsel %vm120, %v11074, %v11093
    %v11095 = vrot.slane %v11082, 4
    %v11096 = vsel %vm120, %v11095, %v11058
    %v11097 = vrot.slane %v11058, 4
    %v11098 = vsel %vm120, %v11082, %v11097
    %v11099 = vrot.slane %v11086, 4
    %v11100 = vsel %vm120, %v11099, %v11062
    %v11101 = vrot.slane %v11062, 4
    %v11102 = vsel %vm120, %v11086, %v11101
    %v11103 = vrot.slane %v10954, 4
    %v11104 = vsel %vm120, %v11103, %v10946
    %v11105 = vrot.slane %v10946, 4
    %v11106 = vsel %vm120, %v10954, %v11105
    %v11108 = vunpack.c.l.s4 1983009808
    %v11109 = vunpack.c.0.s8 %v11108
    %v11110 = vperm.slane %v11104, %v11109
    %v11112 = vunpack.c.l.s4 1983009808
    %v11113 = vunpack.c.0.s8 %v11112
    %v11114 = vperm.slane %v11106, %v11113
    %v11115 = vrot.slane %v10958, 4
    %v11116 = vsel %vm120, %v11115, %v10950
    %v11117 = vrot.slane %v10950, 4
    %v11118 = vsel %vm120, %v10958, %v11117
    %v11120 = vunpack.c.l.s4 1983009808
    %v11121 = vunpack.c.0.s8 %v11120
    %v11122 = vperm.slane %v11116, %v11121
    %v11124 = vunpack.c.l.s4 1983009808
    %v11125 = vunpack.c.0.s8 %v11124
    %v11126 = vperm.slane %v11118, %v11125
    %v11127 = vrot.slane %v10970, 4
    %v11128 = vsel %vm120, %v11127, %v10962
    %v11129 = vrot.slane %v10962, 4
    %v11130 = vsel %vm120, %v10970, %v11129
    %v11132 = vunpack.c.l.s4 1983009808
    %v11133 = vunpack.c.0.s8 %v11132
    %v11134 = vperm.slane %v11128, %v11133
    %v11136 = vunpack.c.l.s4 1983009808
    %v11137 = vunpack.c.0.s8 %v11136
    %v11138 = vperm.slane %v11130, %v11137
    %v11139 = vrot.slane %v10974, 4
    %v11140 = vsel %vm120, %v11139, %v10966
    %v11141 = vrot.slane %v10966, 4
    %v11142 = vsel %vm120, %v10974, %v11141
    %v11144 = vunpack.c.l.s4 1983009808
    %v11145 = vunpack.c.0.s8 %v11144
    %v11146 = vperm.slane %v11140, %v11145
    %v11148 = vunpack.c.l.s4 1983009808
    %v11149 = vunpack.c.0.s8 %v11148
    %v11150 = vperm.slane %v11142, %v11149
    %v11151 = vrot.slane %v11122, 4
    %v11152 = vsel %vm120, %v11151, %v11110
    %v11153 = vrot.slane %v11110, 4
    %v11154 = vsel %vm120, %v11122, %v11153
    %v11156 = vunpack.c.l.s4 1934713408
    %v11157 = vunpack.c.0.s8 %v11156
    %v11158 = vperm.slane %v11152, %v11157
    %v11160 = vunpack.c.l.s4 1934713408
    %v11161 = vunpack.c.0.s8 %v11160
    %v11162 = vperm.slane %v11154, %v11161
    %v11163 = vrot.slane %v11126, 4
    %v11164 = vsel %vm120, %v11163, %v11114
    %v11165 = vrot.slane %v11114, 4
    %v11166 = vsel %vm120, %v11126, %v11165
    %v11168 = vunpack.c.l.s4 1934713408
    %v11169 = vunpack.c.0.s8 %v11168
    %v11170 = vperm.slane %v11164, %v11169
    %v11172 = vunpack.c.l.s4 1934713408
    %v11173 = vunpack.c.0.s8 %v11172
    %v11174 = vperm.slane %v11166, %v11173
    %v11175 = vrot.slane %v11146, 4
    %v11176 = vsel %vm120, %v11175, %v11134
    %v11177 = vrot.slane %v11134, 4
    %v11178 = vsel %vm120, %v11146, %v11177
    %v11180 = vunpack.c.l.s4 1934713408
    %v11181 = vunpack.c.0.s8 %v11180
    %v11182 = vperm.slane %v11176, %v11181
    %v11184 = vunpack.c.l.s4 1934713408
    %v11185 = vunpack.c.0.s8 %v11184
    %v11186 = vperm.slane %v11178, %v11185
    %v11187 = vrot.slane %v11150, 4
    %v11188 = vsel %vm120, %v11187, %v11138
    %v11189 = vrot.slane %v11138, 4
    %v11190 = vsel %vm120, %v11150, %v11189
    %v11192 = vunpack.c.l.s4 1934713408
    %v11193 = vunpack.c.0.s8 %v11192
    %v11194 = vperm.slane %v11188, %v11193
    %v11196 = vunpack.c.l.s4 1934713408
    %v11197 = vunpack.c.0.s8 %v11196
    %v11198 = vperm.slane %v11190, %v11197
    %v11199 = vrot.slane %v11182, 4
    %v11200 = vsel %vm120, %v11199, %v11158
    %v11201 = vrot.slane %v11158, 4
    %v11202 = vsel %vm120, %v11182, %v11201
    %v11203 = vrot.slane %v11186, 4
    %v11204 = vsel %vm120, %v11203, %v11162
    %v11205 = vrot.slane %v11162, 4
    %v11206 = vsel %vm120, %v11186, %v11205
    %v11207 = vrot.slane %v11194, 4
    %v11208 = vsel %vm120, %v11207, %v11170
    %v11209 = vrot.slane %v11170, 4
    %v11210 = vsel %vm120, %v11194, %v11209
    %v11211 = vrot.slane %v11198, 4
    %v11212 = vsel %vm120, %v11211, %v11174
    %v11213 = vrot.slane %v11174, 4
    %v11214 = vsel %vm120, %v11198, %v11213
    %11216 = vrot.lane.b32.xlu0 %v11090, 16
    %v11217 = vpop.permute.xlu0 %11216
    %11220 = vrot.lane.b32.xlu0 %v11092, 32
    %v11221 = vpop.permute.xlu0 %11220
    %11224 = vrot.lane.b32.xlu0 %v11094, 48
    %v11225 = vpop.permute.xlu0 %11224
    %11228 = vrot.lane.b32.xlu0 %v11096, 64
    %v11229 = vpop.permute.xlu0 %11228
    %11232 = vrot.lane.b32.xlu0 %v11098, 80
    %v11233 = vpop.permute.xlu0 %11232
    %11236 = vrot.lane.b32.xlu0 %v11100, 96
    %v11237 = vpop.permute.xlu0 %11236
    %11240 = vrot.lane.b32.xlu0 %v11102, 112
    %v11241 = vpop.permute.xlu0 %11240
    %11244 = vrot.lane.b32.xlu0 %v11202, 16
    %v11245 = vpop.permute.xlu0 %11244
    %11248 = vrot.lane.b32.xlu0 %v11204, 32
    %v11249 = vpop.permute.xlu0 %11248
    %11252 = vrot.lane.b32.xlu0 %v11206, 48
    %v11253 = vpop.permute.xlu0 %11252
    %11256 = vrot.lane.b32.xlu0 %v11208, 64
    %v11257 = vpop.permute.xlu0 %11256
    %11260 = vrot.lane.b32.xlu0 %v11210, 80
    %v11261 = vpop.permute.xlu0 %11260
    %11264 = vrot.lane.b32.xlu0 %v11212, 96
    %v11265 = vpop.permute.xlu0 %11264
    %11268 = vrot.lane.b32.xlu0 %v11214, 112
    %v11269 = vpop.permute.xlu0 %11268
    %v11271 = vsel %vm510, %v11088, %v11217
    %v11272 = vsel %vm512, %v11271, %v11221
    %v11273 = vsel %vm514, %v11272, %v11225
    %v11274 = vsel %vm516, %v11273, %v11229
    %v11275 = vsel %vm518, %v11274, %v11233
    %v11276 = vsel %vm520, %v11275, %v11237
    %v11277 = vsel %vm522, %v11276, %v11241
    %v11278 = vsel %vm510, %v11200, %v11245
    %v11279 = vsel %vm512, %v11278, %v11249
    %v11280 = vsel %vm514, %v11279, %v11253
    %v11281 = vsel %vm516, %v11280, %v11257
    %v11282 = vsel %vm518, %v11281, %v11261
    %v11283 = vsel %vm520, %v11282, %v11265
    %v11284 = vsel %vm522, %v11283, %v11269
    %11285 = vrot.lane.b32.xlu0 %v10595, 126
    %v11286 = vpop.permute.xlu0 %11285
    %11287 = vrot.lane.b32.xlu0 %v10597, 126
    %v11288 = vpop.permute.xlu0 %11287
    %11289 = vrot.lane.b32.xlu0 %v10600, 126
    %v11290 = vpop.permute.xlu0 %11289
    %11291 = vrot.lane.b32.xlu0 %v10602, 126
    %v11292 = vpop.permute.xlu0 %11291
    %11293 = vrot.lane.b32.xlu0 %v10605, 126
    %v11294 = vpop.permute.xlu0 %11293
    %11295 = vrot.lane.b32.xlu0 %v10607, 126
    %v11296 = vpop.permute.xlu0 %11295
    %11297 = vrot.lane.b32.xlu0 %v10610, 126
    %v11298 = vpop.permute.xlu0 %11297
    %11299 = vrot.lane.b32.xlu0 %v10612, 126
    %v11300 = vpop.permute.xlu0 %11299
    %11301 = vrot.lane.b32.xlu0 %v10615, 126
    %v11302 = vpop.permute.xlu0 %11301
    %11303 = vrot.lane.b32.xlu0 %v10617, 126
    %v11304 = vpop.permute.xlu0 %11303
    %11305 = vrot.lane.b32.xlu0 %v10620, 126
    %v11306 = vpop.permute.xlu0 %11305
    %11307 = vrot.lane.b32.xlu0 %v10622, 126
    %v11308 = vpop.permute.xlu0 %11307
    %11309 = vrot.lane.b32.xlu0 %v10625, 126
    %v11310 = vpop.permute.xlu0 %11309
    %11311 = vrot.lane.b32.xlu0 %v10627, 126
    %v11312 = vpop.permute.xlu0 %11311
    %11313 = vrot.lane.b32.xlu0 %v10630, 126
    %v11314 = vpop.permute.xlu0 %11313
    %11315 = vrot.lane.b32.xlu0 %v10632, 126
    %v11316 = vpop.permute.xlu0 %11315
    %v11333 = vrot.slane %v11294, 4
    %v11334 = vsel %vm120, %v11333, %v11286
    %v11335 = vrot.slane %v11286, 4
    %v11336 = vsel %vm120, %v11294, %v11335
    %v11338 = vunpack.c.l.s4 1983009808
    %v11339 = vunpack.c.0.s8 %v11338
    %v11340 = vperm.slane %v11334, %v11339
    %v11342 = vunpack.c.l.s4 1983009808
    %v11343 = vunpack.c.0.s8 %v11342
    %v11344 = vperm.slane %v11336, %v11343
    %v11345 = vrot.slane %v11298, 4
    %v11346 = vsel %vm120, %v11345, %v11290
    %v11347 = vrot.slane %v11290, 4
    %v11348 = vsel %vm120, %v11298, %v11347
    %v11350 = vunpack.c.l.s4 1983009808
    %v11351 = vunpack.c.0.s8 %v11350
    %v11352 = vperm.slane %v11346, %v11351
    %v11354 = vunpack.c.l.s4 1983009808
    %v11355 = vunpack.c.0.s8 %v11354
    %v11356 = vperm.slane %v11348, %v11355
    %v11357 = vrot.slane %v11310, 4
    %v11358 = vsel %vm120, %v11357, %v11302
    %v11359 = vrot.slane %v11302, 4
    %v11360 = vsel %vm120, %v11310, %v11359
    %v11362 = vunpack.c.l.s4 1983009808
    %v11363 = vunpack.c.0.s8 %v11362
    %v11364 = vperm.slane %v11358, %v11363
    %v11366 = vunpack.c.l.s4 1983009808
    %v11367 = vunpack.c.0.s8 %v11366
    %v11368 = vperm.slane %v11360, %v11367
    %v11369 = vrot.slane %v11314, 4
    %v11370 = vsel %vm120, %v11369, %v11306
    %v11371 = vrot.slane %v11306, 4
    %v11372 = vsel %vm120, %v11314, %v11371
    %v11374 = vunpack.c.l.s4 1983009808
    %v11375 = vunpack.c.0.s8 %v11374
    %v11376 = vperm.slane %v11370, %v11375
    %v11378 = vunpack.c.l.s4 1983009808
    %v11379 = vunpack.c.0.s8 %v11378
    %v11380 = vperm.slane %v11372, %v11379
    %v11381 = vrot.slane %v11352, 4
    %v11382 = vsel %vm120, %v11381, %v11340
    %v11383 = vrot.slane %v11340, 4
    %v11384 = vsel %vm120, %v11352, %v11383
    %v11386 = vunpack.c.l.s4 1934713408
    %v11387 = vunpack.c.0.s8 %v11386
    %v11388 = vperm.slane %v11382, %v11387
    %v11390 = vunpack.c.l.s4 1934713408
    %v11391 = vunpack.c.0.s8 %v11390
    %v11392 = vperm.slane %v11384, %v11391
    %v11393 = vrot.slane %v11356, 4
    %v11394 = vsel %vm120, %v11393, %v11344
    %v11395 = vrot.slane %v11344, 4
    %v11396 = vsel %vm120, %v11356, %v11395
    %v11398 = vunpack.c.l.s4 1934713408
    %v11399 = vunpack.c.0.s8 %v11398
    %v11400 = vperm.slane %v11394, %v11399
    %v11402 = vunpack.c.l.s4 1934713408
    %v11403 = vunpack.c.0.s8 %v11402
    %v11404 = vperm.slane %v11396, %v11403
    %v11405 = vrot.slane %v11376, 4
    %v11406 = vsel %vm120, %v11405, %v11364
    %v11407 = vrot.slane %v11364, 4
    %v11408 = vsel %vm120, %v11376, %v11407
    %v11410 = vunpack.c.l.s4 1934713408
    %v11411 = vunpack.c.0.s8 %v11410
    %v11412 = vperm.slane %v11406, %v11411
    %v11414 = vunpack.c.l.s4 1934713408
    %v11415 = vunpack.c.0.s8 %v11414
    %v11416 = vperm.slane %v11408, %v11415
    %v11417 = vrot.slane %v11380, 4
    %v11418 = vsel %vm120, %v11417, %v11368
    %v11419 = vrot.slane %v11368, 4
    %v11420 = vsel %vm120, %v11380, %v11419
    %v11422 = vunpack.c.l.s4 1934713408
    %v11423 = vunpack.c.0.s8 %v11422
    %v11424 = vperm.slane %v11418, %v11423
    %v11426 = vunpack.c.l.s4 1934713408
    %v11427 = vunpack.c.0.s8 %v11426
    %v11428 = vperm.slane %v11420, %v11427
    %v11429 = vrot.slane %v11412, 4
    %v11430 = vsel %vm120, %v11429, %v11388
    %v11431 = vrot.slane %v11388, 4
    %v11432 = vsel %vm120, %v11412, %v11431
    %v11433 = vrot.slane %v11416, 4
    %v11434 = vsel %vm120, %v11433, %v11392
    %v11435 = vrot.slane %v11392, 4
    %v11436 = vsel %vm120, %v11416, %v11435
    %v11437 = vrot.slane %v11424, 4
    %v11438 = vsel %vm120, %v11437, %v11400
    %v11439 = vrot.slane %v11400, 4
    %v11440 = vsel %vm120, %v11424, %v11439
    %v11441 = vrot.slane %v11428, 4
    %v11442 = vsel %vm120, %v11441, %v11404
    %v11443 = vrot.slane %v11404, 4
    %v11444 = vsel %vm120, %v11428, %v11443
    %v11445 = vrot.slane %v11296, 4
    %v11446 = vsel %vm120, %v11445, %v11288
    %v11447 = vrot.slane %v11288, 4
    %v11448 = vsel %vm120, %v11296, %v11447
    %v11450 = vunpack.c.l.s4 1983009808
    %v11451 = vunpack.c.0.s8 %v11450
    %v11452 = vperm.slane %v11446, %v11451
    %v11454 = vunpack.c.l.s4 1983009808
    %v11455 = vunpack.c.0.s8 %v11454
    %v11456 = vperm.slane %v11448, %v11455
    %v11457 = vrot.slane %v11300, 4
    %v11458 = vsel %vm120, %v11457, %v11292
    %v11459 = vrot.slane %v11292, 4
    %v11460 = vsel %vm120, %v11300, %v11459
    %v11462 = vunpack.c.l.s4 1983009808
    %v11463 = vunpack.c.0.s8 %v11462
    %v11464 = vperm.slane %v11458, %v11463
    %v11466 = vunpack.c.l.s4 1983009808
    %v11467 = vunpack.c.0.s8 %v11466
    %v11468 = vperm.slane %v11460, %v11467
    %v11469 = vrot.slane %v11312, 4
    %v11470 = vsel %vm120, %v11469, %v11304
    %v11471 = vrot.slane %v11304, 4
    %v11472 = vsel %vm120, %v11312, %v11471
    %v11474 = vunpack.c.l.s4 1983009808
    %v11475 = vunpack.c.0.s8 %v11474
    %v11476 = vperm.slane %v11470, %v11475
    %v11478 = vunpack.c.l.s4 1983009808
    %v11479 = vunpack.c.0.s8 %v11478
    %v11480 = vperm.slane %v11472, %v11479
    %v11481 = vrot.slane %v11316, 4
    %v11482 = vsel %vm120, %v11481, %v11308
    %v11483 = vrot.slane %v11308, 4
    %v11484 = vsel %vm120, %v11316, %v11483
    %v11486 = vunpack.c.l.s4 1983009808
    %v11487 = vunpack.c.0.s8 %v11486
    %v11488 = vperm.slane %v11482, %v11487
    %v11490 = vunpack.c.l.s4 1983009808
    %v11491 = vunpack.c.0.s8 %v11490
    %v11492 = vperm.slane %v11484, %v11491
    %v11493 = vrot.slane %v11464, 4
    %v11494 = vsel %vm120, %v11493, %v11452
    %v11495 = vrot.slane %v11452, 4
    %v11496 = vsel %vm120, %v11464, %v11495
    %v11498 = vunpack.c.l.s4 1934713408
    %v11499 = vunpack.c.0.s8 %v11498
    %v11500 = vperm.slane %v11494, %v11499
    %v11502 = vunpack.c.l.s4 1934713408
    %v11503 = vunpack.c.0.s8 %v11502
    %v11504 = vperm.slane %v11496, %v11503
    %v11505 = vrot.slane %v11468, 4
    %v11506 = vsel %vm120, %v11505, %v11456
    %v11507 = vrot.slane %v11456, 4
    %v11508 = vsel %vm120, %v11468, %v11507
    %v11510 = vunpack.c.l.s4 1934713408
    %v11511 = vunpack.c.0.s8 %v11510
    %v11512 = vperm.slane %v11506, %v11511
    %v11514 = vunpack.c.l.s4 1934713408
    %v11515 = vunpack.c.0.s8 %v11514
    %v11516 = vperm.slane %v11508, %v11515
    %v11517 = vrot.slane %v11488, 4
    %v11518 = vsel %vm120, %v11517, %v11476
    %v11519 = vrot.slane %v11476, 4
    %v11520 = vsel %vm120, %v11488, %v11519
    %v11522 = vunpack.c.l.s4 1934713408
    %v11523 = vunpack.c.0.s8 %v11522
    %v11524 = vperm.slane %v11518, %v11523
    %v11526 = vunpack.c.l.s4 1934713408
    %v11527 = vunpack.c.0.s8 %v11526
    %v11528 = vperm.slane %v11520, %v11527
    %v11529 = vrot.slane %v11492, 4
    %v11530 = vsel %vm120, %v11529, %v11480
    %v11531 = vrot.slane %v11480, 4
    %v11532 = vsel %vm120, %v11492, %v11531
    %v11534 = vunpack.c.l.s4 1934713408
    %v11535 = vunpack.c.0.s8 %v11534
    %v11536 = vperm.slane %v11530, %v11535
    %v11538 = vunpack.c.l.s4 1934713408
    %v11539 = vunpack.c.0.s8 %v11538
    %v11540 = vperm.slane %v11532, %v11539
    %v11541 = vrot.slane %v11524, 4
    %v11542 = vsel %vm120, %v11541, %v11500
    %v11543 = vrot.slane %v11500, 4
    %v11544 = vsel %vm120, %v11524, %v11543
    %v11545 = vrot.slane %v11528, 4
    %v11546 = vsel %vm120, %v11545, %v11504
    %v11547 = vrot.slane %v11504, 4
    %v11548 = vsel %vm120, %v11528, %v11547
    %v11549 = vrot.slane %v11536, 4
    %v11550 = vsel %vm120, %v11549, %v11512
    %v11551 = vrot.slane %v11512, 4
    %v11552 = vsel %vm120, %v11536, %v11551
    %v11553 = vrot.slane %v11540, 4
    %v11554 = vsel %vm120, %v11553, %v11516
    %v11555 = vrot.slane %v11516, 4
    %v11556 = vsel %vm120, %v11540, %v11555
    %11558 = vrot.lane.b32.xlu0 %v11432, 16
    %v11559 = vpop.permute.xlu0 %11558
    %11562 = vrot.lane.b32.xlu0 %v11434, 32
    %v11563 = vpop.permute.xlu0 %11562
    %11566 = vrot.lane.b32.xlu0 %v11436, 48
    %v11567 = vpop.permute.xlu0 %11566
    %11570 = vrot.lane.b32.xlu0 %v11438, 64
    %v11571 = vpop.permute.xlu0 %11570
    %11574 = vrot.lane.b32.xlu0 %v11440, 80
    %v11575 = vpop.permute.xlu0 %11574
    %11578 = vrot.lane.b32.xlu0 %v11442, 96
    %v11579 = vpop.permute.xlu0 %11578
    %11582 = vrot.lane.b32.xlu0 %v11444, 112
    %v11583 = vpop.permute.xlu0 %11582
    %11586 = vrot.lane.b32.xlu0 %v11544, 16
    %v11587 = vpop.permute.xlu0 %11586
    %11590 = vrot.lane.b32.xlu0 %v11546, 32
    %v11591 = vpop.permute.xlu0 %11590
    %11594 = vrot.lane.b32.xlu0 %v11548, 48
    %v11595 = vpop.permute.xlu0 %11594
    %11598 = vrot.lane.b32.xlu0 %v11550, 64
    %v11599 = vpop.permute.xlu0 %11598
    %11602 = vrot.lane.b32.xlu0 %v11552, 80
    %v11603 = vpop.permute.xlu0 %11602
    %11606 = vrot.lane.b32.xlu0 %v11554, 96
    %v11607 = vpop.permute.xlu0 %11606
    %11610 = vrot.lane.b32.xlu0 %v11556, 112
    %v11611 = vpop.permute.xlu0 %11610
    %v11613 = vsel %vm510, %v11430, %v11559
    %v11614 = vsel %vm512, %v11613, %v11563
    %v11615 = vsel %vm514, %v11614, %v11567
    %v11616 = vsel %vm516, %v11615, %v11571
    %v11617 = vsel %vm518, %v11616, %v11575
    %v11618 = vsel %vm520, %v11617, %v11579
    %v11619 = vsel %vm522, %v11618, %v11583
    %v11620 = vsel %vm510, %v11542, %v11587
    %v11621 = vsel %vm512, %v11620, %v11591
    %v11622 = vsel %vm514, %v11621, %v11595
    %v11623 = vsel %vm516, %v11622, %v11599
    %v11624 = vsel %vm518, %v11623, %v11603
    %v11625 = vsel %vm520, %v11624, %v11607
    %v11626 = vsel %vm522, %v11625, %v11611
    %v11627 = vld [vmem:[#allocation4] sm:$0xff]
    %v11628 = vld [vmem:[%s4] sm:$0xff]
    %11630 = vset.pattern.permute.xlu0 0
    %11631 = vperm.xlu0 %11630, %v11628
    %v11632 = vpop.permute.xlu0 %11631
    %v11635 = vsel %vm5840, %v11627, 0
    %11637 = vmatpush.msra.mxu0 0.0
    %11638 = vmatpush.msra.mxu0 0.0
    %11639 = vmatpush.msra.mxu0 0.0
    %11640 = vmatpush.msra.mxu0 0.0
    %11641 = vmatpush.msra.mxu0 0.0
    %11642 = vmatpush.msra.mxu0 0.0
    %11643 = vmatpush.msra.mxu0 0.0
    %11644 = vmatpush.msra.mxu0 %v11619
    %11645 = vmatpush.msra.mxu0 %v11277
    %11646 = vmatpush.msra.mxu0 %v10935
    %11647 = vmatpush.msra.mxu0 %v10585
    %11648 = vmatpush.msra.mxu0 %v10243
    %11649 = vmatpush.msra.mxu0 %v9901
    %11650 = vmatpush.msra.mxu0 %v9543
    %11651 = vmatpush.msra.mxu0 %v9201
    %11652 = vmatpush.msra.mxu0 %v8843
    %11653 = vmatmul.f32.gmra.mxu0 %v11635
    %v11654 = vpop.f32.mrf.mxu0
    %v11655 = vadd.f32 %v11632, %v11654
    %11656 = vdwg.mxu0
    %11657 = vmatpush.msra.mxu0 0.0
    %11658 = vmatpush.msra.mxu0 0.0
    %11659 = vmatpush.msra.mxu0 0.0
    %11660 = vmatpush.msra.mxu0 0.0
    %11661 = vmatpush.msra.mxu0 0.0
    %11662 = vmatpush.msra.mxu0 0.0
    %11663 = vmatpush.msra.mxu0 0.0
    %11664 = vmatpush.msra.mxu0 %v11626
    %11665 = vmatpush.msra.mxu0 %v11284
    %11666 = vmatpush.msra.mxu0 %v10942
    %11667 = vmatpush.msra.mxu0 %v10592
    %11668 = vmatpush.msra.mxu0 %v10250
    %11669 = vmatpush.msra.mxu0 %v9908
    %11670 = vmatpush.msra.mxu0 %v9550
    %11671 = vmatpush.msra.mxu0 %v9208
    %11672 = vmatpush.msra.mxu0 %v8850
    %11673 = vmatmul.f32.gmra.mxu0 %v11635
    %v11674 = vpop.f32.mrf.mxu0
    %v11675 = vadd.f32 %v11632, %v11674
    %11676 = vdwg.mxu0
    %v11677 = vadd.f32 %v11655, %v8129
    %v11678 = vadd.f32 %v11675, %v8149
    %s11679 = scalar_lea.vmem [#allocation9], 16
    %11680 = vst [vmem:[%s11679] sm:$0xff] %v11677
    %11681 = vst [vmem:[%s11679 + $0x8] sm:$0xff] %v11678
    // Predicated region
    $region38: #{tpu_custom_call.1} parent=1 // pred_check
      _
    $region39: #{tpu_custom_call.1} parent=1 // pred_check_branch
      %11683 = sbr.rel (0) target = $region41
    $region40: #{tpu_custom_call.1} parent=1 // pred_region
      %11685 = vsyncadd [#allocation6], 0
      %s11686 = sshll.u32 [#allocation9], 4
      %s11687 = int_to_ptr.vmem [resolvable:$true] %s11686
      %s11688 = sshll.u32 %s7, 4
      %s11689 = int_to_ptr.hbm [resolvable:$true] %s11688
      %11694 = dma.vmem_to_hbm [thread:$0]  %s11687, 512, %s11689, [#allocation6], 256, 256, 16
    $region41: #{tpu_custom_call.1} parent=1 // pred_fallthru
      _
    // Predicated region
    $region42: #{tpu_custom_call.1} parent=1 // pred_check
      _
    $region43: #{tpu_custom_call.1} parent=1 // pred_check_branch
      %11696 = sbr.rel (0) target = $region45
    $region44: #{tpu_custom_call.1} parent=1 // pred_region
      %11698 = dma.done [#allocation6], 512
    $region45: #{tpu_custom_call.1} parent=1 // pred_fallthru
      _
    %11699 = vsyncpa [#allocation5], 1
    %11700 = vsyncpa [#allocation8], 1
    %11701 = vsyncpa [#allocation6], 1

</llo_original>
